<compile_context>
chip_gen: v5e
topology: v5e:2x2
jax: 0.10.0
libtpu: 0.0.40
codegen_flags: <defaults>
</compile_context>

<pallas_src>
import functools
import math

import jax
import jax.numpy as jnp
import numpy as np
from jax import lax
from jax.experimental import pallas as pl
from jax.experimental.pallas import tpu as pltpu

# ---- module hyperparameters (defaults of TransformerPlanner) ----
N_TRACK = 10
N_WAYPOINTS = 3
D_MODEL = 64
NHEAD = 4
NUM_LAYERS = 2
D_FF = D_MODEL * 4
HEAD_DIM = D_MODEL // NHEAD
LN_EPS = 1e-5

# ---- packed-parameter row / slab indices (static) ----
VEC_ENC_W1X, VEC_ENC_W1Y, VEC_ENC_B1, VEC_ENC_B2 = 0, 1, 2, 3
VEC_SA_BQ, VEC_SA_BK, VEC_SA_BV, VEC_SA_BO = 4, 5, 6, 7          # layer-1 self-attn biases
VEC_N1W, VEC_N1B = 8, 9                                          # layer-1 norm1
VEC_PER_LAYER = 10                                               # start of per-layer rows
(PL_CA_BQ, PL_CA_BK, PL_CA_BV, PL_CA_BO,
 PL_N2W, PL_N2B, PL_N3W, PL_N3B, PL_FF_B2) = range(9)            # per-layer row offsets
N_VEC_ROWS = VEC_PER_LAYER + 9 * NUM_LAYERS

MAT_ENC_W2 = 0
MAT_SA_WQ, MAT_SA_WK, MAT_SA_WV, MAT_SA_WO = 1, 2, 3, 4          # layer-1 self-attn weights
MAT_PER_LAYER = 5                                                # per-layer: CA wq, wk, wv, wo
N_MATS = MAT_PER_LAYER + 4 * NUM_LAYERS


# ---------------- kernel-side helpers (traced inside the Pallas body) ----------------
def _layernorm(x, w, b):
    mu = jnp.mean(x, axis=-1, keepdims=True)
    var = jnp.mean((x - mu) ** 2, axis=-1, keepdims=True)
    return (x - mu) * lax.rsqrt(var + LN_EPS) * w + b


def _attention(q_in, kv_in, wq, wk, wv, bq, bk, bv, wo, bias, g, sq, sk, out_ref):
    """nn.MultiheadAttention (eval) on a batch-tiled slab.

    q_in: (TB*sq, d), kv_in: (TB*sk, d).  QKV projections run on the full slab; the
    score/softmax/PV part runs per group of `g` batch elements with a precomputed additive
    block-diagonal bias (0 / -1e30), so batch elements / padding rows never interact.
    The (TB*sq, d) result (before output bias) is written chunk-by-chunk into `out_ref`
    (VMEM scratch) to bound live ranges.
    """
    q = jnp.dot(q_in, wq, preferred_element_type=jnp.float32) + bq
    k = jnp.dot(kv_in, wk, preferred_element_type=jnp.float32) + bk
    v = jnp.dot(kv_in, wv, preferred_element_type=jnp.float32) + bv

    scale = 1.0 / math.sqrt(HEAD_DIM)
    cq, ck = g * sq, g * sk
    n_chunks = q_in.shape[0] // cq
    for c in range(n_chunks):
        qc = q[c * cq:(c + 1) * cq, :]
        kc = k[c * ck:(c + 1) * ck, :]
        vc = v[c * ck:(c + 1) * ck, :]
        acc = jnp.zeros((cq, D_MODEL), jnp.float32)
        for h in range(NHEAD):
            lo, hi = h * HEAD_DIM, (h + 1) * HEAD_DIM
            s = lax.dot_general(qc[:, lo:hi], kc[:, lo:hi], (((1,), (1,)), ((), ())),
                                preferred_element_type=jnp.float32) * scale + bias
            s = s - jnp.max(s, axis=-1, keepdims=True)
            p = jnp.exp(s)
            a = p / jnp.sum(p, axis=-1, keepdims=True)
            oh = jnp.dot(a, vc[:, lo:hi], preferred_element_type=jnp.float32)
            acc = acc + jnp.dot(oh, wo[lo:hi, :], preferred_element_type=jnp.float32)
        out_ref[c * cq:(c + 1) * cq, :] = acc


def planner_kernel(g,
                   tracks_ref, x0_ref, sa_bias_ref, ca_bias_ref,
                   vecs_ref, mats_ref, ffw1_ref, ffb1_ref, ffw2_ref,
                   outw_ref, outb_ref,
                   o_ref, attn_ref):
    def vrow(i):
        return vecs_ref[i:i + 1, :]

    # ---- track encoder: Linear(2,d) as two VPU broadcast mul-adds -> ReLU -> Linear(d,d) ----
    tr = tracks_ref[...]                                       # (tb*2*n_track, 2)
    h = jnp.maximum(tr[:, 0:1] * vrow(VEC_ENC_W1X)
                    + tr[:, 1:2] * vrow(VEC_ENC_W1Y)
                    + vrow(VEC_ENC_B1), 0.0)
    mem = jnp.dot(h, mats_ref[MAT_ENC_W2],
                  preferred_element_type=jnp.float32) + vrow(VEC_ENC_B2)

    # ---- decoder; layer-0 self-attention + norm1 already hoisted into x0 (batch-invariant) ----
    x = x0_ref[...]                                            # (tb*n_waypoints, d)
    for l in range(NUM_LAYERS):
        if l > 0:
            _attention(x, x,
                       mats_ref[MAT_SA_WQ], mats_ref[MAT_SA_WK], mats_ref[MAT_SA_WV],
                       vrow(VEC_SA_BQ), vrow(VEC_SA_BK), vrow(VEC_SA_BV),
                       mats_ref[MAT_SA_WO], sa_bias_ref[...],
                       g, N_WAYPOINTS, N_WAYPOINTS, attn_ref)
            x = _layernorm(x + attn_ref[...] + vrow(VEC_SA_BO), vrow(VEC_N1W), vrow(VEC_N1B))

        m0 = MAT_PER_LAYER + 4 * l
        v0 = VEC_PER_LAYER + 9 * l
        _attention(x, mem,
                   mats_ref[m0 + 0], mats_ref[m0 + 1], mats_ref[m0 + 2],
                   vrow(v0 + PL_CA_BQ), vrow(v0 + PL_CA_BK), vrow(v0 + PL_CA_BV),
                   mats_ref[m0 + 3], ca_bias_ref[...],
                   g, N_WAYPOINTS, 2 * N_TRACK, attn_ref)
        x = _layernorm(x + attn_ref[...] + vrow(v0 + PL_CA_BO),
                       vrow(v0 + PL_N2W), vrow(v0 + PL_N2B))

        hh = jnp.maximum(
            jnp.dot(x, ffw1_ref[l], preferred_element_type=jnp.float32)
            + ffb1_ref[l:l + 1, :], 0.0)
        ff = jnp.dot(hh, ffw2_ref[l], preferred_element_type=jnp.float32) + vrow(v0 + PL_FF_B2)
        x = _layernorm(x + ff, vrow(v0 + PL_N3W), vrow(v0 + PL_N3B))

    # ---- output projection, stored lane-major as (coord, tb*n_waypoints) ----
    out_t = lax.dot_general(outw_ref[...], x, (((1,), (1,)), ((), ())),
                            preferred_element_type=jnp.float32) + outb_ref[...]
    o_ref[0] = out_t


# ---------------- host-side helpers (plain JAX, used for the hoisted layer-0 block) ----------------
def _host_mha(q_in, kv_in, wq, wk, wv, bq, bk, bv, wo, bo):
    q = q_in @ wq + bq
    k = kv_in @ wk + bk
    v = kv_in @ wv + bv
    Sq, Sk = q.shape[0], k.shape[0]
    qh = q.reshape(Sq, NHEAD, HEAD_DIM)
    kh = k.reshape(Sk, NHEAD, HEAD_DIM)
    vh = v.reshape(Sk, NHEAD, HEAD_DIM)
    s = jnp.einsum("qhd,khd->hqk", qh, kh) / math.sqrt(HEAD_DIM)
    a = jax.nn.softmax(s, axis=-1)
    o = jnp.einsum("hqk,khd->qhd", a, vh).reshape(Sq, D_MODEL)
    return o @ wo + bo


def _host_layernorm(x, w, b):
    mu = jnp.mean(x, -1, keepdims=True)
    var = jnp.mean((x - mu) ** 2, -1, keepdims=True)
    return (x - mu) / jnp.sqrt(var + LN_EPS) * w + b


def _round_up(x, m):
    return ((x + m - 1) // m) * m


def _block_diag_bias(g, sq, sk):
    r = np.arange(g * sq) // sq
    c = np.arange(g * sk) // sk
    return jnp.asarray(np.where(r[:, None] == c[None, :], 0.0, -1e30).astype(np.float32))


# ---------------- wrapper ----------------
def transformer_planner_forward(track_left, track_right, params, tb=64, g=8):
    B = track_left.shape[0]
    d = D_MODEL
    p = params

    tb = min(_round_up(tb, 8), _round_up(B, 8))
    g = max(1, min(g, tb))
    if tb % g != 0:
        g = math.gcd(g, tb)
    n_tiles = _round_up(B, tb) // tb
    B_pad = n_tiles * tb

    # ---- layout plumbing in the wrapper (free relative to the kernel) ----
    tracks = jnp.concatenate([track_left, track_right], axis=1)          # (B, 2*n_track, 2)
    if B_pad != B:
        tracks = jnp.pad(tracks, ((0, B_pad - B), (0, 0), (0, 0)))
    tracks_flat = tracks.reshape(B_pad * 2 * N_TRACK, 2)

    # pre-split fused QKV into lane-clean (d, d) blocks
    def split_qkv(wqkv, bqkv):
        return (wqkv[:, :, 0:d], wqkv[:, :, d:2 * d], wqkv[:, :, 2 * d:3 * d],
                bqkv[:, :, 0:d], bqkv[:, :, d:2 * d], bqkv[:, :, 2 * d:3 * d])

    sa_wq, sa_wk, sa_wv, sa_bq, sa_bk, sa_bv = split_qkv(p["sa_wqkv"], p["sa_bqkv"])
    ca_wq, ca_wk, ca_wv, ca_bq, ca_bk, ca_bv = split_qkv(p["ca_wqkv"], p["ca_bqkv"])

    # ---- hoist the batch-invariant layer-0 self-attention + norm1 (identical for all elements) ----
    x0 = p["query_embed"]                                                # (n_waypoints, d)
    sa0 = _host_mha(x0, x0, sa_wq[0], sa_wk[0], sa_wv[0],
                    sa_bq[0], sa_bk[0], sa_bv[0], p["sa_wo"][0], p["sa_bo"][0])
    x1 = _host_layernorm(x0 + sa0, p["n1w"][0], p["n1b"][0])
    x1_tiled = jnp.tile(x1, (tb, 1))                                     # (tb*n_waypoints, d)

    # ---- pack the (1, d) vectors into one slab (static row indices in the kernel) ----
    vec_rows = [
        p["enc_w1"][0:1, :], p["enc_w1"][1:2, :], p["enc_b1"], p["enc_b2"],
        sa_bq[1], sa_bk[1], sa_bv[1], p["sa_bo"][1],
        p["n1w"][1], p["n1b"][1],
    ]
    for l in range(NUM_LAYERS):
        vec_rows += [ca_bq[l], ca_bk[l], ca_bv[l], p["ca_bo"][l],
                     p["n2w"][l], p["n2b"][l], p["n3w"][l], p["n3b"][l],
                     p["ff_b2"][l]]
    vec_pack = jnp.concatenate(vec_rows, axis=0)                         # (N_VEC_ROWS, d)
    assert vec_pack.shape == (N_VEC_ROWS, d)

    # ---- pack the (d, d) matrices into one slab ----
    mat_list = [p["enc_w2"], sa_wq[1], sa_wk[1], sa_wv[1], p["sa_wo"][1]]
    for l in range(NUM_LAYERS):
        mat_list += [ca_wq[l], ca_wk[l], ca_wv[l], p["ca_wo"][l]]
    mat_pack = jnp.stack(mat_list, axis=0)                               # (N_MATS, d, d)
    assert mat_pack.shape == (N_MATS, d, d)

    ff_b1 = p["ff_b1"][:, 0, :]                                          # (L, d_ff)
    out_wT = p["out_w"].T                                                # (2, d)
    out_bT = p["out_b"].T                                                # (2, 1)

    # precomputed additive block-diagonal biases (per attention chunk of g batch elements)
    sa_bias = _block_diag_bias(g, N_WAYPOINTS, N_WAYPOINTS)
    ca_bias = _block_diag_bias(g, N_WAYPOINTS, 2 * N_TRACK)

    ordered = [x1_tiled, sa_bias, ca_bias, vec_pack, mat_pack,
               p["ff_w1"], ff_b1, p["ff_w2"], out_wT, out_bT]

    def full_spec(a):
        nd = a.ndim
        return pl.BlockSpec(a.shape, lambda b, _nd=nd: (0,) * _nd)

    in_specs = [pl.BlockSpec((tb * 2 * N_TRACK, 2), lambda b: (b, 0))] + [
        full_spec(a) for a in ordered
    ]
    out_specs = pl.BlockSpec((1, 2, tb * N_WAYPOINTS), lambda b: (b, 0, 0))

    # ---- advisory cost estimate ----
    mq, mk = tb * N_WAYPOINTS, tb * 2 * N_TRACK
    matmul_flops = 2 * (
        mk * 2 * d + mk * d * d                                          # track encoder
        + NUM_LAYERS * ((mq + 2 * mk) * d * d + mq * d * d)              # cross-attn projections
        + (NUM_LAYERS - 1) * 4 * mq * d * d                              # layer-1 self-attn projections
        + NUM_LAYERS * 2 * mq * (g * 2 * N_TRACK) * d                    # cross-attn scores + PV
        + (NUM_LAYERS - 1) * 2 * mq * (g * N_WAYPOINTS) * d              # self-attn scores + PV
        + NUM_LAYERS * 2 * mq * d * D_FF                                 # FFN
        + mq * d * 2                                                     # output projection
    )
    transc = NHEAD * (NUM_LAYERS * mq * g * 2 * N_TRACK
                      + (NUM_LAYERS - 1) * mq * g * N_WAYPOINTS)
    bytes_per_tile = 4 * (tb * 2 * N_TRACK * 2 + 2 * tb * N_WAYPOINTS)
    bytes_weights = 4 * sum(int(np.prod(a.shape)) for a in ordered)
    cost = pl.CostEstimate(flops=int(n_tiles * matmul_flops),
                           transcendentals=int(n_tiles * transc),
                           bytes_accessed=int(n_tiles * bytes_per_tile + bytes_weights))

    out_t = pl.pallas_call(
        functools.partial(planner_kernel, g),
        out_shape=jax.ShapeDtypeStruct((n_tiles, 2, tb * N_WAYPOINTS), jnp.float32),
        grid=(n_tiles,),
        in_specs=in_specs,
        out_specs=out_specs,
        scratch_shapes=[pltpu.VMEM((tb * N_WAYPOINTS, D_MODEL), jnp.float32)],
        compiler_params=pltpu.CompilerParams(dimension_semantics=("parallel",)),
        cost_estimate=cost,
    )(tracks_flat, *ordered)

    # (n_tiles, 2, tb*n_waypoints) lane-major -> (B, n_waypoints, 2); wrapper-side relayout is cheap
    out = out_t.transpose(0, 2, 1).reshape(B_pad, N_WAYPOINTS, 2)
    return out[:B]


# ---------------- deterministic parameter construction (synthetic, no checkpoint) ----------------
def init_params(key):
    keys = jax.random.split(key, 32)
    it = iter(keys)

    def w(shape, scale=0.1):
        return jax.random.normal(next(it), shape, jnp.float32) * scale

    return dict(
        query_embed=w((N_WAYPOINTS, D_MODEL), 1.0),
        enc_w1=w((2, D_MODEL)), enc_b1=w((1, D_MODEL), 0.05),
        enc_w2=w((D_MODEL, D_MODEL)), enc_b2=w((1, D_MODEL), 0.05),
        sa_wqkv=w((NUM_LAYERS, D_MODEL, 3 * D_MODEL)),
        sa_bqkv=w((NUM_LAYERS, 1, 3 * D_MODEL), 0.05),
        sa_wo=w((NUM_LAYERS, D_MODEL, D_MODEL)),
        sa_bo=w((NUM_LAYERS, 1, D_MODEL), 0.05),
        ca_wqkv=w((NUM_LAYERS, D_MODEL, 3 * D_MODEL)),
        ca_bqkv=w((NUM_LAYERS, 1, 3 * D_MODEL), 0.05),
        ca_wo=w((NUM_LAYERS, D_MODEL, D_MODEL)),
        ca_bo=w((NUM_LAYERS, 1, D_MODEL), 0.05),
        ff_w1=w((NUM_LAYERS, D_MODEL, D_FF)),
        ff_b1=w((NUM_LAYERS, 1, D_FF), 0.05),
        ff_w2=w((NUM_LAYERS, D_FF, D_MODEL)),
        ff_b2=w((NUM_LAYERS, 1, D_MODEL), 0.05),
        n1w=jnp.ones((NUM_LAYERS, 1, D_MODEL), jnp.float32),
        n1b=jnp.zeros((NUM_LAYERS, 1, D_MODEL), jnp.float32),
        n2w=jnp.ones((NUM_LAYERS, 1, D_MODEL), jnp.float32),
        n2b=jnp.zeros((NUM_LAYERS, 1, D_MODEL), jnp.float32),
        n3w=jnp.ones((NUM_LAYERS, 1, D_MODEL), jnp.float32),
        n3b=jnp.zeros((NUM_LAYERS, 1, D_MODEL), jnp.float32),
        out_w=w((D_MODEL, 2)),
        out_b=w((1, 2), 0.05),
    )


# ---------------- pure-JAX reference (independent, vectorized over batch) ----------------
def reference_forward(track_left, track_right, p):
    def lin(x, w, b):
        return jnp.einsum("...i,io->...o", x, w) + b

    def enc(x):
        return lin(jnp.maximum(lin(x, p["enc_w1"], p["enc_b1"][0]), 0.0),
                   p["enc_w2"], p["enc_b2"][0])

    def ln(x, w, b):
        mu = jnp.mean(x, -1, keepdims=True)
        var = jnp.mean((x - mu) ** 2, -1, keepdims=True)
        return (x - mu) / jnp.sqrt(var + LN_EPS) * w[0] + b[0]

    def mha(q_in, kv_in, wqkv, bqkv, wo, bo):
        d = D_MODEL
        q = lin(q_in, wqkv[:, :d], bqkv[0, :d])
        k = lin(kv_in, wqkv[:, d:2 * d], bqkv[0, d:2 * d])
        v = lin(kv_in, wqkv[:, 2 * d:], bqkv[0, 2 * d:])
        Bq, Sq, _ = q.shape
        Sk = k.shape[1]
        q = q.reshape(Bq, Sq, NHEAD, HEAD_DIM)
        k = k.reshape(Bq, Sk, NHEAD, HEAD_DIM)
        v = v.reshape(Bq, Sk, NHEAD, HEAD_DIM)
        s = jnp.einsum("bqhd,bkhd->bhqk", q, k) / math.sqrt(HEAD_DIM)
        a = jax.nn.softmax(s, axis=-1)
        o = jnp.einsum("bhqk,bkhd->bqhd", a, v).reshape(Bq, Sq, d)
        return lin(o, wo, bo[0])

    mem = jnp.concatenate([enc(track_left), enc(track_right)], axis=1)
    B = track_left.shape[0]
    x = jnp.broadcast_to(p["query_embed"][None], (B, N_WAYPOINTS, D_MODEL))
    for l in range(NUM_LAYERS):
        x = ln(x + mha(x, x, p["sa_wqkv"][l], p["sa_bqkv"][l], p["sa_wo"][l], p["sa_bo"][l]),
               p["n1w"][l], p["n1b"][l])
        x = ln(x + mha(x, mem, p["ca_wqkv"][l], p["ca_bqkv"][l], p["ca_wo"][l], p["ca_bo"][l]),
               p["n2w"][l], p["n2b"][l])
        h = jnp.maximum(lin(x, p["ff_w1"][l], p["ff_b1"][l][0]), 0.0)
        x = ln(x + lin(h, p["ff_w2"][l], p["ff_b2"][l][0]), p["n3w"][l], p["n3b"][l])
    return lin(x, p["out_w"], p["out_b"][0])


if __name__ == "__main__":
    key = jax.random.PRNGKey(0)
    kp, k1, k2 = jax.random.split(key, 3)
    params = init_params(kp)

    B = 2
    track_left = jax.random.normal(k1, (B, N_TRACK, 2), jnp.float32)
    track_right = jax.random.normal(k2, (B, N_TRACK, 2), jnp.float32)

    out = transformer_planner_forward(track_left, track_right, params, tb=64, g=8)
    out = jax.block_until_ready(out)

    assert out.shape == (B, N_WAYPOINTS, 2)
    ref = reference_forward(track_left, track_right, params)
    np.testing.assert_allclose(np.asarray(out), np.asarray(ref), rtol=1e-4, atol=1e-4)

    print("KERNEL_OK")
</pallas_src>

<mosaic_0001>
module attributes {stable_mosaic.version = 11 : i64} {
  func.func @planner_kernel(%arg0: i32, %arg1: memref<160x2xf32, #tpu.memory_space<vmem>>, %arg2: memref<24x64xf32, #tpu.memory_space<vmem>>, %arg3: memref<24x24xf32, #tpu.memory_space<vmem>>, %arg4: memref<24x160xf32, #tpu.memory_space<vmem>>, %arg5: memref<28x64xf32, #tpu.memory_space<vmem>>, %arg6: memref<13x64x64xf32, #tpu.memory_space<vmem>>, %arg7: memref<2x64x256xf32, #tpu.memory_space<vmem>>, %arg8: memref<2x256xf32, #tpu.memory_space<vmem>>, %arg9: memref<2x256x64xf32, #tpu.memory_space<vmem>>, %arg10: memref<2x64xf32, #tpu.memory_space<vmem>>, %arg11: memref<2x1xf32, #tpu.memory_space<vmem>>, %arg12: memref<1x2x24xf32, #tpu.memory_space<vmem>>, %arg13: memref<24x64xf32, #tpu.memory_space<vmem>>) attributes {dimension_semantics = [#tpu.dimension_semantics<parallel>], iteration_bounds = array<i64: 1>, scalar_prefetch = 0 : i64, scratch_operands = 1 : i64, tpu.core_type = #tpu.core_type<tc>, window_params = [{transform_indices = @transform_0, window_bounds = array<i64: 160, 2>}, {pipeline_mode = #tpu.pipeline_mode<synchronous>, transform_indices = @transform_1, window_bounds = array<i64: 24, 64>}, {pipeline_mode = #tpu.pipeline_mode<synchronous>, transform_indices = @transform_2, window_bounds = array<i64: 24, 24>}, {pipeline_mode = #tpu.pipeline_mode<synchronous>, transform_indices = @transform_3, window_bounds = array<i64: 24, 160>}, {pipeline_mode = #tpu.pipeline_mode<synchronous>, transform_indices = @transform_4, window_bounds = array<i64: 28, 64>}, {pipeline_mode = #tpu.pipeline_mode<synchronous>, transform_indices = @transform_5, window_bounds = array<i64: 13, 64, 64>}, {pipeline_mode = #tpu.pipeline_mode<synchronous>, transform_indices = @transform_6, window_bounds = array<i64: 2, 64, 256>}, {pipeline_mode = #tpu.pipeline_mode<synchronous>, transform_indices = @transform_7, window_bounds = array<i64: 2, 256>}, {pipeline_mode = #tpu.pipeline_mode<synchronous>, transform_indices = @transform_8, window_bounds = array<i64: 2, 256, 64>}, {pipeline_mode = #tpu.pipeline_mode<synchronous>, transform_indices = @transform_9, window_bounds = array<i64: 2, 64>}, {pipeline_mode = #tpu.pipeline_mode<synchronous>, transform_indices = @transform_10, window_bounds = array<i64: 2, 1>}, {transform_indices = @transform_11, window_bounds = array<i64: 1, 2, 24>}]} {
    %c0 = arith.constant 0 : index
    %c0_0 = arith.constant 0 : index
    %0 = vector.load %arg1[%c0, %c0_0] : memref<160x2xf32, #tpu.memory_space<vmem>>, vector<160x2xf32>
    %1 = vector.extract_strided_slice %0 {offsets = [0, 0], sizes = [160, 1], strides = [1, 1]} : vector<160x2xf32> to vector<160x1xf32>
    %c0_1 = arith.constant 0 : index
    %c0_2 = arith.constant 0 : index
    %2 = vector.load %arg5[%c0_1, %c0_2] : memref<28x64xf32, #tpu.memory_space<vmem>>, vector<1x64xf32>
    %3 = vector.broadcast %1 : vector<160x1xf32> to vector<160x64xf32>
    %4 = vector.broadcast %2 : vector<1x64xf32> to vector<160x64xf32>
    %5 = arith.mulf %3, %4 : vector<160x64xf32>
    %6 = vector.extract_strided_slice %0 {offsets = [0, 1], sizes = [160, 1], strides = [1, 1]} : vector<160x2xf32> to vector<160x1xf32>
    %c1 = arith.constant 1 : index
    %c0_3 = arith.constant 0 : index
    %7 = vector.load %arg5[%c1, %c0_3] : memref<28x64xf32, #tpu.memory_space<vmem>>, vector<1x64xf32>
    %8 = vector.broadcast %6 : vector<160x1xf32> to vector<160x64xf32>
    %9 = vector.broadcast %7 : vector<1x64xf32> to vector<160x64xf32>
    %10 = arith.mulf %8, %9 : vector<160x64xf32>
    %11 = arith.addf %5, %10 : vector<160x64xf32>
    %c2 = arith.constant 2 : index
    %c0_4 = arith.constant 0 : index
    %12 = vector.load %arg5[%c2, %c0_4] : memref<28x64xf32, #tpu.memory_space<vmem>>, vector<1x64xf32>
    %13 = vector.broadcast %12 : vector<1x64xf32> to vector<160x64xf32>
    %14 = arith.addf %11, %13 : vector<160x64xf32>
    %cst = arith.constant 0.000000e+00 : f32
    %15 = vector.broadcast %cst : f32 to vector<160x64xf32>
    %16 = arith.maximumf %14, %15 : vector<160x64xf32>
    %c0_5 = arith.constant 0 : index
    %c0_6 = arith.constant 0 : index
    %c0_7 = arith.constant 0 : index
    %17 = vector.load %arg6[%c0_5, %c0_6, %c0_7] : memref<13x64x64xf32, #tpu.memory_space<vmem>>, vector<1x64x64xf32>
    %18 = vector.shape_cast %17 : vector<1x64x64xf32> to vector<64x64xf32>
    %cst_8 = arith.constant dense<0.000000e+00> : vector<160x64xf32>
    %19 = tpu.matmul %16, %18, %cst_8 {dimension_numbers = #tpu.dot_dimension_numbers<[1], [0], [0], [1], [0, 0, 1, 1], [], []>} : vector<160x64xf32>, vector<64x64xf32>, vector<160x64xf32> -> vector<160x64xf32>
    %c3 = arith.constant 3 : index
    %c0_9 = arith.constant 0 : index
    %20 = vector.load %arg5[%c3, %c0_9] : memref<28x64xf32, #tpu.memory_space<vmem>>, vector<1x64xf32>
    %21 = vector.broadcast %20 : vector<1x64xf32> to vector<160x64xf32>
    %22 = arith.addf %19, %21 : vector<160x64xf32>
    %c0_10 = arith.constant 0 : index
    %c0_11 = arith.constant 0 : index
    %23 = vector.load %arg2[%c0_10, %c0_11] : memref<24x64xf32, #tpu.memory_space<vmem>>, vector<24x64xf32>
    %c5 = arith.constant 5 : index
    %c0_12 = arith.constant 0 : index
    %c0_13 = arith.constant 0 : index
    %24 = vector.load %arg6[%c5, %c0_12, %c0_13] : memref<13x64x64xf32, #tpu.memory_space<vmem>>, vector<1x64x64xf32>
    %25 = vector.shape_cast %24 : vector<1x64x64xf32> to vector<64x64xf32>
    %c6 = arith.constant 6 : index
    %c0_14 = arith.constant 0 : index
    %c0_15 = arith.constant 0 : index
    %26 = vector.load %arg6[%c6, %c0_14, %c0_15] : memref<13x64x64xf32, #tpu.memory_space<vmem>>, vector<1x64x64xf32>
    %27 = vector.shape_cast %26 : vector<1x64x64xf32> to vector<64x64xf32>
    %c7 = arith.constant 7 : index
    %c0_16 = arith.constant 0 : index
    %c0_17 = arith.constant 0 : index
    %28 = vector.load %arg6[%c7, %c0_16, %c0_17] : memref<13x64x64xf32, #tpu.memory_space<vmem>>, vector<1x64x64xf32>
    %29 = vector.shape_cast %28 : vector<1x64x64xf32> to vector<64x64xf32>
    %c10 = arith.constant 10 : index
    %c0_18 = arith.constant 0 : index
    %30 = vector.load %arg5[%c10, %c0_18] : memref<28x64xf32, #tpu.memory_space<vmem>>, vector<1x64xf32>
    %c11 = arith.constant 11 : index
    %c0_19 = arith.constant 0 : index
    %31 = vector.load %arg5[%c11, %c0_19] : memref<28x64xf32, #tpu.memory_space<vmem>>, vector<1x64xf32>
    %c12 = arith.constant 12 : index
    %c0_20 = arith.constant 0 : index
    %32 = vector.load %arg5[%c12, %c0_20] : memref<28x64xf32, #tpu.memory_space<vmem>>, vector<1x64xf32>
    %c8 = arith.constant 8 : index
    %c0_21 = arith.constant 0 : index
    %c0_22 = arith.constant 0 : index
    %33 = vector.load %arg6[%c8, %c0_21, %c0_22] : memref<13x64x64xf32, #tpu.memory_space<vmem>>, vector<1x64x64xf32>
    %34 = vector.shape_cast %33 : vector<1x64x64xf32> to vector<64x64xf32>
    %c0_23 = arith.constant 0 : index
    %c0_24 = arith.constant 0 : index
    %35 = vector.load %arg4[%c0_23, %c0_24] : memref<24x160xf32, #tpu.memory_space<vmem>>, vector<24x160xf32>
    %cst_25 = arith.constant dense<0.000000e+00> : vector<24x64xf32>
    %36 = tpu.matmul %23, %25, %cst_25 {dimension_numbers = #tpu.dot_dimension_numbers<[1], [0], [0], [1], [0, 0, 1, 1], [], []>} : vector<24x64xf32>, vector<64x64xf32>, vector<24x64xf32> -> vector<24x64xf32>
    %37 = vector.broadcast %30 : vector<1x64xf32> to vector<24x64xf32>
    %38 = arith.addf %36, %37 : vector<24x64xf32>
    %cst_26 = arith.constant dense<0.000000e+00> : vector<160x64xf32>
    %39 = tpu.matmul %22, %27, %cst_26 {dimension_numbers = #tpu.dot_dimension_numbers<[1], [0], [0], [1], [0, 0, 1, 1], [], []>} : vector<160x64xf32>, vector<64x64xf32>, vector<160x64xf32> -> vector<160x64xf32>
    %40 = vector.broadcast %31 : vector<1x64xf32> to vector<160x64xf32>
    %41 = arith.addf %39, %40 : vector<160x64xf32>
    %cst_27 = arith.constant dense<0.000000e+00> : vector<160x64xf32>
    %42 = tpu.matmul %22, %29, %cst_27 {dimension_numbers = #tpu.dot_dimension_numbers<[1], [0], [0], [1], [0, 0, 1, 1], [], []>} : vector<160x64xf32>, vector<64x64xf32>, vector<160x64xf32> -> vector<160x64xf32>
    %43 = vector.broadcast %32 : vector<1x64xf32> to vector<160x64xf32>
    %44 = arith.addf %42, %43 : vector<160x64xf32>
    %cst_28 = arith.constant 0.000000e+00 : f32
    %45 = vector.broadcast %cst_28 : f32 to vector<24x64xf32>
    %46 = vector.extract_strided_slice %38 {offsets = [0, 0], sizes = [24, 16], strides = [1, 1]} : vector<24x64xf32> to vector<24x16xf32>
    %47 = vector.extract_strided_slice %41 {offsets = [0, 0], sizes = [160, 16], strides = [1, 1]} : vector<160x64xf32> to vector<160x16xf32>
    %cst_29 = arith.constant dense<0.000000e+00> : vector<24x160xf32>
    %48 = tpu.matmul %46, %47, %cst_29 {dimension_numbers = #tpu.dot_dimension_numbers<[1], [1], [0], [0], [0, 0, 1, 0], [], []>} : vector<24x16xf32>, vector<160x16xf32>, vector<24x160xf32> -> vector<24x160xf32>
    %cst_30 = arith.constant 2.500000e-01 : f32
    %49 = vector.broadcast %cst_30 : f32 to vector<24x160xf32>
    %50 = arith.mulf %48, %49 : vector<24x160xf32>
    %51 = arith.addf %50, %35 : vector<24x160xf32>
    %cst_31 = arith.constant dense<0xFF800000> : vector<24xf32>
    %52 = vector.multi_reduction <maximumf>, %51, %cst_31 [1] : vector<24x160xf32> to vector<24xf32>
    %53 = vector.shape_cast %52 : vector<24xf32> to vector<24x1xf32>
    %54 = vector.broadcast %53 : vector<24x1xf32> to vector<24x160xf32>
    %55 = arith.subf %51, %54 : vector<24x160xf32>
    %56 = math.exp %55 : vector<24x160xf32>
    %cst_32 = arith.constant dense<0.000000e+00> : vector<24xf32>
    %57 = vector.multi_reduction <add>, %56, %cst_32 [1] : vector<24x160xf32> to vector<24xf32>
    %58 = vector.shape_cast %57 : vector<24xf32> to vector<24x1xf32>
    %59 = vector.broadcast %58 : vector<24x1xf32> to vector<24x160xf32>
    %60 = arith.divf %56, %59 : vector<24x160xf32>
    %61 = vector.extract_strided_slice %44 {offsets = [0, 0], sizes = [160, 16], strides = [1, 1]} : vector<160x64xf32> to vector<160x16xf32>
    %cst_33 = arith.constant dense<0.000000e+00> : vector<24x16xf32>
    %62 = tpu.matmul %60, %61, %cst_33 {dimension_numbers = #tpu.dot_dimension_numbers<[1], [0], [0], [1], [0, 0, 1, 1], [], []>} : vector<24x160xf32>, vector<160x16xf32>, vector<24x16xf32> -> vector<24x16xf32>
    %63 = vector.extract_strided_slice %34 {offsets = [0, 0], sizes = [16, 64], strides = [1, 1]} : vector<64x64xf32> to vector<16x64xf32>
    %cst_34 = arith.constant dense<0.000000e+00> : vector<24x64xf32>
    %64 = tpu.matmul %62, %63, %cst_34 {dimension_numbers = #tpu.dot_dimension_numbers<[1], [0], [0], [1], [0, 0, 1, 1], [], []>} : vector<24x16xf32>, vector<16x64xf32>, vector<24x64xf32> -> vector<24x64xf32>
    %65 = arith.addf %45, %64 : vector<24x64xf32>
    %66 = vector.extract_strided_slice %38 {offsets = [0, 16], sizes = [24, 16], strides = [1, 1]} : vector<24x64xf32> to vector<24x16xf32>
    %67 = vector.extract_strided_slice %41 {offsets = [0, 16], sizes = [160, 16], strides = [1, 1]} : vector<160x64xf32> to vector<160x16xf32>
    %cst_35 = arith.constant dense<0.000000e+00> : vector<24x160xf32>
    %68 = tpu.matmul %66, %67, %cst_35 {dimension_numbers = #tpu.dot_dimension_numbers<[1], [1], [0], [0], [0, 0, 1, 0], [], []>} : vector<24x16xf32>, vector<160x16xf32>, vector<24x160xf32> -> vector<24x160xf32>
    %cst_36 = arith.constant 2.500000e-01 : f32
    %69 = vector.broadcast %cst_36 : f32 to vector<24x160xf32>
    %70 = arith.mulf %68, %69 : vector<24x160xf32>
    %71 = arith.addf %70, %35 : vector<24x160xf32>
    %cst_37 = arith.constant dense<0xFF800000> : vector<24xf32>
    %72 = vector.multi_reduction <maximumf>, %71, %cst_37 [1] : vector<24x160xf32> to vector<24xf32>
    %73 = vector.shape_cast %72 : vector<24xf32> to vector<24x1xf32>
    %74 = vector.broadcast %73 : vector<24x1xf32> to vector<24x160xf32>
    %75 = arith.subf %71, %74 : vector<24x160xf32>
    %76 = math.exp %75 : vector<24x160xf32>
    %cst_38 = arith.constant dense<0.000000e+00> : vector<24xf32>
    %77 = vector.multi_reduction <add>, %76, %cst_38 [1] : vector<24x160xf32> to vector<24xf32>
    %78 = vector.shape_cast %77 : vector<24xf32> to vector<24x1xf32>
    %79 = vector.broadcast %78 : vector<24x1xf32> to vector<24x160xf32>
    %80 = arith.divf %76, %79 : vector<24x160xf32>
    %81 = vector.extract_strided_slice %44 {offsets = [0, 16], sizes = [160, 16], strides = [1, 1]} : vector<160x64xf32> to vector<160x16xf32>
    %cst_39 = arith.constant dense<0.000000e+00> : vector<24x16xf32>
    %82 = tpu.matmul %80, %81, %cst_39 {dimension_numbers = #tpu.dot_dimension_numbers<[1], [0], [0], [1], [0, 0, 1, 1], [], []>} : vector<24x160xf32>, vector<160x16xf32>, vector<24x16xf32> -> vector<24x16xf32>
    %83 = vector.extract_strided_slice %34 {offsets = [16, 0], sizes = [16, 64], strides = [1, 1]} : vector<64x64xf32> to vector<16x64xf32>
    %cst_40 = arith.constant dense<0.000000e+00> : vector<24x64xf32>
    %84 = tpu.matmul %82, %83, %cst_40 {dimension_numbers = #tpu.dot_dimension_numbers<[1], [0], [0], [1], [0, 0, 1, 1], [], []>} : vector<24x16xf32>, vector<16x64xf32>, vector<24x64xf32> -> vector<24x64xf32>
    %85 = arith.addf %65, %84 : vector<24x64xf32>
    %86 = vector.extract_strided_slice %38 {offsets = [0, 32], sizes = [24, 16], strides = [1, 1]} : vector<24x64xf32> to vector<24x16xf32>
    %87 = vector.extract_strided_slice %41 {offsets = [0, 32], sizes = [160, 16], strides = [1, 1]} : vector<160x64xf32> to vector<160x16xf32>
    %cst_41 = arith.constant dense<0.000000e+00> : vector<24x160xf32>
    %88 = tpu.matmul %86, %87, %cst_41 {dimension_numbers = #tpu.dot_dimension_numbers<[1], [1], [0], [0], [0, 0, 1, 0], [], []>} : vector<24x16xf32>, vector<160x16xf32>, vector<24x160xf32> -> vector<24x160xf32>
    %cst_42 = arith.constant 2.500000e-01 : f32
    %89 = vector.broadcast %cst_42 : f32 to vector<24x160xf32>
    %90 = arith.mulf %88, %89 : vector<24x160xf32>
    %91 = arith.addf %90, %35 : vector<24x160xf32>
    %cst_43 = arith.constant dense<0xFF800000> : vector<24xf32>
    %92 = vector.multi_reduction <maximumf>, %91, %cst_43 [1] : vector<24x160xf32> to vector<24xf32>
    %93 = vector.shape_cast %92 : vector<24xf32> to vector<24x1xf32>
    %94 = vector.broadcast %93 : vector<24x1xf32> to vector<24x160xf32>
    %95 = arith.subf %91, %94 : vector<24x160xf32>
    %96 = math.exp %95 : vector<24x160xf32>
    %cst_44 = arith.constant dense<0.000000e+00> : vector<24xf32>
    %97 = vector.multi_reduction <add>, %96, %cst_44 [1] : vector<24x160xf32> to vector<24xf32>
    %98 = vector.shape_cast %97 : vector<24xf32> to vector<24x1xf32>
    %99 = vector.broadcast %98 : vector<24x1xf32> to vector<24x160xf32>
    %100 = arith.divf %96, %99 : vector<24x160xf32>
    %101 = vector.extract_strided_slice %44 {offsets = [0, 32], sizes = [160, 16], strides = [1, 1]} : vector<160x64xf32> to vector<160x16xf32>
    %cst_45 = arith.constant dense<0.000000e+00> : vector<24x16xf32>
    %102 = tpu.matmul %100, %101, %cst_45 {dimension_numbers = #tpu.dot_dimension_numbers<[1], [0], [0], [1], [0, 0, 1, 1], [], []>} : vector<24x160xf32>, vector<160x16xf32>, vector<24x16xf32> -> vector<24x16xf32>
    %103 = vector.extract_strided_slice %34 {offsets = [32, 0], sizes = [16, 64], strides = [1, 1]} : vector<64x64xf32> to vector<16x64xf32>
    %cst_46 = arith.constant dense<0.000000e+00> : vector<24x64xf32>
    %104 = tpu.matmul %102, %103, %cst_46 {dimension_numbers = #tpu.dot_dimension_numbers<[1], [0], [0], [1], [0, 0, 1, 1], [], []>} : vector<24x16xf32>, vector<16x64xf32>, vector<24x64xf32> -> vector<24x64xf32>
    %105 = arith.addf %85, %104 : vector<24x64xf32>
    %106 = vector.extract_strided_slice %38 {offsets = [0, 48], sizes = [24, 16], strides = [1, 1]} : vector<24x64xf32> to vector<24x16xf32>
    %107 = vector.extract_strided_slice %41 {offsets = [0, 48], sizes = [160, 16], strides = [1, 1]} : vector<160x64xf32> to vector<160x16xf32>
    %cst_47 = arith.constant dense<0.000000e+00> : vector<24x160xf32>
    %108 = tpu.matmul %106, %107, %cst_47 {dimension_numbers = #tpu.dot_dimension_numbers<[1], [1], [0], [0], [0, 0, 1, 0], [], []>} : vector<24x16xf32>, vector<160x16xf32>, vector<24x160xf32> -> vector<24x160xf32>
    %cst_48 = arith.constant 2.500000e-01 : f32
    %109 = vector.broadcast %cst_48 : f32 to vector<24x160xf32>
    %110 = arith.mulf %108, %109 : vector<24x160xf32>
    %111 = arith.addf %110, %35 : vector<24x160xf32>
    %cst_49 = arith.constant dense<0xFF800000> : vector<24xf32>
    %112 = vector.multi_reduction <maximumf>, %111, %cst_49 [1] : vector<24x160xf32> to vector<24xf32>
    %113 = vector.shape_cast %112 : vector<24xf32> to vector<24x1xf32>
    %114 = vector.broadcast %113 : vector<24x1xf32> to vector<24x160xf32>
    %115 = arith.subf %111, %114 : vector<24x160xf32>
    %116 = math.exp %115 : vector<24x160xf32>
    %cst_50 = arith.constant dense<0.000000e+00> : vector<24xf32>
    %117 = vector.multi_reduction <add>, %116, %cst_50 [1] : vector<24x160xf32> to vector<24xf32>
    %118 = vector.shape_cast %117 : vector<24xf32> to vector<24x1xf32>
    %119 = vector.broadcast %118 : vector<24x1xf32> to vector<24x160xf32>
    %120 = arith.divf %116, %119 : vector<24x160xf32>
    %121 = vector.extract_strided_slice %44 {offsets = [0, 48], sizes = [160, 16], strides = [1, 1]} : vector<160x64xf32> to vector<160x16xf32>
    %cst_51 = arith.constant dense<0.000000e+00> : vector<24x16xf32>
    %122 = tpu.matmul %120, %121, %cst_51 {dimension_numbers = #tpu.dot_dimension_numbers<[1], [0], [0], [1], [0, 0, 1, 1], [], []>} : vector<24x160xf32>, vector<160x16xf32>, vector<24x16xf32> -> vector<24x16xf32>
    %123 = vector.extract_strided_slice %34 {offsets = [48, 0], sizes = [16, 64], strides = [1, 1]} : vector<64x64xf32> to vector<16x64xf32>
    %cst_52 = arith.constant dense<0.000000e+00> : vector<24x64xf32>
    %124 = tpu.matmul %122, %123, %cst_52 {dimension_numbers = #tpu.dot_dimension_numbers<[1], [0], [0], [1], [0, 0, 1, 1], [], []>} : vector<24x16xf32>, vector<16x64xf32>, vector<24x64xf32> -> vector<24x64xf32>
    %125 = arith.addf %105, %124 : vector<24x64xf32>
    %c0_53 = arith.constant 0 : index
    %c0_54 = arith.constant 0 : index
    %126 = vector.load %arg13[%c0_53, %c0_54] : memref<24x64xf32, #tpu.memory_space<vmem>>, vector<24x64xf32>
    tpu.vector_store %arg13[%c0_53, %c0_54], %125 {strides = array<i32>} : memref<24x64xf32, #tpu.memory_space<vmem>>, vector<24x64xf32>,
    %c0_55 = arith.constant 0 : index
    %c0_56 = arith.constant 0 : index
    %127 = vector.load %arg13[%c0_55, %c0_56] : memref<24x64xf32, #tpu.memory_space<vmem>>, vector<24x64xf32>
    %128 = arith.addf %23, %127 : vector<24x64xf32>
    %c13 = arith.constant 13 : index
    %c0_57 = arith.constant 0 : index
    %129 = vector.load %arg5[%c13, %c0_57] : memref<28x64xf32, #tpu.memory_space<vmem>>, vector<1x64xf32>
    %130 = vector.broadcast %129 : vector<1x64xf32> to vector<24x64xf32>
    %131 = arith.addf %128, %130 : vector<24x64xf32>
    %c14 = arith.constant 14 : index
    %c0_58 = arith.constant 0 : index
    %132 = vector.load %arg5[%c14, %c0_58] : memref<28x64xf32, #tpu.memory_space<vmem>>, vector<1x64xf32>
    %c15 = arith.constant 15 : index
    %c0_59 = arith.constant 0 : index
    %133 = vector.load %arg5[%c15, %c0_59] : memref<28x64xf32, #tpu.memory_space<vmem>>, vector<1x64xf32>
    %cst_60 = arith.constant dense<0.000000e+00> : vector<24xf32>
    %134 = vector.multi_reduction <add>, %131, %cst_60 [1] : vector<24x64xf32> to vector<24xf32>
    %135 = vector.shape_cast %134 : vector<24xf32> to vector<24x1xf32>
    %cst_61 = arith.constant 6.400000e+01 : f32
    %136 = vector.broadcast %cst_61 : f32 to vector<24x1xf32>
    %137 = arith.divf %135, %136 : vector<24x1xf32>
    %138 = vector.broadcast %137 : vector<24x1xf32> to vector<24x64xf32>
    %139 = arith.subf %131, %138 : vector<24x64xf32>
    %140 = arith.mulf %139, %139 : vector<24x64xf32>
    %cst_62 = arith.constant dense<0.000000e+00> : vector<24xf32>
    %141 = vector.multi_reduction <add>, %140, %cst_62 [1] : vector<24x64xf32> to vector<24xf32>
    %142 = vector.shape_cast %141 : vector<24xf32> to vector<24x1xf32>
    %cst_63 = arith.constant 6.400000e+01 : f32
    %143 = vector.broadcast %cst_63 : f32 to vector<24x1xf32>
    %144 = arith.divf %142, %143 : vector<24x1xf32>
    %145 = vector.broadcast %137 : vector<24x1xf32> to vector<24x64xf32>
    %146 = arith.subf %131, %145 : vector<24x64xf32>
    %cst_64 = arith.constant 9.99999974E-6 : f32
    %147 = vector.broadcast %cst_64 : f32 to vector<24x1xf32>
    %148 = arith.addf %144, %147 : vector<24x1xf32>
    %149 = math.rsqrt %148 : vector<24x1xf32>
    %150 = vector.broadcast %149 : vector<24x1xf32> to vector<24x64xf32>
    %151 = arith.mulf %146, %150 : vector<24x64xf32>
    %152 = vector.broadcast %132 : vector<1x64xf32> to vector<24x64xf32>
    %153 = arith.mulf %151, %152 : vector<24x64xf32>
    %154 = vector.broadcast %133 : vector<1x64xf32> to vector<24x64xf32>
    %155 = arith.addf %153, %154 : vector<24x64xf32>
    %c0_65 = arith.constant 0 : index
    %c0_66 = arith.constant 0 : index
    %c0_67 = arith.constant 0 : index
    %156 = vector.load %arg7[%c0_65, %c0_66, %c0_67] : memref<2x64x256xf32, #tpu.memory_space<vmem>>, vector<1x64x256xf32>
    %157 = vector.shape_cast %156 : vector<1x64x256xf32> to vector<64x256xf32>
    %cst_68 = arith.constant dense<0.000000e+00> : vector<24x256xf32>
    %158 = tpu.matmul %155, %157, %cst_68 {dimension_numbers = #tpu.dot_dimension_numbers<[1], [0], [0], [1], [0, 0, 1, 1], [], []>} : vector<24x64xf32>, vector<64x256xf32>, vector<24x256xf32> -> vector<24x256xf32>
    %c0_69 = arith.constant 0 : index
    %c0_70 = arith.constant 0 : index
    %159 = vector.load %arg8[%c0_69, %c0_70] : memref<2x256xf32, #tpu.memory_space<vmem>>, vector<1x256xf32>
    %160 = vector.broadcast %159 : vector<1x256xf32> to vector<24x256xf32>
    %161 = arith.addf %158, %160 : vector<24x256xf32>
    %cst_71 = arith.constant 0.000000e+00 : f32
    %162 = vector.broadcast %cst_71 : f32 to vector<24x256xf32>
    %163 = arith.maximumf %161, %162 : vector<24x256xf32>
    %c0_72 = arith.constant 0 : index
    %c0_73 = arith.constant 0 : index
    %c0_74 = arith.constant 0 : index
    %164 = vector.load %arg9[%c0_72, %c0_73, %c0_74] : memref<2x256x64xf32, #tpu.memory_space<vmem>>, vector<1x256x64xf32>
    %165 = vector.shape_cast %164 : vector<1x256x64xf32> to vector<256x64xf32>
    %cst_75 = arith.constant dense<0.000000e+00> : vector<24x64xf32>
    %166 = tpu.matmul %163, %165, %cst_75 {dimension_numbers = #tpu.dot_dimension_numbers<[1], [0], [0], [1], [0, 0, 1, 1], [], []>} : vector<24x256xf32>, vector<256x64xf32>, vector<24x64xf32> -> vector<24x64xf32>
    %c18 = arith.constant 18 : index
    %c0_76 = arith.constant 0 : index
    %167 = vector.load %arg5[%c18, %c0_76] : memref<28x64xf32, #tpu.memory_space<vmem>>, vector<1x64xf32>
    %168 = vector.broadcast %167 : vector<1x64xf32> to vector<24x64xf32>
    %169 = arith.addf %166, %168 : vector<24x64xf32>
    %170 = arith.addf %155, %169 : vector<24x64xf32>
    %c16 = arith.constant 16 : index
    %c0_77 = arith.constant 0 : index
    %171 = vector.load %arg5[%c16, %c0_77] : memref<28x64xf32, #tpu.memory_space<vmem>>, vector<1x64xf32>
    %c17 = arith.constant 17 : index
    %c0_78 = arith.constant 0 : index
    %172 = vector.load %arg5[%c17, %c0_78] : memref<28x64xf32, #tpu.memory_space<vmem>>, vector<1x64xf32>
    %cst_79 = arith.constant dense<0.000000e+00> : vector<24xf32>
    %173 = vector.multi_reduction <add>, %170, %cst_79 [1] : vector<24x64xf32> to vector<24xf32>
    %174 = vector.shape_cast %173 : vector<24xf32> to vector<24x1xf32>
    %cst_80 = arith.constant 6.400000e+01 : f32
    %175 = vector.broadcast %cst_80 : f32 to vector<24x1xf32>
    %176 = arith.divf %174, %175 : vector<24x1xf32>
    %177 = vector.broadcast %176 : vector<24x1xf32> to vector<24x64xf32>
    %178 = arith.subf %170, %177 : vector<24x64xf32>
    %179 = arith.mulf %178, %178 : vector<24x64xf32>
    %cst_81 = arith.constant dense<0.000000e+00> : vector<24xf32>
    %180 = vector.multi_reduction <add>, %179, %cst_81 [1] : vector<24x64xf32> to vector<24xf32>
    %181 = vector.shape_cast %180 : vector<24xf32> to vector<24x1xf32>
    %cst_82 = arith.constant 6.400000e+01 : f32
    %182 = vector.broadcast %cst_82 : f32 to vector<24x1xf32>
    %183 = arith.divf %181, %182 : vector<24x1xf32>
    %184 = vector.broadcast %176 : vector<24x1xf32> to vector<24x64xf32>
    %185 = arith.subf %170, %184 : vector<24x64xf32>
    %cst_83 = arith.constant 9.99999974E-6 : f32
    %186 = vector.broadcast %cst_83 : f32 to vector<24x1xf32>
    %187 = arith.addf %183, %186 : vector<24x1xf32>
    %188 = math.rsqrt %187 : vector<24x1xf32>
    %189 = vector.broadcast %188 : vector<24x1xf32> to vector<24x64xf32>
    %190 = arith.mulf %185, %189 : vector<24x64xf32>
    %191 = vector.broadcast %171 : vector<1x64xf32> to vector<24x64xf32>
    %192 = arith.mulf %190, %191 : vector<24x64xf32>
    %193 = vector.broadcast %172 : vector<1x64xf32> to vector<24x64xf32>
    %194 = arith.addf %192, %193 : vector<24x64xf32>
    %c1_84 = arith.constant 1 : index
    %c0_85 = arith.constant 0 : index
    %c0_86 = arith.constant 0 : index
    %195 = vector.load %arg6[%c1_84, %c0_85, %c0_86] : memref<13x64x64xf32, #tpu.memory_space<vmem>>, vector<1x64x64xf32>
    %196 = vector.shape_cast %195 : vector<1x64x64xf32> to vector<64x64xf32>
    %c2_87 = arith.constant 2 : index
    %c0_88 = arith.constant 0 : index
    %c0_89 = arith.constant 0 : index
    %197 = vector.load %arg6[%c2_87, %c0_88, %c0_89] : memref<13x64x64xf32, #tpu.memory_space<vmem>>, vector<1x64x64xf32>
    %198 = vector.shape_cast %197 : vector<1x64x64xf32> to vector<64x64xf32>
    %c3_90 = arith.constant 3 : index
    %c0_91 = arith.constant 0 : index
    %c0_92 = arith.constant 0 : index
    %199 = vector.load %arg6[%c3_90, %c0_91, %c0_92] : memref<13x64x64xf32, #tpu.memory_space<vmem>>, vector<1x64x64xf32>
    %200 = vector.shape_cast %199 : vector<1x64x64xf32> to vector<64x64xf32>
    %c4 = arith.constant 4 : index
    %c0_93 = arith.constant 0 : index
    %201 = vector.load %arg5[%c4, %c0_93] : memref<28x64xf32, #tpu.memory_space<vmem>>, vector<1x64xf32>
    %c5_94 = arith.constant 5 : index
    %c0_95 = arith.constant 0 : index
    %202 = vector.load %arg5[%c5_94, %c0_95] : memref<28x64xf32, #tpu.memory_space<vmem>>, vector<1x64xf32>
    %c6_96 = arith.constant 6 : index
    %c0_97 = arith.constant 0 : index
    %203 = vector.load %arg5[%c6_96, %c0_97] : memref<28x64xf32, #tpu.memory_space<vmem>>, vector<1x64xf32>
    %c4_98 = arith.constant 4 : index
    %c0_99 = arith.constant 0 : index
    %c0_100 = arith.constant 0 : index
    %204 = vector.load %arg6[%c4_98, %c0_99, %c0_100] : memref<13x64x64xf32, #tpu.memory_space<vmem>>, vector<1x64x64xf32>
    %205 = vector.shape_cast %204 : vector<1x64x64xf32> to vector<64x64xf32>
    %c0_101 = arith.constant 0 : index
    %c0_102 = arith.constant 0 : index
    %206 = vector.load %arg3[%c0_101, %c0_102] : memref<24x24xf32, #tpu.memory_space<vmem>>, vector<24x24xf32>
    %cst_103 = arith.constant dense<0.000000e+00> : vector<24x64xf32>
    %207 = tpu.matmul %194, %196, %cst_103 {dimension_numbers = #tpu.dot_dimension_numbers<[1], [0], [0], [1], [0, 0, 1, 1], [], []>} : vector<24x64xf32>, vector<64x64xf32>, vector<24x64xf32> -> vector<24x64xf32>
    %208 = vector.broadcast %201 : vector<1x64xf32> to vector<24x64xf32>
    %209 = arith.addf %207, %208 : vector<24x64xf32>
    %cst_104 = arith.constant dense<0.000000e+00> : vector<24x64xf32>
    %210 = tpu.matmul %194, %198, %cst_104 {dimension_numbers = #tpu.dot_dimension_numbers<[1], [0], [0], [1], [0, 0, 1, 1], [], []>} : vector<24x64xf32>, vector<64x64xf32>, vector<24x64xf32> -> vector<24x64xf32>
    %211 = vector.broadcast %202 : vector<1x64xf32> to vector<24x64xf32>
    %212 = arith.addf %210, %211 : vector<24x64xf32>
    %cst_105 = arith.constant dense<0.000000e+00> : vector<24x64xf32>
    %213 = tpu.matmul %194, %200, %cst_105 {dimension_numbers = #tpu.dot_dimension_numbers<[1], [0], [0], [1], [0, 0, 1, 1], [], []>} : vector<24x64xf32>, vector<64x64xf32>, vector<24x64xf32> -> vector<24x64xf32>
    %214 = vector.broadcast %203 : vector<1x64xf32> to vector<24x64xf32>
    %215 = arith.addf %213, %214 : vector<24x64xf32>
    %cst_106 = arith.constant 0.000000e+00 : f32
    %216 = vector.broadcast %cst_106 : f32 to vector<24x64xf32>
    %217 = vector.extract_strided_slice %209 {offsets = [0, 0], sizes = [24, 16], strides = [1, 1]} : vector<24x64xf32> to vector<24x16xf32>
    %218 = vector.extract_strided_slice %212 {offsets = [0, 0], sizes = [24, 16], strides = [1, 1]} : vector<24x64xf32> to vector<24x16xf32>
    %cst_107 = arith.constant dense<0.000000e+00> : vector<24x24xf32>
    %219 = tpu.matmul %217, %218, %cst_107 {dimension_numbers = #tpu.dot_dimension_numbers<[1], [1], [0], [0], [0, 0, 1, 0], [], []>} : vector<24x16xf32>, vector<24x16xf32>, vector<24x24xf32> -> vector<24x24xf32>
    %cst_108 = arith.constant 2.500000e-01 : f32
    %220 = vector.broadcast %cst_108 : f32 to vector<24x24xf32>
    %221 = arith.mulf %219, %220 : vector<24x24xf32>
    %222 = arith.addf %221, %206 : vector<24x24xf32>
    %cst_109 = arith.constant dense<0xFF800000> : vector<24xf32>
    %223 = vector.multi_reduction <maximumf>, %222, %cst_109 [1] : vector<24x24xf32> to vector<24xf32>
    %224 = vector.shape_cast %223 : vector<24xf32> to vector<24x1xf32>
    %225 = vector.broadcast %224 : vector<24x1xf32> to vector<24x24xf32>
    %226 = arith.subf %222, %225 : vector<24x24xf32>
    %227 = math.exp %226 : vector<24x24xf32>
    %cst_110 = arith.constant dense<0.000000e+00> : vector<24xf32>
    %228 = vector.multi_reduction <add>, %227, %cst_110 [1] : vector<24x24xf32> to vector<24xf32>
    %229 = vector.shape_cast %228 : vector<24xf32> to vector<24x1xf32>
    %230 = vector.broadcast %229 : vector<24x1xf32> to vector<24x24xf32>
    %231 = arith.divf %227, %230 : vector<24x24xf32>
    %232 = vector.extract_strided_slice %215 {offsets = [0, 0], sizes = [24, 16], strides = [1, 1]} : vector<24x64xf32> to vector<24x16xf32>
    %cst_111 = arith.constant dense<0.000000e+00> : vector<24x16xf32>
    %233 = tpu.matmul %231, %232, %cst_111 {dimension_numbers = #tpu.dot_dimension_numbers<[1], [0], [0], [1], [0, 0, 1, 1], [], []>} : vector<24x24xf32>, vector<24x16xf32>, vector<24x16xf32> -> vector<24x16xf32>
    %234 = vector.extract_strided_slice %205 {offsets = [0, 0], sizes = [16, 64], strides = [1, 1]} : vector<64x64xf32> to vector<16x64xf32>
    %cst_112 = arith.constant dense<0.000000e+00> : vector<24x64xf32>
    %235 = tpu.matmul %233, %234, %cst_112 {dimension_numbers = #tpu.dot_dimension_numbers<[1], [0], [0], [1], [0, 0, 1, 1], [], []>} : vector<24x16xf32>, vector<16x64xf32>, vector<24x64xf32> -> vector<24x64xf32>
    %236 = arith.addf %216, %235 : vector<24x64xf32>
    %237 = vector.extract_strided_slice %209 {offsets = [0, 16], sizes = [24, 16], strides = [1, 1]} : vector<24x64xf32> to vector<24x16xf32>
    %238 = vector.extract_strided_slice %212 {offsets = [0, 16], sizes = [24, 16], strides = [1, 1]} : vector<24x64xf32> to vector<24x16xf32>
    %cst_113 = arith.constant dense<0.000000e+00> : vector<24x24xf32>
    %239 = tpu.matmul %237, %238, %cst_113 {dimension_numbers = #tpu.dot_dimension_numbers<[1], [1], [0], [0], [0, 0, 1, 0], [], []>} : vector<24x16xf32>, vector<24x16xf32>, vector<24x24xf32> -> vector<24x24xf32>
    %cst_114 = arith.constant 2.500000e-01 : f32
    %240 = vector.broadcast %cst_114 : f32 to vector<24x24xf32>
    %241 = arith.mulf %239, %240 : vector<24x24xf32>
    %242 = arith.addf %241, %206 : vector<24x24xf32>
    %cst_115 = arith.constant dense<0xFF800000> : vector<24xf32>
    %243 = vector.multi_reduction <maximumf>, %242, %cst_115 [1] : vector<24x24xf32> to vector<24xf32>
    %244 = vector.shape_cast %243 : vector<24xf32> to vector<24x1xf32>
    %245 = vector.broadcast %244 : vector<24x1xf32> to vector<24x24xf32>
    %246 = arith.subf %242, %245 : vector<24x24xf32>
    %247 = math.exp %246 : vector<24x24xf32>
    %cst_116 = arith.constant dense<0.000000e+00> : vector<24xf32>
    %248 = vector.multi_reduction <add>, %247, %cst_116 [1] : vector<24x24xf32> to vector<24xf32>
    %249 = vector.shape_cast %248 : vector<24xf32> to vector<24x1xf32>
    %250 = vector.broadcast %249 : vector<24x1xf32> to vector<24x24xf32>
    %251 = arith.divf %247, %250 : vector<24x24xf32>
    %252 = vector.extract_strided_slice %215 {offsets = [0, 16], sizes = [24, 16], strides = [1, 1]} : vector<24x64xf32> to vector<24x16xf32>
    %cst_117 = arith.constant dense<0.000000e+00> : vector<24x16xf32>
    %253 = tpu.matmul %251, %252, %cst_117 {dimension_numbers = #tpu.dot_dimension_numbers<[1], [0], [0], [1], [0, 0, 1, 1], [], []>} : vector<24x24xf32>, vector<24x16xf32>, vector<24x16xf32> -> vector<24x16xf32>
    %254 = vector.extract_strided_slice %205 {offsets = [16, 0], sizes = [16, 64], strides = [1, 1]} : vector<64x64xf32> to vector<16x64xf32>
    %cst_118 = arith.constant dense<0.000000e+00> : vector<24x64xf32>
    %255 = tpu.matmul %253, %254, %cst_118 {dimension_numbers = #tpu.dot_dimension_numbers<[1], [0], [0], [1], [0, 0, 1, 1], [], []>} : vector<24x16xf32>, vector<16x64xf32>, vector<24x64xf32> -> vector<24x64xf32>
    %256 = arith.addf %236, %255 : vector<24x64xf32>
    %257 = vector.extract_strided_slice %209 {offsets = [0, 32], sizes = [24, 16], strides = [1, 1]} : vector<24x64xf32> to vector<24x16xf32>
    %258 = vector.extract_strided_slice %212 {offsets = [0, 32], sizes = [24, 16], strides = [1, 1]} : vector<24x64xf32> to vector<24x16xf32>
    %cst_119 = arith.constant dense<0.000000e+00> : vector<24x24xf32>
    %259 = tpu.matmul %257, %258, %cst_119 {dimension_numbers = #tpu.dot_dimension_numbers<[1], [1], [0], [0], [0, 0, 1, 0], [], []>} : vector<24x16xf32>, vector<24x16xf32>, vector<24x24xf32> -> vector<24x24xf32>
    %cst_120 = arith.constant 2.500000e-01 : f32
    %260 = vector.broadcast %cst_120 : f32 to vector<24x24xf32>
    %261 = arith.mulf %259, %260 : vector<24x24xf32>
    %262 = arith.addf %261, %206 : vector<24x24xf32>
    %cst_121 = arith.constant dense<0xFF800000> : vector<24xf32>
    %263 = vector.multi_reduction <maximumf>, %262, %cst_121 [1] : vector<24x24xf32> to vector<24xf32>
    %264 = vector.shape_cast %263 : vector<24xf32> to vector<24x1xf32>
    %265 = vector.broadcast %264 : vector<24x1xf32> to vector<24x24xf32>
    %266 = arith.subf %262, %265 : vector<24x24xf32>
    %267 = math.exp %266 : vector<24x24xf32>
    %cst_122 = arith.constant dense<0.000000e+00> : vector<24xf32>
    %268 = vector.multi_reduction <add>, %267, %cst_122 [1] : vector<24x24xf32> to vector<24xf32>
    %269 = vector.shape_cast %268 : vector<24xf32> to vector<24x1xf32>
    %270 = vector.broadcast %269 : vector<24x1xf32> to vector<24x24xf32>
    %271 = arith.divf %267, %270 : vector<24x24xf32>
    %272 = vector.extract_strided_slice %215 {offsets = [0, 32], sizes = [24, 16], strides = [1, 1]} : vector<24x64xf32> to vector<24x16xf32>
    %cst_123 = arith.constant dense<0.000000e+00> : vector<24x16xf32>
    %273 = tpu.matmul %271, %272, %cst_123 {dimension_numbers = #tpu.dot_dimension_numbers<[1], [0], [0], [1], [0, 0, 1, 1], [], []>} : vector<24x24xf32>, vector<24x16xf32>, vector<24x16xf32> -> vector<24x16xf32>
    %274 = vector.extract_strided_slice %205 {offsets = [32, 0], sizes = [16, 64], strides = [1, 1]} : vector<64x64xf32> to vector<16x64xf32>
    %cst_124 = arith.constant dense<0.000000e+00> : vector<24x64xf32>
    %275 = tpu.matmul %273, %274, %cst_124 {dimension_numbers = #tpu.dot_dimension_numbers<[1], [0], [0], [1], [0, 0, 1, 1], [], []>} : vector<24x16xf32>, vector<16x64xf32>, vector<24x64xf32> -> vector<24x64xf32>
    %276 = arith.addf %256, %275 : vector<24x64xf32>
    %277 = vector.extract_strided_slice %209 {offsets = [0, 48], sizes = [24, 16], strides = [1, 1]} : vector<24x64xf32> to vector<24x16xf32>
    %278 = vector.extract_strided_slice %212 {offsets = [0, 48], sizes = [24, 16], strides = [1, 1]} : vector<24x64xf32> to vector<24x16xf32>
    %cst_125 = arith.constant dense<0.000000e+00> : vector<24x24xf32>
    %279 = tpu.matmul %277, %278, %cst_125 {dimension_numbers = #tpu.dot_dimension_numbers<[1], [1], [0], [0], [0, 0, 1, 0], [], []>} : vector<24x16xf32>, vector<24x16xf32>, vector<24x24xf32> -> vector<24x24xf32>
    %cst_126 = arith.constant 2.500000e-01 : f32
    %280 = vector.broadcast %cst_126 : f32 to vector<24x24xf32>
    %281 = arith.mulf %279, %280 : vector<24x24xf32>
    %282 = arith.addf %281, %206 : vector<24x24xf32>
    %cst_127 = arith.constant dense<0xFF800000> : vector<24xf32>
    %283 = vector.multi_reduction <maximumf>, %282, %cst_127 [1] : vector<24x24xf32> to vector<24xf32>
    %284 = vector.shape_cast %283 : vector<24xf32> to vector<24x1xf32>
    %285 = vector.broadcast %284 : vector<24x1xf32> to vector<24x24xf32>
    %286 = arith.subf %282, %285 : vector<24x24xf32>
    %287 = math.exp %286 : vector<24x24xf32>
    %cst_128 = arith.constant dense<0.000000e+00> : vector<24xf32>
    %288 = vector.multi_reduction <add>, %287, %cst_128 [1] : vector<24x24xf32> to vector<24xf32>
    %289 = vector.shape_cast %288 : vector<24xf32> to vector<24x1xf32>
    %290 = vector.broadcast %289 : vector<24x1xf32> to vector<24x24xf32>
    %291 = arith.divf %287, %290 : vector<24x24xf32>
    %292 = vector.extract_strided_slice %215 {offsets = [0, 48], sizes = [24, 16], strides = [1, 1]} : vector<24x64xf32> to vector<24x16xf32>
    %cst_129 = arith.constant dense<0.000000e+00> : vector<24x16xf32>
    %293 = tpu.matmul %291, %292, %cst_129 {dimension_numbers = #tpu.dot_dimension_numbers<[1], [0], [0], [1], [0, 0, 1, 1], [], []>} : vector<24x24xf32>, vector<24x16xf32>, vector<24x16xf32> -> vector<24x16xf32>
    %294 = vector.extract_strided_slice %205 {offsets = [48, 0], sizes = [16, 64], strides = [1, 1]} : vector<64x64xf32> to vector<16x64xf32>
    %cst_130 = arith.constant dense<0.000000e+00> : vector<24x64xf32>
    %295 = tpu.matmul %293, %294, %cst_130 {dimension_numbers = #tpu.dot_dimension_numbers<[1], [0], [0], [1], [0, 0, 1, 1], [], []>} : vector<24x16xf32>, vector<16x64xf32>, vector<24x64xf32> -> vector<24x64xf32>
    %296 = arith.addf %276, %295 : vector<24x64xf32>
    %c0_131 = arith.constant 0 : index
    %c0_132 = arith.constant 0 : index
    %297 = vector.load %arg13[%c0_131, %c0_132] : memref<24x64xf32, #tpu.memory_space<vmem>>, vector<24x64xf32>
    tpu.vector_store %arg13[%c0_131, %c0_132], %296 {strides = array<i32>} : memref<24x64xf32, #tpu.memory_space<vmem>>, vector<24x64xf32>,
    %c0_133 = arith.constant 0 : index
    %c0_134 = arith.constant 0 : index
    %298 = vector.load %arg13[%c0_133, %c0_134] : memref<24x64xf32, #tpu.memory_space<vmem>>, vector<24x64xf32>
    %299 = arith.addf %194, %298 : vector<24x64xf32>
    %c7_135 = arith.constant 7 : index
    %c0_136 = arith.constant 0 : index
    %300 = vector.load %arg5[%c7_135, %c0_136] : memref<28x64xf32, #tpu.memory_space<vmem>>, vector<1x64xf32>
    %301 = vector.broadcast %300 : vector<1x64xf32> to vector<24x64xf32>
    %302 = arith.addf %299, %301 : vector<24x64xf32>
    %c8_137 = arith.constant 8 : index
    %c0_138 = arith.constant 0 : index
    %303 = vector.load %arg5[%c8_137, %c0_138] : memref<28x64xf32, #tpu.memory_space<vmem>>, vector<1x64xf32>
    %c9 = arith.constant 9 : index
    %c0_139 = arith.constant 0 : index
    %304 = vector.load %arg5[%c9, %c0_139] : memref<28x64xf32, #tpu.memory_space<vmem>>, vector<1x64xf32>
    %cst_140 = arith.constant dense<0.000000e+00> : vector<24xf32>
    %305 = vector.multi_reduction <add>, %302, %cst_140 [1] : vector<24x64xf32> to vector<24xf32>
    %306 = vector.shape_cast %305 : vector<24xf32> to vector<24x1xf32>
    %cst_141 = arith.constant 6.400000e+01 : f32
    %307 = vector.broadcast %cst_141 : f32 to vector<24x1xf32>
    %308 = arith.divf %306, %307 : vector<24x1xf32>
    %309 = vector.broadcast %308 : vector<24x1xf32> to vector<24x64xf32>
    %310 = arith.subf %302, %309 : vector<24x64xf32>
    %311 = arith.mulf %310, %310 : vector<24x64xf32>
    %cst_142 = arith.constant dense<0.000000e+00> : vector<24xf32>
    %312 = vector.multi_reduction <add>, %311, %cst_142 [1] : vector<24x64xf32> to vector<24xf32>
    %313 = vector.shape_cast %312 : vector<24xf32> to vector<24x1xf32>
    %cst_143 = arith.constant 6.400000e+01 : f32
    %314 = vector.broadcast %cst_143 : f32 to vector<24x1xf32>
    %315 = arith.divf %313, %314 : vector<24x1xf32>
    %316 = vector.broadcast %308 : vector<24x1xf32> to vector<24x64xf32>
    %317 = arith.subf %302, %316 : vector<24x64xf32>
    %cst_144 = arith.constant 9.99999974E-6 : f32
    %318 = vector.broadcast %cst_144 : f32 to vector<24x1xf32>
    %319 = arith.addf %315, %318 : vector<24x1xf32>
    %320 = math.rsqrt %319 : vector<24x1xf32>
    %321 = vector.broadcast %320 : vector<24x1xf32> to vector<24x64xf32>
    %322 = arith.mulf %317, %321 : vector<24x64xf32>
    %323 = vector.broadcast %303 : vector<1x64xf32> to vector<24x64xf32>
    %324 = arith.mulf %322, %323 : vector<24x64xf32>
    %325 = vector.broadcast %304 : vector<1x64xf32> to vector<24x64xf32>
    %326 = arith.addf %324, %325 : vector<24x64xf32>
    %c9_145 = arith.constant 9 : index
    %c0_146 = arith.constant 0 : index
    %c0_147 = arith.constant 0 : index
    %327 = vector.load %arg6[%c9_145, %c0_146, %c0_147] : memref<13x64x64xf32, #tpu.memory_space<vmem>>, vector<1x64x64xf32>
    %328 = vector.shape_cast %327 : vector<1x64x64xf32> to vector<64x64xf32>
    %c10_148 = arith.constant 10 : index
    %c0_149 = arith.constant 0 : index
    %c0_150 = arith.constant 0 : index
    %329 = vector.load %arg6[%c10_148, %c0_149, %c0_150] : memref<13x64x64xf32, #tpu.memory_space<vmem>>, vector<1x64x64xf32>
    %330 = vector.shape_cast %329 : vector<1x64x64xf32> to vector<64x64xf32>
    %c11_151 = arith.constant 11 : index
    %c0_152 = arith.constant 0 : index
    %c0_153 = arith.constant 0 : index
    %331 = vector.load %arg6[%c11_151, %c0_152, %c0_153] : memref<13x64x64xf32, #tpu.memory_space<vmem>>, vector<1x64x64xf32>
    %332 = vector.shape_cast %331 : vector<1x64x64xf32> to vector<64x64xf32>
    %c19 = arith.constant 19 : index
    %c0_154 = arith.constant 0 : index
    %333 = vector.load %arg5[%c19, %c0_154] : memref<28x64xf32, #tpu.memory_space<vmem>>, vector<1x64xf32>
    %c20 = arith.constant 20 : index
    %c0_155 = arith.constant 0 : index
    %334 = vector.load %arg5[%c20, %c0_155] : memref<28x64xf32, #tpu.memory_space<vmem>>, vector<1x64xf32>
    %c21 = arith.constant 21 : index
    %c0_156 = arith.constant 0 : index
    %335 = vector.load %arg5[%c21, %c0_156] : memref<28x64xf32, #tpu.memory_space<vmem>>, vector<1x64xf32>
    %c12_157 = arith.constant 12 : index
    %c0_158 = arith.constant 0 : index
    %c0_159 = arith.constant 0 : index
    %336 = vector.load %arg6[%c12_157, %c0_158, %c0_159] : memref<13x64x64xf32, #tpu.memory_space<vmem>>, vector<1x64x64xf32>
    %337 = vector.shape_cast %336 : vector<1x64x64xf32> to vector<64x64xf32>
    %c0_160 = arith.constant 0 : index
    %c0_161 = arith.constant 0 : index
    %338 = vector.load %arg4[%c0_160, %c0_161] : memref<24x160xf32, #tpu.memory_space<vmem>>, vector<24x160xf32>
    %cst_162 = arith.constant dense<0.000000e+00> : vector<24x64xf32>
    %339 = tpu.matmul %326, %328, %cst_162 {dimension_numbers = #tpu.dot_dimension_numbers<[1], [0], [0], [1], [0, 0, 1, 1], [], []>} : vector<24x64xf32>, vector<64x64xf32>, vector<24x64xf32> -> vector<24x64xf32>
    %340 = vector.broadcast %333 : vector<1x64xf32> to vector<24x64xf32>
    %341 = arith.addf %339, %340 : vector<24x64xf32>
    %cst_163 = arith.constant dense<0.000000e+00> : vector<160x64xf32>
    %342 = tpu.matmul %22, %330, %cst_163 {dimension_numbers = #tpu.dot_dimension_numbers<[1], [0], [0], [1], [0, 0, 1, 1], [], []>} : vector<160x64xf32>, vector<64x64xf32>, vector<160x64xf32> -> vector<160x64xf32>
    %343 = vector.broadcast %334 : vector<1x64xf32> to vector<160x64xf32>
    %344 = arith.addf %342, %343 : vector<160x64xf32>
    %cst_164 = arith.constant dense<0.000000e+00> : vector<160x64xf32>
    %345 = tpu.matmul %22, %332, %cst_164 {dimension_numbers = #tpu.dot_dimension_numbers<[1], [0], [0], [1], [0, 0, 1, 1], [], []>} : vector<160x64xf32>, vector<64x64xf32>, vector<160x64xf32> -> vector<160x64xf32>
    %346 = vector.broadcast %335 : vector<1x64xf32> to vector<160x64xf32>
    %347 = arith.addf %345, %346 : vector<160x64xf32>
    %cst_165 = arith.constant 0.000000e+00 : f32
    %348 = vector.broadcast %cst_165 : f32 to vector<24x64xf32>
    %349 = vector.extract_strided_slice %341 {offsets = [0, 0], sizes = [24, 16], strides = [1, 1]} : vector<24x64xf32> to vector<24x16xf32>
    %350 = vector.extract_strided_slice %344 {offsets = [0, 0], sizes = [160, 16], strides = [1, 1]} : vector<160x64xf32> to vector<160x16xf32>
    %cst_166 = arith.constant dense<0.000000e+00> : vector<24x160xf32>
    %351 = tpu.matmul %349, %350, %cst_166 {dimension_numbers = #tpu.dot_dimension_numbers<[1], [1], [0], [0], [0, 0, 1, 0], [], []>} : vector<24x16xf32>, vector<160x16xf32>, vector<24x160xf32> -> vector<24x160xf32>
    %cst_167 = arith.constant 2.500000e-01 : f32
    %352 = vector.broadcast %cst_167 : f32 to vector<24x160xf32>
    %353 = arith.mulf %351, %352 : vector<24x160xf32>
    %354 = arith.addf %353, %338 : vector<24x160xf32>
    %cst_168 = arith.constant dense<0xFF800000> : vector<24xf32>
    %355 = vector.multi_reduction <maximumf>, %354, %cst_168 [1] : vector<24x160xf32> to vector<24xf32>
    %356 = vector.shape_cast %355 : vector<24xf32> to vector<24x1xf32>
    %357 = vector.broadcast %356 : vector<24x1xf32> to vector<24x160xf32>
    %358 = arith.subf %354, %357 : vector<24x160xf32>
    %359 = math.exp %358 : vector<24x160xf32>
    %cst_169 = arith.constant dense<0.000000e+00> : vector<24xf32>
    %360 = vector.multi_reduction <add>, %359, %cst_169 [1] : vector<24x160xf32> to vector<24xf32>
    %361 = vector.shape_cast %360 : vector<24xf32> to vector<24x1xf32>
    %362 = vector.broadcast %361 : vector<24x1xf32> to vector<24x160xf32>
    %363 = arith.divf %359, %362 : vector<24x160xf32>
    %364 = vector.extract_strided_slice %347 {offsets = [0, 0], sizes = [160, 16], strides = [1, 1]} : vector<160x64xf32> to vector<160x16xf32>
    %cst_170 = arith.constant dense<0.000000e+00> : vector<24x16xf32>
    %365 = tpu.matmul %363, %364, %cst_170 {dimension_numbers = #tpu.dot_dimension_numbers<[1], [0], [0], [1], [0, 0, 1, 1], [], []>} : vector<24x160xf32>, vector<160x16xf32>, vector<24x16xf32> -> vector<24x16xf32>
    %366 = vector.extract_strided_slice %337 {offsets = [0, 0], sizes = [16, 64], strides = [1, 1]} : vector<64x64xf32> to vector<16x64xf32>
    %cst_171 = arith.constant dense<0.000000e+00> : vector<24x64xf32>
    %367 = tpu.matmul %365, %366, %cst_171 {dimension_numbers = #tpu.dot_dimension_numbers<[1], [0], [0], [1], [0, 0, 1, 1], [], []>} : vector<24x16xf32>, vector<16x64xf32>, vector<24x64xf32> -> vector<24x64xf32>
    %368 = arith.addf %348, %367 : vector<24x64xf32>
    %369 = vector.extract_strided_slice %341 {offsets = [0, 16], sizes = [24, 16], strides = [1, 1]} : vector<24x64xf32> to vector<24x16xf32>
    %370 = vector.extract_strided_slice %344 {offsets = [0, 16], sizes = [160, 16], strides = [1, 1]} : vector<160x64xf32> to vector<160x16xf32>
    %cst_172 = arith.constant dense<0.000000e+00> : vector<24x160xf32>
    %371 = tpu.matmul %369, %370, %cst_172 {dimension_numbers = #tpu.dot_dimension_numbers<[1], [1], [0], [0], [0, 0, 1, 0], [], []>} : vector<24x16xf32>, vector<160x16xf32>, vector<24x160xf32> -> vector<24x160xf32>
    %cst_173 = arith.constant 2.500000e-01 : f32
    %372 = vector.broadcast %cst_173 : f32 to vector<24x160xf32>
    %373 = arith.mulf %371, %372 : vector<24x160xf32>
    %374 = arith.addf %373, %338 : vector<24x160xf32>
    %cst_174 = arith.constant dense<0xFF800000> : vector<24xf32>
    %375 = vector.multi_reduction <maximumf>, %374, %cst_174 [1] : vector<24x160xf32> to vector<24xf32>
    %376 = vector.shape_cast %375 : vector<24xf32> to vector<24x1xf32>
    %377 = vector.broadcast %376 : vector<24x1xf32> to vector<24x160xf32>
    %378 = arith.subf %374, %377 : vector<24x160xf32>
    %379 = math.exp %378 : vector<24x160xf32>
    %cst_175 = arith.constant dense<0.000000e+00> : vector<24xf32>
    %380 = vector.multi_reduction <add>, %379, %cst_175 [1] : vector<24x160xf32> to vector<24xf32>
    %381 = vector.shape_cast %380 : vector<24xf32> to vector<24x1xf32>
    %382 = vector.broadcast %381 : vector<24x1xf32> to vector<24x160xf32>
    %383 = arith.divf %379, %382 : vector<24x160xf32>
    %384 = vector.extract_strided_slice %347 {offsets = [0, 16], sizes = [160, 16], strides = [1, 1]} : vector<160x64xf32> to vector<160x16xf32>
    %cst_176 = arith.constant dense<0.000000e+00> : vector<24x16xf32>
    %385 = tpu.matmul %383, %384, %cst_176 {dimension_numbers = #tpu.dot_dimension_numbers<[1], [0], [0], [1], [0, 0, 1, 1], [], []>} : vector<24x160xf32>, vector<160x16xf32>, vector<24x16xf32> -> vector<24x16xf32>
    %386 = vector.extract_strided_slice %337 {offsets = [16, 0], sizes = [16, 64], strides = [1, 1]} : vector<64x64xf32> to vector<16x64xf32>
    %cst_177 = arith.constant dense<0.000000e+00> : vector<24x64xf32>
    %387 = tpu.matmul %385, %386, %cst_177 {dimension_numbers = #tpu.dot_dimension_numbers<[1], [0], [0], [1], [0, 0, 1, 1], [], []>} : vector<24x16xf32>, vector<16x64xf32>, vector<24x64xf32> -> vector<24x64xf32>
    %388 = arith.addf %368, %387 : vector<24x64xf32>
    %389 = vector.extract_strided_slice %341 {offsets = [0, 32], sizes = [24, 16], strides = [1, 1]} : vector<24x64xf32> to vector<24x16xf32>
    %390 = vector.extract_strided_slice %344 {offsets = [0, 32], sizes = [160, 16], strides = [1, 1]} : vector<160x64xf32> to vector<160x16xf32>
    %cst_178 = arith.constant dense<0.000000e+00> : vector<24x160xf32>
    %391 = tpu.matmul %389, %390, %cst_178 {dimension_numbers = #tpu.dot_dimension_numbers<[1], [1], [0], [0], [0, 0, 1, 0], [], []>} : vector<24x16xf32>, vector<160x16xf32>, vector<24x160xf32> -> vector<24x160xf32>
    %cst_179 = arith.constant 2.500000e-01 : f32
    %392 = vector.broadcast %cst_179 : f32 to vector<24x160xf32>
    %393 = arith.mulf %391, %392 : vector<24x160xf32>
    %394 = arith.addf %393, %338 : vector<24x160xf32>
    %cst_180 = arith.constant dense<0xFF800000> : vector<24xf32>
    %395 = vector.multi_reduction <maximumf>, %394, %cst_180 [1] : vector<24x160xf32> to vector<24xf32>
    %396 = vector.shape_cast %395 : vector<24xf32> to vector<24x1xf32>
    %397 = vector.broadcast %396 : vector<24x1xf32> to vector<24x160xf32>
    %398 = arith.subf %394, %397 : vector<24x160xf32>
    %399 = math.exp %398 : vector<24x160xf32>
    %cst_181 = arith.constant dense<0.000000e+00> : vector<24xf32>
    %400 = vector.multi_reduction <add>, %399, %cst_181 [1] : vector<24x160xf32> to vector<24xf32>
    %401 = vector.shape_cast %400 : vector<24xf32> to vector<24x1xf32>
    %402 = vector.broadcast %401 : vector<24x1xf32> to vector<24x160xf32>
    %403 = arith.divf %399, %402 : vector<24x160xf32>
    %404 = vector.extract_strided_slice %347 {offsets = [0, 32], sizes = [160, 16], strides = [1, 1]} : vector<160x64xf32> to vector<160x16xf32>
    %cst_182 = arith.constant dense<0.000000e+00> : vector<24x16xf32>
    %405 = tpu.matmul %403, %404, %cst_182 {dimension_numbers = #tpu.dot_dimension_numbers<[1], [0], [0], [1], [0, 0, 1, 1], [], []>} : vector<24x160xf32>, vector<160x16xf32>, vector<24x16xf32> -> vector<24x16xf32>
    %406 = vector.extract_strided_slice %337 {offsets = [32, 0], sizes = [16, 64], strides = [1, 1]} : vector<64x64xf32> to vector<16x64xf32>
    %cst_183 = arith.constant dense<0.000000e+00> : vector<24x64xf32>
    %407 = tpu.matmul %405, %406, %cst_183 {dimension_numbers = #tpu.dot_dimension_numbers<[1], [0], [0], [1], [0, 0, 1, 1], [], []>} : vector<24x16xf32>, vector<16x64xf32>, vector<24x64xf32> -> vector<24x64xf32>
    %408 = arith.addf %388, %407 : vector<24x64xf32>
    %409 = vector.extract_strided_slice %341 {offsets = [0, 48], sizes = [24, 16], strides = [1, 1]} : vector<24x64xf32> to vector<24x16xf32>
    %410 = vector.extract_strided_slice %344 {offsets = [0, 48], sizes = [160, 16], strides = [1, 1]} : vector<160x64xf32> to vector<160x16xf32>
    %cst_184 = arith.constant dense<0.000000e+00> : vector<24x160xf32>
    %411 = tpu.matmul %409, %410, %cst_184 {dimension_numbers = #tpu.dot_dimension_numbers<[1], [1], [0], [0], [0, 0, 1, 0], [], []>} : vector<24x16xf32>, vector<160x16xf32>, vector<24x160xf32> -> vector<24x160xf32>
    %cst_185 = arith.constant 2.500000e-01 : f32
    %412 = vector.broadcast %cst_185 : f32 to vector<24x160xf32>
    %413 = arith.mulf %411, %412 : vector<24x160xf32>
    %414 = arith.addf %413, %338 : vector<24x160xf32>
    %cst_186 = arith.constant dense<0xFF800000> : vector<24xf32>
    %415 = vector.multi_reduction <maximumf>, %414, %cst_186 [1] : vector<24x160xf32> to vector<24xf32>
    %416 = vector.shape_cast %415 : vector<24xf32> to vector<24x1xf32>
    %417 = vector.broadcast %416 : vector<24x1xf32> to vector<24x160xf32>
    %418 = arith.subf %414, %417 : vector<24x160xf32>
    %419 = math.exp %418 : vector<24x160xf32>
    %cst_187 = arith.constant dense<0.000000e+00> : vector<24xf32>
    %420 = vector.multi_reduction <add>, %419, %cst_187 [1] : vector<24x160xf32> to vector<24xf32>
    %421 = vector.shape_cast %420 : vector<24xf32> to vector<24x1xf32>
    %422 = vector.broadcast %421 : vector<24x1xf32> to vector<24x160xf32>
    %423 = arith.divf %419, %422 : vector<24x160xf32>
    %424 = vector.extract_strided_slice %347 {offsets = [0, 48], sizes = [160, 16], strides = [1, 1]} : vector<160x64xf32> to vector<160x16xf32>
    %cst_188 = arith.constant dense<0.000000e+00> : vector<24x16xf32>
    %425 = tpu.matmul %423, %424, %cst_188 {dimension_numbers = #tpu.dot_dimension_numbers<[1], [0], [0], [1], [0, 0, 1, 1], [], []>} : vector<24x160xf32>, vector<160x16xf32>, vector<24x16xf32> -> vector<24x16xf32>
    %426 = vector.extract_strided_slice %337 {offsets = [48, 0], sizes = [16, 64], strides = [1, 1]} : vector<64x64xf32> to vector<16x64xf32>
    %cst_189 = arith.constant dense<0.000000e+00> : vector<24x64xf32>
    %427 = tpu.matmul %425, %426, %cst_189 {dimension_numbers = #tpu.dot_dimension_numbers<[1], [0], [0], [1], [0, 0, 1, 1], [], []>} : vector<24x16xf32>, vector<16x64xf32>, vector<24x64xf32> -> vector<24x64xf32>
    %428 = arith.addf %408, %427 : vector<24x64xf32>
    %c0_190 = arith.constant 0 : index
    %c0_191 = arith.constant 0 : index
    %429 = vector.load %arg13[%c0_190, %c0_191] : memref<24x64xf32, #tpu.memory_space<vmem>>, vector<24x64xf32>
    tpu.vector_store %arg13[%c0_190, %c0_191], %428 {strides = array<i32>} : memref<24x64xf32, #tpu.memory_space<vmem>>, vector<24x64xf32>,
    %c0_192 = arith.constant 0 : index
    %c0_193 = arith.constant 0 : index
    %430 = vector.load %arg13[%c0_192, %c0_193] : memref<24x64xf32, #tpu.memory_space<vmem>>, vector<24x64xf32>
    %431 = arith.addf %326, %430 : vector<24x64xf32>
    %c22 = arith.constant 22 : index
    %c0_194 = arith.constant 0 : index
    %432 = vector.load %arg5[%c22, %c0_194] : memref<28x64xf32, #tpu.memory_space<vmem>>, vector<1x64xf32>
    %433 = vector.broadcast %432 : vector<1x64xf32> to vector<24x64xf32>
    %434 = arith.addf %431, %433 : vector<24x64xf32>
    %c23 = arith.constant 23 : index
    %c0_195 = arith.constant 0 : index
    %435 = vector.load %arg5[%c23, %c0_195] : memref<28x64xf32, #tpu.memory_space<vmem>>, vector<1x64xf32>
    %c24 = arith.constant 24 : index
    %c0_196 = arith.constant 0 : index
    %436 = vector.load %arg5[%c24, %c0_196] : memref<28x64xf32, #tpu.memory_space<vmem>>, vector<1x64xf32>
    %cst_197 = arith.constant dense<0.000000e+00> : vector<24xf32>
    %437 = vector.multi_reduction <add>, %434, %cst_197 [1] : vector<24x64xf32> to vector<24xf32>
    %438 = vector.shape_cast %437 : vector<24xf32> to vector<24x1xf32>
    %cst_198 = arith.constant 6.400000e+01 : f32
    %439 = vector.broadcast %cst_198 : f32 to vector<24x1xf32>
    %440 = arith.divf %438, %439 : vector<24x1xf32>
    %441 = vector.broadcast %440 : vector<24x1xf32> to vector<24x64xf32>
    %442 = arith.subf %434, %441 : vector<24x64xf32>
    %443 = arith.mulf %442, %442 : vector<24x64xf32>
    %cst_199 = arith.constant dense<0.000000e+00> : vector<24xf32>
    %444 = vector.multi_reduction <add>, %443, %cst_199 [1] : vector<24x64xf32> to vector<24xf32>
    %445 = vector.shape_cast %444 : vector<24xf32> to vector<24x1xf32>
    %cst_200 = arith.constant 6.400000e+01 : f32
    %446 = vector.broadcast %cst_200 : f32 to vector<24x1xf32>
    %447 = arith.divf %445, %446 : vector<24x1xf32>
    %448 = vector.broadcast %440 : vector<24x1xf32> to vector<24x64xf32>
    %449 = arith.subf %434, %448 : vector<24x64xf32>
    %cst_201 = arith.constant 9.99999974E-6 : f32
    %450 = vector.broadcast %cst_201 : f32 to vector<24x1xf32>
    %451 = arith.addf %447, %450 : vector<24x1xf32>
    %452 = math.rsqrt %451 : vector<24x1xf32>
    %453 = vector.broadcast %452 : vector<24x1xf32> to vector<24x64xf32>
    %454 = arith.mulf %449, %453 : vector<24x64xf32>
    %455 = vector.broadcast %435 : vector<1x64xf32> to vector<24x64xf32>
    %456 = arith.mulf %454, %455 : vector<24x64xf32>
    %457 = vector.broadcast %436 : vector<1x64xf32> to vector<24x64xf32>
    %458 = arith.addf %456, %457 : vector<24x64xf32>
    %c1_202 = arith.constant 1 : index
    %c0_203 = arith.constant 0 : index
    %c0_204 = arith.constant 0 : index
    %459 = vector.load %arg7[%c1_202, %c0_203, %c0_204] : memref<2x64x256xf32, #tpu.memory_space<vmem>>, vector<1x64x256xf32>
    %460 = vector.shape_cast %459 : vector<1x64x256xf32> to vector<64x256xf32>
    %cst_205 = arith.constant dense<0.000000e+00> : vector<24x256xf32>
    %461 = tpu.matmul %458, %460, %cst_205 {dimension_numbers = #tpu.dot_dimension_numbers<[1], [0], [0], [1], [0, 0, 1, 1], [], []>} : vector<24x64xf32>, vector<64x256xf32>, vector<24x256xf32> -> vector<24x256xf32>
    %c1_206 = arith.constant 1 : index
    %c0_207 = arith.constant 0 : index
    %462 = vector.load %arg8[%c1_206, %c0_207] : memref<2x256xf32, #tpu.memory_space<vmem>>, vector<1x256xf32>
    %463 = vector.broadcast %462 : vector<1x256xf32> to vector<24x256xf32>
    %464 = arith.addf %461, %463 : vector<24x256xf32>
    %cst_208 = arith.constant 0.000000e+00 : f32
    %465 = vector.broadcast %cst_208 : f32 to vector<24x256xf32>
    %466 = arith.maximumf %464, %465 : vector<24x256xf32>
    %c1_209 = arith.constant 1 : index
    %c0_210 = arith.constant 0 : index
    %c0_211 = arith.constant 0 : index
    %467 = vector.load %arg9[%c1_209, %c0_210, %c0_211] : memref<2x256x64xf32, #tpu.memory_space<vmem>>, vector<1x256x64xf32>
    %468 = vector.shape_cast %467 : vector<1x256x64xf32> to vector<256x64xf32>
    %cst_212 = arith.constant dense<0.000000e+00> : vector<24x64xf32>
    %469 = tpu.matmul %466, %468, %cst_212 {dimension_numbers = #tpu.dot_dimension_numbers<[1], [0], [0], [1], [0, 0, 1, 1], [], []>} : vector<24x256xf32>, vector<256x64xf32>, vector<24x64xf32> -> vector<24x64xf32>
    %c27 = arith.constant 27 : index
    %c0_213 = arith.constant 0 : index
    %470 = vector.load %arg5[%c27, %c0_213] : memref<28x64xf32, #tpu.memory_space<vmem>>, vector<1x64xf32>
    %471 = vector.broadcast %470 : vector<1x64xf32> to vector<24x64xf32>
    %472 = arith.addf %469, %471 : vector<24x64xf32>
    %473 = arith.addf %458, %472 : vector<24x64xf32>
    %c25 = arith.constant 25 : index
    %c0_214 = arith.constant 0 : index
    %474 = vector.load %arg5[%c25, %c0_214] : memref<28x64xf32, #tpu.memory_space<vmem>>, vector<1x64xf32>
    %c26 = arith.constant 26 : index
    %c0_215 = arith.constant 0 : index
    %475 = vector.load %arg5[%c26, %c0_215] : memref<28x64xf32, #tpu.memory_space<vmem>>, vector<1x64xf32>
    %cst_216 = arith.constant dense<0.000000e+00> : vector<24xf32>
    %476 = vector.multi_reduction <add>, %473, %cst_216 [1] : vector<24x64xf32> to vector<24xf32>
    %477 = vector.shape_cast %476 : vector<24xf32> to vector<24x1xf32>
    %cst_217 = arith.constant 6.400000e+01 : f32
    %478 = vector.broadcast %cst_217 : f32 to vector<24x1xf32>
    %479 = arith.divf %477, %478 : vector<24x1xf32>
    %480 = vector.broadcast %479 : vector<24x1xf32> to vector<24x64xf32>
    %481 = arith.subf %473, %480 : vector<24x64xf32>
    %482 = arith.mulf %481, %481 : vector<24x64xf32>
    %cst_218 = arith.constant dense<0.000000e+00> : vector<24xf32>
    %483 = vector.multi_reduction <add>, %482, %cst_218 [1] : vector<24x64xf32> to vector<24xf32>
    %484 = vector.shape_cast %483 : vector<24xf32> to vector<24x1xf32>
    %cst_219 = arith.constant 6.400000e+01 : f32
    %485 = vector.broadcast %cst_219 : f32 to vector<24x1xf32>
    %486 = arith.divf %484, %485 : vector<24x1xf32>
    %487 = vector.broadcast %479 : vector<24x1xf32> to vector<24x64xf32>
    %488 = arith.subf %473, %487 : vector<24x64xf32>
    %cst_220 = arith.constant 9.99999974E-6 : f32
    %489 = vector.broadcast %cst_220 : f32 to vector<24x1xf32>
    %490 = arith.addf %486, %489 : vector<24x1xf32>
    %491 = math.rsqrt %490 : vector<24x1xf32>
    %492 = vector.broadcast %491 : vector<24x1xf32> to vector<24x64xf32>
    %493 = arith.mulf %488, %492 : vector<24x64xf32>
    %494 = vector.broadcast %474 : vector<1x64xf32> to vector<24x64xf32>
    %495 = arith.mulf %493, %494 : vector<24x64xf32>
    %496 = vector.broadcast %475 : vector<1x64xf32> to vector<24x64xf32>
    %497 = arith.addf %495, %496 : vector<24x64xf32>
    %c0_221 = arith.constant 0 : index
    %c0_222 = arith.constant 0 : index
    %498 = vector.load %arg10[%c0_221, %c0_222] : memref<2x64xf32, #tpu.memory_space<vmem>>, vector<2x64xf32>
    %cst_223 = arith.constant dense<0.000000e+00> : vector<2x24xf32>
    %499 = tpu.matmul %498, %497, %cst_223 {dimension_numbers = #tpu.dot_dimension_numbers<[1], [1], [0], [0], [0, 0, 1, 0], [], []>} : vector<2x64xf32>, vector<24x64xf32>, vector<2x24xf32> -> vector<2x24xf32>
    %c0_224 = arith.constant 0 : index
    %c0_225 = arith.constant 0 : index
    %500 = vector.load %arg11[%c0_224, %c0_225] : memref<2x1xf32, #tpu.memory_space<vmem>>, vector<2x1xf32>
    %501 = vector.broadcast %500 : vector<2x1xf32> to vector<2x24xf32>
    %502 = arith.addf %499, %501 : vector<2x24xf32>
    %c0_226 = arith.constant 0 : index
    %c0_227 = arith.constant 0 : index
    %c0_228 = arith.constant 0 : index
    %503 = vector.load %arg12[%c0_226, %c0_227, %c0_228] : memref<1x2x24xf32, #tpu.memory_space<vmem>>, vector<1x2x24xf32>
    %504 = vector.shape_cast %503 : vector<1x2x24xf32> to vector<2x24xf32>
    %505 = vector.shape_cast %502 : vector<2x24xf32> to vector<1x2x24xf32>
    tpu.vector_store %arg12[%c0_226, %c0_227, %c0_228], %505 {strides = array<i32>} : memref<1x2x24xf32, #tpu.memory_space<vmem>>, vector<1x2x24xf32>,
    return
  }
  func.func @transform_0(%arg0: i32) -> (i32, i32) {
    %c0_i32 = arith.constant 0 : i32
    %c0_i32_0 = arith.constant 0 : i32
    return %arg0, %c0_i32 : i32, i32
  }
  func.func @transform_1(%arg0: i32) -> (i32, i32) {
    %c0_i32 = arith.constant 0 : i32
    %c0_i32_0 = arith.constant 0 : i32
    %c0_i32_1 = arith.constant 0 : i32
    return %c0_i32, %c0_i32_0 : i32, i32
  }
  func.func @transform_2(%arg0: i32) -> (i32, i32) {
    %c0_i32 = arith.constant 0 : i32
    %c0_i32_0 = arith.constant 0 : i32
    %c0_i32_1 = arith.constant 0 : i32
    return %c0_i32, %c0_i32_0 : i32, i32
  }
  func.func @transform_3(%arg0: i32) -> (i32, i32) {
    %c0_i32 = arith.constant 0 : i32
    %c0_i32_0 = arith.constant 0 : i32
    %c0_i32_1 = arith.constant 0 : i32
    return %c0_i32, %c0_i32_0 : i32, i32
  }
  func.func @transform_4(%arg0: i32) -> (i32, i32) {
    %c0_i32 = arith.constant 0 : i32
    %c0_i32_0 = arith.constant 0 : i32
    %c0_i32_1 = arith.constant 0 : i32
    return %c0_i32, %c0_i32_0 : i32, i32
  }
  func.func @transform_5(%arg0: i32) -> (i32, i32, i32) {
    %c0_i32 = arith.constant 0 : i32
    %c0_i32_0 = arith.constant 0 : i32
    %c0_i32_1 = arith.constant 0 : i32
    %c0_i32_2 = arith.constant 0 : i32
    return %c0_i32, %c0_i32_0, %c0_i32_1 : i32, i32, i32
  }
  func.func @transform_6(%arg0: i32) -> (i32, i32, i32) {
    %c0_i32 = arith.constant 0 : i32
    %c0_i32_0 = arith.constant 0 : i32
    %c0_i32_1 = arith.constant 0 : i32
    %c0_i32_2 = arith.constant 0 : i32
    return %c0_i32, %c0_i32_0, %c0_i32_1 : i32, i32, i32
  }
  func.func @transform_7(%arg0: i32) -> (i32, i32) {
    %c0_i32 = arith.constant 0 : i32
    %c0_i32_0 = arith.constant 0 : i32
    %c0_i32_1 = arith.constant 0 : i32
    return %c0_i32, %c0_i32_0 : i32, i32
  }
  func.func @transform_8(%arg0: i32) -> (i32, i32, i32) {
    %c0_i32 = arith.constant 0 : i32
    %c0_i32_0 = arith.constant 0 : i32
    %c0_i32_1 = arith.constant 0 : i32
    %c0_i32_2 = arith.constant 0 : i32
    return %c0_i32, %c0_i32_0, %c0_i32_1 : i32, i32, i32
  }
  func.func @transform_9(%arg0: i32) -> (i32, i32) {
    %c0_i32 = arith.constant 0 : i32
    %c0_i32_0 = arith.constant 0 : i32
    %c0_i32_1 = arith.constant 0 : i32
    return %c0_i32, %c0_i32_0 : i32, i32
  }
  func.func @transform_10(%arg0: i32) -> (i32, i32) {
    %c0_i32 = arith.constant 0 : i32
    %c0_i32_0 = arith.constant 0 : i32
    %c0_i32_1 = arith.constant 0 : i32
    return %c0_i32, %c0_i32_0 : i32, i32
  }
  func.func @transform_11(%arg0: i32) -> (i32, i32, i32) {
    %c0_i32 = arith.constant 0 : i32
    %c0_i32_0 = arith.constant 0 : i32
    %c0_i32_1 = arith.constant 0 : i32
    return %arg0, %c0_i32, %c0_i32_0 : i32, i32, i32
  }
}

</mosaic_0001>

<llo_original>
// kernel: tpu_custom_call.1
$region0: #{tpu_custom_call.1}
  #allocation0 [shape = 'u32[]', space=smem, size = 0x4, offset = 0x4, fixed_abs, tag = 'smem constant byte address 0x4 - core index']
  #allocation1 [shape = 'u32[72,128]{1,0:T(1,128)}', space=vmem, size = 0x9000, scoped, tag = 'internal scratch']
  #allocation2 [shape = 'f32[24,64]{1,0:T(8,128)}', space=vmem, size = 0x3000, scoped, tag = 'scratch operand']
  %s0 = inlined_call_operand.vmem [shape: f32[160,2], index: 0, kind: input, shape index: {}]
  %s1 = inlined_call_operand.vmem [shape: f32[24,64], index: 1, kind: input, shape index: {}]
  %s2 = inlined_call_operand.hbm [shape: f32[24,24], index: 2, kind: input, shape index: {}]
  %s3 = inlined_call_operand.vmem [shape: f32[24,160], index: 3, kind: input, shape index: {}]
  %s4 = inlined_call_operand.vmem [shape: f32[28,64], index: 4, kind: input, shape index: {}]
  %s5 = inlined_call_operand.vmem [shape: f32[13,64,64], index: 5, kind: input, shape index: {}]
  %s6 = inlined_call_operand.hbm [shape: f32[2,64,256], index: 6, kind: input, shape index: {}]
  %s7 = inlined_call_operand.vmem [shape: f32[2,256], index: 7, kind: input, shape index: {}]
  %s8 = inlined_call_operand.vmem [shape: f32[2,256,64], index: 8, kind: input, shape index: {}]
  %s9 = inlined_call_operand.hbm [shape: f32[2,64], index: 9, kind: input, shape index: {}]
  %s10 = inlined_call_operand.vmem [shape: f32[2,1], index: 10, kind: input, shape index: {}]
  %s11 = inlined_call_operand.hbm [shape: f32[1,2,24], index: 11, kind: output, shape index: {}]
  %s12 = sld [smem:[#allocation0]]
  $region66: #{tpu_custom_call.1} parent=0
    _
  %s14 = ssub.s32 1, %s12
  %s15 = scalar_select 0, %s14, %s12
  $region1: #{tpu_custom_call.1} parent=0
    #allocation3 [shape = 'u8[12288]{0}', space=vmem, size = 0x3000, scoped, tag = 'input window, operand 2, single buffered']
    #allocation4 [shape = 's32[1]{0}', space=sflag, size = 0x4, scoped, tag = 'scoped memory for tpu_custom_call.1']
    #allocation5 [shape = 's32[1]{0}', space=sflag, size = 0x4, scoped, tag = 'scoped memory for tpu_custom_call.1']
    #allocation6 [shape = 'u8[131072]{0}', space=vmem, size = 0x20000, scoped, tag = 'input window, operand 6, single buffered']
    #allocation7 [shape = 's32[1]{0}', space=sflag, size = 0x4, scoped, tag = 'scoped memory for tpu_custom_call.1']
    #allocation8 [shape = 'u8[1024]{0}', space=vmem, size = 0x400, scoped, tag = 'input window, operand 9, single buffered']
    #allocation9 [shape = 'u8[1024]{0}', space=vmem, size = 0x400, scoped, tag = 'output window, operand 0, single buffered']
    %16 = vsyncpa [#allocation4], 0
    %17 = vsyncpa [#allocation7], 0
    %18 = vsyncpa [#allocation5], 0
    // Predicated region
    $region2: #{tpu_custom_call.1} parent=1 // pred_check
      _
    $region3: #{tpu_custom_call.1} parent=1 // pred_check_branch
      %20 = sbr.rel (0) target = $region5
    $region4: #{tpu_custom_call.1} parent=1 // pred_region
      _
    $region5: #{tpu_custom_call.1} parent=1 // pred_fallthru
      _
    // Predicated region
    $region6: #{tpu_custom_call.1} parent=1 // pred_check
      _
    $region7: #{tpu_custom_call.1} parent=1 // pred_check_branch
      %22 = sbr.rel (0) target = $region9
    $region8: #{tpu_custom_call.1} parent=1 // pred_region
      _
    $region9: #{tpu_custom_call.1} parent=1 // pred_fallthru
      _
    // Predicated region
    $region10: #{tpu_custom_call.1} parent=1 // pred_check
      _
    $region11: #{tpu_custom_call.1} parent=1 // pred_check_branch
      %24 = sbr.rel (0) target = $region13
    $region12: #{tpu_custom_call.1} parent=1 // pred_region
      %26 = vsyncadd [#allocation4], 0
      %s27 = sshll.u32 %s2, 4
      %s28 = int_to_ptr.hbm [resolvable:$true] %s27
      %s29 = sshll.u32 [#allocation3], 4
      %s30 = int_to_ptr.vmem [resolvable:$true] %s29
      %35 = dma.hbm_to_vmem [thread:$0]  %s28, 384, %s30, [#allocation4], 128, 128, 8
    $region13: #{tpu_custom_call.1} parent=1 // pred_fallthru
      _
    // Predicated region
    $region14: #{tpu_custom_call.1} parent=1 // pred_check
      _
    $region15: #{tpu_custom_call.1} parent=1 // pred_check_branch
      %37 = sbr.rel (0) target = $region17
    $region16: #{tpu_custom_call.1} parent=1 // pred_region
      _
    $region17: #{tpu_custom_call.1} parent=1 // pred_fallthru
      _
    // Predicated region
    $region18: #{tpu_custom_call.1} parent=1 // pred_check
      _
    $region19: #{tpu_custom_call.1} parent=1 // pred_check_branch
      %39 = sbr.rel (0) target = $region21
    $region20: #{tpu_custom_call.1} parent=1 // pred_region
      _
    $region21: #{tpu_custom_call.1} parent=1 // pred_fallthru
      _
    // Predicated region
    $region22: #{tpu_custom_call.1} parent=1 // pred_check
      _
    $region23: #{tpu_custom_call.1} parent=1 // pred_check_branch
      %41 = sbr.rel (0) target = $region25
    $region24: #{tpu_custom_call.1} parent=1 // pred_region
      _
    $region25: #{tpu_custom_call.1} parent=1 // pred_fallthru
      _
    // Predicated region
    $region26: #{tpu_custom_call.1} parent=1 // pred_check
      _
    $region27: #{tpu_custom_call.1} parent=1 // pred_check_branch
      %43 = sbr.rel (0) target = $region29
    $region28: #{tpu_custom_call.1} parent=1 // pred_region
      %45 = vsyncadd [#allocation7], 0
      %s46 = sshll.u32 %s6, 4
      %s47 = int_to_ptr.hbm [resolvable:$true] %s46
      %s48 = sshll.u32 [#allocation6], 4
      %s49 = int_to_ptr.vmem [resolvable:$true] %s48
      %54 = dma.hbm_to_vmem [thread:$0]  %s47, 4096, %s49, [#allocation7], 256, 256, 16
    $region29: #{tpu_custom_call.1} parent=1 // pred_fallthru
      _
    // Predicated region
    $region30: #{tpu_custom_call.1} parent=1 // pred_check
      _
    $region31: #{tpu_custom_call.1} parent=1 // pred_check_branch
      %56 = sbr.rel (0) target = $region33
    $region32: #{tpu_custom_call.1} parent=1 // pred_region
      _
    $region33: #{tpu_custom_call.1} parent=1 // pred_fallthru
      _
    // Predicated region
    $region34: #{tpu_custom_call.1} parent=1 // pred_check
      _
    $region35: #{tpu_custom_call.1} parent=1 // pred_check_branch
      %58 = sbr.rel (0) target = $region37
    $region36: #{tpu_custom_call.1} parent=1 // pred_region
      _
    $region37: #{tpu_custom_call.1} parent=1 // pred_fallthru
      _
    // Predicated region
    $region38: #{tpu_custom_call.1} parent=1 // pred_check
      _
    $region39: #{tpu_custom_call.1} parent=1 // pred_check_branch
      %60 = sbr.rel (0) target = $region41
    $region40: #{tpu_custom_call.1} parent=1 // pred_region
      %62 = vsyncadd [#allocation7], 0
      %s64 = sshll.u32 %s9, 4
      %s65 = int_to_ptr.hbm [resolvable:$true] %s64
      %s66 = sshll.u32 [#allocation8], 4
      %s67 = int_to_ptr.vmem [resolvable:$true] %s66
      %69 = dma.hbm_to_vmem [thread:$0]  %s65, 32, %s67, [#allocation7]
    $region41: #{tpu_custom_call.1} parent=1 // pred_fallthru
      _
    // Predicated region
    $region42: #{tpu_custom_call.1} parent=1 // pred_check
      _
    $region43: #{tpu_custom_call.1} parent=1 // pred_check_branch
      %71 = sbr.rel (0) target = $region45
    $region44: #{tpu_custom_call.1} parent=1 // pred_region
      _
    $region45: #{tpu_custom_call.1} parent=1 // pred_fallthru
      _
    // Predicated region
    $region46: #{tpu_custom_call.1} parent=1 // pred_check
      _
    $region47: #{tpu_custom_call.1} parent=1 // pred_check_branch
      %73 = sbr.rel (0) target = $region49
    $region48: #{tpu_custom_call.1} parent=1 // pred_region
      %75 = dma.done [#allocation4], 384
    $region49: #{tpu_custom_call.1} parent=1 // pred_fallthru
      _
    // Predicated region
    $region50: #{tpu_custom_call.1} parent=1 // pred_check
      _
    $region51: #{tpu_custom_call.1} parent=1 // pred_check_branch
      %77 = sbr.rel (0) target = $region53
    $region52: #{tpu_custom_call.1} parent=1 // pred_region
      %79 = dma.done [#allocation7], 4096
    $region53: #{tpu_custom_call.1} parent=1 // pred_fallthru
      _
    // Predicated region
    $region54: #{tpu_custom_call.1} parent=1 // pred_check
      _
    $region55: #{tpu_custom_call.1} parent=1 // pred_check_branch
      %81 = sbr.rel (0) target = $region57
    $region56: #{tpu_custom_call.1} parent=1 // pred_region
      %83 = dma.done [#allocation7], 32
    $region57: #{tpu_custom_call.1} parent=1 // pred_fallthru
      _
    %v84 = vld [vmem:[%s0] sm:$0xff]
    %v85 = vld [vmem:[%s0 + $0x8] sm:$0xff]
    %v86 = vld [vmem:[%s0 + $0x10] sm:$0xff]
    %v87 = vld [vmem:[%s0 + $0x18] sm:$0xff]
    %v88 = vld [vmem:[%s0 + $0x20] sm:$0xff]
    %v89 = vld [vmem:[%s0 + $0x28] sm:$0xff]
    %v90 = vld [vmem:[%s0 + $0x30] sm:$0xff]
    %v91 = vld [vmem:[%s0 + $0x38] sm:$0xff]
    %v92 = vld [vmem:[%s0 + $0x40] sm:$0xff]
    %v93 = vld [vmem:[%s0 + $0x48] sm:$0xff]
    %v94 = vld [vmem:[%s0 + $0x50] sm:$0xff]
    %v95 = vld [vmem:[%s0 + $0x58] sm:$0xff]
    %v96 = vld [vmem:[%s0 + $0x60] sm:$0xff]
    %v97 = vld [vmem:[%s0 + $0x68] sm:$0xff]
    %v98 = vld [vmem:[%s0 + $0x70] sm:$0xff]
    %v99 = vld [vmem:[%s0 + $0x78] sm:$0xff]
    %v100 = vld [vmem:[%s0 + $0x80] sm:$0xff]
    %v101 = vld [vmem:[%s0 + $0x88] sm:$0xff]
    %v102 = vld [vmem:[%s0 + $0x90] sm:$0xff]
    %v103 = vld [vmem:[%s0 + $0x98] sm:$0xff]
    %v104 = vld [vmem:[%s4] sm:$0x1]
    %106 = vset.pattern.permute.xlu0 0
    %107 = vperm.xlu0 %106, %v84
    %v108 = vpop.permute.xlu0 %107
    %111 = vset.pattern.permute.xlu0 0
    %112 = vperm.xlu0 %111, %v85
    %v113 = vpop.permute.xlu0 %112
    %116 = vset.pattern.permute.xlu0 0
    %117 = vperm.xlu0 %116, %v86
    %v118 = vpop.permute.xlu0 %117
    %121 = vset.pattern.permute.xlu0 0
    %122 = vperm.xlu0 %121, %v87
    %v123 = vpop.permute.xlu0 %122
    %126 = vset.pattern.permute.xlu0 0
    %127 = vperm.xlu0 %126, %v88
    %v128 = vpop.permute.xlu0 %127
    %131 = vset.pattern.permute.xlu0 0
    %132 = vperm.xlu0 %131, %v89
    %v133 = vpop.permute.xlu0 %132
    %136 = vset.pattern.permute.xlu0 0
    %137 = vperm.xlu0 %136, %v90
    %v138 = vpop.permute.xlu0 %137
    %141 = vset.pattern.permute.xlu0 0
    %142 = vperm.xlu0 %141, %v91
    %v143 = vpop.permute.xlu0 %142
    %146 = vset.pattern.permute.xlu0 0
    %147 = vperm.xlu0 %146, %v92
    %v148 = vpop.permute.xlu0 %147
    %151 = vset.pattern.permute.xlu0 0
    %152 = vperm.xlu0 %151, %v93
    %v153 = vpop.permute.xlu0 %152
    %156 = vset.pattern.permute.xlu0 0
    %157 = vperm.xlu0 %156, %v94
    %v158 = vpop.permute.xlu0 %157
    %161 = vset.pattern.permute.xlu0 0
    %162 = vperm.xlu0 %161, %v95
    %v163 = vpop.permute.xlu0 %162
    %166 = vset.pattern.permute.xlu0 0
    %167 = vperm.xlu0 %166, %v96
    %v168 = vpop.permute.xlu0 %167
    %171 = vset.pattern.permute.xlu0 0
    %172 = vperm.xlu0 %171, %v97
    %v173 = vpop.permute.xlu0 %172
    %176 = vset.pattern.permute.xlu0 0
    %177 = vperm.xlu0 %176, %v98
    %v178 = vpop.permute.xlu0 %177
    %181 = vset.pattern.permute.xlu0 0
    %182 = vperm.xlu0 %181, %v99
    %v183 = vpop.permute.xlu0 %182
    %186 = vset.pattern.permute.xlu0 0
    %187 = vperm.xlu0 %186, %v100
    %v188 = vpop.permute.xlu0 %187
    %191 = vset.pattern.permute.xlu0 0
    %192 = vperm.xlu0 %191, %v101
    %v193 = vpop.permute.xlu0 %192
    %196 = vset.pattern.permute.xlu0 0
    %197 = vperm.xlu0 %196, %v102
    %v198 = vpop.permute.xlu0 %197
    %201 = vset.pattern.permute.xlu0 0
    %202 = vperm.xlu0 %201, %v103
    %v203 = vpop.permute.xlu0 %202
    %v205 = vperm.slane %v104, 0
    %v206 = vmul.f32 %v108, %v205
    %v207 = vmul.f32 %v113, %v205
    %v208 = vmul.f32 %v118, %v205
    %v209 = vmul.f32 %v123, %v205
    %v210 = vmul.f32 %v128, %v205
    %v211 = vmul.f32 %v133, %v205
    %v212 = vmul.f32 %v138, %v205
    %v213 = vmul.f32 %v143, %v205
    %v214 = vmul.f32 %v148, %v205
    %v215 = vmul.f32 %v153, %v205
    %v216 = vmul.f32 %v158, %v205
    %v217 = vmul.f32 %v163, %v205
    %v218 = vmul.f32 %v168, %v205
    %v219 = vmul.f32 %v173, %v205
    %v220 = vmul.f32 %v178, %v205
    %v221 = vmul.f32 %v183, %v205
    %v222 = vmul.f32 %v188, %v205
    %v223 = vmul.f32 %v193, %v205
    %v224 = vmul.f32 %v198, %v205
    %v225 = vmul.f32 %v203, %v205
    %v226 = vld [vmem:[%s4 + $0x1] sm:$0x1]
    %227 = vset.pattern.permute.xlu0 1
    %228 = vperm.xlu0 %227, %v84
    %v229 = vpop.permute.xlu0 %228
    %231 = vset.pattern.permute.xlu0 1
    %232 = vperm.xlu0 %231, %v85
    %v233 = vpop.permute.xlu0 %232
    %235 = vset.pattern.permute.xlu0 1
    %236 = vperm.xlu0 %235, %v86
    %v237 = vpop.permute.xlu0 %236
    %239 = vset.pattern.permute.xlu0 1
    %240 = vperm.xlu0 %239, %v87
    %v241 = vpop.permute.xlu0 %240
    %243 = vset.pattern.permute.xlu0 1
    %244 = vperm.xlu0 %243, %v88
    %v245 = vpop.permute.xlu0 %244
    %247 = vset.pattern.permute.xlu0 1
    %248 = vperm.xlu0 %247, %v89
    %v249 = vpop.permute.xlu0 %248
    %251 = vset.pattern.permute.xlu0 1
    %252 = vperm.xlu0 %251, %v90
    %v253 = vpop.permute.xlu0 %252
    %255 = vset.pattern.permute.xlu0 1
    %256 = vperm.xlu0 %255, %v91
    %v257 = vpop.permute.xlu0 %256
    %259 = vset.pattern.permute.xlu0 1
    %260 = vperm.xlu0 %259, %v92
    %v261 = vpop.permute.xlu0 %260
    %263 = vset.pattern.permute.xlu0 1
    %264 = vperm.xlu0 %263, %v93
    %v265 = vpop.permute.xlu0 %264
    %267 = vset.pattern.permute.xlu0 1
    %268 = vperm.xlu0 %267, %v94
    %v269 = vpop.permute.xlu0 %268
    %271 = vset.pattern.permute.xlu0 1
    %272 = vperm.xlu0 %271, %v95
    %v273 = vpop.permute.xlu0 %272
    %275 = vset.pattern.permute.xlu0 1
    %276 = vperm.xlu0 %275, %v96
    %v277 = vpop.permute.xlu0 %276
    %279 = vset.pattern.permute.xlu0 1
    %280 = vperm.xlu0 %279, %v97
    %v281 = vpop.permute.xlu0 %280
    %283 = vset.pattern.permute.xlu0 1
    %284 = vperm.xlu0 %283, %v98
    %v285 = vpop.permute.xlu0 %284
    %287 = vset.pattern.permute.xlu0 1
    %288 = vperm.xlu0 %287, %v99
    %v289 = vpop.permute.xlu0 %288
    %291 = vset.pattern.permute.xlu0 1
    %292 = vperm.xlu0 %291, %v100
    %v293 = vpop.permute.xlu0 %292
    %295 = vset.pattern.permute.xlu0 1
    %296 = vperm.xlu0 %295, %v101
    %v297 = vpop.permute.xlu0 %296
    %299 = vset.pattern.permute.xlu0 1
    %300 = vperm.xlu0 %299, %v102
    %v301 = vpop.permute.xlu0 %300
    %303 = vset.pattern.permute.xlu0 1
    %304 = vperm.xlu0 %303, %v103
    %v305 = vpop.permute.xlu0 %304
    %v307 = vperm.slane %v226, 0
    %v308 = vmul.f32 %v229, %v307
    %v309 = vmul.f32 %v233, %v307
    %v310 = vmul.f32 %v237, %v307
    %v311 = vmul.f32 %v241, %v307
    %v312 = vmul.f32 %v245, %v307
    %v313 = vmul.f32 %v249, %v307
    %v314 = vmul.f32 %v253, %v307
    %v315 = vmul.f32 %v257, %v307
    %v316 = vmul.f32 %v261, %v307
    %v317 = vmul.f32 %v265, %v307
    %v318 = vmul.f32 %v269, %v307
    %v319 = vmul.f32 %v273, %v307
    %v320 = vmul.f32 %v277, %v307
    %v321 = vmul.f32 %v281, %v307
    %v322 = vmul.f32 %v285, %v307
    %v323 = vmul.f32 %v289, %v307
    %v324 = vmul.f32 %v293, %v307
    %v325 = vmul.f32 %v297, %v307
    %v326 = vmul.f32 %v301, %v307
    %v327 = vmul.f32 %v305, %v307
    %v328 = vadd.f32 %v206, %v308
    %v329 = vadd.f32 %v207, %v309
    %v330 = vadd.f32 %v208, %v310
    %v331 = vadd.f32 %v209, %v311
    %v332 = vadd.f32 %v210, %v312
    %v333 = vadd.f32 %v211, %v313
    %v334 = vadd.f32 %v212, %v314
    %v335 = vadd.f32 %v213, %v315
    %v336 = vadd.f32 %v214, %v316
    %v337 = vadd.f32 %v215, %v317
    %v338 = vadd.f32 %v216, %v318
    %v339 = vadd.f32 %v217, %v319
    %v340 = vadd.f32 %v218, %v320
    %v341 = vadd.f32 %v219, %v321
    %v342 = vadd.f32 %v220, %v322
    %v343 = vadd.f32 %v221, %v323
    %v344 = vadd.f32 %v222, %v324
    %v345 = vadd.f32 %v223, %v325
    %v346 = vadd.f32 %v224, %v326
    %v347 = vadd.f32 %v225, %v327
    %v348 = vld [vmem:[%s4 + $0x2] sm:$0x1]
    %v349 = vperm.slane %v348, 0
    %v350 = vadd.f32 %v328, %v349
    %v351 = vadd.f32 %v329, %v349
    %v352 = vadd.f32 %v330, %v349
    %v353 = vadd.f32 %v331, %v349
    %v354 = vadd.f32 %v332, %v349
    %v355 = vadd.f32 %v333, %v349
    %v356 = vadd.f32 %v334, %v349
    %v357 = vadd.f32 %v335, %v349
    %v358 = vadd.f32 %v336, %v349
    %v359 = vadd.f32 %v337, %v349
    %v360 = vadd.f32 %v338, %v349
    %v361 = vadd.f32 %v339, %v349
    %v362 = vadd.f32 %v340, %v349
    %v363 = vadd.f32 %v341, %v349
    %v364 = vadd.f32 %v342, %v349
    %v365 = vadd.f32 %v343, %v349
    %v366 = vadd.f32 %v344, %v349
    %v367 = vadd.f32 %v345, %v349
    %v368 = vadd.f32 %v346, %v349
    %v369 = vadd.f32 %v347, %v349
    %v370 = vmax.f32 %v350, 0.0
    %v371 = vmax.f32 %v351, 0.0
    %v372 = vmax.f32 %v352, 0.0
    %v373 = vmax.f32 %v353, 0.0
    %v374 = vmax.f32 %v354, 0.0
    %v375 = vmax.f32 %v355, 0.0
    %v376 = vmax.f32 %v356, 0.0
    %v377 = vmax.f32 %v357, 0.0
    %v378 = vmax.f32 %v358, 0.0
    %v379 = vmax.f32 %v359, 0.0
    %v380 = vmax.f32 %v360, 0.0
    %v381 = vmax.f32 %v361, 0.0
    %v382 = vmax.f32 %v362, 0.0
    %v383 = vmax.f32 %v363, 0.0
    %v384 = vmax.f32 %v364, 0.0
    %v385 = vmax.f32 %v365, 0.0
    %v386 = vmax.f32 %v366, 0.0
    %v387 = vmax.f32 %v367, 0.0
    %v388 = vmax.f32 %v368, 0.0
    %v389 = vmax.f32 %v369, 0.0
    %v390 = vld [vmem:[%s5] sm:$0xff]
    %v391 = vld [vmem:[%s5 + $0x8] sm:$0xff]
    %v392 = vld [vmem:[%s5 + $0x10] sm:$0xff]
    %v393 = vld [vmem:[%s5 + $0x18] sm:$0xff]
    %v394 = vld [vmem:[%s5 + $0x20] sm:$0xff]
    %v395 = vld [vmem:[%s5 + $0x28] sm:$0xff]
    %v396 = vld [vmem:[%s5 + $0x30] sm:$0xff]
    %v397 = vld [vmem:[%s5 + $0x38] sm:$0xff]
    %v398 = vld [vmem:[%s4 + $0x3] sm:$0x1]
    %v399 = vperm.slane %v398, 0
    %vm400 = vcmask 523264
    %v402 = vsel %vm400, %v370, 0
    %v405 = vsel %vm400, %v371, 0
    %v408 = vsel %vm400, %v372, 0
    %v411 = vsel %vm400, %v373, 0
    %v414 = vsel %vm400, %v374, 0
    %v417 = vsel %vm400, %v375, 0
    %v420 = vsel %vm400, %v376, 0
    %v423 = vsel %vm400, %v377, 0
    %v426 = vsel %vm400, %v378, 0
    %v429 = vsel %vm400, %v379, 0
    %v432 = vsel %vm400, %v380, 0
    %v435 = vsel %vm400, %v381, 0
    %v438 = vsel %vm400, %v382, 0
    %v441 = vsel %vm400, %v383, 0
    %v444 = vsel %vm400, %v384, 0
    %v447 = vsel %vm400, %v385, 0
    %v450 = vsel %vm400, %v386, 0
    %v453 = vsel %vm400, %v387, 0
    %v456 = vsel %vm400, %v388, 0
    %v459 = vsel %vm400, %v389, 0
    %461 = vmatpush.msra.mxu0 0.0
    %462 = vmatpush.msra.mxu0 0.0
    %463 = vmatpush.msra.mxu0 0.0
    %464 = vmatpush.msra.mxu0 0.0
    %465 = vmatpush.msra.mxu0 0.0
    %466 = vmatpush.msra.mxu0 0.0
    %467 = vmatpush.msra.mxu0 0.0
    %468 = vmatpush.msra.mxu0 0.0
    %469 = vmatpush.msra.mxu0 %v397
    %470 = vmatpush.msra.mxu0 %v396
    %471 = vmatpush.msra.mxu0 %v395
    %472 = vmatpush.msra.mxu0 %v394
    %473 = vmatpush.msra.mxu0 %v393
    %474 = vmatpush.msra.mxu0 %v392
    %475 = vmatpush.msra.mxu0 %v391
    %476 = vmatpush.msra.mxu0 %v390
    %477 = vmatmul.f32.gmra.mxu0 %v402
    %v478 = vpop.f32.mrf.mxu0
    %v479 = vadd.f32 %v399, %v478
    %480 = vmatmul.f32.gmra.mxu0 %v405
    %v481 = vpop.f32.mrf.mxu0
    %v482 = vadd.f32 %v399, %v481
    %483 = vmatmul.f32.gmra.mxu0 %v408
    %v484 = vpop.f32.mrf.mxu0
    %v485 = vadd.f32 %v399, %v484
    %486 = vmatmul.f32.gmra.mxu0 %v411
    %v487 = vpop.f32.mrf.mxu0
    %v488 = vadd.f32 %v399, %v487
    %489 = vmatmul.f32.gmra.mxu0 %v414
    %v490 = vpop.f32.mrf.mxu0
    %v491 = vadd.f32 %v399, %v490
    %492 = vmatmul.f32.gmra.mxu0 %v417
    %v493 = vpop.f32.mrf.mxu0
    %v494 = vadd.f32 %v399, %v493
    %495 = vmatmul.f32.gmra.mxu0 %v420
    %v496 = vpop.f32.mrf.mxu0
    %v497 = vadd.f32 %v399, %v496
    %498 = vmatmul.f32.gmra.mxu0 %v423
    %v499 = vpop.f32.mrf.mxu0
    %v500 = vadd.f32 %v399, %v499
    %501 = vmatmul.f32.gmra.mxu0 %v426
    %v502 = vpop.f32.mrf.mxu0
    %v503 = vadd.f32 %v399, %v502
    %504 = vmatmul.f32.gmra.mxu0 %v429
    %v505 = vpop.f32.mrf.mxu0
    %v506 = vadd.f32 %v399, %v505
    %507 = vmatmul.f32.gmra.mxu0 %v432
    %v508 = vpop.f32.mrf.mxu0
    %v509 = vadd.f32 %v399, %v508
    %510 = vmatmul.f32.gmra.mxu0 %v435
    %v511 = vpop.f32.mrf.mxu0
    %v512 = vadd.f32 %v399, %v511
    %513 = vmatmul.f32.gmra.mxu0 %v438
    %v514 = vpop.f32.mrf.mxu0
    %v515 = vadd.f32 %v399, %v514
    %516 = vmatmul.f32.gmra.mxu0 %v441
    %v517 = vpop.f32.mrf.mxu0
    %v518 = vadd.f32 %v399, %v517
    %519 = vmatmul.f32.gmra.mxu0 %v444
    %v520 = vpop.f32.mrf.mxu0
    %v521 = vadd.f32 %v399, %v520
    %522 = vmatmul.f32.gmra.mxu0 %v447
    %v523 = vpop.f32.mrf.mxu0
    %v524 = vadd.f32 %v399, %v523
    %525 = vmatmul.f32.gmra.mxu0 %v450
    %v526 = vpop.f32.mrf.mxu0
    %v527 = vadd.f32 %v399, %v526
    %528 = vmatmul.f32.gmra.mxu0 %v453
    %v529 = vpop.f32.mrf.mxu0
    %v530 = vadd.f32 %v399, %v529
    %531 = vmatmul.f32.gmra.mxu0 %v456
    %v532 = vpop.f32.mrf.mxu0
    %v533 = vadd.f32 %v399, %v532
    %534 = vmatmul.f32.gmra.mxu0 %v459
    %v535 = vpop.f32.mrf.mxu0
    %v536 = vadd.f32 %v399, %v535
    %537 = vdwg.mxu0
    %v538 = vld [vmem:[%s1] sm:$0xff]
    %v539 = vld [vmem:[%s1 + $0x8] sm:$0xff]
    %v540 = vld [vmem:[%s1 + $0x10] sm:$0xff]
    %s541 = scalar_lea.vmem %s5, 320
    %v542 = vld [vmem:[%s541] sm:$0xff]
    %v543 = vld [vmem:[%s541 + $0x8] sm:$0xff]
    %v544 = vld [vmem:[%s541 + $0x10] sm:$0xff]
    %v545 = vld [vmem:[%s541 + $0x18] sm:$0xff]
    %v546 = vld [vmem:[%s541 + $0x20] sm:$0xff]
    %v547 = vld [vmem:[%s541 + $0x28] sm:$0xff]
    %v548 = vld [vmem:[%s541 + $0x30] sm:$0xff]
    %v549 = vld [vmem:[%s541 + $0x38] sm:$0xff]
    %s550 = scalar_lea.vmem %s5, 384
    %v551 = vld [vmem:[%s550] sm:$0xff]
    %v552 = vld [vmem:[%s550 + $0x8] sm:$0xff]
    %v553 = vld [vmem:[%s550 + $0x10] sm:$0xff]
    %v554 = vld [vmem:[%s550 + $0x18] sm:$0xff]
    %v555 = vld [vmem:[%s550 + $0x20] sm:$0xff]
    %v556 = vld [vmem:[%s550 + $0x28] sm:$0xff]
    %v557 = vld [vmem:[%s550 + $0x30] sm:$0xff]
    %v558 = vld [vmem:[%s550 + $0x38] sm:$0xff]
    %s559 = scalar_lea.vmem %s5, 448
    %v560 = vld [vmem:[%s559] sm:$0xff]
    %v561 = vld [vmem:[%s559 + $0x8] sm:$0xff]
    %v562 = vld [vmem:[%s559 + $0x10] sm:$0xff]
    %v563 = vld [vmem:[%s559 + $0x18] sm:$0xff]
    %v564 = vld [vmem:[%s559 + $0x20] sm:$0xff]
    %v565 = vld [vmem:[%s559 + $0x28] sm:$0xff]
    %v566 = vld [vmem:[%s559 + $0x30] sm:$0xff]
    %v567 = vld [vmem:[%s559 + $0x38] sm:$0xff]
    %v568 = vld [vmem:[%s4 + $0xa] sm:$0x1]
    %v569 = vld [vmem:[%s4 + $0xb] sm:$0x1]
    %v570 = vld [vmem:[%s4 + $0xc] sm:$0x1]
    %s571 = scalar_lea.vmem %s5, 512
    %v572 = vld [vmem:[%s571] sm:$0xff]
    %v573 = vld [vmem:[%s571 + $0x8] sm:$0xff]
    %v574 = vld [vmem:[%s571 + $0x10] sm:$0xff]
    %v575 = vld [vmem:[%s571 + $0x18] sm:$0xff]
    %v576 = vld [vmem:[%s571 + $0x20] sm:$0xff]
    %v577 = vld [vmem:[%s571 + $0x28] sm:$0xff]
    %v578 = vld [vmem:[%s571 + $0x30] sm:$0xff]
    %v579 = vld [vmem:[%s571 + $0x38] sm:$0xff]
    %v580 = vld [vmem:[%s3] sm:$0xff]
    %v581 = vld [vmem:[%s3 + $0x8] sm:$0xff]
    %v582 = vld [vmem:[%s3 + $0x10] sm:$0xff]
    %v583 = vld [vmem:[%s3 + $0x18] sm:$0xff]
    %v584 = vld [vmem:[%s3 + $0x20] sm:$0xff]
    %v585 = vld [vmem:[%s3 + $0x28] sm:$0xff]
    %v586 = vperm.slane %v568, 0
    %v588 = vsel %vm400, %v538, 0
    %v591 = vsel %vm400, %v539, 0
    %v594 = vsel %vm400, %v540, 0
    %596 = vmatpush.msra.mxu0 0.0
    %597 = vmatpush.msra.mxu0 0.0
    %598 = vmatpush.msra.mxu0 0.0
    %599 = vmatpush.msra.mxu0 0.0
    %600 = vmatpush.msra.mxu0 0.0
    %601 = vmatpush.msra.mxu0 0.0
    %602 = vmatpush.msra.mxu0 0.0
    %603 = vmatpush.msra.mxu0 0.0
    %604 = vmatpush.msra.mxu0 %v549
    %605 = vmatpush.msra.mxu0 %v548
    %606 = vmatpush.msra.mxu0 %v547
    %607 = vmatpush.msra.mxu0 %v546
    %608 = vmatpush.msra.mxu0 %v545
    %609 = vmatpush.msra.mxu0 %v544
    %610 = vmatpush.msra.mxu0 %v543
    %611 = vmatpush.msra.mxu0 %v542
    %612 = vmatmul.f32.gmra.mxu0 %v588
    %v613 = vpop.f32.mrf.mxu0
    %v614 = vadd.f32 %v586, %v613
    %615 = vmatmul.f32.gmra.mxu0 %v591
    %v616 = vpop.f32.mrf.mxu0
    %v617 = vadd.f32 %v586, %v616
    %618 = vmatmul.f32.gmra.mxu0 %v594
    %v619 = vpop.f32.mrf.mxu0
    %v620 = vadd.f32 %v586, %v619
    %621 = vdwg.mxu0
    %v622 = vperm.slane %v569, 0
    %v624 = vsel %vm400, %v479, 0
    %v627 = vsel %vm400, %v482, 0
    %v630 = vsel %vm400, %v485, 0
    %v633 = vsel %vm400, %v488, 0
    %v636 = vsel %vm400, %v491, 0
    %v639 = vsel %vm400, %v494, 0
    %v642 = vsel %vm400, %v497, 0
    %v645 = vsel %vm400, %v500, 0
    %v648 = vsel %vm400, %v503, 0
    %v651 = vsel %vm400, %v506, 0
    %v654 = vsel %vm400, %v509, 0
    %v657 = vsel %vm400, %v512, 0
    %v660 = vsel %vm400, %v515, 0
    %v663 = vsel %vm400, %v518, 0
    %v666 = vsel %vm400, %v521, 0
    %v669 = vsel %vm400, %v524, 0
    %v672 = vsel %vm400, %v527, 0
    %v675 = vsel %vm400, %v530, 0
    %v678 = vsel %vm400, %v533, 0
    %v681 = vsel %vm400, %v536, 0
    %683 = vmatpush.msra.mxu0 0.0
    %684 = vmatpush.msra.mxu0 0.0
    %685 = vmatpush.msra.mxu0 0.0
    %686 = vmatpush.msra.mxu0 0.0
    %687 = vmatpush.msra.mxu0 0.0
    %688 = vmatpush.msra.mxu0 0.0
    %689 = vmatpush.msra.mxu0 0.0
    %690 = vmatpush.msra.mxu0 0.0
    %691 = vmatpush.msra.mxu0 %v558
    %692 = vmatpush.msra.mxu0 %v557
    %693 = vmatpush.msra.mxu0 %v556
    %694 = vmatpush.msra.mxu0 %v555
    %695 = vmatpush.msra.mxu0 %v554
    %696 = vmatpush.msra.mxu0 %v553
    %697 = vmatpush.msra.mxu0 %v552
    %698 = vmatpush.msra.mxu0 %v551
    %699 = vmatmul.f32.gmra.mxu0 %v624
    %v700 = vpop.f32.mrf.mxu0
    %v701 = vadd.f32 %v622, %v700
    %702 = vmatmul.f32.gmra.mxu0 %v627
    %v703 = vpop.f32.mrf.mxu0
    %v704 = vadd.f32 %v622, %v703
    %705 = vmatmul.f32.gmra.mxu0 %v630
    %v706 = vpop.f32.mrf.mxu0
    %v707 = vadd.f32 %v622, %v706
    %708 = vmatmul.f32.gmra.mxu0 %v633
    %v709 = vpop.f32.mrf.mxu0
    %v710 = vadd.f32 %v622, %v709
    %711 = vmatmul.f32.gmra.mxu0 %v636
    %v712 = vpop.f32.mrf.mxu0
    %v713 = vadd.f32 %v622, %v712
    %714 = vmatmul.f32.gmra.mxu0 %v639
    %v715 = vpop.f32.mrf.mxu0
    %v716 = vadd.f32 %v622, %v715
    %717 = vmatmul.f32.gmra.mxu0 %v642
    %v718 = vpop.f32.mrf.mxu0
    %v719 = vadd.f32 %v622, %v718
    %720 = vmatmul.f32.gmra.mxu0 %v645
    %v721 = vpop.f32.mrf.mxu0
    %v722 = vadd.f32 %v622, %v721
    %723 = vmatmul.f32.gmra.mxu0 %v648
    %v724 = vpop.f32.mrf.mxu0
    %v725 = vadd.f32 %v622, %v724
    %726 = vmatmul.f32.gmra.mxu0 %v651
    %v727 = vpop.f32.mrf.mxu0
    %v728 = vadd.f32 %v622, %v727
    %729 = vmatmul.f32.gmra.mxu0 %v654
    %v730 = vpop.f32.mrf.mxu0
    %v731 = vadd.f32 %v622, %v730
    %732 = vmatmul.f32.gmra.mxu0 %v657
    %v733 = vpop.f32.mrf.mxu0
    %v734 = vadd.f32 %v622, %v733
    %735 = vmatmul.f32.gmra.mxu0 %v660
    %v736 = vpop.f32.mrf.mxu0
    %v737 = vadd.f32 %v622, %v736
    %738 = vmatmul.f32.gmra.mxu0 %v663
    %v739 = vpop.f32.mrf.mxu0
    %v740 = vadd.f32 %v622, %v739
    %741 = vmatmul.f32.gmra.mxu0 %v666
    %v742 = vpop.f32.mrf.mxu0
    %v743 = vadd.f32 %v622, %v742
    %744 = vmatmul.f32.gmra.mxu0 %v669
    %v745 = vpop.f32.mrf.mxu0
    %v746 = vadd.f32 %v622, %v745
    %747 = vmatmul.f32.gmra.mxu0 %v672
    %v748 = vpop.f32.mrf.mxu0
    %v749 = vadd.f32 %v622, %v748
    %750 = vmatmul.f32.gmra.mxu0 %v675
    %v751 = vpop.f32.mrf.mxu0
    %v752 = vadd.f32 %v622, %v751
    %753 = vmatmul.f32.gmra.mxu0 %v678
    %v754 = vpop.f32.mrf.mxu0
    %v755 = vadd.f32 %v622, %v754
    %756 = vmatmul.f32.gmra.mxu0 %v681
    %v757 = vpop.f32.mrf.mxu0
    %v758 = vadd.f32 %v622, %v757
    %759 = vdwg.mxu0
    %v760 = vperm.slane %v570, 0
    %761 = vmatpush.msra.mxu0 0.0
    %762 = vmatpush.msra.mxu0 0.0
    %763 = vmatpush.msra.mxu0 0.0
    %764 = vmatpush.msra.mxu0 0.0
    %765 = vmatpush.msra.mxu0 0.0
    %766 = vmatpush.msra.mxu0 0.0
    %767 = vmatpush.msra.mxu0 0.0
    %768 = vmatpush.msra.mxu0 0.0
    %769 = vmatpush.msra.mxu0 %v567
    %770 = vmatpush.msra.mxu0 %v566
    %771 = vmatpush.msra.mxu0 %v565
    %772 = vmatpush.msra.mxu0 %v564
    %773 = vmatpush.msra.mxu0 %v563
    %774 = vmatpush.msra.mxu0 %v562
    %775 = vmatpush.msra.mxu0 %v561
    %776 = vmatpush.msra.mxu0 %v560
    %777 = vmatmul.f32.gmra.mxu0 %v624
    %v778 = vpop.f32.mrf.mxu0
    %v779 = vadd.f32 %v760, %v778
    %780 = vmatmul.f32.gmra.mxu0 %v627
    %v781 = vpop.f32.mrf.mxu0
    %v782 = vadd.f32 %v760, %v781
    %783 = vmatmul.f32.gmra.mxu0 %v630
    %v784 = vpop.f32.mrf.mxu0
    %v785 = vadd.f32 %v760, %v784
    %786 = vmatmul.f32.gmra.mxu0 %v633
    %v787 = vpop.f32.mrf.mxu0
    %v788 = vadd.f32 %v760, %v787
    %789 = vmatmul.f32.gmra.mxu0 %v636
    %v790 = vpop.f32.mrf.mxu0
    %v791 = vadd.f32 %v760, %v790
    %792 = vmatmul.f32.gmra.mxu0 %v639
    %v793 = vpop.f32.mrf.mxu0
    %v794 = vadd.f32 %v760, %v793
    %795 = vmatmul.f32.gmra.mxu0 %v642
    %v796 = vpop.f32.mrf.mxu0
    %v797 = vadd.f32 %v760, %v796
    %798 = vmatmul.f32.gmra.mxu0 %v645
    %v799 = vpop.f32.mrf.mxu0
    %v800 = vadd.f32 %v760, %v799
    %801 = vmatmul.f32.gmra.mxu0 %v648
    %v802 = vpop.f32.mrf.mxu0
    %v803 = vadd.f32 %v760, %v802
    %804 = vmatmul.f32.gmra.mxu0 %v651
    %v805 = vpop.f32.mrf.mxu0
    %v806 = vadd.f32 %v760, %v805
    %807 = vmatmul.f32.gmra.mxu0 %v654
    %v808 = vpop.f32.mrf.mxu0
    %v809 = vadd.f32 %v760, %v808
    %810 = vmatmul.f32.gmra.mxu0 %v657
    %v811 = vpop.f32.mrf.mxu0
    %v812 = vadd.f32 %v760, %v811
    %813 = vmatmul.f32.gmra.mxu0 %v660
    %v814 = vpop.f32.mrf.mxu0
    %v815 = vadd.f32 %v760, %v814
    %816 = vmatmul.f32.gmra.mxu0 %v663
    %v817 = vpop.f32.mrf.mxu0
    %v818 = vadd.f32 %v760, %v817
    %819 = vmatmul.f32.gmra.mxu0 %v666
    %v820 = vpop.f32.mrf.mxu0
    %v821 = vadd.f32 %v760, %v820
    %822 = vmatmul.f32.gmra.mxu0 %v669
    %v823 = vpop.f32.mrf.mxu0
    %v824 = vadd.f32 %v760, %v823
    %825 = vmatmul.f32.gmra.mxu0 %v672
    %v826 = vpop.f32.mrf.mxu0
    %v827 = vadd.f32 %v760, %v826
    %828 = vmatmul.f32.gmra.mxu0 %v675
    %v829 = vpop.f32.mrf.mxu0
    %v830 = vadd.f32 %v760, %v829
    %831 = vmatmul.f32.gmra.mxu0 %v678
    %v832 = vpop.f32.mrf.mxu0
    %v833 = vadd.f32 %v760, %v832
    %834 = vmatmul.f32.gmra.mxu0 %v681
    %v835 = vpop.f32.mrf.mxu0
    %v836 = vadd.f32 %v760, %v835
    %837 = vdwg.mxu0
    %vm838 = vcmask 130048
    %v840 = vsel %vm838, %v614, 0
    %v843 = vsel %vm838, %v617, 0
    %v846 = vsel %vm838, %v620, 0
    %v849 = vsel %vm838, %v701, 0
    %v852 = vsel %vm838, %v704, 0
    %v855 = vsel %vm838, %v707, 0
    %v858 = vsel %vm838, %v710, 0
    %v861 = vsel %vm838, %v713, 0
    %v864 = vsel %vm838, %v716, 0
    %v867 = vsel %vm838, %v719, 0
    %v870 = vsel %vm838, %v722, 0
    %v873 = vsel %vm838, %v725, 0
    %v876 = vsel %vm838, %v728, 0
    %v879 = vsel %vm838, %v731, 0
    %v882 = vsel %vm838, %v734, 0
    %v885 = vsel %vm838, %v737, 0
    %v888 = vsel %vm838, %v740, 0
    %v891 = vsel %vm838, %v743, 0
    %v894 = vsel %vm838, %v746, 0
    %v897 = vsel %vm838, %v749, 0
    %v900 = vsel %vm838, %v752, 0
    %v903 = vsel %vm838, %v755, 0
    %v906 = vsel %vm838, %v758, 0
    %908 = vmatpush.xpose.msra.mxu0 %v894
    %909 = vmatpush.xpose.msra.mxu0 %v891
    %910 = vmatpush.xpose.msra.mxu0 %v888
    %911 = vmatpush.xpose.msra.mxu0 %v885
    %912 = vmatpush.xpose.msra.mxu0 %v882
    %913 = vmatpush.xpose.msra.mxu0 %v879
    %914 = vmatpush.xpose.msra.mxu0 %v876
    %915 = vmatpush.xpose.msra.mxu0 %v873
    %916 = vmatpush.xpose.msra.mxu0 %v870
    %917 = vmatpush.xpose.msra.mxu0 %v867
    %918 = vmatpush.xpose.msra.mxu0 %v864
    %919 = vmatpush.xpose.msra.mxu0 %v861
    %920 = vmatpush.xpose.msra.mxu0 %v858
    %921 = vmatpush.xpose.msra.mxu0 %v855
    %922 = vmatpush.xpose.msra.mxu0 %v852
    %923 = vmatpush.xpose.msra.mxu0 %v849
    %924 = vmatmul.f32.gmra.mxu0 %v840
    %v925 = vpop.f32.mrf.mxu0
    %v926 = vadd.f32 0.0, %v925
    %927 = vmatmul.f32.gmra.mxu0 %v843
    %v928 = vpop.f32.mrf.mxu0
    %v929 = vadd.f32 0.0, %v928
    %930 = vmatmul.f32.gmra.mxu0 %v846
    %v931 = vpop.f32.mrf.mxu0
    %v932 = vadd.f32 0.0, %v931
    %933 = vdwg.mxu0
    %934 = vmatpush.xpose.msra.mxu0 0.0
    %935 = vmatpush.xpose.msra.mxu0 0.0
    %936 = vmatpush.xpose.msra.mxu0 0.0
    %937 = vmatpush.xpose.msra.mxu0 0.0
    %938 = vmatpush.xpose.msra.mxu0 0.0
    %939 = vmatpush.xpose.msra.mxu0 0.0
    %940 = vmatpush.xpose.msra.mxu0 0.0
    %941 = vmatpush.xpose.msra.mxu0 0.0
    %942 = vmatpush.xpose.msra.mxu0 0.0
    %943 = vmatpush.xpose.msra.mxu0 0.0
    %944 = vmatpush.xpose.msra.mxu0 0.0
    %945 = vmatpush.xpose.msra.mxu0 0.0
    %946 = vmatpush.xpose.msra.mxu0 %v906
    %947 = vmatpush.xpose.msra.mxu0 %v903
    %948 = vmatpush.xpose.msra.mxu0 %v900
    %949 = vmatpush.xpose.msra.mxu0 %v897
    %950 = vmatmul.f32.gmra.mxu0 %v840
    %v951 = vpop.f32.mrf.mxu0
    %v952 = vadd.f32 0.0, %v951
    %953 = vmatmul.f32.gmra.mxu0 %v843
    %v954 = vpop.f32.mrf.mxu0
    %v955 = vadd.f32 0.0, %v954
    %956 = vmatmul.f32.gmra.mxu0 %v846
    %v957 = vpop.f32.mrf.mxu0
    %v958 = vadd.f32 0.0, %v957
    %959 = vdwg.mxu0
    %v960 = vmul.f32 %v926, 0.25
    %v961 = vmul.f32 %v952, 0.25
    %v962 = vmul.f32 %v929, 0.25
    %v963 = vmul.f32 %v955, 0.25
    %v964 = vmul.f32 %v932, 0.25
    %v965 = vmul.f32 %v958, 0.25
    %v966 = vadd.f32 %v960, %v580
    %v967 = vadd.f32 %v961, %v581
    %v968 = vadd.f32 %v962, %v582
    %v969 = vadd.f32 %v963, %v583
    %v970 = vadd.f32 %v964, %v584
    %v971 = vadd.f32 %v965, %v585
    %vm972 = vcmask 261120
    %v973 = vsel %vm972, %v967, -inf
    %v974 = vmax.f32 %v966, %v973
    %975 = vmax.xlane.f32.xlu0 %v974
    %v976 = vpop.xlane.xlu0 %975
    %v977 = vsel %vm972, %v969, -inf
    %v978 = vmax.f32 %v968, %v977
    %979 = vmax.xlane.f32.xlu0 %v978
    %v980 = vpop.xlane.xlu0 %979
    %v981 = vsel %vm972, %v971, -inf
    %v982 = vmax.f32 %v970, %v981
    %983 = vmax.xlane.f32.xlu0 %v982
    %v984 = vpop.xlane.xlu0 %983
    %v985 = vsub.f32 %v966, %v976
    %v986 = vsub.f32 %v967, %v976
    %v987 = vsub.f32 %v968, %v980
    %v988 = vsub.f32 %v969, %v980
    %v989 = vsub.f32 %v970, %v984
    %v990 = vsub.f32 %v971, %v984
    %v991 = vmul.f32 %v985, 1.442695
    %v992 = vpow.pop %v991
    %v993 = vmul.f32 %v986, 1.442695
    %v994 = vpow.pop %v993
    %v995 = vmul.f32 %v987, 1.442695
    %v996 = vpow.pop %v995
    %v997 = vmul.f32 %v988, 1.442695
    %v998 = vpow.pop %v997
    %v999 = vmul.f32 %v989, 1.442695
    %v1000 = vpow.pop %v999
    %v1001 = vmul.f32 %v990, 1.442695
    %v1002 = vpow.pop %v1001
    %v1003 = vsel %vm972, %v994, 0.0
    %v1004 = vadd.f32 %v992, %v1003
    %1005 = vadd.xlane.f32.xlu0 %v1004
    %v1006 = vpop.xlane.xlu0 %1005
    %v1007 = vsel %vm972, %v998, 0.0
    %v1008 = vadd.f32 %v996, %v1007
    %1009 = vadd.xlane.f32.xlu0 %v1008
    %v1010 = vpop.xlane.xlu0 %1009
    %v1011 = vsel %vm972, %v1002, 0.0
    %v1012 = vadd.f32 %v1000, %v1011
    %1013 = vadd.xlane.f32.xlu0 %v1012
    %v1014 = vpop.xlane.xlu0 %1013
    %v1015 = vrcp.pop %v1006
    %v1016 = vmul.f32 %v1006, %v1015
    %v1017 = vsub.f32 1.0, %v1016
    %v1018 = vmul.f32 %v1015, %v1017
    %v1019 = vadd.f32 %v1015, %v1018
    %vm1020 = vweird.f32 %v1006
    %vm1021 = vweird.f32 %v1015
    %vm1022 = vmor %vm1020, %vm1021
    %v1023 = vsel %vm1022, %v1015, %v1019
    %v1024 = vand.u32 2147483647, %v1006
    %vm1025 = vcmp.eq.f32.partialorder %v1024, 8.507059e+37
    %v1026 = vand.u32 %v1006, 2147483648
    %v1027 = vor.u32 1.1754944e-38, %v1026
    %v1028 = vsel %vm1025, %v1027, %v1023
    %v1029 = vmul.f32 %v992, %v1028
    %v1030 = vmul.f32 %v994, %v1028
    %v1031 = vrcp.pop %v1010
    %v1032 = vmul.f32 %v1010, %v1031
    %v1033 = vsub.f32 1.0, %v1032
    %v1034 = vmul.f32 %v1031, %v1033
    %v1035 = vadd.f32 %v1031, %v1034
    %vm1036 = vweird.f32 %v1010
    %vm1037 = vweird.f32 %v1031
    %vm1038 = vmor %vm1036, %vm1037
    %v1039 = vsel %vm1038, %v1031, %v1035
    %v1040 = vand.u32 2147483647, %v1010
    %vm1041 = vcmp.eq.f32.partialorder %v1040, 8.507059e+37
    %v1042 = vand.u32 %v1010, 2147483648
    %v1043 = vor.u32 1.1754944e-38, %v1042
    %v1044 = vsel %vm1041, %v1043, %v1039
    %v1045 = vmul.f32 %v996, %v1044
    %v1046 = vmul.f32 %v998, %v1044
    %v1047 = vrcp.pop %v1014
    %v1048 = vmul.f32 %v1014, %v1047
    %v1049 = vsub.f32 1.0, %v1048
    %v1050 = vmul.f32 %v1047, %v1049
    %v1051 = vadd.f32 %v1047, %v1050
    %vm1052 = vweird.f32 %v1014
    %vm1053 = vweird.f32 %v1047
    %vm1054 = vmor %vm1052, %vm1053
    %v1055 = vsel %vm1054, %v1047, %v1051
    %v1056 = vand.u32 2147483647, %v1014
    %vm1057 = vcmp.eq.f32.partialorder %v1056, 8.507059e+37
    %v1058 = vand.u32 %v1014, 2147483648
    %v1059 = vor.u32 1.1754944e-38, %v1058
    %v1060 = vsel %vm1057, %v1059, %v1055
    %v1061 = vmul.f32 %v1000, %v1060
    %v1062 = vmul.f32 %v1002, %v1060
    %v1064 = vsel %vm972, %v1030, 0
    %v1067 = vsel %vm972, %v1046, 0
    %v1070 = vsel %vm972, %v1062, 0
    %1072 = vmatpush.msra.mxu0 %v824
    %1073 = vmatpush.msra.mxu0 %v821
    %1074 = vmatpush.msra.mxu0 %v818
    %1075 = vmatpush.msra.mxu0 %v815
    %1076 = vmatpush.msra.mxu0 %v812
    %1077 = vmatpush.msra.mxu0 %v809
    %1078 = vmatpush.msra.mxu0 %v806
    %1079 = vmatpush.msra.mxu0 %v803
    %1080 = vmatpush.msra.mxu0 %v800
    %1081 = vmatpush.msra.mxu0 %v797
    %1082 = vmatpush.msra.mxu0 %v794
    %1083 = vmatpush.msra.mxu0 %v791
    %1084 = vmatpush.msra.mxu0 %v788
    %1085 = vmatpush.msra.mxu0 %v785
    %1086 = vmatpush.msra.mxu0 %v782
    %1087 = vmatpush.msra.mxu0 %v779
    %1088 = vmatmul.f32.gmra.mxu0 %v1029
    %v1089 = vpop.f32.mrf.mxu0
    %v1090 = vadd.f32 0.0, %v1089
    %1091 = vmatmul.f32.gmra.mxu0 %v1045
    %v1092 = vpop.f32.mrf.mxu0
    %v1093 = vadd.f32 0.0, %v1092
    %1094 = vmatmul.f32.gmra.mxu0 %v1061
    %v1095 = vpop.f32.mrf.mxu0
    %v1096 = vadd.f32 0.0, %v1095
    %1097 = vdwg.mxu0
    %1098 = vmatpush.msra.mxu0 0.0
    %1099 = vmatpush.msra.mxu0 0.0
    %1100 = vmatpush.msra.mxu0 0.0
    %1101 = vmatpush.msra.mxu0 0.0
    %1102 = vmatpush.msra.mxu0 0.0
    %1103 = vmatpush.msra.mxu0 0.0
    %1104 = vmatpush.msra.mxu0 0.0
    %1105 = vmatpush.msra.mxu0 0.0
    %1106 = vmatpush.msra.mxu0 0.0
    %1107 = vmatpush.msra.mxu0 0.0
    %1108 = vmatpush.msra.mxu0 0.0
    %1109 = vmatpush.msra.mxu0 0.0
    %1110 = vmatpush.msra.mxu0 %v836
    %1111 = vmatpush.msra.mxu0 %v833
    %1112 = vmatpush.msra.mxu0 %v830
    %1113 = vmatpush.msra.mxu0 %v827
    %1114 = vmatmul.f32.gmra.mxu0 %v1064
    %v1115 = vpop.f32.mrf.mxu0
    %v1116 = vadd.f32 %v1090, %v1115
    %1117 = vmatmul.f32.gmra.mxu0 %v1067
    %v1118 = vpop.f32.mrf.mxu0
    %v1119 = vadd.f32 %v1093, %v1118
    %1120 = vmatmul.f32.gmra.mxu0 %v1070
    %v1121 = vpop.f32.mrf.mxu0
    %v1122 = vadd.f32 %v1096, %v1121
    %1123 = vdwg.mxu0
    %1124 = vrot.lane.b32.xlu0 %v614, 112
    %v1125 = vpop.permute.xlu0 %1124
    %1126 = vrot.lane.b32.xlu0 %v617, 112
    %v1127 = vpop.permute.xlu0 %1126
    %1128 = vrot.lane.b32.xlu0 %v620, 112
    %v1129 = vpop.permute.xlu0 %1128
    %1130 = vrot.lane.b32.xlu0 %v701, 112
    %v1131 = vpop.permute.xlu0 %1130
    %1132 = vrot.lane.b32.xlu0 %v704, 112
    %v1133 = vpop.permute.xlu0 %1132
    %1134 = vrot.lane.b32.xlu0 %v707, 112
    %v1135 = vpop.permute.xlu0 %1134
    %1136 = vrot.lane.b32.xlu0 %v710, 112
    %v1137 = vpop.permute.xlu0 %1136
    %1138 = vrot.lane.b32.xlu0 %v713, 112
    %v1139 = vpop.permute.xlu0 %1138
    %1140 = vrot.lane.b32.xlu0 %v716, 112
    %v1141 = vpop.permute.xlu0 %1140
    %1142 = vrot.lane.b32.xlu0 %v719, 112
    %v1143 = vpop.permute.xlu0 %1142
    %1144 = vrot.lane.b32.xlu0 %v722, 112
    %v1145 = vpop.permute.xlu0 %1144
    %1146 = vrot.lane.b32.xlu0 %v725, 112
    %v1147 = vpop.permute.xlu0 %1146
    %1148 = vrot.lane.b32.xlu0 %v728, 112
    %v1149 = vpop.permute.xlu0 %1148
    %1150 = vrot.lane.b32.xlu0 %v731, 112
    %v1151 = vpop.permute.xlu0 %1150
    %1152 = vrot.lane.b32.xlu0 %v734, 112
    %v1153 = vpop.permute.xlu0 %1152
    %1154 = vrot.lane.b32.xlu0 %v737, 112
    %v1155 = vpop.permute.xlu0 %1154
    %1156 = vrot.lane.b32.xlu0 %v740, 112
    %v1157 = vpop.permute.xlu0 %1156
    %1158 = vrot.lane.b32.xlu0 %v743, 112
    %v1159 = vpop.permute.xlu0 %1158
    %1160 = vrot.lane.b32.xlu0 %v746, 112
    %v1161 = vpop.permute.xlu0 %1160
    %1162 = vrot.lane.b32.xlu0 %v749, 112
    %v1163 = vpop.permute.xlu0 %1162
    %1164 = vrot.lane.b32.xlu0 %v752, 112
    %v1165 = vpop.permute.xlu0 %1164
    %1166 = vrot.lane.b32.xlu0 %v755, 112
    %v1167 = vpop.permute.xlu0 %1166
    %1168 = vrot.lane.b32.xlu0 %v758, 112
    %v1169 = vpop.permute.xlu0 %1168
    %v1170 = vsel %vm838, %v1125, 0
    %v1172 = vsel %vm838, %v1127, 0
    %v1174 = vsel %vm838, %v1129, 0
    %v1176 = vsel %vm838, %v1131, 0
    %v1178 = vsel %vm838, %v1133, 0
    %v1180 = vsel %vm838, %v1135, 0
    %v1182 = vsel %vm838, %v1137, 0
    %v1184 = vsel %vm838, %v1139, 0
    %v1186 = vsel %vm838, %v1141, 0
    %v1188 = vsel %vm838, %v1143, 0
    %v1190 = vsel %vm838, %v1145, 0
    %v1192 = vsel %vm838, %v1147, 0
    %v1194 = vsel %vm838, %v1149, 0
    %v1196 = vsel %vm838, %v1151, 0
    %v1198 = vsel %vm838, %v1153, 0
    %v1200 = vsel %vm838, %v1155, 0
    %v1202 = vsel %vm838, %v1157, 0
    %v1204 = vsel %vm838, %v1159, 0
    %v1206 = vsel %vm838, %v1161, 0
    %v1208 = vsel %vm838, %v1163, 0
    %v1210 = vsel %vm838, %v1165, 0
    %v1212 = vsel %vm838, %v1167, 0
    %v1214 = vsel %vm838, %v1169, 0
    %1216 = vmatpush.xpose.msra.mxu0 %v1206
    %1217 = vmatpush.xpose.msra.mxu0 %v1204
    %1218 = vmatpush.xpose.msra.mxu0 %v1202
    %1219 = vmatpush.xpose.msra.mxu0 %v1200
    %1220 = vmatpush.xpose.msra.mxu0 %v1198
    %1221 = vmatpush.xpose.msra.mxu0 %v1196
    %1222 = vmatpush.xpose.msra.mxu0 %v1194
    %1223 = vmatpush.xpose.msra.mxu0 %v1192
    %1224 = vmatpush.xpose.msra.mxu0 %v1190
    %1225 = vmatpush.xpose.msra.mxu0 %v1188
    %1226 = vmatpush.xpose.msra.mxu0 %v1186
    %1227 = vmatpush.xpose.msra.mxu0 %v1184
    %1228 = vmatpush.xpose.msra.mxu0 %v1182
    %1229 = vmatpush.xpose.msra.mxu0 %v1180
    %1230 = vmatpush.xpose.msra.mxu0 %v1178
    %1231 = vmatpush.xpose.msra.mxu0 %v1176
    %1232 = vmatmul.f32.gmra.mxu0 %v1170
    %v1233 = vpop.f32.mrf.mxu0
    %v1234 = vadd.f32 0.0, %v1233
    %1235 = vmatmul.f32.gmra.mxu0 %v1172
    %v1236 = vpop.f32.mrf.mxu0
    %v1237 = vadd.f32 0.0, %v1236
    %1238 = vmatmul.f32.gmra.mxu0 %v1174
    %v1239 = vpop.f32.mrf.mxu0
    %v1240 = vadd.f32 0.0, %v1239
    %1241 = vdwg.mxu0
    %1242 = vmatpush.xpose.msra.mxu0 0.0
    %1243 = vmatpush.xpose.msra.mxu0 0.0
    %1244 = vmatpush.xpose.msra.mxu0 0.0
    %1245 = vmatpush.xpose.msra.mxu0 0.0
    %1246 = vmatpush.xpose.msra.mxu0 0.0
    %1247 = vmatpush.xpose.msra.mxu0 0.0
    %1248 = vmatpush.xpose.msra.mxu0 0.0
    %1249 = vmatpush.xpose.msra.mxu0 0.0
    %1250 = vmatpush.xpose.msra.mxu0 0.0
    %1251 = vmatpush.xpose.msra.mxu0 0.0
    %1252 = vmatpush.xpose.msra.mxu0 0.0
    %1253 = vmatpush.xpose.msra.mxu0 0.0
    %1254 = vmatpush.xpose.msra.mxu0 %v1214
    %1255 = vmatpush.xpose.msra.mxu0 %v1212
    %1256 = vmatpush.xpose.msra.mxu0 %v1210
    %1257 = vmatpush.xpose.msra.mxu0 %v1208
    %1258 = vmatmul.f32.gmra.mxu0 %v1170
    %v1259 = vpop.f32.mrf.mxu0
    %v1260 = vadd.f32 0.0, %v1259
    %1261 = vmatmul.f32.gmra.mxu0 %v1172
    %v1262 = vpop.f32.mrf.mxu0
    %v1263 = vadd.f32 0.0, %v1262
    %1264 = vmatmul.f32.gmra.mxu0 %v1174
    %v1265 = vpop.f32.mrf.mxu0
    %v1266 = vadd.f32 0.0, %v1265
    %1267 = vdwg.mxu0
    %v1268 = vmul.f32 %v1234, 0.25
    %v1269 = vmul.f32 %v1260, 0.25
    %v1270 = vmul.f32 %v1237, 0.25
    %v1271 = vmul.f32 %v1263, 0.25
    %v1272 = vmul.f32 %v1240, 0.25
    %v1273 = vmul.f32 %v1266, 0.25
    %v1274 = vadd.f32 %v1268, %v580
    %v1275 = vadd.f32 %v1269, %v581
    %v1276 = vadd.f32 %v1270, %v582
    %v1277 = vadd.f32 %v1271, %v583
    %v1278 = vadd.f32 %v1272, %v584
    %v1279 = vadd.f32 %v1273, %v585
    %v1280 = vsel %vm972, %v1275, -inf
    %v1281 = vmax.f32 %v1274, %v1280
    %1282 = vmax.xlane.f32.xlu0 %v1281
    %v1283 = vpop.xlane.xlu0 %1282
    %v1284 = vsel %vm972, %v1277, -inf
    %v1285 = vmax.f32 %v1276, %v1284
    %1286 = vmax.xlane.f32.xlu0 %v1285
    %v1287 = vpop.xlane.xlu0 %1286
    %v1288 = vsel %vm972, %v1279, -inf
    %v1289 = vmax.f32 %v1278, %v1288
    %1290 = vmax.xlane.f32.xlu0 %v1289
    %v1291 = vpop.xlane.xlu0 %1290
    %v1292 = vsub.f32 %v1274, %v1283
    %v1293 = vsub.f32 %v1275, %v1283
    %v1294 = vsub.f32 %v1276, %v1287
    %v1295 = vsub.f32 %v1277, %v1287
    %v1296 = vsub.f32 %v1278, %v1291
    %v1297 = vsub.f32 %v1279, %v1291
    %v1298 = vmul.f32 %v1292, 1.442695
    %v1299 = vpow.pop %v1298
    %v1300 = vmul.f32 %v1293, 1.442695
    %v1301 = vpow.pop %v1300
    %v1302 = vmul.f32 %v1294, 1.442695
    %v1303 = vpow.pop %v1302
    %v1304 = vmul.f32 %v1295, 1.442695
    %v1305 = vpow.pop %v1304
    %v1306 = vmul.f32 %v1296, 1.442695
    %v1307 = vpow.pop %v1306
    %v1308 = vmul.f32 %v1297, 1.442695
    %v1309 = vpow.pop %v1308
    %v1310 = vsel %vm972, %v1301, 0.0
    %v1311 = vadd.f32 %v1299, %v1310
    %1312 = vadd.xlane.f32.xlu0 %v1311
    %v1313 = vpop.xlane.xlu0 %1312
    %v1314 = vsel %vm972, %v1305, 0.0
    %v1315 = vadd.f32 %v1303, %v1314
    %1316 = vadd.xlane.f32.xlu0 %v1315
    %v1317 = vpop.xlane.xlu0 %1316
    %v1318 = vsel %vm972, %v1309, 0.0
    %v1319 = vadd.f32 %v1307, %v1318
    %1320 = vadd.xlane.f32.xlu0 %v1319
    %v1321 = vpop.xlane.xlu0 %1320
    %v1322 = vrcp.pop %v1313
    %v1323 = vmul.f32 %v1313, %v1322
    %v1324 = vsub.f32 1.0, %v1323
    %v1325 = vmul.f32 %v1322, %v1324
    %v1326 = vadd.f32 %v1322, %v1325
    %vm1327 = vweird.f32 %v1313
    %vm1328 = vweird.f32 %v1322
    %vm1329 = vmor %vm1327, %vm1328
    %v1330 = vsel %vm1329, %v1322, %v1326
    %v1331 = vand.u32 2147483647, %v1313
    %vm1332 = vcmp.eq.f32.partialorder %v1331, 8.507059e+37
    %v1333 = vand.u32 %v1313, 2147483648
    %v1334 = vor.u32 1.1754944e-38, %v1333
    %v1335 = vsel %vm1332, %v1334, %v1330
    %v1336 = vmul.f32 %v1299, %v1335
    %v1337 = vmul.f32 %v1301, %v1335
    %v1338 = vrcp.pop %v1317
    %v1339 = vmul.f32 %v1317, %v1338
    %v1340 = vsub.f32 1.0, %v1339
    %v1341 = vmul.f32 %v1338, %v1340
    %v1342 = vadd.f32 %v1338, %v1341
    %vm1343 = vweird.f32 %v1317
    %vm1344 = vweird.f32 %v1338
    %vm1345 = vmor %vm1343, %vm1344
    %v1346 = vsel %vm1345, %v1338, %v1342
    %v1347 = vand.u32 2147483647, %v1317
    %vm1348 = vcmp.eq.f32.partialorder %v1347, 8.507059e+37
    %v1349 = vand.u32 %v1317, 2147483648
    %v1350 = vor.u32 1.1754944e-38, %v1349
    %v1351 = vsel %vm1348, %v1350, %v1346
    %v1352 = vmul.f32 %v1303, %v1351
    %v1353 = vmul.f32 %v1305, %v1351
    %v1354 = vrcp.pop %v1321
    %v1355 = vmul.f32 %v1321, %v1354
    %v1356 = vsub.f32 1.0, %v1355
    %v1357 = vmul.f32 %v1354, %v1356
    %v1358 = vadd.f32 %v1354, %v1357
    %vm1359 = vweird.f32 %v1321
    %vm1360 = vweird.f32 %v1354
    %vm1361 = vmor %vm1359, %vm1360
    %v1362 = vsel %vm1361, %v1354, %v1358
    %v1363 = vand.u32 2147483647, %v1321
    %vm1364 = vcmp.eq.f32.partialorder %v1363, 8.507059e+37
    %v1365 = vand.u32 %v1321, 2147483648
    %v1366 = vor.u32 1.1754944e-38, %v1365
    %v1367 = vsel %vm1364, %v1366, %v1362
    %v1368 = vmul.f32 %v1307, %v1367
    %v1369 = vmul.f32 %v1309, %v1367
    %1390 = vrot.lane.b32.xlu0 %v779, 112
    %v1391 = vpop.permute.xlu0 %1390
    %1392 = vrot.lane.b32.xlu0 %v782, 112
    %v1393 = vpop.permute.xlu0 %1392
    %1394 = vrot.lane.b32.xlu0 %v785, 112
    %v1395 = vpop.permute.xlu0 %1394
    %1396 = vrot.lane.b32.xlu0 %v788, 112
    %v1397 = vpop.permute.xlu0 %1396
    %1398 = vrot.lane.b32.xlu0 %v791, 112
    %v1399 = vpop.permute.xlu0 %1398
    %1400 = vrot.lane.b32.xlu0 %v794, 112
    %v1401 = vpop.permute.xlu0 %1400
    %1402 = vrot.lane.b32.xlu0 %v797, 112
    %v1403 = vpop.permute.xlu0 %1402
    %1404 = vrot.lane.b32.xlu0 %v800, 112
    %v1405 = vpop.permute.xlu0 %1404
    %1406 = vrot.lane.b32.xlu0 %v803, 112
    %v1407 = vpop.permute.xlu0 %1406
    %1408 = vrot.lane.b32.xlu0 %v806, 112
    %v1409 = vpop.permute.xlu0 %1408
    %1410 = vrot.lane.b32.xlu0 %v809, 112
    %v1411 = vpop.permute.xlu0 %1410
    %1412 = vrot.lane.b32.xlu0 %v812, 112
    %v1413 = vpop.permute.xlu0 %1412
    %1414 = vrot.lane.b32.xlu0 %v815, 112
    %v1415 = vpop.permute.xlu0 %1414
    %1416 = vrot.lane.b32.xlu0 %v818, 112
    %v1417 = vpop.permute.xlu0 %1416
    %1418 = vrot.lane.b32.xlu0 %v821, 112
    %v1419 = vpop.permute.xlu0 %1418
    %1420 = vrot.lane.b32.xlu0 %v824, 112
    %v1421 = vpop.permute.xlu0 %1420
    %1422 = vrot.lane.b32.xlu0 %v827, 112
    %v1423 = vpop.permute.xlu0 %1422
    %1424 = vrot.lane.b32.xlu0 %v830, 112
    %v1425 = vpop.permute.xlu0 %1424
    %1426 = vrot.lane.b32.xlu0 %v833, 112
    %v1427 = vpop.permute.xlu0 %1426
    %1428 = vrot.lane.b32.xlu0 %v836, 112
    %v1429 = vpop.permute.xlu0 %1428
    %v1451 = vsel %vm972, %v1337, 0
    %v1454 = vsel %vm972, %v1353, 0
    %v1457 = vsel %vm972, %v1369, 0
    %1459 = vmatpush.msra.mxu0 %v1421
    %1460 = vmatpush.msra.mxu0 %v1419
    %1461 = vmatpush.msra.mxu0 %v1417
    %1462 = vmatpush.msra.mxu0 %v1415
    %1463 = vmatpush.msra.mxu0 %v1413
    %1464 = vmatpush.msra.mxu0 %v1411
    %1465 = vmatpush.msra.mxu0 %v1409
    %1466 = vmatpush.msra.mxu0 %v1407
    %1467 = vmatpush.msra.mxu0 %v1405
    %1468 = vmatpush.msra.mxu0 %v1403
    %1469 = vmatpush.msra.mxu0 %v1401
    %1470 = vmatpush.msra.mxu0 %v1399
    %1471 = vmatpush.msra.mxu0 %v1397
    %1472 = vmatpush.msra.mxu0 %v1395
    %1473 = vmatpush.msra.mxu0 %v1393
    %1474 = vmatpush.msra.mxu0 %v1391
    %1475 = vmatmul.f32.gmra.mxu0 %v1336
    %v1476 = vpop.f32.mrf.mxu0
    %v1477 = vadd.f32 0.0, %v1476
    %1478 = vmatmul.f32.gmra.mxu0 %v1352
    %v1479 = vpop.f32.mrf.mxu0
    %v1480 = vadd.f32 0.0, %v1479
    %1481 = vmatmul.f32.gmra.mxu0 %v1368
    %v1482 = vpop.f32.mrf.mxu0
    %v1483 = vadd.f32 0.0, %v1482
    %1484 = vdwg.mxu0
    %1485 = vmatpush.msra.mxu0 0.0
    %1486 = vmatpush.msra.mxu0 0.0
    %1487 = vmatpush.msra.mxu0 0.0
    %1488 = vmatpush.msra.mxu0 0.0
    %1489 = vmatpush.msra.mxu0 0.0
    %1490 = vmatpush.msra.mxu0 0.0
    %1491 = vmatpush.msra.mxu0 0.0
    %1492 = vmatpush.msra.mxu0 0.0
    %1493 = vmatpush.msra.mxu0 0.0
    %1494 = vmatpush.msra.mxu0 0.0
    %1495 = vmatpush.msra.mxu0 0.0
    %1496 = vmatpush.msra.mxu0 0.0
    %1497 = vmatpush.msra.mxu0 %v1429
    %1498 = vmatpush.msra.mxu0 %v1427
    %1499 = vmatpush.msra.mxu0 %v1425
    %1500 = vmatpush.msra.mxu0 %v1423
    %1501 = vmatmul.f32.gmra.mxu0 %v1451
    %v1502 = vpop.f32.mrf.mxu0
    %v1503 = vadd.f32 %v1477, %v1502
    %1504 = vmatmul.f32.gmra.mxu0 %v1454
    %v1505 = vpop.f32.mrf.mxu0
    %v1506 = vadd.f32 %v1480, %v1505
    %1507 = vmatmul.f32.gmra.mxu0 %v1457
    %v1508 = vpop.f32.mrf.mxu0
    %v1509 = vadd.f32 %v1483, %v1508
    %1510 = vdwg.mxu0
    %v1512 = vsel %vm838, %v1503, 0
    %v1515 = vsel %vm838, %v1506, 0
    %v1518 = vsel %vm838, %v1509, 0
    %1520 = vmatpush.msra.mxu0 0.0
    %1521 = vmatpush.msra.mxu0 0.0
    %1522 = vmatpush.msra.mxu0 0.0
    %1523 = vmatpush.msra.mxu0 0.0
    %1524 = vmatpush.msra.mxu0 0.0
    %1525 = vmatpush.msra.mxu0 0.0
    %1526 = vmatpush.msra.mxu0 0.0
    %1527 = vmatpush.msra.mxu0 0.0
    %1528 = vmatpush.msra.mxu0 0.0
    %1529 = vmatpush.msra.mxu0 0.0
    %1530 = vmatpush.msra.mxu0 0.0
    %1531 = vmatpush.msra.mxu0 0.0
    %1532 = vmatpush.msra.mxu0 0.0
    %1533 = vmatpush.msra.mxu0 0.0
    %1534 = vmatpush.msra.mxu0 %v575
    %1535 = vmatpush.msra.mxu0 %v574
    %1536 = vmatmul.f32.gmra.mxu0 %v1512
    %v1537 = vpop.f32.mrf.mxu0
    %v1538 = vadd.f32 0.0, %v1537
    %1539 = vmatmul.f32.gmra.mxu0 %v1515
    %v1540 = vpop.f32.mrf.mxu0
    %v1541 = vadd.f32 0.0, %v1540
    %1542 = vmatmul.f32.gmra.mxu0 %v1518
    %v1543 = vpop.f32.mrf.mxu0
    %v1544 = vadd.f32 0.0, %v1543
    %1545 = vdwg.mxu0
    %v1547 = vsel %vm838, %v1116, 0
    %v1550 = vsel %vm838, %v1119, 0
    %v1553 = vsel %vm838, %v1122, 0
    %1555 = vmatpush.msra.mxu0 0.0
    %1556 = vmatpush.msra.mxu0 0.0
    %1557 = vmatpush.msra.mxu0 0.0
    %1558 = vmatpush.msra.mxu0 0.0
    %1559 = vmatpush.msra.mxu0 0.0
    %1560 = vmatpush.msra.mxu0 0.0
    %1561 = vmatpush.msra.mxu0 0.0
    %1562 = vmatpush.msra.mxu0 0.0
    %1563 = vmatpush.msra.mxu0 0.0
    %1564 = vmatpush.msra.mxu0 0.0
    %1565 = vmatpush.msra.mxu0 0.0
    %1566 = vmatpush.msra.mxu0 0.0
    %1567 = vmatpush.msra.mxu0 0.0
    %1568 = vmatpush.msra.mxu0 0.0
    %1569 = vmatpush.msra.mxu0 %v573
    %1570 = vmatpush.msra.mxu0 %v572
    %1571 = vmatmul.f32.gmra.mxu0 %v1547
    %v1572 = vpop.f32.mrf.mxu0
    %v1573 = vadd.f32 %v1538, %v1572
    %1574 = vmatmul.f32.gmra.mxu0 %v1550
    %v1575 = vpop.f32.mrf.mxu0
    %v1576 = vadd.f32 %v1541, %v1575
    %1577 = vmatmul.f32.gmra.mxu0 %v1553
    %v1578 = vpop.f32.mrf.mxu0
    %v1579 = vadd.f32 %v1544, %v1578
    %1580 = vdwg.mxu0
    %1581 = vrot.lane.b32.xlu0 %v614, 96
    %v1582 = vpop.permute.xlu0 %1581
    %1583 = vrot.lane.b32.xlu0 %v617, 96
    %v1584 = vpop.permute.xlu0 %1583
    %1585 = vrot.lane.b32.xlu0 %v620, 96
    %v1586 = vpop.permute.xlu0 %1585
    %1587 = vrot.lane.b32.xlu0 %v701, 96
    %v1588 = vpop.permute.xlu0 %1587
    %1589 = vrot.lane.b32.xlu0 %v704, 96
    %v1590 = vpop.permute.xlu0 %1589
    %1591 = vrot.lane.b32.xlu0 %v707, 96
    %v1592 = vpop.permute.xlu0 %1591
    %1593 = vrot.lane.b32.xlu0 %v710, 96
    %v1594 = vpop.permute.xlu0 %1593
    %1595 = vrot.lane.b32.xlu0 %v713, 96
    %v1596 = vpop.permute.xlu0 %1595
    %1597 = vrot.lane.b32.xlu0 %v716, 96
    %v1598 = vpop.permute.xlu0 %1597
    %1599 = vrot.lane.b32.xlu0 %v719, 96
    %v1600 = vpop.permute.xlu0 %1599
    %1601 = vrot.lane.b32.xlu0 %v722, 96
    %v1602 = vpop.permute.xlu0 %1601
    %1603 = vrot.lane.b32.xlu0 %v725, 96
    %v1604 = vpop.permute.xlu0 %1603
    %1605 = vrot.lane.b32.xlu0 %v728, 96
    %v1606 = vpop.permute.xlu0 %1605
    %1607 = vrot.lane.b32.xlu0 %v731, 96
    %v1608 = vpop.permute.xlu0 %1607
    %1609 = vrot.lane.b32.xlu0 %v734, 96
    %v1610 = vpop.permute.xlu0 %1609
    %1611 = vrot.lane.b32.xlu0 %v737, 96
    %v1612 = vpop.permute.xlu0 %1611
    %1613 = vrot.lane.b32.xlu0 %v740, 96
    %v1614 = vpop.permute.xlu0 %1613
    %1615 = vrot.lane.b32.xlu0 %v743, 96
    %v1616 = vpop.permute.xlu0 %1615
    %1617 = vrot.lane.b32.xlu0 %v746, 96
    %v1618 = vpop.permute.xlu0 %1617
    %1619 = vrot.lane.b32.xlu0 %v749, 96
    %v1620 = vpop.permute.xlu0 %1619
    %1621 = vrot.lane.b32.xlu0 %v752, 96
    %v1622 = vpop.permute.xlu0 %1621
    %1623 = vrot.lane.b32.xlu0 %v755, 96
    %v1624 = vpop.permute.xlu0 %1623
    %1625 = vrot.lane.b32.xlu0 %v758, 96
    %v1626 = vpop.permute.xlu0 %1625
    %v1627 = vsel %vm838, %v1582, 0
    %v1629 = vsel %vm838, %v1584, 0
    %v1631 = vsel %vm838, %v1586, 0
    %v1633 = vsel %vm838, %v1588, 0
    %v1635 = vsel %vm838, %v1590, 0
    %v1637 = vsel %vm838, %v1592, 0
    %v1639 = vsel %vm838, %v1594, 0
    %v1641 = vsel %vm838, %v1596, 0
    %v1643 = vsel %vm838, %v1598, 0
    %v1645 = vsel %vm838, %v1600, 0
    %v1647 = vsel %vm838, %v1602, 0
    %v1649 = vsel %vm838, %v1604, 0
    %v1651 = vsel %vm838, %v1606, 0
    %v1653 = vsel %vm838, %v1608, 0
    %v1655 = vsel %vm838, %v1610, 0
    %v1657 = vsel %vm838, %v1612, 0
    %v1659 = vsel %vm838, %v1614, 0
    %v1661 = vsel %vm838, %v1616, 0
    %v1663 = vsel %vm838, %v1618, 0
    %v1665 = vsel %vm838, %v1620, 0
    %v1667 = vsel %vm838, %v1622, 0
    %v1669 = vsel %vm838, %v1624, 0
    %v1671 = vsel %vm838, %v1626, 0
    %1673 = vmatpush.xpose.msra.mxu0 %v1663
    %1674 = vmatpush.xpose.msra.mxu0 %v1661
    %1675 = vmatpush.xpose.msra.mxu0 %v1659
    %1676 = vmatpush.xpose.msra.mxu0 %v1657
    %1677 = vmatpush.xpose.msra.mxu0 %v1655
    %1678 = vmatpush.xpose.msra.mxu0 %v1653
    %1679 = vmatpush.xpose.msra.mxu0 %v1651
    %1680 = vmatpush.xpose.msra.mxu0 %v1649
    %1681 = vmatpush.xpose.msra.mxu0 %v1647
    %1682 = vmatpush.xpose.msra.mxu0 %v1645
    %1683 = vmatpush.xpose.msra.mxu0 %v1643
    %1684 = vmatpush.xpose.msra.mxu0 %v1641
    %1685 = vmatpush.xpose.msra.mxu0 %v1639
    %1686 = vmatpush.xpose.msra.mxu0 %v1637
    %1687 = vmatpush.xpose.msra.mxu0 %v1635
    %1688 = vmatpush.xpose.msra.mxu0 %v1633
    %1689 = vmatmul.f32.gmra.mxu0 %v1627
    %v1690 = vpop.f32.mrf.mxu0
    %v1691 = vadd.f32 0.0, %v1690
    %1692 = vmatmul.f32.gmra.mxu0 %v1629
    %v1693 = vpop.f32.mrf.mxu0
    %v1694 = vadd.f32 0.0, %v1693
    %1695 = vmatmul.f32.gmra.mxu0 %v1631
    %v1696 = vpop.f32.mrf.mxu0
    %v1697 = vadd.f32 0.0, %v1696
    %1698 = vdwg.mxu0
    %1699 = vmatpush.xpose.msra.mxu0 0.0
    %1700 = vmatpush.xpose.msra.mxu0 0.0
    %1701 = vmatpush.xpose.msra.mxu0 0.0
    %1702 = vmatpush.xpose.msra.mxu0 0.0
    %1703 = vmatpush.xpose.msra.mxu0 0.0
    %1704 = vmatpush.xpose.msra.mxu0 0.0
    %1705 = vmatpush.xpose.msra.mxu0 0.0
    %1706 = vmatpush.xpose.msra.mxu0 0.0
    %1707 = vmatpush.xpose.msra.mxu0 0.0
    %1708 = vmatpush.xpose.msra.mxu0 0.0
    %1709 = vmatpush.xpose.msra.mxu0 0.0
    %1710 = vmatpush.xpose.msra.mxu0 0.0
    %1711 = vmatpush.xpose.msra.mxu0 %v1671
    %1712 = vmatpush.xpose.msra.mxu0 %v1669
    %1713 = vmatpush.xpose.msra.mxu0 %v1667
    %1714 = vmatpush.xpose.msra.mxu0 %v1665
    %1715 = vmatmul.f32.gmra.mxu0 %v1627
    %v1716 = vpop.f32.mrf.mxu0
    %v1717 = vadd.f32 0.0, %v1716
    %1718 = vmatmul.f32.gmra.mxu0 %v1629
    %v1719 = vpop.f32.mrf.mxu0
    %v1720 = vadd.f32 0.0, %v1719
    %1721 = vmatmul.f32.gmra.mxu0 %v1631
    %v1722 = vpop.f32.mrf.mxu0
    %v1723 = vadd.f32 0.0, %v1722
    %1724 = vdwg.mxu0
    %v1725 = vmul.f32 %v1691, 0.25
    %v1726 = vmul.f32 %v1717, 0.25
    %v1727 = vmul.f32 %v1694, 0.25
    %v1728 = vmul.f32 %v1720, 0.25
    %v1729 = vmul.f32 %v1697, 0.25
    %v1730 = vmul.f32 %v1723, 0.25
    %v1731 = vadd.f32 %v1725, %v580
    %v1732 = vadd.f32 %v1726, %v581
    %v1733 = vadd.f32 %v1727, %v582
    %v1734 = vadd.f32 %v1728, %v583
    %v1735 = vadd.f32 %v1729, %v584
    %v1736 = vadd.f32 %v1730, %v585
    %v1737 = vsel %vm972, %v1732, -inf
    %v1738 = vmax.f32 %v1731, %v1737
    %1739 = vmax.xlane.f32.xlu0 %v1738
    %v1740 = vpop.xlane.xlu0 %1739
    %v1741 = vsel %vm972, %v1734, -inf
    %v1742 = vmax.f32 %v1733, %v1741
    %1743 = vmax.xlane.f32.xlu0 %v1742
    %v1744 = vpop.xlane.xlu0 %1743
    %v1745 = vsel %vm972, %v1736, -inf
    %v1746 = vmax.f32 %v1735, %v1745
    %1747 = vmax.xlane.f32.xlu0 %v1746
    %v1748 = vpop.xlane.xlu0 %1747
    %v1749 = vsub.f32 %v1731, %v1740
    %v1750 = vsub.f32 %v1732, %v1740
    %v1751 = vsub.f32 %v1733, %v1744
    %v1752 = vsub.f32 %v1734, %v1744
    %v1753 = vsub.f32 %v1735, %v1748
    %v1754 = vsub.f32 %v1736, %v1748
    %v1755 = vmul.f32 %v1749, 1.442695
    %v1756 = vpow.pop %v1755
    %v1757 = vmul.f32 %v1750, 1.442695
    %v1758 = vpow.pop %v1757
    %v1759 = vmul.f32 %v1751, 1.442695
    %v1760 = vpow.pop %v1759
    %v1761 = vmul.f32 %v1752, 1.442695
    %v1762 = vpow.pop %v1761
    %v1763 = vmul.f32 %v1753, 1.442695
    %v1764 = vpow.pop %v1763
    %v1765 = vmul.f32 %v1754, 1.442695
    %v1766 = vpow.pop %v1765
    %v1767 = vsel %vm972, %v1758, 0.0
    %v1768 = vadd.f32 %v1756, %v1767
    %1769 = vadd.xlane.f32.xlu0 %v1768
    %v1770 = vpop.xlane.xlu0 %1769
    %v1771 = vsel %vm972, %v1762, 0.0
    %v1772 = vadd.f32 %v1760, %v1771
    %1773 = vadd.xlane.f32.xlu0 %v1772
    %v1774 = vpop.xlane.xlu0 %1773
    %v1775 = vsel %vm972, %v1766, 0.0
    %v1776 = vadd.f32 %v1764, %v1775
    %1777 = vadd.xlane.f32.xlu0 %v1776
    %v1778 = vpop.xlane.xlu0 %1777
    %v1779 = vrcp.pop %v1770
    %v1780 = vmul.f32 %v1770, %v1779
    %v1781 = vsub.f32 1.0, %v1780
    %v1782 = vmul.f32 %v1779, %v1781
    %v1783 = vadd.f32 %v1779, %v1782
    %vm1784 = vweird.f32 %v1770
    %vm1785 = vweird.f32 %v1779
    %vm1786 = vmor %vm1784, %vm1785
    %v1787 = vsel %vm1786, %v1779, %v1783
    %v1788 = vand.u32 2147483647, %v1770
    %vm1789 = vcmp.eq.f32.partialorder %v1788, 8.507059e+37
    %v1790 = vand.u32 %v1770, 2147483648
    %v1791 = vor.u32 1.1754944e-38, %v1790
    %v1792 = vsel %vm1789, %v1791, %v1787
    %v1793 = vmul.f32 %v1756, %v1792
    %v1794 = vmul.f32 %v1758, %v1792
    %v1795 = vrcp.pop %v1774
    %v1796 = vmul.f32 %v1774, %v1795
    %v1797 = vsub.f32 1.0, %v1796
    %v1798 = vmul.f32 %v1795, %v1797
    %v1799 = vadd.f32 %v1795, %v1798
    %vm1800 = vweird.f32 %v1774
    %vm1801 = vweird.f32 %v1795
    %vm1802 = vmor %vm1800, %vm1801
    %v1803 = vsel %vm1802, %v1795, %v1799
    %v1804 = vand.u32 2147483647, %v1774
    %vm1805 = vcmp.eq.f32.partialorder %v1804, 8.507059e+37
    %v1806 = vand.u32 %v1774, 2147483648
    %v1807 = vor.u32 1.1754944e-38, %v1806
    %v1808 = vsel %vm1805, %v1807, %v1803
    %v1809 = vmul.f32 %v1760, %v1808
    %v1810 = vmul.f32 %v1762, %v1808
    %v1811 = vrcp.pop %v1778
    %v1812 = vmul.f32 %v1778, %v1811
    %v1813 = vsub.f32 1.0, %v1812
    %v1814 = vmul.f32 %v1811, %v1813
    %v1815 = vadd.f32 %v1811, %v1814
    %vm1816 = vweird.f32 %v1778
    %vm1817 = vweird.f32 %v1811
    %vm1818 = vmor %vm1816, %vm1817
    %v1819 = vsel %vm1818, %v1811, %v1815
    %v1820 = vand.u32 2147483647, %v1778
    %vm1821 = vcmp.eq.f32.partialorder %v1820, 8.507059e+37
    %v1822 = vand.u32 %v1778, 2147483648
    %v1823 = vor.u32 1.1754944e-38, %v1822
    %v1824 = vsel %vm1821, %v1823, %v1819
    %v1825 = vmul.f32 %v1764, %v1824
    %v1826 = vmul.f32 %v1766, %v1824
    %1827 = vrot.lane.b32.xlu0 %v779, 96
    %v1828 = vpop.permute.xlu0 %1827
    %1829 = vrot.lane.b32.xlu0 %v782, 96
    %v1830 = vpop.permute.xlu0 %1829
    %1831 = vrot.lane.b32.xlu0 %v785, 96
    %v1832 = vpop.permute.xlu0 %1831
    %1833 = vrot.lane.b32.xlu0 %v788, 96
    %v1834 = vpop.permute.xlu0 %1833
    %1835 = vrot.lane.b32.xlu0 %v791, 96
    %v1836 = vpop.permute.xlu0 %1835
    %1837 = vrot.lane.b32.xlu0 %v794, 96
    %v1838 = vpop.permute.xlu0 %1837
    %1839 = vrot.lane.b32.xlu0 %v797, 96
    %v1840 = vpop.permute.xlu0 %1839
    %1841 = vrot.lane.b32.xlu0 %v800, 96
    %v1842 = vpop.permute.xlu0 %1841
    %1843 = vrot.lane.b32.xlu0 %v803, 96
    %v1844 = vpop.permute.xlu0 %1843
    %1845 = vrot.lane.b32.xlu0 %v806, 96
    %v1846 = vpop.permute.xlu0 %1845
    %1847 = vrot.lane.b32.xlu0 %v809, 96
    %v1848 = vpop.permute.xlu0 %1847
    %1849 = vrot.lane.b32.xlu0 %v812, 96
    %v1850 = vpop.permute.xlu0 %1849
    %1851 = vrot.lane.b32.xlu0 %v815, 96
    %v1852 = vpop.permute.xlu0 %1851
    %1853 = vrot.lane.b32.xlu0 %v818, 96
    %v1854 = vpop.permute.xlu0 %1853
    %1855 = vrot.lane.b32.xlu0 %v821, 96
    %v1856 = vpop.permute.xlu0 %1855
    %1857 = vrot.lane.b32.xlu0 %v824, 96
    %v1858 = vpop.permute.xlu0 %1857
    %1859 = vrot.lane.b32.xlu0 %v827, 96
    %v1860 = vpop.permute.xlu0 %1859
    %1861 = vrot.lane.b32.xlu0 %v830, 96
    %v1862 = vpop.permute.xlu0 %1861
    %1863 = vrot.lane.b32.xlu0 %v833, 96
    %v1864 = vpop.permute.xlu0 %1863
    %1865 = vrot.lane.b32.xlu0 %v836, 96
    %v1866 = vpop.permute.xlu0 %1865
    %v1888 = vsel %vm972, %v1794, 0
    %v1891 = vsel %vm972, %v1810, 0
    %v1894 = vsel %vm972, %v1826, 0
    %1896 = vmatpush.msra.mxu0 %v1858
    %1897 = vmatpush.msra.mxu0 %v1856
    %1898 = vmatpush.msra.mxu0 %v1854
    %1899 = vmatpush.msra.mxu0 %v1852
    %1900 = vmatpush.msra.mxu0 %v1850
    %1901 = vmatpush.msra.mxu0 %v1848
    %1902 = vmatpush.msra.mxu0 %v1846
    %1903 = vmatpush.msra.mxu0 %v1844
    %1904 = vmatpush.msra.mxu0 %v1842
    %1905 = vmatpush.msra.mxu0 %v1840
    %1906 = vmatpush.msra.mxu0 %v1838
    %1907 = vmatpush.msra.mxu0 %v1836
    %1908 = vmatpush.msra.mxu0 %v1834
    %1909 = vmatpush.msra.mxu0 %v1832
    %1910 = vmatpush.msra.mxu0 %v1830
    %1911 = vmatpush.msra.mxu0 %v1828
    %1912 = vmatmul.f32.gmra.mxu0 %v1793
    %v1913 = vpop.f32.mrf.mxu0
    %v1914 = vadd.f32 0.0, %v1913
    %1915 = vmatmul.f32.gmra.mxu0 %v1809
    %v1916 = vpop.f32.mrf.mxu0
    %v1917 = vadd.f32 0.0, %v1916
    %1918 = vmatmul.f32.gmra.mxu0 %v1825
    %v1919 = vpop.f32.mrf.mxu0
    %v1920 = vadd.f32 0.0, %v1919
    %1921 = vdwg.mxu0
    %1922 = vmatpush.msra.mxu0 0.0
    %1923 = vmatpush.msra.mxu0 0.0
    %1924 = vmatpush.msra.mxu0 0.0
    %1925 = vmatpush.msra.mxu0 0.0
    %1926 = vmatpush.msra.mxu0 0.0
    %1927 = vmatpush.msra.mxu0 0.0
    %1928 = vmatpush.msra.mxu0 0.0
    %1929 = vmatpush.msra.mxu0 0.0
    %1930 = vmatpush.msra.mxu0 0.0
    %1931 = vmatpush.msra.mxu0 0.0
    %1932 = vmatpush.msra.mxu0 0.0
    %1933 = vmatpush.msra.mxu0 0.0
    %1934 = vmatpush.msra.mxu0 %v1866
    %1935 = vmatpush.msra.mxu0 %v1864
    %1936 = vmatpush.msra.mxu0 %v1862
    %1937 = vmatpush.msra.mxu0 %v1860
    %1938 = vmatmul.f32.gmra.mxu0 %v1888
    %v1939 = vpop.f32.mrf.mxu0
    %v1940 = vadd.f32 %v1914, %v1939
    %1941 = vmatmul.f32.gmra.mxu0 %v1891
    %v1942 = vpop.f32.mrf.mxu0
    %v1943 = vadd.f32 %v1917, %v1942
    %1944 = vmatmul.f32.gmra.mxu0 %v1894
    %v1945 = vpop.f32.mrf.mxu0
    %v1946 = vadd.f32 %v1920, %v1945
    %1947 = vdwg.mxu0
    %v1949 = vsel %vm838, %v1940, 0
    %v1952 = vsel %vm838, %v1943, 0
    %v1955 = vsel %vm838, %v1946, 0
    %1957 = vmatpush.msra.mxu0 0.0
    %1958 = vmatpush.msra.mxu0 0.0
    %1959 = vmatpush.msra.mxu0 0.0
    %1960 = vmatpush.msra.mxu0 0.0
    %1961 = vmatpush.msra.mxu0 0.0
    %1962 = vmatpush.msra.mxu0 0.0
    %1963 = vmatpush.msra.mxu0 0.0
    %1964 = vmatpush.msra.mxu0 0.0
    %1965 = vmatpush.msra.mxu0 0.0
    %1966 = vmatpush.msra.mxu0 0.0
    %1967 = vmatpush.msra.mxu0 0.0
    %1968 = vmatpush.msra.mxu0 0.0
    %1969 = vmatpush.msra.mxu0 0.0
    %1970 = vmatpush.msra.mxu0 0.0
    %1971 = vmatpush.msra.mxu0 %v577
    %1972 = vmatpush.msra.mxu0 %v576
    %1973 = vmatmul.f32.gmra.mxu0 %v1949
    %v1974 = vpop.f32.mrf.mxu0
    %v1975 = vadd.f32 0.0, %v1974
    %1976 = vmatmul.f32.gmra.mxu0 %v1952
    %v1977 = vpop.f32.mrf.mxu0
    %v1978 = vadd.f32 0.0, %v1977
    %1979 = vmatmul.f32.gmra.mxu0 %v1955
    %v1980 = vpop.f32.mrf.mxu0
    %v1981 = vadd.f32 0.0, %v1980
    %1982 = vdwg.mxu0
    %v1983 = vadd.f32 %v1573, %v1975
    %v1984 = vadd.f32 %v1576, %v1978
    %v1985 = vadd.f32 %v1579, %v1981
    %1986 = vrot.lane.b32.xlu0 %v614, 80
    %v1987 = vpop.permute.xlu0 %1986
    %1988 = vrot.lane.b32.xlu0 %v617, 80
    %v1989 = vpop.permute.xlu0 %1988
    %1990 = vrot.lane.b32.xlu0 %v620, 80
    %v1991 = vpop.permute.xlu0 %1990
    %1992 = vrot.lane.b32.xlu0 %v701, 80
    %v1993 = vpop.permute.xlu0 %1992
    %1994 = vrot.lane.b32.xlu0 %v704, 80
    %v1995 = vpop.permute.xlu0 %1994
    %1996 = vrot.lane.b32.xlu0 %v707, 80
    %v1997 = vpop.permute.xlu0 %1996
    %1998 = vrot.lane.b32.xlu0 %v710, 80
    %v1999 = vpop.permute.xlu0 %1998
    %2000 = vrot.lane.b32.xlu0 %v713, 80
    %v2001 = vpop.permute.xlu0 %2000
    %2002 = vrot.lane.b32.xlu0 %v716, 80
    %v2003 = vpop.permute.xlu0 %2002
    %2004 = vrot.lane.b32.xlu0 %v719, 80
    %v2005 = vpop.permute.xlu0 %2004
    %2006 = vrot.lane.b32.xlu0 %v722, 80
    %v2007 = vpop.permute.xlu0 %2006
    %2008 = vrot.lane.b32.xlu0 %v725, 80
    %v2009 = vpop.permute.xlu0 %2008
    %2010 = vrot.lane.b32.xlu0 %v728, 80
    %v2011 = vpop.permute.xlu0 %2010
    %2012 = vrot.lane.b32.xlu0 %v731, 80
    %v2013 = vpop.permute.xlu0 %2012
    %2014 = vrot.lane.b32.xlu0 %v734, 80
    %v2015 = vpop.permute.xlu0 %2014
    %2016 = vrot.lane.b32.xlu0 %v737, 80
    %v2017 = vpop.permute.xlu0 %2016
    %2018 = vrot.lane.b32.xlu0 %v740, 80
    %v2019 = vpop.permute.xlu0 %2018
    %2020 = vrot.lane.b32.xlu0 %v743, 80
    %v2021 = vpop.permute.xlu0 %2020
    %2022 = vrot.lane.b32.xlu0 %v746, 80
    %v2023 = vpop.permute.xlu0 %2022
    %2024 = vrot.lane.b32.xlu0 %v749, 80
    %v2025 = vpop.permute.xlu0 %2024
    %2026 = vrot.lane.b32.xlu0 %v752, 80
    %v2027 = vpop.permute.xlu0 %2026
    %2028 = vrot.lane.b32.xlu0 %v755, 80
    %v2029 = vpop.permute.xlu0 %2028
    %2030 = vrot.lane.b32.xlu0 %v758, 80
    %v2031 = vpop.permute.xlu0 %2030
    %v2032 = vsel %vm838, %v1987, 0
    %v2034 = vsel %vm838, %v1989, 0
    %v2036 = vsel %vm838, %v1991, 0
    %v2038 = vsel %vm838, %v1993, 0
    %v2040 = vsel %vm838, %v1995, 0
    %v2042 = vsel %vm838, %v1997, 0
    %v2044 = vsel %vm838, %v1999, 0
    %v2046 = vsel %vm838, %v2001, 0
    %v2048 = vsel %vm838, %v2003, 0
    %v2050 = vsel %vm838, %v2005, 0
    %v2052 = vsel %vm838, %v2007, 0
    %v2054 = vsel %vm838, %v2009, 0
    %v2056 = vsel %vm838, %v2011, 0
    %v2058 = vsel %vm838, %v2013, 0
    %v2060 = vsel %vm838, %v2015, 0
    %v2062 = vsel %vm838, %v2017, 0
    %v2064 = vsel %vm838, %v2019, 0
    %v2066 = vsel %vm838, %v2021, 0
    %v2068 = vsel %vm838, %v2023, 0
    %v2070 = vsel %vm838, %v2025, 0
    %v2072 = vsel %vm838, %v2027, 0
    %v2074 = vsel %vm838, %v2029, 0
    %v2076 = vsel %vm838, %v2031, 0
    %2078 = vmatpush.xpose.msra.mxu0 %v2068
    %2079 = vmatpush.xpose.msra.mxu0 %v2066
    %2080 = vmatpush.xpose.msra.mxu0 %v2064
    %2081 = vmatpush.xpose.msra.mxu0 %v2062
    %2082 = vmatpush.xpose.msra.mxu0 %v2060
    %2083 = vmatpush.xpose.msra.mxu0 %v2058
    %2084 = vmatpush.xpose.msra.mxu0 %v2056
    %2085 = vmatpush.xpose.msra.mxu0 %v2054
    %2086 = vmatpush.xpose.msra.mxu0 %v2052
    %2087 = vmatpush.xpose.msra.mxu0 %v2050
    %2088 = vmatpush.xpose.msra.mxu0 %v2048
    %2089 = vmatpush.xpose.msra.mxu0 %v2046
    %2090 = vmatpush.xpose.msra.mxu0 %v2044
    %2091 = vmatpush.xpose.msra.mxu0 %v2042
    %2092 = vmatpush.xpose.msra.mxu0 %v2040
    %2093 = vmatpush.xpose.msra.mxu0 %v2038
    %2094 = vmatmul.f32.gmra.mxu0 %v2032
    %v2095 = vpop.f32.mrf.mxu0
    %v2096 = vadd.f32 0.0, %v2095
    %2097 = vmatmul.f32.gmra.mxu0 %v2034
    %v2098 = vpop.f32.mrf.mxu0
    %v2099 = vadd.f32 0.0, %v2098
    %2100 = vmatmul.f32.gmra.mxu0 %v2036
    %v2101 = vpop.f32.mrf.mxu0
    %v2102 = vadd.f32 0.0, %v2101
    %2103 = vdwg.mxu0
    %2104 = vmatpush.xpose.msra.mxu0 0.0
    %2105 = vmatpush.xpose.msra.mxu0 0.0
    %2106 = vmatpush.xpose.msra.mxu0 0.0
    %2107 = vmatpush.xpose.msra.mxu0 0.0
    %2108 = vmatpush.xpose.msra.mxu0 0.0
    %2109 = vmatpush.xpose.msra.mxu0 0.0
    %2110 = vmatpush.xpose.msra.mxu0 0.0
    %2111 = vmatpush.xpose.msra.mxu0 0.0
    %2112 = vmatpush.xpose.msra.mxu0 0.0
    %2113 = vmatpush.xpose.msra.mxu0 0.0
    %2114 = vmatpush.xpose.msra.mxu0 0.0
    %2115 = vmatpush.xpose.msra.mxu0 0.0
    %2116 = vmatpush.xpose.msra.mxu0 %v2076
    %2117 = vmatpush.xpose.msra.mxu0 %v2074
    %2118 = vmatpush.xpose.msra.mxu0 %v2072
    %2119 = vmatpush.xpose.msra.mxu0 %v2070
    %2120 = vmatmul.f32.gmra.mxu0 %v2032
    %v2121 = vpop.f32.mrf.mxu0
    %v2122 = vadd.f32 0.0, %v2121
    %2123 = vmatmul.f32.gmra.mxu0 %v2034
    %v2124 = vpop.f32.mrf.mxu0
    %v2125 = vadd.f32 0.0, %v2124
    %2126 = vmatmul.f32.gmra.mxu0 %v2036
    %v2127 = vpop.f32.mrf.mxu0
    %v2128 = vadd.f32 0.0, %v2127
    %2129 = vdwg.mxu0
    %v2130 = vmul.f32 %v2096, 0.25
    %v2131 = vmul.f32 %v2122, 0.25
    %v2132 = vmul.f32 %v2099, 0.25
    %v2133 = vmul.f32 %v2125, 0.25
    %v2134 = vmul.f32 %v2102, 0.25
    %v2135 = vmul.f32 %v2128, 0.25
    %v2136 = vadd.f32 %v2130, %v580
    %v2137 = vadd.f32 %v2131, %v581
    %v2138 = vadd.f32 %v2132, %v582
    %v2139 = vadd.f32 %v2133, %v583
    %v2140 = vadd.f32 %v2134, %v584
    %v2141 = vadd.f32 %v2135, %v585
    %v2142 = vsel %vm972, %v2137, -inf
    %v2143 = vmax.f32 %v2136, %v2142
    %2144 = vmax.xlane.f32.xlu0 %v2143
    %v2145 = vpop.xlane.xlu0 %2144
    %v2146 = vsel %vm972, %v2139, -inf
    %v2147 = vmax.f32 %v2138, %v2146
    %2148 = vmax.xlane.f32.xlu0 %v2147
    %v2149 = vpop.xlane.xlu0 %2148
    %v2150 = vsel %vm972, %v2141, -inf
    %v2151 = vmax.f32 %v2140, %v2150
    %2152 = vmax.xlane.f32.xlu0 %v2151
    %v2153 = vpop.xlane.xlu0 %2152
    %v2154 = vsub.f32 %v2136, %v2145
    %v2155 = vsub.f32 %v2137, %v2145
    %v2156 = vsub.f32 %v2138, %v2149
    %v2157 = vsub.f32 %v2139, %v2149
    %v2158 = vsub.f32 %v2140, %v2153
    %v2159 = vsub.f32 %v2141, %v2153
    %v2160 = vmul.f32 %v2154, 1.442695
    %v2161 = vpow.pop %v2160
    %v2162 = vmul.f32 %v2155, 1.442695
    %v2163 = vpow.pop %v2162
    %v2164 = vmul.f32 %v2156, 1.442695
    %v2165 = vpow.pop %v2164
    %v2166 = vmul.f32 %v2157, 1.442695
    %v2167 = vpow.pop %v2166
    %v2168 = vmul.f32 %v2158, 1.442695
    %v2169 = vpow.pop %v2168
    %v2170 = vmul.f32 %v2159, 1.442695
    %v2171 = vpow.pop %v2170
    %v2172 = vsel %vm972, %v2163, 0.0
    %v2173 = vadd.f32 %v2161, %v2172
    %2174 = vadd.xlane.f32.xlu0 %v2173
    %v2175 = vpop.xlane.xlu0 %2174
    %v2176 = vsel %vm972, %v2167, 0.0
    %v2177 = vadd.f32 %v2165, %v2176
    %2178 = vadd.xlane.f32.xlu0 %v2177
    %v2179 = vpop.xlane.xlu0 %2178
    %v2180 = vsel %vm972, %v2171, 0.0
    %v2181 = vadd.f32 %v2169, %v2180
    %2182 = vadd.xlane.f32.xlu0 %v2181
    %v2183 = vpop.xlane.xlu0 %2182
    %v2184 = vrcp.pop %v2175
    %v2185 = vmul.f32 %v2175, %v2184
    %v2186 = vsub.f32 1.0, %v2185
    %v2187 = vmul.f32 %v2184, %v2186
    %v2188 = vadd.f32 %v2184, %v2187
    %vm2189 = vweird.f32 %v2175
    %vm2190 = vweird.f32 %v2184
    %vm2191 = vmor %vm2189, %vm2190
    %v2192 = vsel %vm2191, %v2184, %v2188
    %v2193 = vand.u32 2147483647, %v2175
    %vm2194 = vcmp.eq.f32.partialorder %v2193, 8.507059e+37
    %v2195 = vand.u32 %v2175, 2147483648
    %v2196 = vor.u32 1.1754944e-38, %v2195
    %v2197 = vsel %vm2194, %v2196, %v2192
    %v2198 = vmul.f32 %v2161, %v2197
    %v2199 = vmul.f32 %v2163, %v2197
    %v2200 = vrcp.pop %v2179
    %v2201 = vmul.f32 %v2179, %v2200
    %v2202 = vsub.f32 1.0, %v2201
    %v2203 = vmul.f32 %v2200, %v2202
    %v2204 = vadd.f32 %v2200, %v2203
    %vm2205 = vweird.f32 %v2179
    %vm2206 = vweird.f32 %v2200
    %vm2207 = vmor %vm2205, %vm2206
    %v2208 = vsel %vm2207, %v2200, %v2204
    %v2209 = vand.u32 2147483647, %v2179
    %vm2210 = vcmp.eq.f32.partialorder %v2209, 8.507059e+37
    %v2211 = vand.u32 %v2179, 2147483648
    %v2212 = vor.u32 1.1754944e-38, %v2211
    %v2213 = vsel %vm2210, %v2212, %v2208
    %v2214 = vmul.f32 %v2165, %v2213
    %v2215 = vmul.f32 %v2167, %v2213
    %v2216 = vrcp.pop %v2183
    %v2217 = vmul.f32 %v2183, %v2216
    %v2218 = vsub.f32 1.0, %v2217
    %v2219 = vmul.f32 %v2216, %v2218
    %v2220 = vadd.f32 %v2216, %v2219
    %vm2221 = vweird.f32 %v2183
    %vm2222 = vweird.f32 %v2216
    %vm2223 = vmor %vm2221, %vm2222
    %v2224 = vsel %vm2223, %v2216, %v2220
    %v2225 = vand.u32 2147483647, %v2183
    %vm2226 = vcmp.eq.f32.partialorder %v2225, 8.507059e+37
    %v2227 = vand.u32 %v2183, 2147483648
    %v2228 = vor.u32 1.1754944e-38, %v2227
    %v2229 = vsel %vm2226, %v2228, %v2224
    %v2230 = vmul.f32 %v2169, %v2229
    %v2231 = vmul.f32 %v2171, %v2229
    %2232 = vrot.lane.b32.xlu0 %v779, 80
    %v2233 = vpop.permute.xlu0 %2232
    %2234 = vrot.lane.b32.xlu0 %v782, 80
    %v2235 = vpop.permute.xlu0 %2234
    %2236 = vrot.lane.b32.xlu0 %v785, 80
    %v2237 = vpop.permute.xlu0 %2236
    %2238 = vrot.lane.b32.xlu0 %v788, 80
    %v2239 = vpop.permute.xlu0 %2238
    %2240 = vrot.lane.b32.xlu0 %v791, 80
    %v2241 = vpop.permute.xlu0 %2240
    %2242 = vrot.lane.b32.xlu0 %v794, 80
    %v2243 = vpop.permute.xlu0 %2242
    %2244 = vrot.lane.b32.xlu0 %v797, 80
    %v2245 = vpop.permute.xlu0 %2244
    %2246 = vrot.lane.b32.xlu0 %v800, 80
    %v2247 = vpop.permute.xlu0 %2246
    %2248 = vrot.lane.b32.xlu0 %v803, 80
    %v2249 = vpop.permute.xlu0 %2248
    %2250 = vrot.lane.b32.xlu0 %v806, 80
    %v2251 = vpop.permute.xlu0 %2250
    %2252 = vrot.lane.b32.xlu0 %v809, 80
    %v2253 = vpop.permute.xlu0 %2252
    %2254 = vrot.lane.b32.xlu0 %v812, 80
    %v2255 = vpop.permute.xlu0 %2254
    %2256 = vrot.lane.b32.xlu0 %v815, 80
    %v2257 = vpop.permute.xlu0 %2256
    %2258 = vrot.lane.b32.xlu0 %v818, 80
    %v2259 = vpop.permute.xlu0 %2258
    %2260 = vrot.lane.b32.xlu0 %v821, 80
    %v2261 = vpop.permute.xlu0 %2260
    %2262 = vrot.lane.b32.xlu0 %v824, 80
    %v2263 = vpop.permute.xlu0 %2262
    %2264 = vrot.lane.b32.xlu0 %v827, 80
    %v2265 = vpop.permute.xlu0 %2264
    %2266 = vrot.lane.b32.xlu0 %v830, 80
    %v2267 = vpop.permute.xlu0 %2266
    %2268 = vrot.lane.b32.xlu0 %v833, 80
    %v2269 = vpop.permute.xlu0 %2268
    %2270 = vrot.lane.b32.xlu0 %v836, 80
    %v2271 = vpop.permute.xlu0 %2270
    %v2293 = vsel %vm972, %v2199, 0
    %v2296 = vsel %vm972, %v2215, 0
    %v2299 = vsel %vm972, %v2231, 0
    %2301 = vmatpush.msra.mxu0 %v2263
    %2302 = vmatpush.msra.mxu0 %v2261
    %2303 = vmatpush.msra.mxu0 %v2259
    %2304 = vmatpush.msra.mxu0 %v2257
    %2305 = vmatpush.msra.mxu0 %v2255
    %2306 = vmatpush.msra.mxu0 %v2253
    %2307 = vmatpush.msra.mxu0 %v2251
    %2308 = vmatpush.msra.mxu0 %v2249
    %2309 = vmatpush.msra.mxu0 %v2247
    %2310 = vmatpush.msra.mxu0 %v2245
    %2311 = vmatpush.msra.mxu0 %v2243
    %2312 = vmatpush.msra.mxu0 %v2241
    %2313 = vmatpush.msra.mxu0 %v2239
    %2314 = vmatpush.msra.mxu0 %v2237
    %2315 = vmatpush.msra.mxu0 %v2235
    %2316 = vmatpush.msra.mxu0 %v2233
    %2317 = vmatmul.f32.gmra.mxu0 %v2198
    %v2318 = vpop.f32.mrf.mxu0
    %v2319 = vadd.f32 0.0, %v2318
    %2320 = vmatmul.f32.gmra.mxu0 %v2214
    %v2321 = vpop.f32.mrf.mxu0
    %v2322 = vadd.f32 0.0, %v2321
    %2323 = vmatmul.f32.gmra.mxu0 %v2230
    %v2324 = vpop.f32.mrf.mxu0
    %v2325 = vadd.f32 0.0, %v2324
    %2326 = vdwg.mxu0
    %2327 = vmatpush.msra.mxu0 0.0
    %2328 = vmatpush.msra.mxu0 0.0
    %2329 = vmatpush.msra.mxu0 0.0
    %2330 = vmatpush.msra.mxu0 0.0
    %2331 = vmatpush.msra.mxu0 0.0
    %2332 = vmatpush.msra.mxu0 0.0
    %2333 = vmatpush.msra.mxu0 0.0
    %2334 = vmatpush.msra.mxu0 0.0
    %2335 = vmatpush.msra.mxu0 0.0
    %2336 = vmatpush.msra.mxu0 0.0
    %2337 = vmatpush.msra.mxu0 0.0
    %2338 = vmatpush.msra.mxu0 0.0
    %2339 = vmatpush.msra.mxu0 %v2271
    %2340 = vmatpush.msra.mxu0 %v2269
    %2341 = vmatpush.msra.mxu0 %v2267
    %2342 = vmatpush.msra.mxu0 %v2265
    %2343 = vmatmul.f32.gmra.mxu0 %v2293
    %v2344 = vpop.f32.mrf.mxu0
    %v2345 = vadd.f32 %v2319, %v2344
    %2346 = vmatmul.f32.gmra.mxu0 %v2296
    %v2347 = vpop.f32.mrf.mxu0
    %v2348 = vadd.f32 %v2322, %v2347
    %2349 = vmatmul.f32.gmra.mxu0 %v2299
    %v2350 = vpop.f32.mrf.mxu0
    %v2351 = vadd.f32 %v2325, %v2350
    %2352 = vdwg.mxu0
    %v2354 = vsel %vm838, %v2345, 0
    %v2357 = vsel %vm838, %v2348, 0
    %v2360 = vsel %vm838, %v2351, 0
    %2362 = vmatpush.msra.mxu0 0.0
    %2363 = vmatpush.msra.mxu0 0.0
    %2364 = vmatpush.msra.mxu0 0.0
    %2365 = vmatpush.msra.mxu0 0.0
    %2366 = vmatpush.msra.mxu0 0.0
    %2367 = vmatpush.msra.mxu0 0.0
    %2368 = vmatpush.msra.mxu0 0.0
    %2369 = vmatpush.msra.mxu0 0.0
    %2370 = vmatpush.msra.mxu0 0.0
    %2371 = vmatpush.msra.mxu0 0.0
    %2372 = vmatpush.msra.mxu0 0.0
    %2373 = vmatpush.msra.mxu0 0.0
    %2374 = vmatpush.msra.mxu0 0.0
    %2375 = vmatpush.msra.mxu0 0.0
    %2376 = vmatpush.msra.mxu0 %v579
    %2377 = vmatpush.msra.mxu0 %v578
    %2378 = vmatmul.f32.gmra.mxu0 %v2354
    %v2379 = vpop.f32.mrf.mxu0
    %v2380 = vadd.f32 0.0, %v2379
    %2381 = vmatmul.f32.gmra.mxu0 %v2357
    %v2382 = vpop.f32.mrf.mxu0
    %v2383 = vadd.f32 0.0, %v2382
    %2384 = vmatmul.f32.gmra.mxu0 %v2360
    %v2385 = vpop.f32.mrf.mxu0
    %v2386 = vadd.f32 0.0, %v2385
    %2387 = vdwg.mxu0
    %v2388 = vadd.f32 %v1983, %v2380
    %v2389 = vadd.f32 %v1984, %v2383
    %v2390 = vadd.f32 %v1985, %v2386
    %2391 = vst.msk [vmem:[#allocation2] sm:$0xff] %vm400, %v2388
    %2392 = vst.msk [vmem:[#allocation2 + $0x8] sm:$0xff] %vm400, %v2389
    %2393 = vst.msk [vmem:[#allocation2 + $0x10] sm:$0xff] %vm400, %v2390
    %v2394 = vld [vmem:[#allocation2] sm:$0xff]
    %v2395 = vld [vmem:[#allocation2 + $0x8] sm:$0xff]
    %v2396 = vld [vmem:[#allocation2 + $0x10] sm:$0xff]
    %v2397 = vadd.f32 %v538, %v2394
    %v2398 = vadd.f32 %v539, %v2395
    %v2399 = vadd.f32 %v540, %v2396
    %v2400 = vld [vmem:[%s4 + $0xd] sm:$0x1]
    %v2401 = vperm.slane %v2400, 0
    %v2402 = vadd.f32 %v2397, %v2401
    %v2403 = vadd.f32 %v2398, %v2401
    %v2404 = vadd.f32 %v2399, %v2401
    %v2405 = vld [vmem:[%s4 + $0xe] sm:$0x1]
    %v2406 = vld [vmem:[%s4 + $0xf] sm:$0x1]
    %v2407 = vsel %vm400, %v2402, 0.0
    %2408 = vadd.xlane.f32.xlu0 %v2407
    %v2409 = vpop.xlane.xlu0 %2408
    %v2410 = vsel %vm400, %v2403, 0.0
    %2411 = vadd.xlane.f32.xlu0 %v2410
    %v2412 = vpop.xlane.xlu0 %2411
    %v2413 = vsel %vm400, %v2404, 0.0
    %2414 = vadd.xlane.f32.xlu0 %v2413
    %v2415 = vpop.xlane.xlu0 %2414
    %v2416 = vrcp.pop 64.0
    %v2417 = vmul.f32 64.0, %v2416
    %v2418 = vsub.f32 1.0, %v2417
    %v2419 = vmul.f32 %v2416, %v2418
    %v2420 = vadd.f32 %v2416, %v2419
    %vm2421 = vweird.f32 %v2416
    %v2422 = vsel %vm2421, %v2416, %v2420
    %v2423 = vmul.f32 %v2409, %v2422
    %v2424 = vmul.f32 %v2412, %v2422
    %v2425 = vmul.f32 %v2415, %v2422
    %v2426 = vsub.f32 %v2402, %v2423
    %v2427 = vsub.f32 %v2403, %v2424
    %v2428 = vsub.f32 %v2404, %v2425
    %v2429 = vmul.f32 %v2426, %v2426
    %v2430 = vmul.f32 %v2427, %v2427
    %v2431 = vmul.f32 %v2428, %v2428
    %v2432 = vsel %vm400, %v2429, 0.0
    %2433 = vadd.xlane.f32.xlu0 %v2432
    %v2434 = vpop.xlane.xlu0 %2433
    %v2435 = vsel %vm400, %v2430, 0.0
    %2436 = vadd.xlane.f32.xlu0 %v2435
    %v2437 = vpop.xlane.xlu0 %2436
    %v2438 = vsel %vm400, %v2431, 0.0
    %2439 = vadd.xlane.f32.xlu0 %v2438
    %v2440 = vpop.xlane.xlu0 %2439
    %v2441 = vmul.f32 %v2434, %v2422
    %v2442 = vmul.f32 %v2437, %v2422
    %v2443 = vmul.f32 %v2440, %v2422
    %v2444 = vadd.f32 %v2441, 1e-05
    %v2445 = vadd.f32 %v2442, 1e-05
    %v2446 = vadd.f32 %v2443, 1e-05
    %v2447 = vrsqrt.pop %v2444
    %v2448 = vmul.f32 %v2447, %v2444
    %v2449 = vmul.f32 %v2448, %v2447
    %v2450 = vmul.f32 0.5, %v2449
    %v2451 = vsub.f32 1.5, %v2450
    %v2452 = vmul.f32 %v2447, %v2451
    %vm2453 = vweird.f32 %v2444
    %vm2454 = vweird.f32 %v2447
    %vm2455 = vmor %vm2453, %vm2454
    %v2456 = vsel %vm2455, %v2447, %v2452
    %v2457 = vrsqrt.pop %v2445
    %v2458 = vmul.f32 %v2457, %v2445
    %v2459 = vmul.f32 %v2458, %v2457
    %v2460 = vmul.f32 0.5, %v2459
    %v2461 = vsub.f32 1.5, %v2460
    %v2462 = vmul.f32 %v2457, %v2461
    %vm2463 = vweird.f32 %v2445
    %vm2464 = vweird.f32 %v2457
    %vm2465 = vmor %vm2463, %vm2464
    %v2466 = vsel %vm2465, %v2457, %v2462
    %v2467 = vrsqrt.pop %v2446
    %v2468 = vmul.f32 %v2467, %v2446
    %v2469 = vmul.f32 %v2468, %v2467
    %v2470 = vmul.f32 0.5, %v2469
    %v2471 = vsub.f32 1.5, %v2470
    %v2472 = vmul.f32 %v2467, %v2471
    %vm2473 = vweird.f32 %v2446
    %vm2474 = vweird.f32 %v2467
    %vm2475 = vmor %vm2473, %vm2474
    %v2476 = vsel %vm2475, %v2467, %v2472
    %v2477 = vmul.f32 %v2426, %v2456
    %v2478 = vmul.f32 %v2427, %v2466
    %v2479 = vmul.f32 %v2428, %v2476
    %v2480 = vperm.slane %v2405, 0
    %v2481 = vmul.f32 %v2477, %v2480
    %v2482 = vmul.f32 %v2478, %v2480
    %v2483 = vmul.f32 %v2479, %v2480
    %v2484 = vperm.slane %v2406, 0
    %v2485 = vadd.f32 %v2481, %v2484
    %v2486 = vadd.f32 %v2482, %v2484
    %v2487 = vadd.f32 %v2483, %v2484
    %v2488 = vld [vmem:[#allocation6] sm:$0xff]
    %v2489 = vld [vmem:[#allocation6 + $0x8] sm:$0xff]
    %v2490 = vld [vmem:[#allocation6 + $0x10] sm:$0xff]
    %v2491 = vld [vmem:[#allocation6 + $0x18] sm:$0xff]
    %v2492 = vld [vmem:[#allocation6 + $0x20] sm:$0xff]
    %v2493 = vld [vmem:[#allocation6 + $0x28] sm:$0xff]
    %v2494 = vld [vmem:[#allocation6 + $0x30] sm:$0xff]
    %v2495 = vld [vmem:[#allocation6 + $0x38] sm:$0xff]
    %v2496 = vld [vmem:[#allocation6 + $0x40] sm:$0xff]
    %v2497 = vld [vmem:[#allocation6 + $0x48] sm:$0xff]
    %v2498 = vld [vmem:[#allocation6 + $0x50] sm:$0xff]
    %v2499 = vld [vmem:[#allocation6 + $0x58] sm:$0xff]
    %v2500 = vld [vmem:[#allocation6 + $0x60] sm:$0xff]
    %v2501 = vld [vmem:[#allocation6 + $0x68] sm:$0xff]
    %v2502 = vld [vmem:[#allocation6 + $0x70] sm:$0xff]
    %v2503 = vld [vmem:[#allocation6 + $0x78] sm:$0xff]
    %v2504 = vld [vmem:[%s7] ss:$2 sm:$0x3]
    %v2506 = vperm.slane %v2504, 0
    %v2507 = vperm.slane %v2504, 1
    %v2511 = vsel %vm400, %v2485, 0
    %v2514 = vsel %vm400, %v2486, 0
    %v2517 = vsel %vm400, %v2487, 0
    %2519 = vmatpush.msra.mxu0 0.0
    %2520 = vmatpush.msra.mxu0 0.0
    %2521 = vmatpush.msra.mxu0 0.0
    %2522 = vmatpush.msra.mxu0 0.0
    %2523 = vmatpush.msra.mxu0 0.0
    %2524 = vmatpush.msra.mxu0 0.0
    %2525 = vmatpush.msra.mxu0 0.0
    %2526 = vmatpush.msra.mxu0 0.0
    %2527 = vmatpush.msra.mxu0 %v2502
    %2528 = vmatpush.msra.mxu0 %v2500
    %2529 = vmatpush.msra.mxu0 %v2498
    %2530 = vmatpush.msra.mxu0 %v2496
    %2531 = vmatpush.msra.mxu0 %v2494
    %2532 = vmatpush.msra.mxu0 %v2492
    %2533 = vmatpush.msra.mxu0 %v2490
    %2534 = vmatpush.msra.mxu0 %v2488
    %2535 = vmatmul.f32.gmra.mxu0 %v2511
    %v2536 = vpop.f32.mrf.mxu0
    %v2537 = vadd.f32 %v2506, %v2536
    %2538 = vmatmul.f32.gmra.mxu0 %v2514
    %v2539 = vpop.f32.mrf.mxu0
    %v2540 = vadd.f32 %v2506, %v2539
    %2541 = vmatmul.f32.gmra.mxu0 %v2517
    %v2542 = vpop.f32.mrf.mxu0
    %v2543 = vadd.f32 %v2506, %v2542
    %2544 = vdwg.mxu0
    %2545 = vmatpush.msra.mxu0 0.0
    %2546 = vmatpush.msra.mxu0 0.0
    %2547 = vmatpush.msra.mxu0 0.0
    %2548 = vmatpush.msra.mxu0 0.0
    %2549 = vmatpush.msra.mxu0 0.0
    %2550 = vmatpush.msra.mxu0 0.0
    %2551 = vmatpush.msra.mxu0 0.0
    %2552 = vmatpush.msra.mxu0 0.0
    %2553 = vmatpush.msra.mxu0 %v2503
    %2554 = vmatpush.msra.mxu0 %v2501
    %2555 = vmatpush.msra.mxu0 %v2499
    %2556 = vmatpush.msra.mxu0 %v2497
    %2557 = vmatpush.msra.mxu0 %v2495
    %2558 = vmatpush.msra.mxu0 %v2493
    %2559 = vmatpush.msra.mxu0 %v2491
    %2560 = vmatpush.msra.mxu0 %v2489
    %2561 = vmatmul.f32.gmra.mxu0 %v2511
    %v2562 = vpop.f32.mrf.mxu0
    %v2563 = vadd.f32 %v2507, %v2562
    %2564 = vmatmul.f32.gmra.mxu0 %v2514
    %v2565 = vpop.f32.mrf.mxu0
    %v2566 = vadd.f32 %v2507, %v2565
    %2567 = vmatmul.f32.gmra.mxu0 %v2517
    %v2568 = vpop.f32.mrf.mxu0
    %v2569 = vadd.f32 %v2507, %v2568
    %2570 = vdwg.mxu0
    %v2571 = vmax.f32 %v2537, 0.0
    %v2572 = vmax.f32 %v2563, 0.0
    %v2573 = vmax.f32 %v2540, 0.0
    %v2574 = vmax.f32 %v2566, 0.0
    %v2575 = vmax.f32 %v2543, 0.0
    %v2576 = vmax.f32 %v2569, 0.0
    %v2577 = vld [vmem:[%s8] sm:$0xff]
    %v2578 = vld [vmem:[%s8 + $0x8] sm:$0xff]
    %v2579 = vld [vmem:[%s8 + $0x10] sm:$0xff]
    %v2580 = vld [vmem:[%s8 + $0x18] sm:$0xff]
    %v2581 = vld [vmem:[%s8 + $0x20] sm:$0xff]
    %v2582 = vld [vmem:[%s8 + $0x28] sm:$0xff]
    %v2583 = vld [vmem:[%s8 + $0x30] sm:$0xff]
    %v2584 = vld [vmem:[%s8 + $0x38] sm:$0xff]
    %v2585 = vld [vmem:[%s8 + $0x40] sm:$0xff]
    %v2586 = vld [vmem:[%s8 + $0x48] sm:$0xff]
    %v2587 = vld [vmem:[%s8 + $0x50] sm:$0xff]
    %v2588 = vld [vmem:[%s8 + $0x58] sm:$0xff]
    %v2589 = vld [vmem:[%s8 + $0x60] sm:$0xff]
    %v2590 = vld [vmem:[%s8 + $0x68] sm:$0xff]
    %v2591 = vld [vmem:[%s8 + $0x70] sm:$0xff]
    %v2592 = vld [vmem:[%s8 + $0x78] sm:$0xff]
    %v2593 = vld [vmem:[%s8 + $0x80] sm:$0xff]
    %v2594 = vld [vmem:[%s8 + $0x88] sm:$0xff]
    %v2595 = vld [vmem:[%s8 + $0x90] sm:$0xff]
    %v2596 = vld [vmem:[%s8 + $0x98] sm:$0xff]
    %v2597 = vld [vmem:[%s8 + $0xa0] sm:$0xff]
    %v2598 = vld [vmem:[%s8 + $0xa8] sm:$0xff]
    %v2599 = vld [vmem:[%s8 + $0xb0] sm:$0xff]
    %v2600 = vld [vmem:[%s8 + $0xb8] sm:$0xff]
    %v2601 = vld [vmem:[%s8 + $0xc0] sm:$0xff]
    %v2602 = vld [vmem:[%s8 + $0xc8] sm:$0xff]
    %v2603 = vld [vmem:[%s8 + $0xd0] sm:$0xff]
    %v2604 = vld [vmem:[%s8 + $0xd8] sm:$0xff]
    %v2605 = vld [vmem:[%s8 + $0xe0] sm:$0xff]
    %v2606 = vld [vmem:[%s8 + $0xe8] sm:$0xff]
    %v2607 = vld [vmem:[%s8 + $0xf0] sm:$0xff]
    %v2608 = vld [vmem:[%s8 + $0xf8] sm:$0xff]
    %v2609 = vld [vmem:[%s4 + $0x12] sm:$0x1]
    %v2610 = vperm.slane %v2609, 0
    %2611 = vmatpush.msra.mxu0 %v2592
    %2612 = vmatpush.msra.mxu0 %v2591
    %2613 = vmatpush.msra.mxu0 %v2590
    %2614 = vmatpush.msra.mxu0 %v2589
    %2615 = vmatpush.msra.mxu0 %v2588
    %2616 = vmatpush.msra.mxu0 %v2587
    %2617 = vmatpush.msra.mxu0 %v2586
    %2618 = vmatpush.msra.mxu0 %v2585
    %2619 = vmatpush.msra.mxu0 %v2584
    %2620 = vmatpush.msra.mxu0 %v2583
    %2621 = vmatpush.msra.mxu0 %v2582
    %2622 = vmatpush.msra.mxu0 %v2581
    %2623 = vmatpush.msra.mxu0 %v2580
    %2624 = vmatpush.msra.mxu0 %v2579
    %2625 = vmatpush.msra.mxu0 %v2578
    %2626 = vmatpush.msra.mxu0 %v2577
    %2627 = vmatmul.f32.gmra.mxu0 %v2571
    %v2628 = vpop.f32.mrf.mxu0
    %v2629 = vadd.f32 %v2610, %v2628
    %2630 = vmatmul.f32.gmra.mxu0 %v2573
    %v2631 = vpop.f32.mrf.mxu0
    %v2632 = vadd.f32 %v2610, %v2631
    %2633 = vmatmul.f32.gmra.mxu0 %v2575
    %v2634 = vpop.f32.mrf.mxu0
    %v2635 = vadd.f32 %v2610, %v2634
    %2636 = vdwg.mxu0
    %2637 = vmatpush.msra.mxu0 %v2608
    %2638 = vmatpush.msra.mxu0 %v2607
    %2639 = vmatpush.msra.mxu0 %v2606
    %2640 = vmatpush.msra.mxu0 %v2605
    %2641 = vmatpush.msra.mxu0 %v2604
    %2642 = vmatpush.msra.mxu0 %v2603
    %2643 = vmatpush.msra.mxu0 %v2602
    %2644 = vmatpush.msra.mxu0 %v2601
    %2645 = vmatpush.msra.mxu0 %v2600
    %2646 = vmatpush.msra.mxu0 %v2599
    %2647 = vmatpush.msra.mxu0 %v2598
    %2648 = vmatpush.msra.mxu0 %v2597
    %2649 = vmatpush.msra.mxu0 %v2596
    %2650 = vmatpush.msra.mxu0 %v2595
    %2651 = vmatpush.msra.mxu0 %v2594
    %2652 = vmatpush.msra.mxu0 %v2593
    %2653 = vmatmul.f32.gmra.mxu0 %v2572
    %v2654 = vpop.f32.mrf.mxu0
    %v2655 = vadd.f32 %v2629, %v2654
    %2656 = vmatmul.f32.gmra.mxu0 %v2574
    %v2657 = vpop.f32.mrf.mxu0
    %v2658 = vadd.f32 %v2632, %v2657
    %2659 = vmatmul.f32.gmra.mxu0 %v2576
    %v2660 = vpop.f32.mrf.mxu0
    %v2661 = vadd.f32 %v2635, %v2660
    %2662 = vdwg.mxu0
    %v2663 = vadd.f32 %v2485, %v2655
    %v2664 = vadd.f32 %v2486, %v2658
    %v2665 = vadd.f32 %v2487, %v2661
    %v2666 = vld [vmem:[%s4 + $0x10] sm:$0x1]
    %v2667 = vld [vmem:[%s4 + $0x11] sm:$0x1]
    %v2668 = vsel %vm400, %v2663, 0.0
    %2669 = vadd.xlane.f32.xlu0 %v2668
    %v2670 = vpop.xlane.xlu0 %2669
    %v2671 = vsel %vm400, %v2664, 0.0
    %2672 = vadd.xlane.f32.xlu0 %v2671
    %v2673 = vpop.xlane.xlu0 %2672
    %v2674 = vsel %vm400, %v2665, 0.0
    %2675 = vadd.xlane.f32.xlu0 %v2674
    %v2676 = vpop.xlane.xlu0 %2675
    %v2677 = vmul.f32 %v2670, %v2422
    %v2678 = vmul.f32 %v2673, %v2422
    %v2679 = vmul.f32 %v2676, %v2422
    %v2680 = vsub.f32 %v2663, %v2677
    %v2681 = vsub.f32 %v2664, %v2678
    %v2682 = vsub.f32 %v2665, %v2679
    %v2683 = vmul.f32 %v2680, %v2680
    %v2684 = vmul.f32 %v2681, %v2681
    %v2685 = vmul.f32 %v2682, %v2682
    %v2686 = vsel %vm400, %v2683, 0.0
    %2687 = vadd.xlane.f32.xlu0 %v2686
    %v2688 = vpop.xlane.xlu0 %2687
    %v2689 = vsel %vm400, %v2684, 0.0
    %2690 = vadd.xlane.f32.xlu0 %v2689
    %v2691 = vpop.xlane.xlu0 %2690
    %v2692 = vsel %vm400, %v2685, 0.0
    %2693 = vadd.xlane.f32.xlu0 %v2692
    %v2694 = vpop.xlane.xlu0 %2693
    %v2695 = vmul.f32 %v2688, %v2422
    %v2696 = vmul.f32 %v2691, %v2422
    %v2697 = vmul.f32 %v2694, %v2422
    %v2698 = vadd.f32 %v2695, 1e-05
    %v2699 = vadd.f32 %v2696, 1e-05
    %v2700 = vadd.f32 %v2697, 1e-05
    %v2701 = vrsqrt.pop %v2698
    %v2702 = vmul.f32 %v2701, %v2698
    %v2703 = vmul.f32 %v2702, %v2701
    %v2704 = vmul.f32 0.5, %v2703
    %v2705 = vsub.f32 1.5, %v2704
    %v2706 = vmul.f32 %v2701, %v2705
    %vm2707 = vweird.f32 %v2698
    %vm2708 = vweird.f32 %v2701
    %vm2709 = vmor %vm2707, %vm2708
    %v2710 = vsel %vm2709, %v2701, %v2706
    %v2711 = vrsqrt.pop %v2699
    %v2712 = vmul.f32 %v2711, %v2699
    %v2713 = vmul.f32 %v2712, %v2711
    %v2714 = vmul.f32 0.5, %v2713
    %v2715 = vsub.f32 1.5, %v2714
    %v2716 = vmul.f32 %v2711, %v2715
    %vm2717 = vweird.f32 %v2699
    %vm2718 = vweird.f32 %v2711
    %vm2719 = vmor %vm2717, %vm2718
    %v2720 = vsel %vm2719, %v2711, %v2716
    %v2721 = vrsqrt.pop %v2700
    %v2722 = vmul.f32 %v2721, %v2700
    %v2723 = vmul.f32 %v2722, %v2721
    %v2724 = vmul.f32 0.5, %v2723
    %v2725 = vsub.f32 1.5, %v2724
    %v2726 = vmul.f32 %v2721, %v2725
    %vm2727 = vweird.f32 %v2700
    %vm2728 = vweird.f32 %v2721
    %vm2729 = vmor %vm2727, %vm2728
    %v2730 = vsel %vm2729, %v2721, %v2726
    %v2731 = vmul.f32 %v2680, %v2710
    %v2732 = vmul.f32 %v2681, %v2720
    %v2733 = vmul.f32 %v2682, %v2730
    %v2734 = vperm.slane %v2666, 0
    %v2735 = vmul.f32 %v2731, %v2734
    %v2736 = vmul.f32 %v2732, %v2734
    %v2737 = vmul.f32 %v2733, %v2734
    %v2738 = vperm.slane %v2667, 0
    %v2739 = vadd.f32 %v2735, %v2738
    %v2740 = vadd.f32 %v2736, %v2738
    %v2741 = vadd.f32 %v2737, %v2738
    %s2742 = scalar_lea.vmem %s5, 64
    %v2743 = vld [vmem:[%s2742] sm:$0xff]
    %v2744 = vld [vmem:[%s2742 + $0x8] sm:$0xff]
    %v2745 = vld [vmem:[%s2742 + $0x10] sm:$0xff]
    %v2746 = vld [vmem:[%s2742 + $0x18] sm:$0xff]
    %v2747 = vld [vmem:[%s2742 + $0x20] sm:$0xff]
    %v2748 = vld [vmem:[%s2742 + $0x28] sm:$0xff]
    %v2749 = vld [vmem:[%s2742 + $0x30] sm:$0xff]
    %v2750 = vld [vmem:[%s2742 + $0x38] sm:$0xff]
    %s2751 = scalar_lea.vmem %s5, 128
    %v2752 = vld [vmem:[%s2751] sm:$0xff]
    %v2753 = vld [vmem:[%s2751 + $0x8] sm:$0xff]
    %v2754 = vld [vmem:[%s2751 + $0x10] sm:$0xff]
    %v2755 = vld [vmem:[%s2751 + $0x18] sm:$0xff]
    %v2756 = vld [vmem:[%s2751 + $0x20] sm:$0xff]
    %v2757 = vld [vmem:[%s2751 + $0x28] sm:$0xff]
    %v2758 = vld [vmem:[%s2751 + $0x30] sm:$0xff]
    %v2759 = vld [vmem:[%s2751 + $0x38] sm:$0xff]
    %s2760 = scalar_lea.vmem %s5, 192
    %v2761 = vld [vmem:[%s2760] sm:$0xff]
    %v2762 = vld [vmem:[%s2760 + $0x8] sm:$0xff]
    %v2763 = vld [vmem:[%s2760 + $0x10] sm:$0xff]
    %v2764 = vld [vmem:[%s2760 + $0x18] sm:$0xff]
    %v2765 = vld [vmem:[%s2760 + $0x20] sm:$0xff]
    %v2766 = vld [vmem:[%s2760 + $0x28] sm:$0xff]
    %v2767 = vld [vmem:[%s2760 + $0x30] sm:$0xff]
    %v2768 = vld [vmem:[%s2760 + $0x38] sm:$0xff]
    %v2769 = vld [vmem:[%s4 + $0x4] sm:$0x1]
    %v2770 = vld [vmem:[%s4 + $0x5] sm:$0x1]
    %v2771 = vld [vmem:[%s4 + $0x6] sm:$0x1]
    %s2772 = scalar_lea.vmem %s5, 256
    %v2773 = vld [vmem:[%s2772] sm:$0xff]
    %v2774 = vld [vmem:[%s2772 + $0x8] sm:$0xff]
    %v2775 = vld [vmem:[%s2772 + $0x10] sm:$0xff]
    %v2776 = vld [vmem:[%s2772 + $0x18] sm:$0xff]
    %v2777 = vld [vmem:[%s2772 + $0x20] sm:$0xff]
    %v2778 = vld [vmem:[%s2772 + $0x28] sm:$0xff]
    %v2779 = vld [vmem:[%s2772 + $0x30] sm:$0xff]
    %v2780 = vld [vmem:[%s2772 + $0x38] sm:$0xff]
    %v2781 = vld [vmem:[#allocation3] sm:$0xff]
    %v2782 = vld [vmem:[#allocation3 + $0x8] sm:$0xff]
    %v2783 = vld [vmem:[#allocation3 + $0x10] sm:$0xff]
    %v2784 = vperm.slane %v2769, 0
    %v2786 = vsel %vm400, %v2739, 0
    %v2789 = vsel %vm400, %v2740, 0
    %v2792 = vsel %vm400, %v2741, 0
    %2794 = vmatpush.msra.mxu0 0.0
    %2795 = vmatpush.msra.mxu0 0.0
    %2796 = vmatpush.msra.mxu0 0.0
    %2797 = vmatpush.msra.mxu0 0.0
    %2798 = vmatpush.msra.mxu0 0.0
    %2799 = vmatpush.msra.mxu0 0.0
    %2800 = vmatpush.msra.mxu0 0.0
    %2801 = vmatpush.msra.mxu0 0.0
    %2802 = vmatpush.msra.mxu0 %v2750
    %2803 = vmatpush.msra.mxu0 %v2749
    %2804 = vmatpush.msra.mxu0 %v2748
    %2805 = vmatpush.msra.mxu0 %v2747
    %2806 = vmatpush.msra.mxu0 %v2746
    %2807 = vmatpush.msra.mxu0 %v2745
    %2808 = vmatpush.msra.mxu0 %v2744
    %2809 = vmatpush.msra.mxu0 %v2743
    %2810 = vmatmul.f32.gmra.mxu0 %v2786
    %v2811 = vpop.f32.mrf.mxu0
    %v2812 = vadd.f32 %v2784, %v2811
    %2813 = vmatmul.f32.gmra.mxu0 %v2789
    %v2814 = vpop.f32.mrf.mxu0
    %v2815 = vadd.f32 %v2784, %v2814
    %2816 = vmatmul.f32.gmra.mxu0 %v2792
    %v2817 = vpop.f32.mrf.mxu0
    %v2818 = vadd.f32 %v2784, %v2817
    %2819 = vdwg.mxu0
    %v2820 = vperm.slane %v2770, 0
    %2821 = vmatpush.msra.mxu0 0.0
    %2822 = vmatpush.msra.mxu0 0.0
    %2823 = vmatpush.msra.mxu0 0.0
    %2824 = vmatpush.msra.mxu0 0.0
    %2825 = vmatpush.msra.mxu0 0.0
    %2826 = vmatpush.msra.mxu0 0.0
    %2827 = vmatpush.msra.mxu0 0.0
    %2828 = vmatpush.msra.mxu0 0.0
    %2829 = vmatpush.msra.mxu0 %v2759
    %2830 = vmatpush.msra.mxu0 %v2758
    %2831 = vmatpush.msra.mxu0 %v2757
    %2832 = vmatpush.msra.mxu0 %v2756
    %2833 = vmatpush.msra.mxu0 %v2755
    %2834 = vmatpush.msra.mxu0 %v2754
    %2835 = vmatpush.msra.mxu0 %v2753
    %2836 = vmatpush.msra.mxu0 %v2752
    %2837 = vmatmul.f32.gmra.mxu0 %v2786
    %v2838 = vpop.f32.mrf.mxu0
    %v2839 = vadd.f32 %v2820, %v2838
    %2840 = vmatmul.f32.gmra.mxu0 %v2789
    %v2841 = vpop.f32.mrf.mxu0
    %v2842 = vadd.f32 %v2820, %v2841
    %2843 = vmatmul.f32.gmra.mxu0 %v2792
    %v2844 = vpop.f32.mrf.mxu0
    %v2845 = vadd.f32 %v2820, %v2844
    %2846 = vdwg.mxu0
    %v2847 = vperm.slane %v2771, 0
    %2848 = vmatpush.msra.mxu0 0.0
    %2849 = vmatpush.msra.mxu0 0.0
    %2850 = vmatpush.msra.mxu0 0.0
    %2851 = vmatpush.msra.mxu0 0.0
    %2852 = vmatpush.msra.mxu0 0.0
    %2853 = vmatpush.msra.mxu0 0.0
    %2854 = vmatpush.msra.mxu0 0.0
    %2855 = vmatpush.msra.mxu0 0.0
    %2856 = vmatpush.msra.mxu0 %v2768
    %2857 = vmatpush.msra.mxu0 %v2767
    %2858 = vmatpush.msra.mxu0 %v2766
    %2859 = vmatpush.msra.mxu0 %v2765
    %2860 = vmatpush.msra.mxu0 %v2764
    %2861 = vmatpush.msra.mxu0 %v2763
    %2862 = vmatpush.msra.mxu0 %v2762
    %2863 = vmatpush.msra.mxu0 %v2761
    %2864 = vmatmul.f32.gmra.mxu0 %v2786
    %v2865 = vpop.f32.mrf.mxu0
    %v2866 = vadd.f32 %v2847, %v2865
    %2867 = vmatmul.f32.gmra.mxu0 %v2789
    %v2868 = vpop.f32.mrf.mxu0
    %v2869 = vadd.f32 %v2847, %v2868
    %2870 = vmatmul.f32.gmra.mxu0 %v2792
    %v2871 = vpop.f32.mrf.mxu0
    %v2872 = vadd.f32 %v2847, %v2871
    %2873 = vdwg.mxu0
    %v2875 = vsel %vm838, %v2812, 0
    %v2878 = vsel %vm838, %v2815, 0
    %v2881 = vsel %vm838, %v2818, 0
    %v2884 = vsel %vm838, %v2839, 0
    %v2887 = vsel %vm838, %v2842, 0
    %v2890 = vsel %vm838, %v2845, 0
    %2892 = vmatpush.xpose.msra.mxu0 0.0
    %2893 = vmatpush.xpose.msra.mxu0 0.0
    %2894 = vmatpush.xpose.msra.mxu0 0.0
    %2895 = vmatpush.xpose.msra.mxu0 0.0
    %2896 = vmatpush.xpose.msra.mxu0 0.0
    %2897 = vmatpush.xpose.msra.mxu0 0.0
    %2898 = vmatpush.xpose.msra.mxu0 0.0
    %2899 = vmatpush.xpose.msra.mxu0 0.0
    %2900 = vmatpush.xpose.msra.mxu0 0.0
    %2901 = vmatpush.xpose.msra.mxu0 0.0
    %2902 = vmatpush.xpose.msra.mxu0 0.0
    %2903 = vmatpush.xpose.msra.mxu0 0.0
    %2904 = vmatpush.xpose.msra.mxu0 0.0
    %2905 = vmatpush.xpose.msra.mxu0 %v2890
    %2906 = vmatpush.xpose.msra.mxu0 %v2887
    %2907 = vmatpush.xpose.msra.mxu0 %v2884
    %2908 = vmatmul.f32.gmra.mxu0 %v2875
    %v2909 = vpop.f32.mrf.mxu0
    %v2910 = vadd.f32 0.0, %v2909
    %2911 = vmatmul.f32.gmra.mxu0 %v2878
    %v2912 = vpop.f32.mrf.mxu0
    %v2913 = vadd.f32 0.0, %v2912
    %2914 = vmatmul.f32.gmra.mxu0 %v2881
    %v2915 = vpop.f32.mrf.mxu0
    %v2916 = vadd.f32 0.0, %v2915
    %2917 = vdwg.mxu0
    %v2918 = vmul.f32 %v2910, 0.25
    %v2919 = vmul.f32 %v2913, 0.25
    %v2920 = vmul.f32 %v2916, 0.25
    %v2921 = vadd.f32 %v2918, %v2781
    %v2922 = vadd.f32 %v2919, %v2782
    %v2923 = vadd.f32 %v2920, %v2783
    %vm2924 = vcmask 195584
    %v2925 = vsel %vm2924, %v2921, -inf
    %2926 = vmax.xlane.f32.xlu0 %v2925
    %v2927 = vpop.xlane.xlu0 %2926
    %v2928 = vsel %vm2924, %v2922, -inf
    %2929 = vmax.xlane.f32.xlu0 %v2928
    %v2930 = vpop.xlane.xlu0 %2929
    %v2931 = vsel %vm2924, %v2923, -inf
    %2932 = vmax.xlane.f32.xlu0 %v2931
    %v2933 = vpop.xlane.xlu0 %2932
    %v2934 = vsub.f32 %v2921, %v2927
    %v2935 = vsub.f32 %v2922, %v2930
    %v2936 = vsub.f32 %v2923, %v2933
    %v2937 = vmul.f32 %v2934, 1.442695
    %v2938 = vpow.pop %v2937
    %v2939 = vmul.f32 %v2935, 1.442695
    %v2940 = vpow.pop %v2939
    %v2941 = vmul.f32 %v2936, 1.442695
    %v2942 = vpow.pop %v2941
    %v2943 = vsel %vm2924, %v2938, 0.0
    %2944 = vadd.xlane.f32.xlu0 %v2943
    %v2945 = vpop.xlane.xlu0 %2944
    %v2946 = vsel %vm2924, %v2940, 0.0
    %2947 = vadd.xlane.f32.xlu0 %v2946
    %v2948 = vpop.xlane.xlu0 %2947
    %v2949 = vsel %vm2924, %v2942, 0.0
    %2950 = vadd.xlane.f32.xlu0 %v2949
    %v2951 = vpop.xlane.xlu0 %2950
    %v2952 = vrcp.pop %v2945
    %v2953 = vmul.f32 %v2945, %v2952
    %v2954 = vsub.f32 1.0, %v2953
    %v2955 = vmul.f32 %v2952, %v2954
    %v2956 = vadd.f32 %v2952, %v2955
    %vm2957 = vweird.f32 %v2945
    %vm2958 = vweird.f32 %v2952
    %vm2959 = vmor %vm2957, %vm2958
    %v2960 = vsel %vm2959, %v2952, %v2956
    %v2961 = vand.u32 2147483647, %v2945
    %vm2962 = vcmp.eq.f32.partialorder %v2961, 8.507059e+37
    %v2963 = vand.u32 %v2945, 2147483648
    %v2964 = vor.u32 1.1754944e-38, %v2963
    %v2965 = vsel %vm2962, %v2964, %v2960
    %v2966 = vmul.f32 %v2938, %v2965
    %v2967 = vrcp.pop %v2948
    %v2968 = vmul.f32 %v2948, %v2967
    %v2969 = vsub.f32 1.0, %v2968
    %v2970 = vmul.f32 %v2967, %v2969
    %v2971 = vadd.f32 %v2967, %v2970
    %vm2972 = vweird.f32 %v2948
    %vm2973 = vweird.f32 %v2967
    %vm2974 = vmor %vm2972, %vm2973
    %v2975 = vsel %vm2974, %v2967, %v2971
    %v2976 = vand.u32 2147483647, %v2948
    %vm2977 = vcmp.eq.f32.partialorder %v2976, 8.507059e+37
    %v2978 = vand.u32 %v2948, 2147483648
    %v2979 = vor.u32 1.1754944e-38, %v2978
    %v2980 = vsel %vm2977, %v2979, %v2975
    %v2981 = vmul.f32 %v2940, %v2980
    %v2982 = vrcp.pop %v2951
    %v2983 = vmul.f32 %v2951, %v2982
    %v2984 = vsub.f32 1.0, %v2983
    %v2985 = vmul.f32 %v2982, %v2984
    %v2986 = vadd.f32 %v2982, %v2985
    %vm2987 = vweird.f32 %v2951
    %vm2988 = vweird.f32 %v2982
    %vm2989 = vmor %vm2987, %vm2988
    %v2990 = vsel %vm2989, %v2982, %v2986
    %v2991 = vand.u32 2147483647, %v2951
    %vm2992 = vcmp.eq.f32.partialorder %v2991, 8.507059e+37
    %v2993 = vand.u32 %v2951, 2147483648
    %v2994 = vor.u32 1.1754944e-38, %v2993
    %v2995 = vsel %vm2992, %v2994, %v2990
    %v2996 = vmul.f32 %v2942, %v2995
    %v2998 = vsel %vm2924, %v2966, 0
    %v3001 = vsel %vm2924, %v2981, 0
    %v3004 = vsel %vm2924, %v2996, 0
    %3006 = vmatpush.msra.mxu0 0.0
    %3007 = vmatpush.msra.mxu0 0.0
    %3008 = vmatpush.msra.mxu0 0.0
    %3009 = vmatpush.msra.mxu0 0.0
    %3010 = vmatpush.msra.mxu0 0.0
    %3011 = vmatpush.msra.mxu0 0.0
    %3012 = vmatpush.msra.mxu0 0.0
    %3013 = vmatpush.msra.mxu0 0.0
    %3014 = vmatpush.msra.mxu0 0.0
    %3015 = vmatpush.msra.mxu0 0.0
    %3016 = vmatpush.msra.mxu0 0.0
    %3017 = vmatpush.msra.mxu0 0.0
    %3018 = vmatpush.msra.mxu0 0.0
    %3019 = vmatpush.msra.mxu0 %v2872
    %3020 = vmatpush.msra.mxu0 %v2869
    %3021 = vmatpush.msra.mxu0 %v2866
    %3022 = vmatmul.f32.gmra.mxu0 %v2998
    %v3023 = vpop.f32.mrf.mxu0
    %v3024 = vadd.f32 0.0, %v3023
    %3025 = vmatmul.f32.gmra.mxu0 %v3001
    %v3026 = vpop.f32.mrf.mxu0
    %v3027 = vadd.f32 0.0, %v3026
    %3028 = vmatmul.f32.gmra.mxu0 %v3004
    %v3029 = vpop.f32.mrf.mxu0
    %v3030 = vadd.f32 0.0, %v3029
    %3031 = vdwg.mxu0
    %3032 = vrot.lane.b32.xlu0 %v2812, 112
    %v3033 = vpop.permute.xlu0 %3032
    %3034 = vrot.lane.b32.xlu0 %v2815, 112
    %v3035 = vpop.permute.xlu0 %3034
    %3036 = vrot.lane.b32.xlu0 %v2818, 112
    %v3037 = vpop.permute.xlu0 %3036
    %3038 = vrot.lane.b32.xlu0 %v2839, 112
    %v3039 = vpop.permute.xlu0 %3038
    %3040 = vrot.lane.b32.xlu0 %v2842, 112
    %v3041 = vpop.permute.xlu0 %3040
    %3042 = vrot.lane.b32.xlu0 %v2845, 112
    %v3043 = vpop.permute.xlu0 %3042
    %v3044 = vsel %vm838, %v3033, 0
    %v3046 = vsel %vm838, %v3035, 0
    %v3048 = vsel %vm838, %v3037, 0
    %v3050 = vsel %vm838, %v3039, 0
    %v3052 = vsel %vm838, %v3041, 0
    %v3054 = vsel %vm838, %v3043, 0
    %3056 = vmatpush.xpose.msra.mxu0 0.0
    %3057 = vmatpush.xpose.msra.mxu0 0.0
    %3058 = vmatpush.xpose.msra.mxu0 0.0
    %3059 = vmatpush.xpose.msra.mxu0 0.0
    %3060 = vmatpush.xpose.msra.mxu0 0.0
    %3061 = vmatpush.xpose.msra.mxu0 0.0
    %3062 = vmatpush.xpose.msra.mxu0 0.0
    %3063 = vmatpush.xpose.msra.mxu0 0.0
    %3064 = vmatpush.xpose.msra.mxu0 0.0
    %3065 = vmatpush.xpose.msra.mxu0 0.0
    %3066 = vmatpush.xpose.msra.mxu0 0.0
    %3067 = vmatpush.xpose.msra.mxu0 0.0
    %3068 = vmatpush.xpose.msra.mxu0 0.0
    %3069 = vmatpush.xpose.msra.mxu0 %v3054
    %3070 = vmatpush.xpose.msra.mxu0 %v3052
    %3071 = vmatpush.xpose.msra.mxu0 %v3050
    %3072 = vmatmul.f32.gmra.mxu0 %v3044
    %v3073 = vpop.f32.mrf.mxu0
    %v3074 = vadd.f32 0.0, %v3073
    %3075 = vmatmul.f32.gmra.mxu0 %v3046
    %v3076 = vpop.f32.mrf.mxu0
    %v3077 = vadd.f32 0.0, %v3076
    %3078 = vmatmul.f32.gmra.mxu0 %v3048
    %v3079 = vpop.f32.mrf.mxu0
    %v3080 = vadd.f32 0.0, %v3079
    %3081 = vdwg.mxu0
    %v3082 = vmul.f32 %v3074, 0.25
    %v3083 = vmul.f32 %v3077, 0.25
    %v3084 = vmul.f32 %v3080, 0.25
    %v3085 = vadd.f32 %v3082, %v2781
    %v3086 = vadd.f32 %v3083, %v2782
    %v3087 = vadd.f32 %v3084, %v2783
    %v3088 = vsel %vm2924, %v3085, -inf
    %3089 = vmax.xlane.f32.xlu0 %v3088
    %v3090 = vpop.xlane.xlu0 %3089
    %v3091 = vsel %vm2924, %v3086, -inf
    %3092 = vmax.xlane.f32.xlu0 %v3091
    %v3093 = vpop.xlane.xlu0 %3092
    %v3094 = vsel %vm2924, %v3087, -inf
    %3095 = vmax.xlane.f32.xlu0 %v3094
    %v3096 = vpop.xlane.xlu0 %3095
    %v3097 = vsub.f32 %v3085, %v3090
    %v3098 = vsub.f32 %v3086, %v3093
    %v3099 = vsub.f32 %v3087, %v3096
    %v3100 = vmul.f32 %v3097, 1.442695
    %v3101 = vpow.pop %v3100
    %v3102 = vmul.f32 %v3098, 1.442695
    %v3103 = vpow.pop %v3102
    %v3104 = vmul.f32 %v3099, 1.442695
    %v3105 = vpow.pop %v3104
    %v3106 = vsel %vm2924, %v3101, 0.0
    %3107 = vadd.xlane.f32.xlu0 %v3106
    %v3108 = vpop.xlane.xlu0 %3107
    %v3109 = vsel %vm2924, %v3103, 0.0
    %3110 = vadd.xlane.f32.xlu0 %v3109
    %v3111 = vpop.xlane.xlu0 %3110
    %v3112 = vsel %vm2924, %v3105, 0.0
    %3113 = vadd.xlane.f32.xlu0 %v3112
    %v3114 = vpop.xlane.xlu0 %3113
    %v3115 = vrcp.pop %v3108
    %v3116 = vmul.f32 %v3108, %v3115
    %v3117 = vsub.f32 1.0, %v3116
    %v3118 = vmul.f32 %v3115, %v3117
    %v3119 = vadd.f32 %v3115, %v3118
    %vm3120 = vweird.f32 %v3108
    %vm3121 = vweird.f32 %v3115
    %vm3122 = vmor %vm3120, %vm3121
    %v3123 = vsel %vm3122, %v3115, %v3119
    %v3124 = vand.u32 2147483647, %v3108
    %vm3125 = vcmp.eq.f32.partialorder %v3124, 8.507059e+37
    %v3126 = vand.u32 %v3108, 2147483648
    %v3127 = vor.u32 1.1754944e-38, %v3126
    %v3128 = vsel %vm3125, %v3127, %v3123
    %v3129 = vmul.f32 %v3101, %v3128
    %v3130 = vrcp.pop %v3111
    %v3131 = vmul.f32 %v3111, %v3130
    %v3132 = vsub.f32 1.0, %v3131
    %v3133 = vmul.f32 %v3130, %v3132
    %v3134 = vadd.f32 %v3130, %v3133
    %vm3135 = vweird.f32 %v3111
    %vm3136 = vweird.f32 %v3130
    %vm3137 = vmor %vm3135, %vm3136
    %v3138 = vsel %vm3137, %v3130, %v3134
    %v3139 = vand.u32 2147483647, %v3111
    %vm3140 = vcmp.eq.f32.partialorder %v3139, 8.507059e+37
    %v3141 = vand.u32 %v3111, 2147483648
    %v3142 = vor.u32 1.1754944e-38, %v3141
    %v3143 = vsel %vm3140, %v3142, %v3138
    %v3144 = vmul.f32 %v3103, %v3143
    %v3145 = vrcp.pop %v3114
    %v3146 = vmul.f32 %v3114, %v3145
    %v3147 = vsub.f32 1.0, %v3146
    %v3148 = vmul.f32 %v3145, %v3147
    %v3149 = vadd.f32 %v3145, %v3148
    %vm3150 = vweird.f32 %v3114
    %vm3151 = vweird.f32 %v3145
    %vm3152 = vmor %vm3150, %vm3151
    %v3153 = vsel %vm3152, %v3145, %v3149
    %v3154 = vand.u32 2147483647, %v3114
    %vm3155 = vcmp.eq.f32.partialorder %v3154, 8.507059e+37
    %v3156 = vand.u32 %v3114, 2147483648
    %v3157 = vor.u32 1.1754944e-38, %v3156
    %v3158 = vsel %vm3155, %v3157, %v3153
    %v3159 = vmul.f32 %v3105, %v3158
    %3163 = vrot.lane.b32.xlu0 %v2866, 112
    %v3164 = vpop.permute.xlu0 %3163
    %3165 = vrot.lane.b32.xlu0 %v2869, 112
    %v3166 = vpop.permute.xlu0 %3165
    %3167 = vrot.lane.b32.xlu0 %v2872, 112
    %v3168 = vpop.permute.xlu0 %3167
    %v3173 = vsel %vm2924, %v3129, 0
    %v3176 = vsel %vm2924, %v3144, 0
    %v3179 = vsel %vm2924, %v3159, 0
    %3181 = vmatpush.msra.mxu0 0.0
    %3182 = vmatpush.msra.mxu0 0.0
    %3183 = vmatpush.msra.mxu0 0.0
    %3184 = vmatpush.msra.mxu0 0.0
    %3185 = vmatpush.msra.mxu0 0.0
    %3186 = vmatpush.msra.mxu0 0.0
    %3187 = vmatpush.msra.mxu0 0.0
    %3188 = vmatpush.msra.mxu0 0.0
    %3189 = vmatpush.msra.mxu0 0.0
    %3190 = vmatpush.msra.mxu0 0.0
    %3191 = vmatpush.msra.mxu0 0.0
    %3192 = vmatpush.msra.mxu0 0.0
    %3193 = vmatpush.msra.mxu0 0.0
    %3194 = vmatpush.msra.mxu0 %v3168
    %3195 = vmatpush.msra.mxu0 %v3166
    %3196 = vmatpush.msra.mxu0 %v3164
    %3197 = vmatmul.f32.gmra.mxu0 %v3173
    %v3198 = vpop.f32.mrf.mxu0
    %v3199 = vadd.f32 0.0, %v3198
    %3200 = vmatmul.f32.gmra.mxu0 %v3176
    %v3201 = vpop.f32.mrf.mxu0
    %v3202 = vadd.f32 0.0, %v3201
    %3203 = vmatmul.f32.gmra.mxu0 %v3179
    %v3204 = vpop.f32.mrf.mxu0
    %v3205 = vadd.f32 0.0, %v3204
    %3206 = vdwg.mxu0
    %v3208 = vsel %vm838, %v3199, 0
    %v3211 = vsel %vm838, %v3202, 0
    %v3214 = vsel %vm838, %v3205, 0
    %3216 = vmatpush.msra.mxu0 0.0
    %3217 = vmatpush.msra.mxu0 0.0
    %3218 = vmatpush.msra.mxu0 0.0
    %3219 = vmatpush.msra.mxu0 0.0
    %3220 = vmatpush.msra.mxu0 0.0
    %3221 = vmatpush.msra.mxu0 0.0
    %3222 = vmatpush.msra.mxu0 0.0
    %3223 = vmatpush.msra.mxu0 0.0
    %3224 = vmatpush.msra.mxu0 0.0
    %3225 = vmatpush.msra.mxu0 0.0
    %3226 = vmatpush.msra.mxu0 0.0
    %3227 = vmatpush.msra.mxu0 0.0
    %3228 = vmatpush.msra.mxu0 0.0
    %3229 = vmatpush.msra.mxu0 0.0
    %3230 = vmatpush.msra.mxu0 %v2776
    %3231 = vmatpush.msra.mxu0 %v2775
    %3232 = vmatmul.f32.gmra.mxu0 %v3208
    %v3233 = vpop.f32.mrf.mxu0
    %v3234 = vadd.f32 0.0, %v3233
    %3235 = vmatmul.f32.gmra.mxu0 %v3211
    %v3236 = vpop.f32.mrf.mxu0
    %v3237 = vadd.f32 0.0, %v3236
    %3238 = vmatmul.f32.gmra.mxu0 %v3214
    %v3239 = vpop.f32.mrf.mxu0
    %v3240 = vadd.f32 0.0, %v3239
    %3241 = vdwg.mxu0
    %v3243 = vsel %vm838, %v3024, 0
    %v3246 = vsel %vm838, %v3027, 0
    %v3249 = vsel %vm838, %v3030, 0
    %3251 = vmatpush.msra.mxu0 0.0
    %3252 = vmatpush.msra.mxu0 0.0
    %3253 = vmatpush.msra.mxu0 0.0
    %3254 = vmatpush.msra.mxu0 0.0
    %3255 = vmatpush.msra.mxu0 0.0
    %3256 = vmatpush.msra.mxu0 0.0
    %3257 = vmatpush.msra.mxu0 0.0
    %3258 = vmatpush.msra.mxu0 0.0
    %3259 = vmatpush.msra.mxu0 0.0
    %3260 = vmatpush.msra.mxu0 0.0
    %3261 = vmatpush.msra.mxu0 0.0
    %3262 = vmatpush.msra.mxu0 0.0
    %3263 = vmatpush.msra.mxu0 0.0
    %3264 = vmatpush.msra.mxu0 0.0
    %3265 = vmatpush.msra.mxu0 %v2774
    %3266 = vmatpush.msra.mxu0 %v2773
    %3267 = vmatmul.f32.gmra.mxu0 %v3243
    %v3268 = vpop.f32.mrf.mxu0
    %v3269 = vadd.f32 %v3234, %v3268
    %3270 = vmatmul.f32.gmra.mxu0 %v3246
    %v3271 = vpop.f32.mrf.mxu0
    %v3272 = vadd.f32 %v3237, %v3271
    %3273 = vmatmul.f32.gmra.mxu0 %v3249
    %v3274 = vpop.f32.mrf.mxu0
    %v3275 = vadd.f32 %v3240, %v3274
    %3276 = vdwg.mxu0
    %3277 = vrot.lane.b32.xlu0 %v2812, 96
    %v3278 = vpop.permute.xlu0 %3277
    %3279 = vrot.lane.b32.xlu0 %v2815, 96
    %v3280 = vpop.permute.xlu0 %3279
    %3281 = vrot.lane.b32.xlu0 %v2818, 96
    %v3282 = vpop.permute.xlu0 %3281
    %3283 = vrot.lane.b32.xlu0 %v2839, 96
    %v3284 = vpop.permute.xlu0 %3283
    %3285 = vrot.lane.b32.xlu0 %v2842, 96
    %v3286 = vpop.permute.xlu0 %3285
    %3287 = vrot.lane.b32.xlu0 %v2845, 96
    %v3288 = vpop.permute.xlu0 %3287
    %v3289 = vsel %vm838, %v3278, 0
    %v3291 = vsel %vm838, %v3280, 0
    %v3293 = vsel %vm838, %v3282, 0
    %v3295 = vsel %vm838, %v3284, 0
    %v3297 = vsel %vm838, %v3286, 0
    %v3299 = vsel %vm838, %v3288, 0
    %3301 = vmatpush.xpose.msra.mxu0 0.0
    %3302 = vmatpush.xpose.msra.mxu0 0.0
    %3303 = vmatpush.xpose.msra.mxu0 0.0
    %3304 = vmatpush.xpose.msra.mxu0 0.0
    %3305 = vmatpush.xpose.msra.mxu0 0.0
    %3306 = vmatpush.xpose.msra.mxu0 0.0
    %3307 = vmatpush.xpose.msra.mxu0 0.0
    %3308 = vmatpush.xpose.msra.mxu0 0.0
    %3309 = vmatpush.xpose.msra.mxu0 0.0
    %3310 = vmatpush.xpose.msra.mxu0 0.0
    %3311 = vmatpush.xpose.msra.mxu0 0.0
    %3312 = vmatpush.xpose.msra.mxu0 0.0
    %3313 = vmatpush.xpose.msra.mxu0 0.0
    %3314 = vmatpush.xpose.msra.mxu0 %v3299
    %3315 = vmatpush.xpose.msra.mxu0 %v3297
    %3316 = vmatpush.xpose.msra.mxu0 %v3295
    %3317 = vmatmul.f32.gmra.mxu0 %v3289
    %v3318 = vpop.f32.mrf.mxu0
    %v3319 = vadd.f32 0.0, %v3318
    %3320 = vmatmul.f32.gmra.mxu0 %v3291
    %v3321 = vpop.f32.mrf.mxu0
    %v3322 = vadd.f32 0.0, %v3321
    %3323 = vmatmul.f32.gmra.mxu0 %v3293
    %v3324 = vpop.f32.mrf.mxu0
    %v3325 = vadd.f32 0.0, %v3324
    %3326 = vdwg.mxu0
    %v3327 = vmul.f32 %v3319, 0.25
    %v3328 = vmul.f32 %v3322, 0.25
    %v3329 = vmul.f32 %v3325, 0.25
    %v3330 = vadd.f32 %v3327, %v2781
    %v3331 = vadd.f32 %v3328, %v2782
    %v3332 = vadd.f32 %v3329, %v2783
    %v3333 = vsel %vm2924, %v3330, -inf
    %3334 = vmax.xlane.f32.xlu0 %v3333
    %v3335 = vpop.xlane.xlu0 %3334
    %v3336 = vsel %vm2924, %v3331, -inf
    %3337 = vmax.xlane.f32.xlu0 %v3336
    %v3338 = vpop.xlane.xlu0 %3337
    %v3339 = vsel %vm2924, %v3332, -inf
    %3340 = vmax.xlane.f32.xlu0 %v3339
    %v3341 = vpop.xlane.xlu0 %3340
    %v3342 = vsub.f32 %v3330, %v3335
    %v3343 = vsub.f32 %v3331, %v3338
    %v3344 = vsub.f32 %v3332, %v3341
    %v3345 = vmul.f32 %v3342, 1.442695
    %v3346 = vpow.pop %v3345
    %v3347 = vmul.f32 %v3343, 1.442695
    %v3348 = vpow.pop %v3347
    %v3349 = vmul.f32 %v3344, 1.442695
    %v3350 = vpow.pop %v3349
    %v3351 = vsel %vm2924, %v3346, 0.0
    %3352 = vadd.xlane.f32.xlu0 %v3351
    %v3353 = vpop.xlane.xlu0 %3352
    %v3354 = vsel %vm2924, %v3348, 0.0
    %3355 = vadd.xlane.f32.xlu0 %v3354
    %v3356 = vpop.xlane.xlu0 %3355
    %v3357 = vsel %vm2924, %v3350, 0.0
    %3358 = vadd.xlane.f32.xlu0 %v3357
    %v3359 = vpop.xlane.xlu0 %3358
    %v3360 = vrcp.pop %v3353
    %v3361 = vmul.f32 %v3353, %v3360
    %v3362 = vsub.f32 1.0, %v3361
    %v3363 = vmul.f32 %v3360, %v3362
    %v3364 = vadd.f32 %v3360, %v3363
    %vm3365 = vweird.f32 %v3353
    %vm3366 = vweird.f32 %v3360
    %vm3367 = vmor %vm3365, %vm3366
    %v3368 = vsel %vm3367, %v3360, %v3364
    %v3369 = vand.u32 2147483647, %v3353
    %vm3370 = vcmp.eq.f32.partialorder %v3369, 8.507059e+37
    %v3371 = vand.u32 %v3353, 2147483648
    %v3372 = vor.u32 1.1754944e-38, %v3371
    %v3373 = vsel %vm3370, %v3372, %v3368
    %v3374 = vmul.f32 %v3346, %v3373
    %v3375 = vrcp.pop %v3356
    %v3376 = vmul.f32 %v3356, %v3375
    %v3377 = vsub.f32 1.0, %v3376
    %v3378 = vmul.f32 %v3375, %v3377
    %v3379 = vadd.f32 %v3375, %v3378
    %vm3380 = vweird.f32 %v3356
    %vm3381 = vweird.f32 %v3375
    %vm3382 = vmor %vm3380, %vm3381
    %v3383 = vsel %vm3382, %v3375, %v3379
    %v3384 = vand.u32 2147483647, %v3356
    %vm3385 = vcmp.eq.f32.partialorder %v3384, 8.507059e+37
    %v3386 = vand.u32 %v3356, 2147483648
    %v3387 = vor.u32 1.1754944e-38, %v3386
    %v3388 = vsel %vm3385, %v3387, %v3383
    %v3389 = vmul.f32 %v3348, %v3388
    %v3390 = vrcp.pop %v3359
    %v3391 = vmul.f32 %v3359, %v3390
    %v3392 = vsub.f32 1.0, %v3391
    %v3393 = vmul.f32 %v3390, %v3392
    %v3394 = vadd.f32 %v3390, %v3393
    %vm3395 = vweird.f32 %v3359
    %vm3396 = vweird.f32 %v3390
    %vm3397 = vmor %vm3395, %vm3396
    %v3398 = vsel %vm3397, %v3390, %v3394
    %v3399 = vand.u32 2147483647, %v3359
    %vm3400 = vcmp.eq.f32.partialorder %v3399, 8.507059e+37
    %v3401 = vand.u32 %v3359, 2147483648
    %v3402 = vor.u32 1.1754944e-38, %v3401
    %v3403 = vsel %vm3400, %v3402, %v3398
    %v3404 = vmul.f32 %v3350, %v3403
    %3405 = vrot.lane.b32.xlu0 %v2866, 96
    %v3406 = vpop.permute.xlu0 %3405
    %3407 = vrot.lane.b32.xlu0 %v2869, 96
    %v3408 = vpop.permute.xlu0 %3407
    %3409 = vrot.lane.b32.xlu0 %v2872, 96
    %v3410 = vpop.permute.xlu0 %3409
    %v3415 = vsel %vm2924, %v3374, 0
    %v3418 = vsel %vm2924, %v3389, 0
    %v3421 = vsel %vm2924, %v3404, 0
    %3423 = vmatpush.msra.mxu0 0.0
    %3424 = vmatpush.msra.mxu0 0.0
    %3425 = vmatpush.msra.mxu0 0.0
    %3426 = vmatpush.msra.mxu0 0.0
    %3427 = vmatpush.msra.mxu0 0.0
    %3428 = vmatpush.msra.mxu0 0.0
    %3429 = vmatpush.msra.mxu0 0.0
    %3430 = vmatpush.msra.mxu0 0.0
    %3431 = vmatpush.msra.mxu0 0.0
    %3432 = vmatpush.msra.mxu0 0.0
    %3433 = vmatpush.msra.mxu0 0.0
    %3434 = vmatpush.msra.mxu0 0.0
    %3435 = vmatpush.msra.mxu0 0.0
    %3436 = vmatpush.msra.mxu0 %v3410
    %3437 = vmatpush.msra.mxu0 %v3408
    %3438 = vmatpush.msra.mxu0 %v3406
    %3439 = vmatmul.f32.gmra.mxu0 %v3415
    %v3440 = vpop.f32.mrf.mxu0
    %v3441 = vadd.f32 0.0, %v3440
    %3442 = vmatmul.f32.gmra.mxu0 %v3418
    %v3443 = vpop.f32.mrf.mxu0
    %v3444 = vadd.f32 0.0, %v3443
    %3445 = vmatmul.f32.gmra.mxu0 %v3421
    %v3446 = vpop.f32.mrf.mxu0
    %v3447 = vadd.f32 0.0, %v3446
    %3448 = vdwg.mxu0
    %v3450 = vsel %vm838, %v3441, 0
    %v3453 = vsel %vm838, %v3444, 0
    %v3456 = vsel %vm838, %v3447, 0
    %3458 = vmatpush.msra.mxu0 0.0
    %3459 = vmatpush.msra.mxu0 0.0
    %3460 = vmatpush.msra.mxu0 0.0
    %3461 = vmatpush.msra.mxu0 0.0
    %3462 = vmatpush.msra.mxu0 0.0
    %3463 = vmatpush.msra.mxu0 0.0
    %3464 = vmatpush.msra.mxu0 0.0
    %3465 = vmatpush.msra.mxu0 0.0
    %3466 = vmatpush.msra.mxu0 0.0
    %3467 = vmatpush.msra.mxu0 0.0
    %3468 = vmatpush.msra.mxu0 0.0
    %3469 = vmatpush.msra.mxu0 0.0
    %3470 = vmatpush.msra.mxu0 0.0
    %3471 = vmatpush.msra.mxu0 0.0
    %3472 = vmatpush.msra.mxu0 %v2778
    %3473 = vmatpush.msra.mxu0 %v2777
    %3474 = vmatmul.f32.gmra.mxu0 %v3450
    %v3475 = vpop.f32.mrf.mxu0
    %v3476 = vadd.f32 0.0, %v3475
    %3477 = vmatmul.f32.gmra.mxu0 %v3453
    %v3478 = vpop.f32.mrf.mxu0
    %v3479 = vadd.f32 0.0, %v3478
    %3480 = vmatmul.f32.gmra.mxu0 %v3456
    %v3481 = vpop.f32.mrf.mxu0
    %v3482 = vadd.f32 0.0, %v3481
    %3483 = vdwg.mxu0
    %v3484 = vadd.f32 %v3269, %v3476
    %v3485 = vadd.f32 %v3272, %v3479
    %v3486 = vadd.f32 %v3275, %v3482
    %3487 = vrot.lane.b32.xlu0 %v2812, 80
    %v3488 = vpop.permute.xlu0 %3487
    %3489 = vrot.lane.b32.xlu0 %v2815, 80
    %v3490 = vpop.permute.xlu0 %3489
    %3491 = vrot.lane.b32.xlu0 %v2818, 80
    %v3492 = vpop.permute.xlu0 %3491
    %3493 = vrot.lane.b32.xlu0 %v2839, 80
    %v3494 = vpop.permute.xlu0 %3493
    %3495 = vrot.lane.b32.xlu0 %v2842, 80
    %v3496 = vpop.permute.xlu0 %3495
    %3497 = vrot.lane.b32.xlu0 %v2845, 80
    %v3498 = vpop.permute.xlu0 %3497
    %v3499 = vsel %vm838, %v3488, 0
    %v3501 = vsel %vm838, %v3490, 0
    %v3503 = vsel %vm838, %v3492, 0
    %v3505 = vsel %vm838, %v3494, 0
    %v3507 = vsel %vm838, %v3496, 0
    %v3509 = vsel %vm838, %v3498, 0
    %3511 = vmatpush.xpose.msra.mxu0 0.0
    %3512 = vmatpush.xpose.msra.mxu0 0.0
    %3513 = vmatpush.xpose.msra.mxu0 0.0
    %3514 = vmatpush.xpose.msra.mxu0 0.0
    %3515 = vmatpush.xpose.msra.mxu0 0.0
    %3516 = vmatpush.xpose.msra.mxu0 0.0
    %3517 = vmatpush.xpose.msra.mxu0 0.0
    %3518 = vmatpush.xpose.msra.mxu0 0.0
    %3519 = vmatpush.xpose.msra.mxu0 0.0
    %3520 = vmatpush.xpose.msra.mxu0 0.0
    %3521 = vmatpush.xpose.msra.mxu0 0.0
    %3522 = vmatpush.xpose.msra.mxu0 0.0
    %3523 = vmatpush.xpose.msra.mxu0 0.0
    %3524 = vmatpush.xpose.msra.mxu0 %v3509
    %3525 = vmatpush.xpose.msra.mxu0 %v3507
    %3526 = vmatpush.xpose.msra.mxu0 %v3505
    %3527 = vmatmul.f32.gmra.mxu0 %v3499
    %v3528 = vpop.f32.mrf.mxu0
    %v3529 = vadd.f32 0.0, %v3528
    %3530 = vmatmul.f32.gmra.mxu0 %v3501
    %v3531 = vpop.f32.mrf.mxu0
    %v3532 = vadd.f32 0.0, %v3531
    %3533 = vmatmul.f32.gmra.mxu0 %v3503
    %v3534 = vpop.f32.mrf.mxu0
    %v3535 = vadd.f32 0.0, %v3534
    %3536 = vdwg.mxu0
    %v3537 = vmul.f32 %v3529, 0.25
    %v3538 = vmul.f32 %v3532, 0.25
    %v3539 = vmul.f32 %v3535, 0.25
    %v3540 = vadd.f32 %v3537, %v2781
    %v3541 = vadd.f32 %v3538, %v2782
    %v3542 = vadd.f32 %v3539, %v2783
    %v3543 = vsel %vm2924, %v3540, -inf
    %3544 = vmax.xlane.f32.xlu0 %v3543
    %v3545 = vpop.xlane.xlu0 %3544
    %v3546 = vsel %vm2924, %v3541, -inf
    %3547 = vmax.xlane.f32.xlu0 %v3546
    %v3548 = vpop.xlane.xlu0 %3547
    %v3549 = vsel %vm2924, %v3542, -inf
    %3550 = vmax.xlane.f32.xlu0 %v3549
    %v3551 = vpop.xlane.xlu0 %3550
    %v3552 = vsub.f32 %v3540, %v3545
    %v3553 = vsub.f32 %v3541, %v3548
    %v3554 = vsub.f32 %v3542, %v3551
    %v3555 = vmul.f32 %v3552, 1.442695
    %v3556 = vpow.pop %v3555
    %v3557 = vmul.f32 %v3553, 1.442695
    %v3558 = vpow.pop %v3557
    %v3559 = vmul.f32 %v3554, 1.442695
    %v3560 = vpow.pop %v3559
    %v3561 = vsel %vm2924, %v3556, 0.0
    %3562 = vadd.xlane.f32.xlu0 %v3561
    %v3563 = vpop.xlane.xlu0 %3562
    %v3564 = vsel %vm2924, %v3558, 0.0
    %3565 = vadd.xlane.f32.xlu0 %v3564
    %v3566 = vpop.xlane.xlu0 %3565
    %v3567 = vsel %vm2924, %v3560, 0.0
    %3568 = vadd.xlane.f32.xlu0 %v3567
    %v3569 = vpop.xlane.xlu0 %3568
    %v3570 = vrcp.pop %v3563
    %v3571 = vmul.f32 %v3563, %v3570
    %v3572 = vsub.f32 1.0, %v3571
    %v3573 = vmul.f32 %v3570, %v3572
    %v3574 = vadd.f32 %v3570, %v3573
    %vm3575 = vweird.f32 %v3563
    %vm3576 = vweird.f32 %v3570
    %vm3577 = vmor %vm3575, %vm3576
    %v3578 = vsel %vm3577, %v3570, %v3574
    %v3579 = vand.u32 2147483647, %v3563
    %vm3580 = vcmp.eq.f32.partialorder %v3579, 8.507059e+37
    %v3581 = vand.u32 %v3563, 2147483648
    %v3582 = vor.u32 1.1754944e-38, %v3581
    %v3583 = vsel %vm3580, %v3582, %v3578
    %v3584 = vmul.f32 %v3556, %v3583
    %v3585 = vrcp.pop %v3566
    %v3586 = vmul.f32 %v3566, %v3585
    %v3587 = vsub.f32 1.0, %v3586
    %v3588 = vmul.f32 %v3585, %v3587
    %v3589 = vadd.f32 %v3585, %v3588
    %vm3590 = vweird.f32 %v3566
    %vm3591 = vweird.f32 %v3585
    %vm3592 = vmor %vm3590, %vm3591
    %v3593 = vsel %vm3592, %v3585, %v3589
    %v3594 = vand.u32 2147483647, %v3566
    %vm3595 = vcmp.eq.f32.partialorder %v3594, 8.507059e+37
    %v3596 = vand.u32 %v3566, 2147483648
    %v3597 = vor.u32 1.1754944e-38, %v3596
    %v3598 = vsel %vm3595, %v3597, %v3593
    %v3599 = vmul.f32 %v3558, %v3598
    %v3600 = vrcp.pop %v3569
    %v3601 = vmul.f32 %v3569, %v3600
    %v3602 = vsub.f32 1.0, %v3601
    %v3603 = vmul.f32 %v3600, %v3602
    %v3604 = vadd.f32 %v3600, %v3603
    %vm3605 = vweird.f32 %v3569
    %vm3606 = vweird.f32 %v3600
    %vm3607 = vmor %vm3605, %vm3606
    %v3608 = vsel %vm3607, %v3600, %v3604
    %v3609 = vand.u32 2147483647, %v3569
    %vm3610 = vcmp.eq.f32.partialorder %v3609, 8.507059e+37
    %v3611 = vand.u32 %v3569, 2147483648
    %v3612 = vor.u32 1.1754944e-38, %v3611
    %v3613 = vsel %vm3610, %v3612, %v3608
    %v3614 = vmul.f32 %v3560, %v3613
    %3615 = vrot.lane.b32.xlu0 %v2866, 80
    %v3616 = vpop.permute.xlu0 %3615
    %3617 = vrot.lane.b32.xlu0 %v2869, 80
    %v3618 = vpop.permute.xlu0 %3617
    %3619 = vrot.lane.b32.xlu0 %v2872, 80
    %v3620 = vpop.permute.xlu0 %3619
    %v3625 = vsel %vm2924, %v3584, 0
    %v3628 = vsel %vm2924, %v3599, 0
    %v3631 = vsel %vm2924, %v3614, 0
    %3633 = vmatpush.msra.mxu0 0.0
    %3634 = vmatpush.msra.mxu0 0.0
    %3635 = vmatpush.msra.mxu0 0.0
    %3636 = vmatpush.msra.mxu0 0.0
    %3637 = vmatpush.msra.mxu0 0.0
    %3638 = vmatpush.msra.mxu0 0.0
    %3639 = vmatpush.msra.mxu0 0.0
    %3640 = vmatpush.msra.mxu0 0.0
    %3641 = vmatpush.msra.mxu0 0.0
    %3642 = vmatpush.msra.mxu0 0.0
    %3643 = vmatpush.msra.mxu0 0.0
    %3644 = vmatpush.msra.mxu0 0.0
    %3645 = vmatpush.msra.mxu0 0.0
    %3646 = vmatpush.msra.mxu0 %v3620
    %3647 = vmatpush.msra.mxu0 %v3618
    %3648 = vmatpush.msra.mxu0 %v3616
    %3649 = vmatmul.f32.gmra.mxu0 %v3625
    %v3650 = vpop.f32.mrf.mxu0
    %v3651 = vadd.f32 0.0, %v3650
    %3652 = vmatmul.f32.gmra.mxu0 %v3628
    %v3653 = vpop.f32.mrf.mxu0
    %v3654 = vadd.f32 0.0, %v3653
    %3655 = vmatmul.f32.gmra.mxu0 %v3631
    %v3656 = vpop.f32.mrf.mxu0
    %v3657 = vadd.f32 0.0, %v3656
    %3658 = vdwg.mxu0
    %v3660 = vsel %vm838, %v3651, 0
    %v3663 = vsel %vm838, %v3654, 0
    %v3666 = vsel %vm838, %v3657, 0
    %3668 = vmatpush.msra.mxu0 0.0
    %3669 = vmatpush.msra.mxu0 0.0
    %3670 = vmatpush.msra.mxu0 0.0
    %3671 = vmatpush.msra.mxu0 0.0
    %3672 = vmatpush.msra.mxu0 0.0
    %3673 = vmatpush.msra.mxu0 0.0
    %3674 = vmatpush.msra.mxu0 0.0
    %3675 = vmatpush.msra.mxu0 0.0
    %3676 = vmatpush.msra.mxu0 0.0
    %3677 = vmatpush.msra.mxu0 0.0
    %3678 = vmatpush.msra.mxu0 0.0
    %3679 = vmatpush.msra.mxu0 0.0
    %3680 = vmatpush.msra.mxu0 0.0
    %3681 = vmatpush.msra.mxu0 0.0
    %3682 = vmatpush.msra.mxu0 %v2780
    %3683 = vmatpush.msra.mxu0 %v2779
    %3684 = vmatmul.f32.gmra.mxu0 %v3660
    %v3685 = vpop.f32.mrf.mxu0
    %v3686 = vadd.f32 0.0, %v3685
    %3687 = vmatmul.f32.gmra.mxu0 %v3663
    %v3688 = vpop.f32.mrf.mxu0
    %v3689 = vadd.f32 0.0, %v3688
    %3690 = vmatmul.f32.gmra.mxu0 %v3666
    %v3691 = vpop.f32.mrf.mxu0
    %v3692 = vadd.f32 0.0, %v3691
    %3693 = vdwg.mxu0
    %v3694 = vadd.f32 %v3484, %v3686
    %v3695 = vadd.f32 %v3485, %v3689
    %v3696 = vadd.f32 %v3486, %v3692
    %3697 = vst.msk [vmem:[#allocation2] sm:$0xff] %vm400, %v3694
    %3698 = vst.msk [vmem:[#allocation2 + $0x8] sm:$0xff] %vm400, %v3695
    %3699 = vst.msk [vmem:[#allocation2 + $0x10] sm:$0xff] %vm400, %v3696
    %v3700 = vld [vmem:[#allocation2] sm:$0xff]
    %v3701 = vld [vmem:[#allocation2 + $0x8] sm:$0xff]
    %v3702 = vld [vmem:[#allocation2 + $0x10] sm:$0xff]
    %v3703 = vadd.f32 %v2739, %v3700
    %v3704 = vadd.f32 %v2740, %v3701
    %v3705 = vadd.f32 %v2741, %v3702
    %v3706 = vld [vmem:[%s4 + $0x7] sm:$0x1]
    %v3707 = vperm.slane %v3706, 0
    %v3708 = vadd.f32 %v3703, %v3707
    %v3709 = vadd.f32 %v3704, %v3707
    %v3710 = vadd.f32 %v3705, %v3707
    %v3711 = vld [vmem:[%s4 + $0x8] sm:$0x1]
    %v3712 = vld [vmem:[%s4 + $0x9] sm:$0x1]
    %v3713 = vsel %vm400, %v3708, 0.0
    %3714 = vadd.xlane.f32.xlu0 %v3713
    %v3715 = vpop.xlane.xlu0 %3714
    %v3716 = vsel %vm400, %v3709, 0.0
    %3717 = vadd.xlane.f32.xlu0 %v3716
    %v3718 = vpop.xlane.xlu0 %3717
    %v3719 = vsel %vm400, %v3710, 0.0
    %3720 = vadd.xlane.f32.xlu0 %v3719
    %v3721 = vpop.xlane.xlu0 %3720
    %v3722 = vmul.f32 %v3715, %v2422
    %v3723 = vmul.f32 %v3718, %v2422
    %v3724 = vmul.f32 %v3721, %v2422
    %v3725 = vsub.f32 %v3708, %v3722
    %v3726 = vsub.f32 %v3709, %v3723
    %v3727 = vsub.f32 %v3710, %v3724
    %v3728 = vmul.f32 %v3725, %v3725
    %v3729 = vmul.f32 %v3726, %v3726
    %v3730 = vmul.f32 %v3727, %v3727
    %v3731 = vsel %vm400, %v3728, 0.0
    %3732 = vadd.xlane.f32.xlu0 %v3731
    %v3733 = vpop.xlane.xlu0 %3732
    %v3734 = vsel %vm400, %v3729, 0.0
    %3735 = vadd.xlane.f32.xlu0 %v3734
    %v3736 = vpop.xlane.xlu0 %3735
    %v3737 = vsel %vm400, %v3730, 0.0
    %3738 = vadd.xlane.f32.xlu0 %v3737
    %v3739 = vpop.xlane.xlu0 %3738
    %v3740 = vmul.f32 %v3733, %v2422
    %v3741 = vmul.f32 %v3736, %v2422
    %v3742 = vmul.f32 %v3739, %v2422
    %v3743 = vadd.f32 %v3740, 1e-05
    %v3744 = vadd.f32 %v3741, 1e-05
    %v3745 = vadd.f32 %v3742, 1e-05
    %v3746 = vrsqrt.pop %v3743
    %v3747 = vmul.f32 %v3746, %v3743
    %v3748 = vmul.f32 %v3747, %v3746
    %v3749 = vmul.f32 0.5, %v3748
    %v3750 = vsub.f32 1.5, %v3749
    %v3751 = vmul.f32 %v3746, %v3750
    %vm3752 = vweird.f32 %v3743
    %vm3753 = vweird.f32 %v3746
    %vm3754 = vmor %vm3752, %vm3753
    %v3755 = vsel %vm3754, %v3746, %v3751
    %v3756 = vrsqrt.pop %v3744
    %v3757 = vmul.f32 %v3756, %v3744
    %v3758 = vmul.f32 %v3757, %v3756
    %v3759 = vmul.f32 0.5, %v3758
    %v3760 = vsub.f32 1.5, %v3759
    %v3761 = vmul.f32 %v3756, %v3760
    %vm3762 = vweird.f32 %v3744
    %vm3763 = vweird.f32 %v3756
    %vm3764 = vmor %vm3762, %vm3763
    %v3765 = vsel %vm3764, %v3756, %v3761
    %v3766 = vrsqrt.pop %v3745
    %v3767 = vmul.f32 %v3766, %v3745
    %v3768 = vmul.f32 %v3767, %v3766
    %v3769 = vmul.f32 0.5, %v3768
    %v3770 = vsub.f32 1.5, %v3769
    %v3771 = vmul.f32 %v3766, %v3770
    %vm3772 = vweird.f32 %v3745
    %vm3773 = vweird.f32 %v3766
    %vm3774 = vmor %vm3772, %vm3773
    %v3775 = vsel %vm3774, %v3766, %v3771
    %v3776 = vmul.f32 %v3725, %v3755
    %v3777 = vmul.f32 %v3726, %v3765
    %v3778 = vmul.f32 %v3727, %v3775
    %v3779 = vperm.slane %v3711, 0
    %v3780 = vmul.f32 %v3776, %v3779
    %v3781 = vmul.f32 %v3777, %v3779
    %v3782 = vmul.f32 %v3778, %v3779
    %v3783 = vperm.slane %v3712, 0
    %v3784 = vadd.f32 %v3780, %v3783
    %v3785 = vadd.f32 %v3781, %v3783
    %v3786 = vadd.f32 %v3782, %v3783
    %s3787 = scalar_lea.vmem %s5, 576
    %v3788 = vld [vmem:[%s3787] sm:$0xff]
    %v3789 = vld [vmem:[%s3787 + $0x8] sm:$0xff]
    %v3790 = vld [vmem:[%s3787 + $0x10] sm:$0xff]
    %v3791 = vld [vmem:[%s3787 + $0x18] sm:$0xff]
    %v3792 = vld [vmem:[%s3787 + $0x20] sm:$0xff]
    %v3793 = vld [vmem:[%s3787 + $0x28] sm:$0xff]
    %v3794 = vld [vmem:[%s3787 + $0x30] sm:$0xff]
    %v3795 = vld [vmem:[%s3787 + $0x38] sm:$0xff]
    %s3796 = scalar_lea.vmem %s5, 640
    %v3797 = vld [vmem:[%s3796] sm:$0xff]
    %v3798 = vld [vmem:[%s3796 + $0x8] sm:$0xff]
    %v3799 = vld [vmem:[%s3796 + $0x10] sm:$0xff]
    %v3800 = vld [vmem:[%s3796 + $0x18] sm:$0xff]
    %v3801 = vld [vmem:[%s3796 + $0x20] sm:$0xff]
    %v3802 = vld [vmem:[%s3796 + $0x28] sm:$0xff]
    %v3803 = vld [vmem:[%s3796 + $0x30] sm:$0xff]
    %v3804 = vld [vmem:[%s3796 + $0x38] sm:$0xff]
    %s3805 = scalar_lea.vmem %s5, 704
    %v3806 = vld [vmem:[%s3805] sm:$0xff]
    %v3807 = vld [vmem:[%s3805 + $0x8] sm:$0xff]
    %v3808 = vld [vmem:[%s3805 + $0x10] sm:$0xff]
    %v3809 = vld [vmem:[%s3805 + $0x18] sm:$0xff]
    %v3810 = vld [vmem:[%s3805 + $0x20] sm:$0xff]
    %v3811 = vld [vmem:[%s3805 + $0x28] sm:$0xff]
    %v3812 = vld [vmem:[%s3805 + $0x30] sm:$0xff]
    %v3813 = vld [vmem:[%s3805 + $0x38] sm:$0xff]
    %v3814 = vld [vmem:[%s4 + $0x13] sm:$0x1]
    %v3815 = vld [vmem:[%s4 + $0x14] sm:$0x1]
    %v3816 = vld [vmem:[%s4 + $0x15] sm:$0x1]
    %s3817 = scalar_lea.vmem %s5, 768
    %v3818 = vld [vmem:[%s3817] sm:$0xff]
    %v3819 = vld [vmem:[%s3817 + $0x8] sm:$0xff]
    %v3820 = vld [vmem:[%s3817 + $0x10] sm:$0xff]
    %v3821 = vld [vmem:[%s3817 + $0x18] sm:$0xff]
    %v3822 = vld [vmem:[%s3817 + $0x20] sm:$0xff]
    %v3823 = vld [vmem:[%s3817 + $0x28] sm:$0xff]
    %v3824 = vld [vmem:[%s3817 + $0x30] sm:$0xff]
    %v3825 = vld [vmem:[%s3817 + $0x38] sm:$0xff]
    %v3826 = vld [vmem:[%s3] sm:$0xff]
    %v3827 = vld [vmem:[%s3 + $0x8] sm:$0xff]
    %v3828 = vld [vmem:[%s3 + $0x10] sm:$0xff]
    %v3829 = vld [vmem:[%s3 + $0x18] sm:$0xff]
    %v3830 = vld [vmem:[%s3 + $0x20] sm:$0xff]
    %v3831 = vld [vmem:[%s3 + $0x28] sm:$0xff]
    %v3832 = vperm.slane %v3814, 0
    %v3834 = vsel %vm400, %v3784, 0
    %v3837 = vsel %vm400, %v3785, 0
    %v3840 = vsel %vm400, %v3786, 0
    %3842 = vmatpush.msra.mxu0 0.0
    %3843 = vmatpush.msra.mxu0 0.0
    %3844 = vmatpush.msra.mxu0 0.0
    %3845 = vmatpush.msra.mxu0 0.0
    %3846 = vmatpush.msra.mxu0 0.0
    %3847 = vmatpush.msra.mxu0 0.0
    %3848 = vmatpush.msra.mxu0 0.0
    %3849 = vmatpush.msra.mxu0 0.0
    %3850 = vmatpush.msra.mxu0 %v3795
    %3851 = vmatpush.msra.mxu0 %v3794
    %3852 = vmatpush.msra.mxu0 %v3793
    %3853 = vmatpush.msra.mxu0 %v3792
    %3854 = vmatpush.msra.mxu0 %v3791
    %3855 = vmatpush.msra.mxu0 %v3790
    %3856 = vmatpush.msra.mxu0 %v3789
    %3857 = vmatpush.msra.mxu0 %v3788
    %3858 = vmatmul.f32.gmra.mxu0 %v3834
    %v3859 = vpop.f32.mrf.mxu0
    %v3860 = vadd.f32 %v3832, %v3859
    %3861 = vmatmul.f32.gmra.mxu0 %v3837
    %v3862 = vpop.f32.mrf.mxu0
    %v3863 = vadd.f32 %v3832, %v3862
    %3864 = vmatmul.f32.gmra.mxu0 %v3840
    %v3865 = vpop.f32.mrf.mxu0
    %v3866 = vadd.f32 %v3832, %v3865
    %3867 = vdwg.mxu0
    %v3868 = vperm.slane %v3815, 0
    %3869 = vmatpush.msra.mxu0 0.0
    %3870 = vmatpush.msra.mxu0 0.0
    %3871 = vmatpush.msra.mxu0 0.0
    %3872 = vmatpush.msra.mxu0 0.0
    %3873 = vmatpush.msra.mxu0 0.0
    %3874 = vmatpush.msra.mxu0 0.0
    %3875 = vmatpush.msra.mxu0 0.0
    %3876 = vmatpush.msra.mxu0 0.0
    %3877 = vmatpush.msra.mxu0 %v3804
    %3878 = vmatpush.msra.mxu0 %v3803
    %3879 = vmatpush.msra.mxu0 %v3802
    %3880 = vmatpush.msra.mxu0 %v3801
    %3881 = vmatpush.msra.mxu0 %v3800
    %3882 = vmatpush.msra.mxu0 %v3799
    %3883 = vmatpush.msra.mxu0 %v3798
    %3884 = vmatpush.msra.mxu0 %v3797
    %3885 = vmatmul.f32.gmra.mxu0 %v624
    %v3886 = vpop.f32.mrf.mxu0
    %v3887 = vadd.f32 %v3868, %v3886
    %3888 = vmatmul.f32.gmra.mxu0 %v627
    %v3889 = vpop.f32.mrf.mxu0
    %v3890 = vadd.f32 %v3868, %v3889
    %3891 = vmatmul.f32.gmra.mxu0 %v630
    %v3892 = vpop.f32.mrf.mxu0
    %v3893 = vadd.f32 %v3868, %v3892
    %3894 = vmatmul.f32.gmra.mxu0 %v633
    %v3895 = vpop.f32.mrf.mxu0
    %v3896 = vadd.f32 %v3868, %v3895
    %3897 = vmatmul.f32.gmra.mxu0 %v636
    %v3898 = vpop.f32.mrf.mxu0
    %v3899 = vadd.f32 %v3868, %v3898
    %3900 = vmatmul.f32.gmra.mxu0 %v639
    %v3901 = vpop.f32.mrf.mxu0
    %v3902 = vadd.f32 %v3868, %v3901
    %3903 = vmatmul.f32.gmra.mxu0 %v642
    %v3904 = vpop.f32.mrf.mxu0
    %v3905 = vadd.f32 %v3868, %v3904
    %3906 = vmatmul.f32.gmra.mxu0 %v645
    %v3907 = vpop.f32.mrf.mxu0
    %v3908 = vadd.f32 %v3868, %v3907
    %3909 = vmatmul.f32.gmra.mxu0 %v648
    %v3910 = vpop.f32.mrf.mxu0
    %v3911 = vadd.f32 %v3868, %v3910
    %3912 = vmatmul.f32.gmra.mxu0 %v651
    %v3913 = vpop.f32.mrf.mxu0
    %v3914 = vadd.f32 %v3868, %v3913
    %3915 = vmatmul.f32.gmra.mxu0 %v654
    %v3916 = vpop.f32.mrf.mxu0
    %v3917 = vadd.f32 %v3868, %v3916
    %3918 = vmatmul.f32.gmra.mxu0 %v657
    %v3919 = vpop.f32.mrf.mxu0
    %v3920 = vadd.f32 %v3868, %v3919
    %3921 = vmatmul.f32.gmra.mxu0 %v660
    %v3922 = vpop.f32.mrf.mxu0
    %v3923 = vadd.f32 %v3868, %v3922
    %3924 = vmatmul.f32.gmra.mxu0 %v663
    %v3925 = vpop.f32.mrf.mxu0
    %v3926 = vadd.f32 %v3868, %v3925
    %3927 = vmatmul.f32.gmra.mxu0 %v666
    %v3928 = vpop.f32.mrf.mxu0
    %v3929 = vadd.f32 %v3868, %v3928
    %3930 = vmatmul.f32.gmra.mxu0 %v669
    %v3931 = vpop.f32.mrf.mxu0
    %v3932 = vadd.f32 %v3868, %v3931
    %3933 = vmatmul.f32.gmra.mxu0 %v672
    %v3934 = vpop.f32.mrf.mxu0
    %v3935 = vadd.f32 %v3868, %v3934
    %3936 = vmatmul.f32.gmra.mxu0 %v675
    %v3937 = vpop.f32.mrf.mxu0
    %v3938 = vadd.f32 %v3868, %v3937
    %3939 = vmatmul.f32.gmra.mxu0 %v678
    %v3940 = vpop.f32.mrf.mxu0
    %v3941 = vadd.f32 %v3868, %v3940
    %3942 = vmatmul.f32.gmra.mxu0 %v681
    %v3943 = vpop.f32.mrf.mxu0
    %v3944 = vadd.f32 %v3868, %v3943
    %3945 = vdwg.mxu0
    %v3946 = vperm.slane %v3816, 0
    %3947 = vmatpush.msra.mxu0 0.0
    %3948 = vmatpush.msra.mxu0 0.0
    %3949 = vmatpush.msra.mxu0 0.0
    %3950 = vmatpush.msra.mxu0 0.0
    %3951 = vmatpush.msra.mxu0 0.0
    %3952 = vmatpush.msra.mxu0 0.0
    %3953 = vmatpush.msra.mxu0 0.0
    %3954 = vmatpush.msra.mxu0 0.0
    %3955 = vmatpush.msra.mxu0 %v3813
    %3956 = vmatpush.msra.mxu0 %v3812
    %3957 = vmatpush.msra.mxu0 %v3811
    %3958 = vmatpush.msra.mxu0 %v3810
    %3959 = vmatpush.msra.mxu0 %v3809
    %3960 = vmatpush.msra.mxu0 %v3808
    %3961 = vmatpush.msra.mxu0 %v3807
    %3962 = vmatpush.msra.mxu0 %v3806
    %3963 = vmatmul.f32.gmra.mxu0 %v624
    %v3964 = vpop.f32.mrf.mxu0
    %v3965 = vadd.f32 %v3946, %v3964
    %3966 = vmatmul.f32.gmra.mxu0 %v627
    %v3967 = vpop.f32.mrf.mxu0
    %v3968 = vadd.f32 %v3946, %v3967
    %3969 = vmatmul.f32.gmra.mxu0 %v630
    %v3970 = vpop.f32.mrf.mxu0
    %v3971 = vadd.f32 %v3946, %v3970
    %3972 = vmatmul.f32.gmra.mxu0 %v633
    %v3973 = vpop.f32.mrf.mxu0
    %v3974 = vadd.f32 %v3946, %v3973
    %3975 = vmatmul.f32.gmra.mxu0 %v636
    %v3976 = vpop.f32.mrf.mxu0
    %v3977 = vadd.f32 %v3946, %v3976
    %3978 = vmatmul.f32.gmra.mxu0 %v639
    %v3979 = vpop.f32.mrf.mxu0
    %v3980 = vadd.f32 %v3946, %v3979
    %3981 = vmatmul.f32.gmra.mxu0 %v642
    %v3982 = vpop.f32.mrf.mxu0
    %v3983 = vadd.f32 %v3946, %v3982
    %3984 = vmatmul.f32.gmra.mxu0 %v645
    %v3985 = vpop.f32.mrf.mxu0
    %v3986 = vadd.f32 %v3946, %v3985
    %3987 = vmatmul.f32.gmra.mxu0 %v648
    %v3988 = vpop.f32.mrf.mxu0
    %v3989 = vadd.f32 %v3946, %v3988
    %3990 = vmatmul.f32.gmra.mxu0 %v651
    %v3991 = vpop.f32.mrf.mxu0
    %v3992 = vadd.f32 %v3946, %v3991
    %3993 = vmatmul.f32.gmra.mxu0 %v654
    %v3994 = vpop.f32.mrf.mxu0
    %v3995 = vadd.f32 %v3946, %v3994
    %3996 = vmatmul.f32.gmra.mxu0 %v657
    %v3997 = vpop.f32.mrf.mxu0
    %v3998 = vadd.f32 %v3946, %v3997
    %3999 = vmatmul.f32.gmra.mxu0 %v660
    %v4000 = vpop.f32.mrf.mxu0
    %v4001 = vadd.f32 %v3946, %v4000
    %4002 = vmatmul.f32.gmra.mxu0 %v663
    %v4003 = vpop.f32.mrf.mxu0
    %v4004 = vadd.f32 %v3946, %v4003
    %4005 = vmatmul.f32.gmra.mxu0 %v666
    %v4006 = vpop.f32.mrf.mxu0
    %v4007 = vadd.f32 %v3946, %v4006
    %4008 = vmatmul.f32.gmra.mxu0 %v669
    %v4009 = vpop.f32.mrf.mxu0
    %v4010 = vadd.f32 %v3946, %v4009
    %4011 = vmatmul.f32.gmra.mxu0 %v672
    %v4012 = vpop.f32.mrf.mxu0
    %v4013 = vadd.f32 %v3946, %v4012
    %4014 = vmatmul.f32.gmra.mxu0 %v675
    %v4015 = vpop.f32.mrf.mxu0
    %v4016 = vadd.f32 %v3946, %v4015
    %4017 = vmatmul.f32.gmra.mxu0 %v678
    %v4018 = vpop.f32.mrf.mxu0
    %v4019 = vadd.f32 %v3946, %v4018
    %4020 = vmatmul.f32.gmra.mxu0 %v681
    %v4021 = vpop.f32.mrf.mxu0
    %v4022 = vadd.f32 %v3946, %v4021
    %4023 = vdwg.mxu0
    %v4025 = vsel %vm838, %v3860, 0
    %v4028 = vsel %vm838, %v3863, 0
    %v4031 = vsel %vm838, %v3866, 0
    %v4034 = vsel %vm838, %v3887, 0
    %v4037 = vsel %vm838, %v3890, 0
    %v4040 = vsel %vm838, %v3893, 0
    %v4043 = vsel %vm838, %v3896, 0
    %v4046 = vsel %vm838, %v3899, 0
    %v4049 = vsel %vm838, %v3902, 0
    %v4052 = vsel %vm838, %v3905, 0
    %v4055 = vsel %vm838, %v3908, 0
    %v4058 = vsel %vm838, %v3911, 0
    %v4061 = vsel %vm838, %v3914, 0
    %v4064 = vsel %vm838, %v3917, 0
    %v4067 = vsel %vm838, %v3920, 0
    %v4070 = vsel %vm838, %v3923, 0
    %v4073 = vsel %vm838, %v3926, 0
    %v4076 = vsel %vm838, %v3929, 0
    %v4079 = vsel %vm838, %v3932, 0
    %v4082 = vsel %vm838, %v3935, 0
    %v4085 = vsel %vm838, %v3938, 0
    %v4088 = vsel %vm838, %v3941, 0
    %v4091 = vsel %vm838, %v3944, 0
    %4093 = vmatpush.xpose.msra.mxu0 %v4079
    %4094 = vmatpush.xpose.msra.mxu0 %v4076
    %4095 = vmatpush.xpose.msra.mxu0 %v4073
    %4096 = vmatpush.xpose.msra.mxu0 %v4070
    %4097 = vmatpush.xpose.msra.mxu0 %v4067
    %4098 = vmatpush.xpose.msra.mxu0 %v4064
    %4099 = vmatpush.xpose.msra.mxu0 %v4061
    %4100 = vmatpush.xpose.msra.mxu0 %v4058
    %4101 = vmatpush.xpose.msra.mxu0 %v4055
    %4102 = vmatpush.xpose.msra.mxu0 %v4052
    %4103 = vmatpush.xpose.msra.mxu0 %v4049
    %4104 = vmatpush.xpose.msra.mxu0 %v4046
    %4105 = vmatpush.xpose.msra.mxu0 %v4043
    %4106 = vmatpush.xpose.msra.mxu0 %v4040
    %4107 = vmatpush.xpose.msra.mxu0 %v4037
    %4108 = vmatpush.xpose.msra.mxu0 %v4034
    %4109 = vmatmul.f32.gmra.mxu0 %v4025
    %v4110 = vpop.f32.mrf.mxu0
    %v4111 = vadd.f32 0.0, %v4110
    %4112 = vmatmul.f32.gmra.mxu0 %v4028
    %v4113 = vpop.f32.mrf.mxu0
    %v4114 = vadd.f32 0.0, %v4113
    %4115 = vmatmul.f32.gmra.mxu0 %v4031
    %v4116 = vpop.f32.mrf.mxu0
    %v4117 = vadd.f32 0.0, %v4116
    %4118 = vdwg.mxu0
    %4119 = vmatpush.xpose.msra.mxu0 0.0
    %4120 = vmatpush.xpose.msra.mxu0 0.0
    %4121 = vmatpush.xpose.msra.mxu0 0.0
    %4122 = vmatpush.xpose.msra.mxu0 0.0
    %4123 = vmatpush.xpose.msra.mxu0 0.0
    %4124 = vmatpush.xpose.msra.mxu0 0.0
    %4125 = vmatpush.xpose.msra.mxu0 0.0
    %4126 = vmatpush.xpose.msra.mxu0 0.0
    %4127 = vmatpush.xpose.msra.mxu0 0.0
    %4128 = vmatpush.xpose.msra.mxu0 0.0
    %4129 = vmatpush.xpose.msra.mxu0 0.0
    %4130 = vmatpush.xpose.msra.mxu0 0.0
    %4131 = vmatpush.xpose.msra.mxu0 %v4091
    %4132 = vmatpush.xpose.msra.mxu0 %v4088
    %4133 = vmatpush.xpose.msra.mxu0 %v4085
    %4134 = vmatpush.xpose.msra.mxu0 %v4082
    %4135 = vmatmul.f32.gmra.mxu0 %v4025
    %v4136 = vpop.f32.mrf.mxu0
    %v4137 = vadd.f32 0.0, %v4136
    %4138 = vmatmul.f32.gmra.mxu0 %v4028
    %v4139 = vpop.f32.mrf.mxu0
    %v4140 = vadd.f32 0.0, %v4139
    %4141 = vmatmul.f32.gmra.mxu0 %v4031
    %v4142 = vpop.f32.mrf.mxu0
    %v4143 = vadd.f32 0.0, %v4142
    %4144 = vdwg.mxu0
    %v4145 = vmul.f32 %v4111, 0.25
    %v4146 = vmul.f32 %v4137, 0.25
    %v4147 = vmul.f32 %v4114, 0.25
    %v4148 = vmul.f32 %v4140, 0.25
    %v4149 = vmul.f32 %v4117, 0.25
    %v4150 = vmul.f32 %v4143, 0.25
    %v4151 = vadd.f32 %v4145, %v3826
    %v4152 = vadd.f32 %v4146, %v3827
    %v4153 = vadd.f32 %v4147, %v3828
    %v4154 = vadd.f32 %v4148, %v3829
    %v4155 = vadd.f32 %v4149, %v3830
    %v4156 = vadd.f32 %v4150, %v3831
    %v4157 = vsel %vm972, %v4152, -inf
    %v4158 = vmax.f32 %v4151, %v4157
    %4159 = vmax.xlane.f32.xlu0 %v4158
    %v4160 = vpop.xlane.xlu0 %4159
    %v4161 = vsel %vm972, %v4154, -inf
    %v4162 = vmax.f32 %v4153, %v4161
    %4163 = vmax.xlane.f32.xlu0 %v4162
    %v4164 = vpop.xlane.xlu0 %4163
    %v4165 = vsel %vm972, %v4156, -inf
    %v4166 = vmax.f32 %v4155, %v4165
    %4167 = vmax.xlane.f32.xlu0 %v4166
    %v4168 = vpop.xlane.xlu0 %4167
    %v4169 = vsub.f32 %v4151, %v4160
    %v4170 = vsub.f32 %v4152, %v4160
    %v4171 = vsub.f32 %v4153, %v4164
    %v4172 = vsub.f32 %v4154, %v4164
    %v4173 = vsub.f32 %v4155, %v4168
    %v4174 = vsub.f32 %v4156, %v4168
    %v4175 = vmul.f32 %v4169, 1.442695
    %v4176 = vpow.pop %v4175
    %v4177 = vmul.f32 %v4170, 1.442695
    %v4178 = vpow.pop %v4177
    %v4179 = vmul.f32 %v4171, 1.442695
    %v4180 = vpow.pop %v4179
    %v4181 = vmul.f32 %v4172, 1.442695
    %v4182 = vpow.pop %v4181
    %v4183 = vmul.f32 %v4173, 1.442695
    %v4184 = vpow.pop %v4183
    %v4185 = vmul.f32 %v4174, 1.442695
    %v4186 = vpow.pop %v4185
    %v4187 = vsel %vm972, %v4178, 0.0
    %v4188 = vadd.f32 %v4176, %v4187
    %4189 = vadd.xlane.f32.xlu0 %v4188
    %v4190 = vpop.xlane.xlu0 %4189
    %v4191 = vsel %vm972, %v4182, 0.0
    %v4192 = vadd.f32 %v4180, %v4191
    %4193 = vadd.xlane.f32.xlu0 %v4192
    %v4194 = vpop.xlane.xlu0 %4193
    %v4195 = vsel %vm972, %v4186, 0.0
    %v4196 = vadd.f32 %v4184, %v4195
    %4197 = vadd.xlane.f32.xlu0 %v4196
    %v4198 = vpop.xlane.xlu0 %4197
    %v4199 = vrcp.pop %v4190
    %v4200 = vmul.f32 %v4190, %v4199
    %v4201 = vsub.f32 1.0, %v4200
    %v4202 = vmul.f32 %v4199, %v4201
    %v4203 = vadd.f32 %v4199, %v4202
    %vm4204 = vweird.f32 %v4190
    %vm4205 = vweird.f32 %v4199
    %vm4206 = vmor %vm4204, %vm4205
    %v4207 = vsel %vm4206, %v4199, %v4203
    %v4208 = vand.u32 2147483647, %v4190
    %vm4209 = vcmp.eq.f32.partialorder %v4208, 8.507059e+37
    %v4210 = vand.u32 %v4190, 2147483648
    %v4211 = vor.u32 1.1754944e-38, %v4210
    %v4212 = vsel %vm4209, %v4211, %v4207
    %v4213 = vmul.f32 %v4176, %v4212
    %v4214 = vmul.f32 %v4178, %v4212
    %v4215 = vrcp.pop %v4194
    %v4216 = vmul.f32 %v4194, %v4215
    %v4217 = vsub.f32 1.0, %v4216
    %v4218 = vmul.f32 %v4215, %v4217
    %v4219 = vadd.f32 %v4215, %v4218
    %vm4220 = vweird.f32 %v4194
    %vm4221 = vweird.f32 %v4215
    %vm4222 = vmor %vm4220, %vm4221
    %v4223 = vsel %vm4222, %v4215, %v4219
    %v4224 = vand.u32 2147483647, %v4194
    %vm4225 = vcmp.eq.f32.partialorder %v4224, 8.507059e+37
    %v4226 = vand.u32 %v4194, 2147483648
    %v4227 = vor.u32 1.1754944e-38, %v4226
    %v4228 = vsel %vm4225, %v4227, %v4223
    %v4229 = vmul.f32 %v4180, %v4228
    %v4230 = vmul.f32 %v4182, %v4228
    %v4231 = vrcp.pop %v4198
    %v4232 = vmul.f32 %v4198, %v4231
    %v4233 = vsub.f32 1.0, %v4232
    %v4234 = vmul.f32 %v4231, %v4233
    %v4235 = vadd.f32 %v4231, %v4234
    %vm4236 = vweird.f32 %v4198
    %vm4237 = vweird.f32 %v4231
    %vm4238 = vmor %vm4236, %vm4237
    %v4239 = vsel %vm4238, %v4231, %v4235
    %v4240 = vand.u32 2147483647, %v4198
    %vm4241 = vcmp.eq.f32.partialorder %v4240, 8.507059e+37
    %v4242 = vand.u32 %v4198, 2147483648
    %v4243 = vor.u32 1.1754944e-38, %v4242
    %v4244 = vsel %vm4241, %v4243, %v4239
    %v4245 = vmul.f32 %v4184, %v4244
    %v4246 = vmul.f32 %v4186, %v4244
    %v4248 = vsel %vm972, %v4214, 0
    %v4251 = vsel %vm972, %v4230, 0
    %v4254 = vsel %vm972, %v4246, 0
    %4256 = vmatpush.msra.mxu0 %v4010
    %4257 = vmatpush.msra.mxu0 %v4007
    %4258 = vmatpush.msra.mxu0 %v4004
    %4259 = vmatpush.msra.mxu0 %v4001
    %4260 = vmatpush.msra.mxu0 %v3998
    %4261 = vmatpush.msra.mxu0 %v3995
    %4262 = vmatpush.msra.mxu0 %v3992
    %4263 = vmatpush.msra.mxu0 %v3989
    %4264 = vmatpush.msra.mxu0 %v3986
    %4265 = vmatpush.msra.mxu0 %v3983
    %4266 = vmatpush.msra.mxu0 %v3980
    %4267 = vmatpush.msra.mxu0 %v3977
    %4268 = vmatpush.msra.mxu0 %v3974
    %4269 = vmatpush.msra.mxu0 %v3971
    %4270 = vmatpush.msra.mxu0 %v3968
    %4271 = vmatpush.msra.mxu0 %v3965
    %4272 = vmatmul.f32.gmra.mxu0 %v4213
    %v4273 = vpop.f32.mrf.mxu0
    %v4274 = vadd.f32 0.0, %v4273
    %4275 = vmatmul.f32.gmra.mxu0 %v4229
    %v4276 = vpop.f32.mrf.mxu0
    %v4277 = vadd.f32 0.0, %v4276
    %4278 = vmatmul.f32.gmra.mxu0 %v4245
    %v4279 = vpop.f32.mrf.mxu0
    %v4280 = vadd.f32 0.0, %v4279
    %4281 = vdwg.mxu0
    %4282 = vmatpush.msra.mxu0 0.0
    %4283 = vmatpush.msra.mxu0 0.0
    %4284 = vmatpush.msra.mxu0 0.0
    %4285 = vmatpush.msra.mxu0 0.0
    %4286 = vmatpush.msra.mxu0 0.0
    %4287 = vmatpush.msra.mxu0 0.0
    %4288 = vmatpush.msra.mxu0 0.0
    %4289 = vmatpush.msra.mxu0 0.0
    %4290 = vmatpush.msra.mxu0 0.0
    %4291 = vmatpush.msra.mxu0 0.0
    %4292 = vmatpush.msra.mxu0 0.0
    %4293 = vmatpush.msra.mxu0 0.0
    %4294 = vmatpush.msra.mxu0 %v4022
    %4295 = vmatpush.msra.mxu0 %v4019
    %4296 = vmatpush.msra.mxu0 %v4016
    %4297 = vmatpush.msra.mxu0 %v4013
    %4298 = vmatmul.f32.gmra.mxu0 %v4248
    %v4299 = vpop.f32.mrf.mxu0
    %v4300 = vadd.f32 %v4274, %v4299
    %4301 = vmatmul.f32.gmra.mxu0 %v4251
    %v4302 = vpop.f32.mrf.mxu0
    %v4303 = vadd.f32 %v4277, %v4302
    %4304 = vmatmul.f32.gmra.mxu0 %v4254
    %v4305 = vpop.f32.mrf.mxu0
    %v4306 = vadd.f32 %v4280, %v4305
    %4307 = vdwg.mxu0
    %4308 = vrot.lane.b32.xlu0 %v3860, 112
    %v4309 = vpop.permute.xlu0 %4308
    %4310 = vrot.lane.b32.xlu0 %v3863, 112
    %v4311 = vpop.permute.xlu0 %4310
    %4312 = vrot.lane.b32.xlu0 %v3866, 112
    %v4313 = vpop.permute.xlu0 %4312
    %4314 = vrot.lane.b32.xlu0 %v3887, 112
    %v4315 = vpop.permute.xlu0 %4314
    %4316 = vrot.lane.b32.xlu0 %v3890, 112
    %v4317 = vpop.permute.xlu0 %4316
    %4318 = vrot.lane.b32.xlu0 %v3893, 112
    %v4319 = vpop.permute.xlu0 %4318
    %4320 = vrot.lane.b32.xlu0 %v3896, 112
    %v4321 = vpop.permute.xlu0 %4320
    %4322 = vrot.lane.b32.xlu0 %v3899, 112
    %v4323 = vpop.permute.xlu0 %4322
    %4324 = vrot.lane.b32.xlu0 %v3902, 112
    %v4325 = vpop.permute.xlu0 %4324
    %4326 = vrot.lane.b32.xlu0 %v3905, 112
    %v4327 = vpop.permute.xlu0 %4326
    %4328 = vrot.lane.b32.xlu0 %v3908, 112
    %v4329 = vpop.permute.xlu0 %4328
    %4330 = vrot.lane.b32.xlu0 %v3911, 112
    %v4331 = vpop.permute.xlu0 %4330
    %4332 = vrot.lane.b32.xlu0 %v3914, 112
    %v4333 = vpop.permute.xlu0 %4332
    %4334 = vrot.lane.b32.xlu0 %v3917, 112
    %v4335 = vpop.permute.xlu0 %4334
    %4336 = vrot.lane.b32.xlu0 %v3920, 112
    %v4337 = vpop.permute.xlu0 %4336
    %4338 = vrot.lane.b32.xlu0 %v3923, 112
    %v4339 = vpop.permute.xlu0 %4338
    %4340 = vrot.lane.b32.xlu0 %v3926, 112
    %v4341 = vpop.permute.xlu0 %4340
    %4342 = vrot.lane.b32.xlu0 %v3929, 112
    %v4343 = vpop.permute.xlu0 %4342
    %4344 = vrot.lane.b32.xlu0 %v3932, 112
    %v4345 = vpop.permute.xlu0 %4344
    %4346 = vrot.lane.b32.xlu0 %v3935, 112
    %v4347 = vpop.permute.xlu0 %4346
    %4348 = vrot.lane.b32.xlu0 %v3938, 112
    %v4349 = vpop.permute.xlu0 %4348
    %4350 = vrot.lane.b32.xlu0 %v3941, 112
    %v4351 = vpop.permute.xlu0 %4350
    %4352 = vrot.lane.b32.xlu0 %v3944, 112
    %v4353 = vpop.permute.xlu0 %4352
    %v4354 = vsel %vm838, %v4309, 0
    %v4356 = vsel %vm838, %v4311, 0
    %v4358 = vsel %vm838, %v4313, 0
    %v4360 = vsel %vm838, %v4315, 0
    %v4362 = vsel %vm838, %v4317, 0
    %v4364 = vsel %vm838, %v4319, 0
    %v4366 = vsel %vm838, %v4321, 0
    %v4368 = vsel %vm838, %v4323, 0
    %v4370 = vsel %vm838, %v4325, 0
    %v4372 = vsel %vm838, %v4327, 0
    %v4374 = vsel %vm838, %v4329, 0
    %v4376 = vsel %vm838, %v4331, 0
    %v4378 = vsel %vm838, %v4333, 0
    %v4380 = vsel %vm838, %v4335, 0
    %v4382 = vsel %vm838, %v4337, 0
    %v4384 = vsel %vm838, %v4339, 0
    %v4386 = vsel %vm838, %v4341, 0
    %v4388 = vsel %vm838, %v4343, 0
    %v4390 = vsel %vm838, %v4345, 0
    %v4392 = vsel %vm838, %v4347, 0
    %v4394 = vsel %vm838, %v4349, 0
    %v4396 = vsel %vm838, %v4351, 0
    %v4398 = vsel %vm838, %v4353, 0
    %4400 = vmatpush.xpose.msra.mxu0 %v4390
    %4401 = vmatpush.xpose.msra.mxu0 %v4388
    %4402 = vmatpush.xpose.msra.mxu0 %v4386
    %4403 = vmatpush.xpose.msra.mxu0 %v4384
    %4404 = vmatpush.xpose.msra.mxu0 %v4382
    %4405 = vmatpush.xpose.msra.mxu0 %v4380
    %4406 = vmatpush.xpose.msra.mxu0 %v4378
    %4407 = vmatpush.xpose.msra.mxu0 %v4376
    %4408 = vmatpush.xpose.msra.mxu0 %v4374
    %4409 = vmatpush.xpose.msra.mxu0 %v4372
    %4410 = vmatpush.xpose.msra.mxu0 %v4370
    %4411 = vmatpush.xpose.msra.mxu0 %v4368
    %4412 = vmatpush.xpose.msra.mxu0 %v4366
    %4413 = vmatpush.xpose.msra.mxu0 %v4364
    %4414 = vmatpush.xpose.msra.mxu0 %v4362
    %4415 = vmatpush.xpose.msra.mxu0 %v4360
    %4416 = vmatmul.f32.gmra.mxu0 %v4354
    %v4417 = vpop.f32.mrf.mxu0
    %v4418 = vadd.f32 0.0, %v4417
    %4419 = vmatmul.f32.gmra.mxu0 %v4356
    %v4420 = vpop.f32.mrf.mxu0
    %v4421 = vadd.f32 0.0, %v4420
    %4422 = vmatmul.f32.gmra.mxu0 %v4358
    %v4423 = vpop.f32.mrf.mxu0
    %v4424 = vadd.f32 0.0, %v4423
    %4425 = vdwg.mxu0
    %4426 = vmatpush.xpose.msra.mxu0 0.0
    %4427 = vmatpush.xpose.msra.mxu0 0.0
    %4428 = vmatpush.xpose.msra.mxu0 0.0
    %4429 = vmatpush.xpose.msra.mxu0 0.0
    %4430 = vmatpush.xpose.msra.mxu0 0.0
    %4431 = vmatpush.xpose.msra.mxu0 0.0
    %4432 = vmatpush.xpose.msra.mxu0 0.0
    %4433 = vmatpush.xpose.msra.mxu0 0.0
    %4434 = vmatpush.xpose.msra.mxu0 0.0
    %4435 = vmatpush.xpose.msra.mxu0 0.0
    %4436 = vmatpush.xpose.msra.mxu0 0.0
    %4437 = vmatpush.xpose.msra.mxu0 0.0
    %4438 = vmatpush.xpose.msra.mxu0 %v4398
    %4439 = vmatpush.xpose.msra.mxu0 %v4396
    %4440 = vmatpush.xpose.msra.mxu0 %v4394
    %4441 = vmatpush.xpose.msra.mxu0 %v4392
    %4442 = vmatmul.f32.gmra.mxu0 %v4354
    %v4443 = vpop.f32.mrf.mxu0
    %v4444 = vadd.f32 0.0, %v4443
    %4445 = vmatmul.f32.gmra.mxu0 %v4356
    %v4446 = vpop.f32.mrf.mxu0
    %v4447 = vadd.f32 0.0, %v4446
    %4448 = vmatmul.f32.gmra.mxu0 %v4358
    %v4449 = vpop.f32.mrf.mxu0
    %v4450 = vadd.f32 0.0, %v4449
    %4451 = vdwg.mxu0
    %v4452 = vmul.f32 %v4418, 0.25
    %v4453 = vmul.f32 %v4444, 0.25
    %v4454 = vmul.f32 %v4421, 0.25
    %v4455 = vmul.f32 %v4447, 0.25
    %v4456 = vmul.f32 %v4424, 0.25
    %v4457 = vmul.f32 %v4450, 0.25
    %v4458 = vadd.f32 %v4452, %v3826
    %v4459 = vadd.f32 %v4453, %v3827
    %v4460 = vadd.f32 %v4454, %v3828
    %v4461 = vadd.f32 %v4455, %v3829
    %v4462 = vadd.f32 %v4456, %v3830
    %v4463 = vadd.f32 %v4457, %v3831
    %v4464 = vsel %vm972, %v4459, -inf
    %v4465 = vmax.f32 %v4458, %v4464
    %4466 = vmax.xlane.f32.xlu0 %v4465
    %v4467 = vpop.xlane.xlu0 %4466
    %v4468 = vsel %vm972, %v4461, -inf
    %v4469 = vmax.f32 %v4460, %v4468
    %4470 = vmax.xlane.f32.xlu0 %v4469
    %v4471 = vpop.xlane.xlu0 %4470
    %v4472 = vsel %vm972, %v4463, -inf
    %v4473 = vmax.f32 %v4462, %v4472
    %4474 = vmax.xlane.f32.xlu0 %v4473
    %v4475 = vpop.xlane.xlu0 %4474
    %v4476 = vsub.f32 %v4458, %v4467
    %v4477 = vsub.f32 %v4459, %v4467
    %v4478 = vsub.f32 %v4460, %v4471
    %v4479 = vsub.f32 %v4461, %v4471
    %v4480 = vsub.f32 %v4462, %v4475
    %v4481 = vsub.f32 %v4463, %v4475
    %v4482 = vmul.f32 %v4476, 1.442695
    %v4483 = vpow.pop %v4482
    %v4484 = vmul.f32 %v4477, 1.442695
    %v4485 = vpow.pop %v4484
    %v4486 = vmul.f32 %v4478, 1.442695
    %v4487 = vpow.pop %v4486
    %v4488 = vmul.f32 %v4479, 1.442695
    %v4489 = vpow.pop %v4488
    %v4490 = vmul.f32 %v4480, 1.442695
    %v4491 = vpow.pop %v4490
    %v4492 = vmul.f32 %v4481, 1.442695
    %v4493 = vpow.pop %v4492
    %v4494 = vsel %vm972, %v4485, 0.0
    %v4495 = vadd.f32 %v4483, %v4494
    %4496 = vadd.xlane.f32.xlu0 %v4495
    %v4497 = vpop.xlane.xlu0 %4496
    %v4498 = vsel %vm972, %v4489, 0.0
    %v4499 = vadd.f32 %v4487, %v4498
    %4500 = vadd.xlane.f32.xlu0 %v4499
    %v4501 = vpop.xlane.xlu0 %4500
    %v4502 = vsel %vm972, %v4493, 0.0
    %v4503 = vadd.f32 %v4491, %v4502
    %4504 = vadd.xlane.f32.xlu0 %v4503
    %v4505 = vpop.xlane.xlu0 %4504
    %v4506 = vrcp.pop %v4497
    %v4507 = vmul.f32 %v4497, %v4506
    %v4508 = vsub.f32 1.0, %v4507
    %v4509 = vmul.f32 %v4506, %v4508
    %v4510 = vadd.f32 %v4506, %v4509
    %vm4511 = vweird.f32 %v4497
    %vm4512 = vweird.f32 %v4506
    %vm4513 = vmor %vm4511, %vm4512
    %v4514 = vsel %vm4513, %v4506, %v4510
    %v4515 = vand.u32 2147483647, %v4497
    %vm4516 = vcmp.eq.f32.partialorder %v4515, 8.507059e+37
    %v4517 = vand.u32 %v4497, 2147483648
    %v4518 = vor.u32 1.1754944e-38, %v4517
    %v4519 = vsel %vm4516, %v4518, %v4514
    %v4520 = vmul.f32 %v4483, %v4519
    %v4521 = vmul.f32 %v4485, %v4519
    %v4522 = vrcp.pop %v4501
    %v4523 = vmul.f32 %v4501, %v4522
    %v4524 = vsub.f32 1.0, %v4523
    %v4525 = vmul.f32 %v4522, %v4524
    %v4526 = vadd.f32 %v4522, %v4525
    %vm4527 = vweird.f32 %v4501
    %vm4528 = vweird.f32 %v4522
    %vm4529 = vmor %vm4527, %vm4528
    %v4530 = vsel %vm4529, %v4522, %v4526
    %v4531 = vand.u32 2147483647, %v4501
    %vm4532 = vcmp.eq.f32.partialorder %v4531, 8.507059e+37
    %v4533 = vand.u32 %v4501, 2147483648
    %v4534 = vor.u32 1.1754944e-38, %v4533
    %v4535 = vsel %vm4532, %v4534, %v4530
    %v4536 = vmul.f32 %v4487, %v4535
    %v4537 = vmul.f32 %v4489, %v4535
    %v4538 = vrcp.pop %v4505
    %v4539 = vmul.f32 %v4505, %v4538
    %v4540 = vsub.f32 1.0, %v4539
    %v4541 = vmul.f32 %v4538, %v4540
    %v4542 = vadd.f32 %v4538, %v4541
    %vm4543 = vweird.f32 %v4505
    %vm4544 = vweird.f32 %v4538
    %vm4545 = vmor %vm4543, %vm4544
    %v4546 = vsel %vm4545, %v4538, %v4542
    %v4547 = vand.u32 2147483647, %v4505
    %vm4548 = vcmp.eq.f32.partialorder %v4547, 8.507059e+37
    %v4549 = vand.u32 %v4505, 2147483648
    %v4550 = vor.u32 1.1754944e-38, %v4549
    %v4551 = vsel %vm4548, %v4550, %v4546
    %v4552 = vmul.f32 %v4491, %v4551
    %v4553 = vmul.f32 %v4493, %v4551
    %4574 = vrot.lane.b32.xlu0 %v3965, 112
    %v4575 = vpop.permute.xlu0 %4574
    %4576 = vrot.lane.b32.xlu0 %v3968, 112
    %v4577 = vpop.permute.xlu0 %4576
    %4578 = vrot.lane.b32.xlu0 %v3971, 112
    %v4579 = vpop.permute.xlu0 %4578
    %4580 = vrot.lane.b32.xlu0 %v3974, 112
    %v4581 = vpop.permute.xlu0 %4580
    %4582 = vrot.lane.b32.xlu0 %v3977, 112
    %v4583 = vpop.permute.xlu0 %4582
    %4584 = vrot.lane.b32.xlu0 %v3980, 112
    %v4585 = vpop.permute.xlu0 %4584
    %4586 = vrot.lane.b32.xlu0 %v3983, 112
    %v4587 = vpop.permute.xlu0 %4586
    %4588 = vrot.lane.b32.xlu0 %v3986, 112
    %v4589 = vpop.permute.xlu0 %4588
    %4590 = vrot.lane.b32.xlu0 %v3989, 112
    %v4591 = vpop.permute.xlu0 %4590
    %4592 = vrot.lane.b32.xlu0 %v3992, 112
    %v4593 = vpop.permute.xlu0 %4592
    %4594 = vrot.lane.b32.xlu0 %v3995, 112
    %v4595 = vpop.permute.xlu0 %4594
    %4596 = vrot.lane.b32.xlu0 %v3998, 112
    %v4597 = vpop.permute.xlu0 %4596
    %4598 = vrot.lane.b32.xlu0 %v4001, 112
    %v4599 = vpop.permute.xlu0 %4598
    %4600 = vrot.lane.b32.xlu0 %v4004, 112
    %v4601 = vpop.permute.xlu0 %4600
    %4602 = vrot.lane.b32.xlu0 %v4007, 112
    %v4603 = vpop.permute.xlu0 %4602
    %4604 = vrot.lane.b32.xlu0 %v4010, 112
    %v4605 = vpop.permute.xlu0 %4604
    %4606 = vrot.lane.b32.xlu0 %v4013, 112
    %v4607 = vpop.permute.xlu0 %4606
    %4608 = vrot.lane.b32.xlu0 %v4016, 112
    %v4609 = vpop.permute.xlu0 %4608
    %4610 = vrot.lane.b32.xlu0 %v4019, 112
    %v4611 = vpop.permute.xlu0 %4610
    %4612 = vrot.lane.b32.xlu0 %v4022, 112
    %v4613 = vpop.permute.xlu0 %4612
    %v4635 = vsel %vm972, %v4521, 0
    %v4638 = vsel %vm972, %v4537, 0
    %v4641 = vsel %vm972, %v4553, 0
    %4643 = vmatpush.msra.mxu0 %v4605
    %4644 = vmatpush.msra.mxu0 %v4603
    %4645 = vmatpush.msra.mxu0 %v4601
    %4646 = vmatpush.msra.mxu0 %v4599
    %4647 = vmatpush.msra.mxu0 %v4597
    %4648 = vmatpush.msra.mxu0 %v4595
    %4649 = vmatpush.msra.mxu0 %v4593
    %4650 = vmatpush.msra.mxu0 %v4591
    %4651 = vmatpush.msra.mxu0 %v4589
    %4652 = vmatpush.msra.mxu0 %v4587
    %4653 = vmatpush.msra.mxu0 %v4585
    %4654 = vmatpush.msra.mxu0 %v4583
    %4655 = vmatpush.msra.mxu0 %v4581
    %4656 = vmatpush.msra.mxu0 %v4579
    %4657 = vmatpush.msra.mxu0 %v4577
    %4658 = vmatpush.msra.mxu0 %v4575
    %4659 = vmatmul.f32.gmra.mxu0 %v4520
    %v4660 = vpop.f32.mrf.mxu0
    %v4661 = vadd.f32 0.0, %v4660
    %4662 = vmatmul.f32.gmra.mxu0 %v4536
    %v4663 = vpop.f32.mrf.mxu0
    %v4664 = vadd.f32 0.0, %v4663
    %4665 = vmatmul.f32.gmra.mxu0 %v4552
    %v4666 = vpop.f32.mrf.mxu0
    %v4667 = vadd.f32 0.0, %v4666
    %4668 = vdwg.mxu0
    %4669 = vmatpush.msra.mxu0 0.0
    %4670 = vmatpush.msra.mxu0 0.0
    %4671 = vmatpush.msra.mxu0 0.0
    %4672 = vmatpush.msra.mxu0 0.0
    %4673 = vmatpush.msra.mxu0 0.0
    %4674 = vmatpush.msra.mxu0 0.0
    %4675 = vmatpush.msra.mxu0 0.0
    %4676 = vmatpush.msra.mxu0 0.0
    %4677 = vmatpush.msra.mxu0 0.0
    %4678 = vmatpush.msra.mxu0 0.0
    %4679 = vmatpush.msra.mxu0 0.0
    %4680 = vmatpush.msra.mxu0 0.0
    %4681 = vmatpush.msra.mxu0 %v4613
    %4682 = vmatpush.msra.mxu0 %v4611
    %4683 = vmatpush.msra.mxu0 %v4609
    %4684 = vmatpush.msra.mxu0 %v4607
    %4685 = vmatmul.f32.gmra.mxu0 %v4635
    %v4686 = vpop.f32.mrf.mxu0
    %v4687 = vadd.f32 %v4661, %v4686
    %4688 = vmatmul.f32.gmra.mxu0 %v4638
    %v4689 = vpop.f32.mrf.mxu0
    %v4690 = vadd.f32 %v4664, %v4689
    %4691 = vmatmul.f32.gmra.mxu0 %v4641
    %v4692 = vpop.f32.mrf.mxu0
    %v4693 = vadd.f32 %v4667, %v4692
    %4694 = vdwg.mxu0
    %v4696 = vsel %vm838, %v4687, 0
    %v4699 = vsel %vm838, %v4690, 0
    %v4702 = vsel %vm838, %v4693, 0
    %4704 = vmatpush.msra.mxu0 0.0
    %4705 = vmatpush.msra.mxu0 0.0
    %4706 = vmatpush.msra.mxu0 0.0
    %4707 = vmatpush.msra.mxu0 0.0
    %4708 = vmatpush.msra.mxu0 0.0
    %4709 = vmatpush.msra.mxu0 0.0
    %4710 = vmatpush.msra.mxu0 0.0
    %4711 = vmatpush.msra.mxu0 0.0
    %4712 = vmatpush.msra.mxu0 0.0
    %4713 = vmatpush.msra.mxu0 0.0
    %4714 = vmatpush.msra.mxu0 0.0
    %4715 = vmatpush.msra.mxu0 0.0
    %4716 = vmatpush.msra.mxu0 0.0
    %4717 = vmatpush.msra.mxu0 0.0
    %4718 = vmatpush.msra.mxu0 %v3821
    %4719 = vmatpush.msra.mxu0 %v3820
    %4720 = vmatmul.f32.gmra.mxu0 %v4696
    %v4721 = vpop.f32.mrf.mxu0
    %v4722 = vadd.f32 0.0, %v4721
    %4723 = vmatmul.f32.gmra.mxu0 %v4699
    %v4724 = vpop.f32.mrf.mxu0
    %v4725 = vadd.f32 0.0, %v4724
    %4726 = vmatmul.f32.gmra.mxu0 %v4702
    %v4727 = vpop.f32.mrf.mxu0
    %v4728 = vadd.f32 0.0, %v4727
    %4729 = vdwg.mxu0
    %v4731 = vsel %vm838, %v4300, 0
    %v4734 = vsel %vm838, %v4303, 0
    %v4737 = vsel %vm838, %v4306, 0
    %4739 = vmatpush.msra.mxu0 0.0
    %4740 = vmatpush.msra.mxu0 0.0
    %4741 = vmatpush.msra.mxu0 0.0
    %4742 = vmatpush.msra.mxu0 0.0
    %4743 = vmatpush.msra.mxu0 0.0
    %4744 = vmatpush.msra.mxu0 0.0
    %4745 = vmatpush.msra.mxu0 0.0
    %4746 = vmatpush.msra.mxu0 0.0
    %4747 = vmatpush.msra.mxu0 0.0
    %4748 = vmatpush.msra.mxu0 0.0
    %4749 = vmatpush.msra.mxu0 0.0
    %4750 = vmatpush.msra.mxu0 0.0
    %4751 = vmatpush.msra.mxu0 0.0
    %4752 = vmatpush.msra.mxu0 0.0
    %4753 = vmatpush.msra.mxu0 %v3819
    %4754 = vmatpush.msra.mxu0 %v3818
    %4755 = vmatmul.f32.gmra.mxu0 %v4731
    %v4756 = vpop.f32.mrf.mxu0
    %v4757 = vadd.f32 %v4722, %v4756
    %4758 = vmatmul.f32.gmra.mxu0 %v4734
    %v4759 = vpop.f32.mrf.mxu0
    %v4760 = vadd.f32 %v4725, %v4759
    %4761 = vmatmul.f32.gmra.mxu0 %v4737
    %v4762 = vpop.f32.mrf.mxu0
    %v4763 = vadd.f32 %v4728, %v4762
    %4764 = vdwg.mxu0
    %4765 = vrot.lane.b32.xlu0 %v3860, 96
    %v4766 = vpop.permute.xlu0 %4765
    %4767 = vrot.lane.b32.xlu0 %v3863, 96
    %v4768 = vpop.permute.xlu0 %4767
    %4769 = vrot.lane.b32.xlu0 %v3866, 96
    %v4770 = vpop.permute.xlu0 %4769
    %4771 = vrot.lane.b32.xlu0 %v3887, 96
    %v4772 = vpop.permute.xlu0 %4771
    %4773 = vrot.lane.b32.xlu0 %v3890, 96
    %v4774 = vpop.permute.xlu0 %4773
    %4775 = vrot.lane.b32.xlu0 %v3893, 96
    %v4776 = vpop.permute.xlu0 %4775
    %4777 = vrot.lane.b32.xlu0 %v3896, 96
    %v4778 = vpop.permute.xlu0 %4777
    %4779 = vrot.lane.b32.xlu0 %v3899, 96
    %v4780 = vpop.permute.xlu0 %4779
    %4781 = vrot.lane.b32.xlu0 %v3902, 96
    %v4782 = vpop.permute.xlu0 %4781
    %4783 = vrot.lane.b32.xlu0 %v3905, 96
    %v4784 = vpop.permute.xlu0 %4783
    %4785 = vrot.lane.b32.xlu0 %v3908, 96
    %v4786 = vpop.permute.xlu0 %4785
    %4787 = vrot.lane.b32.xlu0 %v3911, 96
    %v4788 = vpop.permute.xlu0 %4787
    %4789 = vrot.lane.b32.xlu0 %v3914, 96
    %v4790 = vpop.permute.xlu0 %4789
    %4791 = vrot.lane.b32.xlu0 %v3917, 96
    %v4792 = vpop.permute.xlu0 %4791
    %4793 = vrot.lane.b32.xlu0 %v3920, 96
    %v4794 = vpop.permute.xlu0 %4793
    %4795 = vrot.lane.b32.xlu0 %v3923, 96
    %v4796 = vpop.permute.xlu0 %4795
    %4797 = vrot.lane.b32.xlu0 %v3926, 96
    %v4798 = vpop.permute.xlu0 %4797
    %4799 = vrot.lane.b32.xlu0 %v3929, 96
    %v4800 = vpop.permute.xlu0 %4799
    %4801 = vrot.lane.b32.xlu0 %v3932, 96
    %v4802 = vpop.permute.xlu0 %4801
    %4803 = vrot.lane.b32.xlu0 %v3935, 96
    %v4804 = vpop.permute.xlu0 %4803
    %4805 = vrot.lane.b32.xlu0 %v3938, 96
    %v4806 = vpop.permute.xlu0 %4805
    %4807 = vrot.lane.b32.xlu0 %v3941, 96
    %v4808 = vpop.permute.xlu0 %4807
    %4809 = vrot.lane.b32.xlu0 %v3944, 96
    %v4810 = vpop.permute.xlu0 %4809
    %v4811 = vsel %vm838, %v4766, 0
    %v4813 = vsel %vm838, %v4768, 0
    %v4815 = vsel %vm838, %v4770, 0
    %v4817 = vsel %vm838, %v4772, 0
    %v4819 = vsel %vm838, %v4774, 0
    %v4821 = vsel %vm838, %v4776, 0
    %v4823 = vsel %vm838, %v4778, 0
    %v4825 = vsel %vm838, %v4780, 0
    %v4827 = vsel %vm838, %v4782, 0
    %v4829 = vsel %vm838, %v4784, 0
    %v4831 = vsel %vm838, %v4786, 0
    %v4833 = vsel %vm838, %v4788, 0
    %v4835 = vsel %vm838, %v4790, 0
    %v4837 = vsel %vm838, %v4792, 0
    %v4839 = vsel %vm838, %v4794, 0
    %v4841 = vsel %vm838, %v4796, 0
    %v4843 = vsel %vm838, %v4798, 0
    %v4845 = vsel %vm838, %v4800, 0
    %v4847 = vsel %vm838, %v4802, 0
    %v4849 = vsel %vm838, %v4804, 0
    %v4851 = vsel %vm838, %v4806, 0
    %v4853 = vsel %vm838, %v4808, 0
    %v4855 = vsel %vm838, %v4810, 0
    %4857 = vmatpush.xpose.msra.mxu0 %v4847
    %4858 = vmatpush.xpose.msra.mxu0 %v4845
    %4859 = vmatpush.xpose.msra.mxu0 %v4843
    %4860 = vmatpush.xpose.msra.mxu0 %v4841
    %4861 = vmatpush.xpose.msra.mxu0 %v4839
    %4862 = vmatpush.xpose.msra.mxu0 %v4837
    %4863 = vmatpush.xpose.msra.mxu0 %v4835
    %4864 = vmatpush.xpose.msra.mxu0 %v4833
    %4865 = vmatpush.xpose.msra.mxu0 %v4831
    %4866 = vmatpush.xpose.msra.mxu0 %v4829
    %4867 = vmatpush.xpose.msra.mxu0 %v4827
    %4868 = vmatpush.xpose.msra.mxu0 %v4825
    %4869 = vmatpush.xpose.msra.mxu0 %v4823
    %4870 = vmatpush.xpose.msra.mxu0 %v4821
    %4871 = vmatpush.xpose.msra.mxu0 %v4819
    %4872 = vmatpush.xpose.msra.mxu0 %v4817
    %4873 = vmatmul.f32.gmra.mxu0 %v4811
    %v4874 = vpop.f32.mrf.mxu0
    %v4875 = vadd.f32 0.0, %v4874
    %4876 = vmatmul.f32.gmra.mxu0 %v4813
    %v4877 = vpop.f32.mrf.mxu0
    %v4878 = vadd.f32 0.0, %v4877
    %4879 = vmatmul.f32.gmra.mxu0 %v4815
    %v4880 = vpop.f32.mrf.mxu0
    %v4881 = vadd.f32 0.0, %v4880
    %4882 = vdwg.mxu0
    %4883 = vmatpush.xpose.msra.mxu0 0.0
    %4884 = vmatpush.xpose.msra.mxu0 0.0
    %4885 = vmatpush.xpose.msra.mxu0 0.0
    %4886 = vmatpush.xpose.msra.mxu0 0.0
    %4887 = vmatpush.xpose.msra.mxu0 0.0
    %4888 = vmatpush.xpose.msra.mxu0 0.0
    %4889 = vmatpush.xpose.msra.mxu0 0.0
    %4890 = vmatpush.xpose.msra.mxu0 0.0
    %4891 = vmatpush.xpose.msra.mxu0 0.0
    %4892 = vmatpush.xpose.msra.mxu0 0.0
    %4893 = vmatpush.xpose.msra.mxu0 0.0
    %4894 = vmatpush.xpose.msra.mxu0 0.0
    %4895 = vmatpush.xpose.msra.mxu0 %v4855
    %4896 = vmatpush.xpose.msra.mxu0 %v4853
    %4897 = vmatpush.xpose.msra.mxu0 %v4851
    %4898 = vmatpush.xpose.msra.mxu0 %v4849
    %4899 = vmatmul.f32.gmra.mxu0 %v4811
    %v4900 = vpop.f32.mrf.mxu0
    %v4901 = vadd.f32 0.0, %v4900
    %4902 = vmatmul.f32.gmra.mxu0 %v4813
    %v4903 = vpop.f32.mrf.mxu0
    %v4904 = vadd.f32 0.0, %v4903
    %4905 = vmatmul.f32.gmra.mxu0 %v4815
    %v4906 = vpop.f32.mrf.mxu0
    %v4907 = vadd.f32 0.0, %v4906
    %4908 = vdwg.mxu0
    %v4909 = vmul.f32 %v4875, 0.25
    %v4910 = vmul.f32 %v4901, 0.25
    %v4911 = vmul.f32 %v4878, 0.25
    %v4912 = vmul.f32 %v4904, 0.25
    %v4913 = vmul.f32 %v4881, 0.25
    %v4914 = vmul.f32 %v4907, 0.25
    %v4915 = vadd.f32 %v4909, %v3826
    %v4916 = vadd.f32 %v4910, %v3827
    %v4917 = vadd.f32 %v4911, %v3828
    %v4918 = vadd.f32 %v4912, %v3829
    %v4919 = vadd.f32 %v4913, %v3830
    %v4920 = vadd.f32 %v4914, %v3831
    %v4921 = vsel %vm972, %v4916, -inf
    %v4922 = vmax.f32 %v4915, %v4921
    %4923 = vmax.xlane.f32.xlu0 %v4922
    %v4924 = vpop.xlane.xlu0 %4923
    %v4925 = vsel %vm972, %v4918, -inf
    %v4926 = vmax.f32 %v4917, %v4925
    %4927 = vmax.xlane.f32.xlu0 %v4926
    %v4928 = vpop.xlane.xlu0 %4927
    %v4929 = vsel %vm972, %v4920, -inf
    %v4930 = vmax.f32 %v4919, %v4929
    %4931 = vmax.xlane.f32.xlu0 %v4930
    %v4932 = vpop.xlane.xlu0 %4931
    %v4933 = vsub.f32 %v4915, %v4924
    %v4934 = vsub.f32 %v4916, %v4924
    %v4935 = vsub.f32 %v4917, %v4928
    %v4936 = vsub.f32 %v4918, %v4928
    %v4937 = vsub.f32 %v4919, %v4932
    %v4938 = vsub.f32 %v4920, %v4932
    %v4939 = vmul.f32 %v4933, 1.442695
    %v4940 = vpow.pop %v4939
    %v4941 = vmul.f32 %v4934, 1.442695
    %v4942 = vpow.pop %v4941
    %v4943 = vmul.f32 %v4935, 1.442695
    %v4944 = vpow.pop %v4943
    %v4945 = vmul.f32 %v4936, 1.442695
    %v4946 = vpow.pop %v4945
    %v4947 = vmul.f32 %v4937, 1.442695
    %v4948 = vpow.pop %v4947
    %v4949 = vmul.f32 %v4938, 1.442695
    %v4950 = vpow.pop %v4949
    %v4951 = vsel %vm972, %v4942, 0.0
    %v4952 = vadd.f32 %v4940, %v4951
    %4953 = vadd.xlane.f32.xlu0 %v4952
    %v4954 = vpop.xlane.xlu0 %4953
    %v4955 = vsel %vm972, %v4946, 0.0
    %v4956 = vadd.f32 %v4944, %v4955
    %4957 = vadd.xlane.f32.xlu0 %v4956
    %v4958 = vpop.xlane.xlu0 %4957
    %v4959 = vsel %vm972, %v4950, 0.0
    %v4960 = vadd.f32 %v4948, %v4959
    %4961 = vadd.xlane.f32.xlu0 %v4960
    %v4962 = vpop.xlane.xlu0 %4961
    %v4963 = vrcp.pop %v4954
    %v4964 = vmul.f32 %v4954, %v4963
    %v4965 = vsub.f32 1.0, %v4964
    %v4966 = vmul.f32 %v4963, %v4965
    %v4967 = vadd.f32 %v4963, %v4966
    %vm4968 = vweird.f32 %v4954
    %vm4969 = vweird.f32 %v4963
    %vm4970 = vmor %vm4968, %vm4969
    %v4971 = vsel %vm4970, %v4963, %v4967
    %v4972 = vand.u32 2147483647, %v4954
    %vm4973 = vcmp.eq.f32.partialorder %v4972, 8.507059e+37
    %v4974 = vand.u32 %v4954, 2147483648
    %v4975 = vor.u32 1.1754944e-38, %v4974
    %v4976 = vsel %vm4973, %v4975, %v4971
    %v4977 = vmul.f32 %v4940, %v4976
    %v4978 = vmul.f32 %v4942, %v4976
    %v4979 = vrcp.pop %v4958
    %v4980 = vmul.f32 %v4958, %v4979
    %v4981 = vsub.f32 1.0, %v4980
    %v4982 = vmul.f32 %v4979, %v4981
    %v4983 = vadd.f32 %v4979, %v4982
    %vm4984 = vweird.f32 %v4958
    %vm4985 = vweird.f32 %v4979
    %vm4986 = vmor %vm4984, %vm4985
    %v4987 = vsel %vm4986, %v4979, %v4983
    %v4988 = vand.u32 2147483647, %v4958
    %vm4989 = vcmp.eq.f32.partialorder %v4988, 8.507059e+37
    %v4990 = vand.u32 %v4958, 2147483648
    %v4991 = vor.u32 1.1754944e-38, %v4990
    %v4992 = vsel %vm4989, %v4991, %v4987
    %v4993 = vmul.f32 %v4944, %v4992
    %v4994 = vmul.f32 %v4946, %v4992
    %v4995 = vrcp.pop %v4962
    %v4996 = vmul.f32 %v4962, %v4995
    %v4997 = vsub.f32 1.0, %v4996
    %v4998 = vmul.f32 %v4995, %v4997
    %v4999 = vadd.f32 %v4995, %v4998
    %vm5000 = vweird.f32 %v4962
    %vm5001 = vweird.f32 %v4995
    %vm5002 = vmor %vm5000, %vm5001
    %v5003 = vsel %vm5002, %v4995, %v4999
    %v5004 = vand.u32 2147483647, %v4962
    %vm5005 = vcmp.eq.f32.partialorder %v5004, 8.507059e+37
    %v5006 = vand.u32 %v4962, 2147483648
    %v5007 = vor.u32 1.1754944e-38, %v5006
    %v5008 = vsel %vm5005, %v5007, %v5003
    %v5009 = vmul.f32 %v4948, %v5008
    %v5010 = vmul.f32 %v4950, %v5008
    %5011 = vrot.lane.b32.xlu0 %v3965, 96
    %v5012 = vpop.permute.xlu0 %5011
    %5013 = vrot.lane.b32.xlu0 %v3968, 96
    %v5014 = vpop.permute.xlu0 %5013
    %5015 = vrot.lane.b32.xlu0 %v3971, 96
    %v5016 = vpop.permute.xlu0 %5015
    %5017 = vrot.lane.b32.xlu0 %v3974, 96
    %v5018 = vpop.permute.xlu0 %5017
    %5019 = vrot.lane.b32.xlu0 %v3977, 96
    %v5020 = vpop.permute.xlu0 %5019
    %5021 = vrot.lane.b32.xlu0 %v3980, 96
    %v5022 = vpop.permute.xlu0 %5021
    %5023 = vrot.lane.b32.xlu0 %v3983, 96
    %v5024 = vpop.permute.xlu0 %5023
    %5025 = vrot.lane.b32.xlu0 %v3986, 96
    %v5026 = vpop.permute.xlu0 %5025
    %5027 = vrot.lane.b32.xlu0 %v3989, 96
    %v5028 = vpop.permute.xlu0 %5027
    %5029 = vrot.lane.b32.xlu0 %v3992, 96
    %v5030 = vpop.permute.xlu0 %5029
    %5031 = vrot.lane.b32.xlu0 %v3995, 96
    %v5032 = vpop.permute.xlu0 %5031
    %5033 = vrot.lane.b32.xlu0 %v3998, 96
    %v5034 = vpop.permute.xlu0 %5033
    %5035 = vrot.lane.b32.xlu0 %v4001, 96
    %v5036 = vpop.permute.xlu0 %5035
    %5037 = vrot.lane.b32.xlu0 %v4004, 96
    %v5038 = vpop.permute.xlu0 %5037
    %5039 = vrot.lane.b32.xlu0 %v4007, 96
    %v5040 = vpop.permute.xlu0 %5039
    %5041 = vrot.lane.b32.xlu0 %v4010, 96
    %v5042 = vpop.permute.xlu0 %5041
    %5043 = vrot.lane.b32.xlu0 %v4013, 96
    %v5044 = vpop.permute.xlu0 %5043
    %5045 = vrot.lane.b32.xlu0 %v4016, 96
    %v5046 = vpop.permute.xlu0 %5045
    %5047 = vrot.lane.b32.xlu0 %v4019, 96
    %v5048 = vpop.permute.xlu0 %5047
    %5049 = vrot.lane.b32.xlu0 %v4022, 96
    %v5050 = vpop.permute.xlu0 %5049
    %v5072 = vsel %vm972, %v4978, 0
    %v5075 = vsel %vm972, %v4994, 0
    %v5078 = vsel %vm972, %v5010, 0
    %5080 = vmatpush.msra.mxu0 %v5042
    %5081 = vmatpush.msra.mxu0 %v5040
    %5082 = vmatpush.msra.mxu0 %v5038
    %5083 = vmatpush.msra.mxu0 %v5036
    %5084 = vmatpush.msra.mxu0 %v5034
    %5085 = vmatpush.msra.mxu0 %v5032
    %5086 = vmatpush.msra.mxu0 %v5030
    %5087 = vmatpush.msra.mxu0 %v5028
    %5088 = vmatpush.msra.mxu0 %v5026
    %5089 = vmatpush.msra.mxu0 %v5024
    %5090 = vmatpush.msra.mxu0 %v5022
    %5091 = vmatpush.msra.mxu0 %v5020
    %5092 = vmatpush.msra.mxu0 %v5018
    %5093 = vmatpush.msra.mxu0 %v5016
    %5094 = vmatpush.msra.mxu0 %v5014
    %5095 = vmatpush.msra.mxu0 %v5012
    %5096 = vmatmul.f32.gmra.mxu0 %v4977
    %v5097 = vpop.f32.mrf.mxu0
    %v5098 = vadd.f32 0.0, %v5097
    %5099 = vmatmul.f32.gmra.mxu0 %v4993
    %v5100 = vpop.f32.mrf.mxu0
    %v5101 = vadd.f32 0.0, %v5100
    %5102 = vmatmul.f32.gmra.mxu0 %v5009
    %v5103 = vpop.f32.mrf.mxu0
    %v5104 = vadd.f32 0.0, %v5103
    %5105 = vdwg.mxu0
    %5106 = vmatpush.msra.mxu0 0.0
    %5107 = vmatpush.msra.mxu0 0.0
    %5108 = vmatpush.msra.mxu0 0.0
    %5109 = vmatpush.msra.mxu0 0.0
    %5110 = vmatpush.msra.mxu0 0.0
    %5111 = vmatpush.msra.mxu0 0.0
    %5112 = vmatpush.msra.mxu0 0.0
    %5113 = vmatpush.msra.mxu0 0.0
    %5114 = vmatpush.msra.mxu0 0.0
    %5115 = vmatpush.msra.mxu0 0.0
    %5116 = vmatpush.msra.mxu0 0.0
    %5117 = vmatpush.msra.mxu0 0.0
    %5118 = vmatpush.msra.mxu0 %v5050
    %5119 = vmatpush.msra.mxu0 %v5048
    %5120 = vmatpush.msra.mxu0 %v5046
    %5121 = vmatpush.msra.mxu0 %v5044
    %5122 = vmatmul.f32.gmra.mxu0 %v5072
    %v5123 = vpop.f32.mrf.mxu0
    %v5124 = vadd.f32 %v5098, %v5123
    %5125 = vmatmul.f32.gmra.mxu0 %v5075
    %v5126 = vpop.f32.mrf.mxu0
    %v5127 = vadd.f32 %v5101, %v5126
    %5128 = vmatmul.f32.gmra.mxu0 %v5078
    %v5129 = vpop.f32.mrf.mxu0
    %v5130 = vadd.f32 %v5104, %v5129
    %5131 = vdwg.mxu0
    %v5133 = vsel %vm838, %v5124, 0
    %v5136 = vsel %vm838, %v5127, 0
    %v5139 = vsel %vm838, %v5130, 0
    %5141 = vmatpush.msra.mxu0 0.0
    %5142 = vmatpush.msra.mxu0 0.0
    %5143 = vmatpush.msra.mxu0 0.0
    %5144 = vmatpush.msra.mxu0 0.0
    %5145 = vmatpush.msra.mxu0 0.0
    %5146 = vmatpush.msra.mxu0 0.0
    %5147 = vmatpush.msra.mxu0 0.0
    %5148 = vmatpush.msra.mxu0 0.0
    %5149 = vmatpush.msra.mxu0 0.0
    %5150 = vmatpush.msra.mxu0 0.0
    %5151 = vmatpush.msra.mxu0 0.0
    %5152 = vmatpush.msra.mxu0 0.0
    %5153 = vmatpush.msra.mxu0 0.0
    %5154 = vmatpush.msra.mxu0 0.0
    %5155 = vmatpush.msra.mxu0 %v3823
    %5156 = vmatpush.msra.mxu0 %v3822
    %5157 = vmatmul.f32.gmra.mxu0 %v5133
    %v5158 = vpop.f32.mrf.mxu0
    %v5159 = vadd.f32 0.0, %v5158
    %5160 = vmatmul.f32.gmra.mxu0 %v5136
    %v5161 = vpop.f32.mrf.mxu0
    %v5162 = vadd.f32 0.0, %v5161
    %5163 = vmatmul.f32.gmra.mxu0 %v5139
    %v5164 = vpop.f32.mrf.mxu0
    %v5165 = vadd.f32 0.0, %v5164
    %5166 = vdwg.mxu0
    %v5167 = vadd.f32 %v4757, %v5159
    %v5168 = vadd.f32 %v4760, %v5162
    %v5169 = vadd.f32 %v4763, %v5165
    %5170 = vrot.lane.b32.xlu0 %v3860, 80
    %v5171 = vpop.permute.xlu0 %5170
    %5172 = vrot.lane.b32.xlu0 %v3863, 80
    %v5173 = vpop.permute.xlu0 %5172
    %5174 = vrot.lane.b32.xlu0 %v3866, 80
    %v5175 = vpop.permute.xlu0 %5174
    %5176 = vrot.lane.b32.xlu0 %v3887, 80
    %v5177 = vpop.permute.xlu0 %5176
    %5178 = vrot.lane.b32.xlu0 %v3890, 80
    %v5179 = vpop.permute.xlu0 %5178
    %5180 = vrot.lane.b32.xlu0 %v3893, 80
    %v5181 = vpop.permute.xlu0 %5180
    %5182 = vrot.lane.b32.xlu0 %v3896, 80
    %v5183 = vpop.permute.xlu0 %5182
    %5184 = vrot.lane.b32.xlu0 %v3899, 80
    %v5185 = vpop.permute.xlu0 %5184
    %5186 = vrot.lane.b32.xlu0 %v3902, 80
    %v5187 = vpop.permute.xlu0 %5186
    %5188 = vrot.lane.b32.xlu0 %v3905, 80
    %v5189 = vpop.permute.xlu0 %5188
    %5190 = vrot.lane.b32.xlu0 %v3908, 80
    %v5191 = vpop.permute.xlu0 %5190
    %5192 = vrot.lane.b32.xlu0 %v3911, 80
    %v5193 = vpop.permute.xlu0 %5192
    %5194 = vrot.lane.b32.xlu0 %v3914, 80
    %v5195 = vpop.permute.xlu0 %5194
    %5196 = vrot.lane.b32.xlu0 %v3917, 80
    %v5197 = vpop.permute.xlu0 %5196
    %5198 = vrot.lane.b32.xlu0 %v3920, 80
    %v5199 = vpop.permute.xlu0 %5198
    %5200 = vrot.lane.b32.xlu0 %v3923, 80
    %v5201 = vpop.permute.xlu0 %5200
    %5202 = vrot.lane.b32.xlu0 %v3926, 80
    %v5203 = vpop.permute.xlu0 %5202
    %5204 = vrot.lane.b32.xlu0 %v3929, 80
    %v5205 = vpop.permute.xlu0 %5204
    %5206 = vrot.lane.b32.xlu0 %v3932, 80
    %v5207 = vpop.permute.xlu0 %5206
    %5208 = vrot.lane.b32.xlu0 %v3935, 80
    %v5209 = vpop.permute.xlu0 %5208
    %5210 = vrot.lane.b32.xlu0 %v3938, 80
    %v5211 = vpop.permute.xlu0 %5210
    %5212 = vrot.lane.b32.xlu0 %v3941, 80
    %v5213 = vpop.permute.xlu0 %5212
    %5214 = vrot.lane.b32.xlu0 %v3944, 80
    %v5215 = vpop.permute.xlu0 %5214
    %v5216 = vsel %vm838, %v5171, 0
    %v5218 = vsel %vm838, %v5173, 0
    %v5220 = vsel %vm838, %v5175, 0
    %v5222 = vsel %vm838, %v5177, 0
    %v5224 = vsel %vm838, %v5179, 0
    %v5226 = vsel %vm838, %v5181, 0
    %v5228 = vsel %vm838, %v5183, 0
    %v5230 = vsel %vm838, %v5185, 0
    %v5232 = vsel %vm838, %v5187, 0
    %v5234 = vsel %vm838, %v5189, 0
    %v5236 = vsel %vm838, %v5191, 0
    %v5238 = vsel %vm838, %v5193, 0
    %v5240 = vsel %vm838, %v5195, 0
    %v5242 = vsel %vm838, %v5197, 0
    %v5244 = vsel %vm838, %v5199, 0
    %v5246 = vsel %vm838, %v5201, 0
    %v5248 = vsel %vm838, %v5203, 0
    %v5250 = vsel %vm838, %v5205, 0
    %v5252 = vsel %vm838, %v5207, 0
    %v5254 = vsel %vm838, %v5209, 0
    %v5256 = vsel %vm838, %v5211, 0
    %v5258 = vsel %vm838, %v5213, 0
    %v5260 = vsel %vm838, %v5215, 0
    %5262 = vmatpush.xpose.msra.mxu0 %v5252
    %5263 = vmatpush.xpose.msra.mxu0 %v5250
    %5264 = vmatpush.xpose.msra.mxu0 %v5248
    %5265 = vmatpush.xpose.msra.mxu0 %v5246
    %5266 = vmatpush.xpose.msra.mxu0 %v5244
    %5267 = vmatpush.xpose.msra.mxu0 %v5242
    %5268 = vmatpush.xpose.msra.mxu0 %v5240
    %5269 = vmatpush.xpose.msra.mxu0 %v5238
    %5270 = vmatpush.xpose.msra.mxu0 %v5236
    %5271 = vmatpush.xpose.msra.mxu0 %v5234
    %5272 = vmatpush.xpose.msra.mxu0 %v5232
    %5273 = vmatpush.xpose.msra.mxu0 %v5230
    %5274 = vmatpush.xpose.msra.mxu0 %v5228
    %5275 = vmatpush.xpose.msra.mxu0 %v5226
    %5276 = vmatpush.xpose.msra.mxu0 %v5224
    %5277 = vmatpush.xpose.msra.mxu0 %v5222
    %5278 = vmatmul.f32.gmra.mxu0 %v5216
    %v5279 = vpop.f32.mrf.mxu0
    %v5280 = vadd.f32 0.0, %v5279
    %5281 = vmatmul.f32.gmra.mxu0 %v5218
    %v5282 = vpop.f32.mrf.mxu0
    %v5283 = vadd.f32 0.0, %v5282
    %5284 = vmatmul.f32.gmra.mxu0 %v5220
    %v5285 = vpop.f32.mrf.mxu0
    %v5286 = vadd.f32 0.0, %v5285
    %5287 = vdwg.mxu0
    %5288 = vmatpush.xpose.msra.mxu0 0.0
    %5289 = vmatpush.xpose.msra.mxu0 0.0
    %5290 = vmatpush.xpose.msra.mxu0 0.0
    %5291 = vmatpush.xpose.msra.mxu0 0.0
    %5292 = vmatpush.xpose.msra.mxu0 0.0
    %5293 = vmatpush.xpose.msra.mxu0 0.0
    %5294 = vmatpush.xpose.msra.mxu0 0.0
    %5295 = vmatpush.xpose.msra.mxu0 0.0
    %5296 = vmatpush.xpose.msra.mxu0 0.0
    %5297 = vmatpush.xpose.msra.mxu0 0.0
    %5298 = vmatpush.xpose.msra.mxu0 0.0
    %5299 = vmatpush.xpose.msra.mxu0 0.0
    %5300 = vmatpush.xpose.msra.mxu0 %v5260
    %5301 = vmatpush.xpose.msra.mxu0 %v5258
    %5302 = vmatpush.xpose.msra.mxu0 %v5256
    %5303 = vmatpush.xpose.msra.mxu0 %v5254
    %5304 = vmatmul.f32.gmra.mxu0 %v5216
    %v5305 = vpop.f32.mrf.mxu0
    %v5306 = vadd.f32 0.0, %v5305
    %5307 = vmatmul.f32.gmra.mxu0 %v5218
    %v5308 = vpop.f32.mrf.mxu0
    %v5309 = vadd.f32 0.0, %v5308
    %5310 = vmatmul.f32.gmra.mxu0 %v5220
    %v5311 = vpop.f32.mrf.mxu0
    %v5312 = vadd.f32 0.0, %v5311
    %5313 = vdwg.mxu0
    %v5314 = vmul.f32 %v5280, 0.25
    %v5315 = vmul.f32 %v5306, 0.25
    %v5316 = vmul.f32 %v5283, 0.25
    %v5317 = vmul.f32 %v5309, 0.25
    %v5318 = vmul.f32 %v5286, 0.25
    %v5319 = vmul.f32 %v5312, 0.25
    %v5320 = vadd.f32 %v5314, %v3826
    %v5321 = vadd.f32 %v5315, %v3827
    %v5322 = vadd.f32 %v5316, %v3828
    %v5323 = vadd.f32 %v5317, %v3829
    %v5324 = vadd.f32 %v5318, %v3830
    %v5325 = vadd.f32 %v5319, %v3831
    %v5326 = vsel %vm972, %v5321, -inf
    %v5327 = vmax.f32 %v5320, %v5326
    %5328 = vmax.xlane.f32.xlu0 %v5327
    %v5329 = vpop.xlane.xlu0 %5328
    %v5330 = vsel %vm972, %v5323, -inf
    %v5331 = vmax.f32 %v5322, %v5330
    %5332 = vmax.xlane.f32.xlu0 %v5331
    %v5333 = vpop.xlane.xlu0 %5332
    %v5334 = vsel %vm972, %v5325, -inf
    %v5335 = vmax.f32 %v5324, %v5334
    %5336 = vmax.xlane.f32.xlu0 %v5335
    %v5337 = vpop.xlane.xlu0 %5336
    %v5338 = vsub.f32 %v5320, %v5329
    %v5339 = vsub.f32 %v5321, %v5329
    %v5340 = vsub.f32 %v5322, %v5333
    %v5341 = vsub.f32 %v5323, %v5333
    %v5342 = vsub.f32 %v5324, %v5337
    %v5343 = vsub.f32 %v5325, %v5337
    %v5344 = vmul.f32 %v5338, 1.442695
    %v5345 = vpow.pop %v5344
    %v5346 = vmul.f32 %v5339, 1.442695
    %v5347 = vpow.pop %v5346
    %v5348 = vmul.f32 %v5340, 1.442695
    %v5349 = vpow.pop %v5348
    %v5350 = vmul.f32 %v5341, 1.442695
    %v5351 = vpow.pop %v5350
    %v5352 = vmul.f32 %v5342, 1.442695
    %v5353 = vpow.pop %v5352
    %v5354 = vmul.f32 %v5343, 1.442695
    %v5355 = vpow.pop %v5354
    %v5356 = vsel %vm972, %v5347, 0.0
    %v5357 = vadd.f32 %v5345, %v5356
    %5358 = vadd.xlane.f32.xlu0 %v5357
    %v5359 = vpop.xlane.xlu0 %5358
    %v5360 = vsel %vm972, %v5351, 0.0
    %v5361 = vadd.f32 %v5349, %v5360
    %5362 = vadd.xlane.f32.xlu0 %v5361
    %v5363 = vpop.xlane.xlu0 %5362
    %v5364 = vsel %vm972, %v5355, 0.0
    %v5365 = vadd.f32 %v5353, %v5364
    %5366 = vadd.xlane.f32.xlu0 %v5365
    %v5367 = vpop.xlane.xlu0 %5366
    %v5368 = vrcp.pop %v5359
    %v5369 = vmul.f32 %v5359, %v5368
    %v5370 = vsub.f32 1.0, %v5369
    %v5371 = vmul.f32 %v5368, %v5370
    %v5372 = vadd.f32 %v5368, %v5371
    %vm5373 = vweird.f32 %v5359
    %vm5374 = vweird.f32 %v5368
    %vm5375 = vmor %vm5373, %vm5374
    %v5376 = vsel %vm5375, %v5368, %v5372
    %v5377 = vand.u32 2147483647, %v5359
    %vm5378 = vcmp.eq.f32.partialorder %v5377, 8.507059e+37
    %v5379 = vand.u32 %v5359, 2147483648
    %v5380 = vor.u32 1.1754944e-38, %v5379
    %v5381 = vsel %vm5378, %v5380, %v5376
    %v5382 = vmul.f32 %v5345, %v5381
    %v5383 = vmul.f32 %v5347, %v5381
    %v5384 = vrcp.pop %v5363
    %v5385 = vmul.f32 %v5363, %v5384
    %v5386 = vsub.f32 1.0, %v5385
    %v5387 = vmul.f32 %v5384, %v5386
    %v5388 = vadd.f32 %v5384, %v5387
    %vm5389 = vweird.f32 %v5363
    %vm5390 = vweird.f32 %v5384
    %vm5391 = vmor %vm5389, %vm5390
    %v5392 = vsel %vm5391, %v5384, %v5388
    %v5393 = vand.u32 2147483647, %v5363
    %vm5394 = vcmp.eq.f32.partialorder %v5393, 8.507059e+37
    %v5395 = vand.u32 %v5363, 2147483648
    %v5396 = vor.u32 1.1754944e-38, %v5395
    %v5397 = vsel %vm5394, %v5396, %v5392
    %v5398 = vmul.f32 %v5349, %v5397
    %v5399 = vmul.f32 %v5351, %v5397
    %v5400 = vrcp.pop %v5367
    %v5401 = vmul.f32 %v5367, %v5400
    %v5402 = vsub.f32 1.0, %v5401
    %v5403 = vmul.f32 %v5400, %v5402
    %v5404 = vadd.f32 %v5400, %v5403
    %vm5405 = vweird.f32 %v5367
    %vm5406 = vweird.f32 %v5400
    %vm5407 = vmor %vm5405, %vm5406
    %v5408 = vsel %vm5407, %v5400, %v5404
    %v5409 = vand.u32 2147483647, %v5367
    %vm5410 = vcmp.eq.f32.partialorder %v5409, 8.507059e+37
    %v5411 = vand.u32 %v5367, 2147483648
    %v5412 = vor.u32 1.1754944e-38, %v5411
    %v5413 = vsel %vm5410, %v5412, %v5408
    %v5414 = vmul.f32 %v5353, %v5413
    %v5415 = vmul.f32 %v5355, %v5413
    %5416 = vrot.lane.b32.xlu0 %v3965, 80
    %v5417 = vpop.permute.xlu0 %5416
    %5418 = vrot.lane.b32.xlu0 %v3968, 80
    %v5419 = vpop.permute.xlu0 %5418
    %5420 = vrot.lane.b32.xlu0 %v3971, 80
    %v5421 = vpop.permute.xlu0 %5420
    %5422 = vrot.lane.b32.xlu0 %v3974, 80
    %v5423 = vpop.permute.xlu0 %5422
    %5424 = vrot.lane.b32.xlu0 %v3977, 80
    %v5425 = vpop.permute.xlu0 %5424
    %5426 = vrot.lane.b32.xlu0 %v3980, 80
    %v5427 = vpop.permute.xlu0 %5426
    %5428 = vrot.lane.b32.xlu0 %v3983, 80
    %v5429 = vpop.permute.xlu0 %5428
    %5430 = vrot.lane.b32.xlu0 %v3986, 80
    %v5431 = vpop.permute.xlu0 %5430
    %5432 = vrot.lane.b32.xlu0 %v3989, 80
    %v5433 = vpop.permute.xlu0 %5432
    %5434 = vrot.lane.b32.xlu0 %v3992, 80
    %v5435 = vpop.permute.xlu0 %5434
    %5436 = vrot.lane.b32.xlu0 %v3995, 80
    %v5437 = vpop.permute.xlu0 %5436
    %5438 = vrot.lane.b32.xlu0 %v3998, 80
    %v5439 = vpop.permute.xlu0 %5438
    %5440 = vrot.lane.b32.xlu0 %v4001, 80
    %v5441 = vpop.permute.xlu0 %5440
    %5442 = vrot.lane.b32.xlu0 %v4004, 80
    %v5443 = vpop.permute.xlu0 %5442
    %5444 = vrot.lane.b32.xlu0 %v4007, 80
    %v5445 = vpop.permute.xlu0 %5444
    %5446 = vrot.lane.b32.xlu0 %v4010, 80
    %v5447 = vpop.permute.xlu0 %5446
    %5448 = vrot.lane.b32.xlu0 %v4013, 80
    %v5449 = vpop.permute.xlu0 %5448
    %5450 = vrot.lane.b32.xlu0 %v4016, 80
    %v5451 = vpop.permute.xlu0 %5450
    %5452 = vrot.lane.b32.xlu0 %v4019, 80
    %v5453 = vpop.permute.xlu0 %5452
    %5454 = vrot.lane.b32.xlu0 %v4022, 80
    %v5455 = vpop.permute.xlu0 %5454
    %v5477 = vsel %vm972, %v5383, 0
    %v5480 = vsel %vm972, %v5399, 0
    %v5483 = vsel %vm972, %v5415, 0
    %5485 = vmatpush.msra.mxu0 %v5447
    %5486 = vmatpush.msra.mxu0 %v5445
    %5487 = vmatpush.msra.mxu0 %v5443
    %5488 = vmatpush.msra.mxu0 %v5441
    %5489 = vmatpush.msra.mxu0 %v5439
    %5490 = vmatpush.msra.mxu0 %v5437
    %5491 = vmatpush.msra.mxu0 %v5435
    %5492 = vmatpush.msra.mxu0 %v5433
    %5493 = vmatpush.msra.mxu0 %v5431
    %5494 = vmatpush.msra.mxu0 %v5429
    %5495 = vmatpush.msra.mxu0 %v5427
    %5496 = vmatpush.msra.mxu0 %v5425
    %5497 = vmatpush.msra.mxu0 %v5423
    %5498 = vmatpush.msra.mxu0 %v5421
    %5499 = vmatpush.msra.mxu0 %v5419
    %5500 = vmatpush.msra.mxu0 %v5417
    %5501 = vmatmul.f32.gmra.mxu0 %v5382
    %v5502 = vpop.f32.mrf.mxu0
    %v5503 = vadd.f32 0.0, %v5502
    %5504 = vmatmul.f32.gmra.mxu0 %v5398
    %v5505 = vpop.f32.mrf.mxu0
    %v5506 = vadd.f32 0.0, %v5505
    %5507 = vmatmul.f32.gmra.mxu0 %v5414
    %v5508 = vpop.f32.mrf.mxu0
    %v5509 = vadd.f32 0.0, %v5508
    %5510 = vdwg.mxu0
    %5511 = vmatpush.msra.mxu0 0.0
    %5512 = vmatpush.msra.mxu0 0.0
    %5513 = vmatpush.msra.mxu0 0.0
    %5514 = vmatpush.msra.mxu0 0.0
    %5515 = vmatpush.msra.mxu0 0.0
    %5516 = vmatpush.msra.mxu0 0.0
    %5517 = vmatpush.msra.mxu0 0.0
    %5518 = vmatpush.msra.mxu0 0.0
    %5519 = vmatpush.msra.mxu0 0.0
    %5520 = vmatpush.msra.mxu0 0.0
    %5521 = vmatpush.msra.mxu0 0.0
    %5522 = vmatpush.msra.mxu0 0.0
    %5523 = vmatpush.msra.mxu0 %v5455
    %5524 = vmatpush.msra.mxu0 %v5453
    %5525 = vmatpush.msra.mxu0 %v5451
    %5526 = vmatpush.msra.mxu0 %v5449
    %5527 = vmatmul.f32.gmra.mxu0 %v5477
    %v5528 = vpop.f32.mrf.mxu0
    %v5529 = vadd.f32 %v5503, %v5528
    %5530 = vmatmul.f32.gmra.mxu0 %v5480
    %v5531 = vpop.f32.mrf.mxu0
    %v5532 = vadd.f32 %v5506, %v5531
    %5533 = vmatmul.f32.gmra.mxu0 %v5483
    %v5534 = vpop.f32.mrf.mxu0
    %v5535 = vadd.f32 %v5509, %v5534
    %5536 = vdwg.mxu0
    %v5538 = vsel %vm838, %v5529, 0
    %v5541 = vsel %vm838, %v5532, 0
    %v5544 = vsel %vm838, %v5535, 0
    %5546 = vmatpush.msra.mxu0 0.0
    %5547 = vmatpush.msra.mxu0 0.0
    %5548 = vmatpush.msra.mxu0 0.0
    %5549 = vmatpush.msra.mxu0 0.0
    %5550 = vmatpush.msra.mxu0 0.0
    %5551 = vmatpush.msra.mxu0 0.0
    %5552 = vmatpush.msra.mxu0 0.0
    %5553 = vmatpush.msra.mxu0 0.0
    %5554 = vmatpush.msra.mxu0 0.0
    %5555 = vmatpush.msra.mxu0 0.0
    %5556 = vmatpush.msra.mxu0 0.0
    %5557 = vmatpush.msra.mxu0 0.0
    %5558 = vmatpush.msra.mxu0 0.0
    %5559 = vmatpush.msra.mxu0 0.0
    %5560 = vmatpush.msra.mxu0 %v3825
    %5561 = vmatpush.msra.mxu0 %v3824
    %5562 = vmatmul.f32.gmra.mxu0 %v5538
    %v5563 = vpop.f32.mrf.mxu0
    %v5564 = vadd.f32 0.0, %v5563
    %5565 = vmatmul.f32.gmra.mxu0 %v5541
    %v5566 = vpop.f32.mrf.mxu0
    %v5567 = vadd.f32 0.0, %v5566
    %5568 = vmatmul.f32.gmra.mxu0 %v5544
    %v5569 = vpop.f32.mrf.mxu0
    %v5570 = vadd.f32 0.0, %v5569
    %5571 = vdwg.mxu0
    %v5572 = vadd.f32 %v5167, %v5564
    %v5573 = vadd.f32 %v5168, %v5567
    %v5574 = vadd.f32 %v5169, %v5570
    %5575 = vst.msk [vmem:[#allocation2] sm:$0xff] %vm400, %v5572
    %5576 = vst.msk [vmem:[#allocation2 + $0x8] sm:$0xff] %vm400, %v5573
    %5577 = vst.msk [vmem:[#allocation2 + $0x10] sm:$0xff] %vm400, %v5574
    %v5578 = vld [vmem:[#allocation2] sm:$0xff]
    %v5579 = vld [vmem:[#allocation2 + $0x8] sm:$0xff]
    %v5580 = vld [vmem:[#allocation2 + $0x10] sm:$0xff]
    %v5581 = vadd.f32 %v3784, %v5578
    %v5582 = vadd.f32 %v3785, %v5579
    %v5583 = vadd.f32 %v3786, %v5580
    %v5584 = vld [vmem:[%s4 + $0x16] sm:$0x1]
    %v5585 = vperm.slane %v5584, 0
    %v5586 = vadd.f32 %v5581, %v5585
    %v5587 = vadd.f32 %v5582, %v5585
    %v5588 = vadd.f32 %v5583, %v5585
    %v5589 = vld [vmem:[%s4 + $0x17] sm:$0x1]
    %v5590 = vld [vmem:[%s4 + $0x18] sm:$0x1]
    %v5591 = vsel %vm400, %v5586, 0.0
    %5592 = vadd.xlane.f32.xlu0 %v5591
    %v5593 = vpop.xlane.xlu0 %5592
    %v5594 = vsel %vm400, %v5587, 0.0
    %5595 = vadd.xlane.f32.xlu0 %v5594
    %v5596 = vpop.xlane.xlu0 %5595
    %v5597 = vsel %vm400, %v5588, 0.0
    %5598 = vadd.xlane.f32.xlu0 %v5597
    %v5599 = vpop.xlane.xlu0 %5598
    %v5600 = vmul.f32 %v5593, %v2422
    %v5601 = vmul.f32 %v5596, %v2422
    %v5602 = vmul.f32 %v5599, %v2422
    %v5603 = vsub.f32 %v5586, %v5600
    %v5604 = vsub.f32 %v5587, %v5601
    %v5605 = vsub.f32 %v5588, %v5602
    %v5606 = vmul.f32 %v5603, %v5603
    %v5607 = vmul.f32 %v5604, %v5604
    %v5608 = vmul.f32 %v5605, %v5605
    %v5609 = vsel %vm400, %v5606, 0.0
    %5610 = vadd.xlane.f32.xlu0 %v5609
    %v5611 = vpop.xlane.xlu0 %5610
    %v5612 = vsel %vm400, %v5607, 0.0
    %5613 = vadd.xlane.f32.xlu0 %v5612
    %v5614 = vpop.xlane.xlu0 %5613
    %v5615 = vsel %vm400, %v5608, 0.0
    %5616 = vadd.xlane.f32.xlu0 %v5615
    %v5617 = vpop.xlane.xlu0 %5616
    %v5618 = vmul.f32 %v5611, %v2422
    %v5619 = vmul.f32 %v5614, %v2422
    %v5620 = vmul.f32 %v5617, %v2422
    %v5621 = vadd.f32 %v5618, 1e-05
    %v5622 = vadd.f32 %v5619, 1e-05
    %v5623 = vadd.f32 %v5620, 1e-05
    %v5624 = vrsqrt.pop %v5621
    %v5625 = vmul.f32 %v5624, %v5621
    %v5626 = vmul.f32 %v5625, %v5624
    %v5627 = vmul.f32 0.5, %v5626
    %v5628 = vsub.f32 1.5, %v5627
    %v5629 = vmul.f32 %v5624, %v5628
    %vm5630 = vweird.f32 %v5621
    %vm5631 = vweird.f32 %v5624
    %vm5632 = vmor %vm5630, %vm5631
    %v5633 = vsel %vm5632, %v5624, %v5629
    %v5634 = vrsqrt.pop %v5622
    %v5635 = vmul.f32 %v5634, %v5622
    %v5636 = vmul.f32 %v5635, %v5634
    %v5637 = vmul.f32 0.5, %v5636
    %v5638 = vsub.f32 1.5, %v5637
    %v5639 = vmul.f32 %v5634, %v5638
    %vm5640 = vweird.f32 %v5622
    %vm5641 = vweird.f32 %v5634
    %vm5642 = vmor %vm5640, %vm5641
    %v5643 = vsel %vm5642, %v5634, %v5639
    %v5644 = vrsqrt.pop %v5623
    %v5645 = vmul.f32 %v5644, %v5623
    %v5646 = vmul.f32 %v5645, %v5644
    %v5647 = vmul.f32 0.5, %v5646
    %v5648 = vsub.f32 1.5, %v5647
    %v5649 = vmul.f32 %v5644, %v5648
    %vm5650 = vweird.f32 %v5623
    %vm5651 = vweird.f32 %v5644
    %vm5652 = vmor %vm5650, %vm5651
    %v5653 = vsel %vm5652, %v5644, %v5649
    %v5654 = vmul.f32 %v5603, %v5633
    %v5655 = vmul.f32 %v5604, %v5643
    %v5656 = vmul.f32 %v5605, %v5653
    %v5657 = vperm.slane %v5589, 0
    %v5658 = vmul.f32 %v5654, %v5657
    %v5659 = vmul.f32 %v5655, %v5657
    %v5660 = vmul.f32 %v5656, %v5657
    %v5661 = vperm.slane %v5590, 0
    %v5662 = vadd.f32 %v5658, %v5661
    %v5663 = vadd.f32 %v5659, %v5661
    %v5664 = vadd.f32 %v5660, %v5661
    %s5665 = scalar_lea.vmem [#allocation6], 128
    %v5666 = vld [vmem:[%s5665] sm:$0xff]
    %v5667 = vld [vmem:[%s5665 + $0x8] sm:$0xff]
    %v5668 = vld [vmem:[%s5665 + $0x10] sm:$0xff]
    %v5669 = vld [vmem:[%s5665 + $0x18] sm:$0xff]
    %v5670 = vld [vmem:[%s5665 + $0x20] sm:$0xff]
    %v5671 = vld [vmem:[%s5665 + $0x28] sm:$0xff]
    %v5672 = vld [vmem:[%s5665 + $0x30] sm:$0xff]
    %v5673 = vld [vmem:[%s5665 + $0x38] sm:$0xff]
    %v5674 = vld [vmem:[%s5665 + $0x40] sm:$0xff]
    %v5675 = vld [vmem:[%s5665 + $0x48] sm:$0xff]
    %v5676 = vld [vmem:[%s5665 + $0x50] sm:$0xff]
    %v5677 = vld [vmem:[%s5665 + $0x58] sm:$0xff]
    %v5678 = vld [vmem:[%s5665 + $0x60] sm:$0xff]
    %v5679 = vld [vmem:[%s5665 + $0x68] sm:$0xff]
    %v5680 = vld [vmem:[%s5665 + $0x70] sm:$0xff]
    %v5681 = vld [vmem:[%s5665 + $0x78] sm:$0xff]
    %s5682 = scalar_lea.vmem %s7, 1
    %v5683 = vld [vmem:[%s5682] ss:$2 sm:$0x3]
    %v5685 = vperm.slane %v5683, 0
    %v5686 = vperm.slane %v5683, 1
    %v5690 = vsel %vm400, %v5662, 0
    %v5693 = vsel %vm400, %v5663, 0
    %v5696 = vsel %vm400, %v5664, 0
    %5698 = vmatpush.msra.mxu0 0.0
    %5699 = vmatpush.msra.mxu0 0.0
    %5700 = vmatpush.msra.mxu0 0.0
    %5701 = vmatpush.msra.mxu0 0.0
    %5702 = vmatpush.msra.mxu0 0.0
    %5703 = vmatpush.msra.mxu0 0.0
    %5704 = vmatpush.msra.mxu0 0.0
    %5705 = vmatpush.msra.mxu0 0.0
    %5706 = vmatpush.msra.mxu0 %v5680
    %5707 = vmatpush.msra.mxu0 %v5678
    %5708 = vmatpush.msra.mxu0 %v5676
    %5709 = vmatpush.msra.mxu0 %v5674
    %5710 = vmatpush.msra.mxu0 %v5672
    %5711 = vmatpush.msra.mxu0 %v5670
    %5712 = vmatpush.msra.mxu0 %v5668
    %5713 = vmatpush.msra.mxu0 %v5666
    %5714 = vmatmul.f32.gmra.mxu0 %v5690
    %v5715 = vpop.f32.mrf.mxu0
    %v5716 = vadd.f32 %v5685, %v5715
    %5717 = vmatmul.f32.gmra.mxu0 %v5693
    %v5718 = vpop.f32.mrf.mxu0
    %v5719 = vadd.f32 %v5685, %v5718
    %5720 = vmatmul.f32.gmra.mxu0 %v5696
    %v5721 = vpop.f32.mrf.mxu0
    %v5722 = vadd.f32 %v5685, %v5721
    %5723 = vdwg.mxu0
    %5724 = vmatpush.msra.mxu0 0.0
    %5725 = vmatpush.msra.mxu0 0.0
    %5726 = vmatpush.msra.mxu0 0.0
    %5727 = vmatpush.msra.mxu0 0.0
    %5728 = vmatpush.msra.mxu0 0.0
    %5729 = vmatpush.msra.mxu0 0.0
    %5730 = vmatpush.msra.mxu0 0.0
    %5731 = vmatpush.msra.mxu0 0.0
    %5732 = vmatpush.msra.mxu0 %v5681
    %5733 = vmatpush.msra.mxu0 %v5679
    %5734 = vmatpush.msra.mxu0 %v5677
    %5735 = vmatpush.msra.mxu0 %v5675
    %5736 = vmatpush.msra.mxu0 %v5673
    %5737 = vmatpush.msra.mxu0 %v5671
    %5738 = vmatpush.msra.mxu0 %v5669
    %5739 = vmatpush.msra.mxu0 %v5667
    %5740 = vmatmul.f32.gmra.mxu0 %v5690
    %v5741 = vpop.f32.mrf.mxu0
    %v5742 = vadd.f32 %v5686, %v5741
    %5743 = vmatmul.f32.gmra.mxu0 %v5693
    %v5744 = vpop.f32.mrf.mxu0
    %v5745 = vadd.f32 %v5686, %v5744
    %5746 = vmatmul.f32.gmra.mxu0 %v5696
    %v5747 = vpop.f32.mrf.mxu0
    %v5748 = vadd.f32 %v5686, %v5747
    %5749 = vdwg.mxu0
    %v5750 = vmax.f32 %v5716, 0.0
    %v5751 = vmax.f32 %v5742, 0.0
    %v5752 = vmax.f32 %v5719, 0.0
    %v5753 = vmax.f32 %v5745, 0.0
    %v5754 = vmax.f32 %v5722, 0.0
    %v5755 = vmax.f32 %v5748, 0.0
    %s5756 = scalar_lea.vmem %s8, 256
    %v5757 = vld [vmem:[%s5756] sm:$0xff]
    %v5758 = vld [vmem:[%s5756 + $0x8] sm:$0xff]
    %v5759 = vld [vmem:[%s5756 + $0x10] sm:$0xff]
    %v5760 = vld [vmem:[%s5756 + $0x18] sm:$0xff]
    %v5761 = vld [vmem:[%s5756 + $0x20] sm:$0xff]
    %v5762 = vld [vmem:[%s5756 + $0x28] sm:$0xff]
    %v5763 = vld [vmem:[%s5756 + $0x30] sm:$0xff]
    %v5764 = vld [vmem:[%s5756 + $0x38] sm:$0xff]
    %v5765 = vld [vmem:[%s5756 + $0x40] sm:$0xff]
    %v5766 = vld [vmem:[%s5756 + $0x48] sm:$0xff]
    %v5767 = vld [vmem:[%s5756 + $0x50] sm:$0xff]
    %v5768 = vld [vmem:[%s5756 + $0x58] sm:$0xff]
    %v5769 = vld [vmem:[%s5756 + $0x60] sm:$0xff]
    %v5770 = vld [vmem:[%s5756 + $0x68] sm:$0xff]
    %v5771 = vld [vmem:[%s5756 + $0x70] sm:$0xff]
    %v5772 = vld [vmem:[%s5756 + $0x78] sm:$0xff]
    %v5773 = vld [vmem:[%s5756 + $0x80] sm:$0xff]
    %v5774 = vld [vmem:[%s5756 + $0x88] sm:$0xff]
    %v5775 = vld [vmem:[%s5756 + $0x90] sm:$0xff]
    %v5776 = vld [vmem:[%s5756 + $0x98] sm:$0xff]
    %v5777 = vld [vmem:[%s5756 + $0xa0] sm:$0xff]
    %v5778 = vld [vmem:[%s5756 + $0xa8] sm:$0xff]
    %v5779 = vld [vmem:[%s5756 + $0xb0] sm:$0xff]
    %v5780 = vld [vmem:[%s5756 + $0xb8] sm:$0xff]
    %v5781 = vld [vmem:[%s5756 + $0xc0] sm:$0xff]
    %v5782 = vld [vmem:[%s5756 + $0xc8] sm:$0xff]
    %v5783 = vld [vmem:[%s5756 + $0xd0] sm:$0xff]
    %v5784 = vld [vmem:[%s5756 + $0xd8] sm:$0xff]
    %v5785 = vld [vmem:[%s5756 + $0xe0] sm:$0xff]
    %v5786 = vld [vmem:[%s5756 + $0xe8] sm:$0xff]
    %v5787 = vld [vmem:[%s5756 + $0xf0] sm:$0xff]
    %v5788 = vld [vmem:[%s5756 + $0xf8] sm:$0xff]
    %v5789 = vld [vmem:[%s4 + $0x1b] sm:$0x1]
    %v5790 = vperm.slane %v5789, 0
    %5791 = vmatpush.msra.mxu0 %v5772
    %5792 = vmatpush.msra.mxu0 %v5771
    %5793 = vmatpush.msra.mxu0 %v5770
    %5794 = vmatpush.msra.mxu0 %v5769
    %5795 = vmatpush.msra.mxu0 %v5768
    %5796 = vmatpush.msra.mxu0 %v5767
    %5797 = vmatpush.msra.mxu0 %v5766
    %5798 = vmatpush.msra.mxu0 %v5765
    %5799 = vmatpush.msra.mxu0 %v5764
    %5800 = vmatpush.msra.mxu0 %v5763
    %5801 = vmatpush.msra.mxu0 %v5762
    %5802 = vmatpush.msra.mxu0 %v5761
    %5803 = vmatpush.msra.mxu0 %v5760
    %5804 = vmatpush.msra.mxu0 %v5759
    %5805 = vmatpush.msra.mxu0 %v5758
    %5806 = vmatpush.msra.mxu0 %v5757
    %5807 = vmatmul.f32.gmra.mxu0 %v5750
    %v5808 = vpop.f32.mrf.mxu0
    %v5809 = vadd.f32 %v5790, %v5808
    %5810 = vmatmul.f32.gmra.mxu0 %v5752
    %v5811 = vpop.f32.mrf.mxu0
    %v5812 = vadd.f32 %v5790, %v5811
    %5813 = vmatmul.f32.gmra.mxu0 %v5754
    %v5814 = vpop.f32.mrf.mxu0
    %v5815 = vadd.f32 %v5790, %v5814
    %5816 = vdwg.mxu0
    %5817 = vmatpush.msra.mxu0 %v5788
    %5818 = vmatpush.msra.mxu0 %v5787
    %5819 = vmatpush.msra.mxu0 %v5786
    %5820 = vmatpush.msra.mxu0 %v5785
    %5821 = vmatpush.msra.mxu0 %v5784
    %5822 = vmatpush.msra.mxu0 %v5783
    %5823 = vmatpush.msra.mxu0 %v5782
    %5824 = vmatpush.msra.mxu0 %v5781
    %5825 = vmatpush.msra.mxu0 %v5780
    %5826 = vmatpush.msra.mxu0 %v5779
    %5827 = vmatpush.msra.mxu0 %v5778
    %5828 = vmatpush.msra.mxu0 %v5777
    %5829 = vmatpush.msra.mxu0 %v5776
    %5830 = vmatpush.msra.mxu0 %v5775
    %5831 = vmatpush.msra.mxu0 %v5774
    %5832 = vmatpush.msra.mxu0 %v5773
    %5833 = vmatmul.f32.gmra.mxu0 %v5751
    %v5834 = vpop.f32.mrf.mxu0
    %v5835 = vadd.f32 %v5809, %v5834
    %5836 = vmatmul.f32.gmra.mxu0 %v5753
    %v5837 = vpop.f32.mrf.mxu0
    %v5838 = vadd.f32 %v5812, %v5837
    %5839 = vmatmul.f32.gmra.mxu0 %v5755
    %v5840 = vpop.f32.mrf.mxu0
    %v5841 = vadd.f32 %v5815, %v5840
    %5842 = vdwg.mxu0
    %v5843 = vadd.f32 %v5662, %v5835
    %v5844 = vadd.f32 %v5663, %v5838
    %v5845 = vadd.f32 %v5664, %v5841
    %v5846 = vld [vmem:[%s4 + $0x19] sm:$0x1]
    %v5847 = vld [vmem:[%s4 + $0x1a] sm:$0x1]
    %v5848 = vsel %vm400, %v5843, 0.0
    %5849 = vadd.xlane.f32.xlu0 %v5848
    %v5850 = vpop.xlane.xlu0 %5849
    %v5851 = vsel %vm400, %v5844, 0.0
    %5852 = vadd.xlane.f32.xlu0 %v5851
    %v5853 = vpop.xlane.xlu0 %5852
    %v5854 = vsel %vm400, %v5845, 0.0
    %5855 = vadd.xlane.f32.xlu0 %v5854
    %v5856 = vpop.xlane.xlu0 %5855
    %v5857 = vmul.f32 %v5850, %v2422
    %v5858 = vmul.f32 %v5853, %v2422
    %v5859 = vmul.f32 %v5856, %v2422
    %v5860 = vsub.f32 %v5843, %v5857
    %v5861 = vsub.f32 %v5844, %v5858
    %v5862 = vsub.f32 %v5845, %v5859
    %v5863 = vmul.f32 %v5860, %v5860
    %v5864 = vmul.f32 %v5861, %v5861
    %v5865 = vmul.f32 %v5862, %v5862
    %v5866 = vsel %vm400, %v5863, 0.0
    %5867 = vadd.xlane.f32.xlu0 %v5866
    %v5868 = vpop.xlane.xlu0 %5867
    %v5869 = vsel %vm400, %v5864, 0.0
    %5870 = vadd.xlane.f32.xlu0 %v5869
    %v5871 = vpop.xlane.xlu0 %5870
    %v5872 = vsel %vm400, %v5865, 0.0
    %5873 = vadd.xlane.f32.xlu0 %v5872
    %v5874 = vpop.xlane.xlu0 %5873
    %v5875 = vmul.f32 %v5868, %v2422
    %v5876 = vmul.f32 %v5871, %v2422
    %v5877 = vmul.f32 %v5874, %v2422
    %v5878 = vadd.f32 %v5875, 1e-05
    %v5879 = vadd.f32 %v5876, 1e-05
    %v5880 = vadd.f32 %v5877, 1e-05
    %v5881 = vrsqrt.pop %v5878
    %v5882 = vmul.f32 %v5881, %v5878
    %v5883 = vmul.f32 %v5882, %v5881
    %v5884 = vmul.f32 0.5, %v5883
    %v5885 = vsub.f32 1.5, %v5884
    %v5886 = vmul.f32 %v5881, %v5885
    %vm5887 = vweird.f32 %v5878
    %vm5888 = vweird.f32 %v5881
    %vm5889 = vmor %vm5887, %vm5888
    %v5890 = vsel %vm5889, %v5881, %v5886
    %v5891 = vrsqrt.pop %v5879
    %v5892 = vmul.f32 %v5891, %v5879
    %v5893 = vmul.f32 %v5892, %v5891
    %v5894 = vmul.f32 0.5, %v5893
    %v5895 = vsub.f32 1.5, %v5894
    %v5896 = vmul.f32 %v5891, %v5895
    %vm5897 = vweird.f32 %v5879
    %vm5898 = vweird.f32 %v5891
    %vm5899 = vmor %vm5897, %vm5898
    %v5900 = vsel %vm5899, %v5891, %v5896
    %v5901 = vrsqrt.pop %v5880
    %v5902 = vmul.f32 %v5901, %v5880
    %v5903 = vmul.f32 %v5902, %v5901
    %v5904 = vmul.f32 0.5, %v5903
    %v5905 = vsub.f32 1.5, %v5904
    %v5906 = vmul.f32 %v5901, %v5905
    %vm5907 = vweird.f32 %v5880
    %vm5908 = vweird.f32 %v5901
    %vm5909 = vmor %vm5907, %vm5908
    %v5910 = vsel %vm5909, %v5901, %v5906
    %v5911 = vmul.f32 %v5860, %v5890
    %v5912 = vmul.f32 %v5861, %v5900
    %v5913 = vmul.f32 %v5862, %v5910
    %v5914 = vperm.slane %v5846, 0
    %v5915 = vmul.f32 %v5911, %v5914
    %v5916 = vmul.f32 %v5912, %v5914
    %v5917 = vmul.f32 %v5913, %v5914
    %v5918 = vperm.slane %v5847, 0
    %v5919 = vadd.f32 %v5915, %v5918
    %v5920 = vadd.f32 %v5916, %v5918
    %v5921 = vadd.f32 %v5917, %v5918
    %v5922 = vld [vmem:[#allocation8] sm:$0x3]
    %v5923 = vld [vmem:[%s10] sm:$0x3]
    %5925 = vset.pattern.permute.xlu0 0
    %5926 = vperm.xlu0 %5925, %v5923
    %v5927 = vpop.permute.xlu0 %5926
    %v5930 = vsel %vm400, %v5922, 0
    %v5933 = vsel %vm400, %v5919, 0
    %v5936 = vsel %vm400, %v5920, 0
    %v5939 = vsel %vm400, %v5921, 0
    %5941 = vmatpush.xpose.msra.mxu0 0.0
    %5942 = vmatpush.xpose.msra.mxu0 0.0
    %5943 = vmatpush.xpose.msra.mxu0 0.0
    %5944 = vmatpush.xpose.msra.mxu0 0.0
    %5945 = vmatpush.xpose.msra.mxu0 0.0
    %5946 = vmatpush.xpose.msra.mxu0 0.0
    %5947 = vmatpush.xpose.msra.mxu0 0.0
    %5948 = vmatpush.xpose.msra.mxu0 0.0
    %5949 = vmatpush.xpose.msra.mxu0 0.0
    %5950 = vmatpush.xpose.msra.mxu0 0.0
    %5951 = vmatpush.xpose.msra.mxu0 0.0
    %5952 = vmatpush.xpose.msra.mxu0 0.0
    %5953 = vmatpush.xpose.msra.mxu0 0.0
    %5954 = vmatpush.xpose.msra.mxu0 %v5939
    %5955 = vmatpush.xpose.msra.mxu0 %v5936
    %5956 = vmatpush.xpose.msra.mxu0 %v5933
    %5957 = vmatmul.f32.gmra.mxu0 %v5930
    %v5958 = vpop.f32.mrf.mxu0
    %v5959 = vadd.f32 %v5927, %v5958
    %5960 = vdwg.mxu0
    %vm5961 = vcmask 189440
    %5962 = vst.msk [vmem:[#allocation9] sm:$0x3] %vm5961, %v5959
    // Predicated region
    $region58: #{tpu_custom_call.1} parent=1 // pred_check
      _
    $region59: #{tpu_custom_call.1} parent=1 // pred_check_branch
      %5964 = sbr.rel (0) target = $region61
    $region60: #{tpu_custom_call.1} parent=1 // pred_region
      %5966 = vsyncadd [#allocation5], 0
      %s5968 = sshll.u32 [#allocation9], 4
      %s5969 = int_to_ptr.vmem [resolvable:$true] %s5968
      %s5970 = sshll.u32 %s11, 4
      %s5971 = int_to_ptr.hbm [resolvable:$true] %s5970
      %5973 = dma.vmem_to_hbm [thread:$0]  %s5969, 32, %s5971, [#allocation5]
    $region61: #{tpu_custom_call.1} parent=1 // pred_fallthru
      _
    // Predicated region
    $region62: #{tpu_custom_call.1} parent=1 // pred_check
      _
    $region63: #{tpu_custom_call.1} parent=1 // pred_check_branch
      %5975 = sbr.rel (0) target = $region65
    $region64: #{tpu_custom_call.1} parent=1 // pred_region
      %5977 = dma.done [#allocation5], 32
    $region65: #{tpu_custom_call.1} parent=1 // pred_fallthru
      _
    %5978 = vsyncpa [#allocation4], 1
    %5979 = vsyncpa [#allocation7], 1
    %5980 = vsyncpa [#allocation5], 1

</llo_original>
